<compile_context>
chip_gen: v7x
topology: tpu7x:2x2x1
jax: 0.10.0
libtpu: 0.0.40
codegen_flags: <defaults>
</compile_context>

<pallas_src>
import functools
import numpy as np

import jax
import jax.numpy as jnp
from jax.experimental import pallas as pl
from jax.experimental.pallas import tpu as pltpu

EPS = 1e-5            # PyTorch LayerNorm default eps
N_HEADS = 4           # SDNet concatenates 4 (identical) branches
CONV_K = (4, 2)       # SDNet conv_kernel
CAUSAL_K = 6          # SDNet casual_kernel[0]


# ------------------------ constant matrix builders -------------------------

def _sel_conv(L_in, L_out, k, stride, pad):
    """S[j] @ x selects tap j of a (stride, pad) Conv1d (zero padding folded in)."""
    S = np.zeros((k, L_out, L_in), np.float32)
    for j in range(k):
        for t in range(L_out):
            src = stride * t + j - pad
            if 0 <= src < L_in:
                S[j, t, src] = 1.0
    return jnp.asarray(S)


def _scat_convT(L_in, L_out, k, stride, pad):
    """T[j] @ y scatters tap j of a ConvTranspose1d (output crop folded in)."""
    T = np.zeros((k, L_out, L_in), np.float32)
    for j in range(k):
        for t in range(L_in):
            dst = stride * t + j - pad
            if 0 <= dst < L_out:
                T[j, dst, t] = 1.0
    return jnp.asarray(T)


def _circ_shift(L, k, pad):
    """C[j] @ x == x[(t + j - pad) mod L]  (circular-padded token conv)."""
    C = np.zeros((k, L, L), np.float32)
    for j in range(k):
        for t in range(L):
            C[j, t, (t + j - pad) % L] = 1.0
    return jnp.asarray(C)


def _positional_embedding(L, d_model):
    pos = np.arange(L, dtype=np.float32)[:, None]
    i = np.arange(0, d_model, 2, dtype=np.float32)
    div = np.exp(-i * (np.log(10000.0) / d_model))
    pe = np.zeros((L, d_model), np.float32)
    pe[:, 0::2] = np.sin(pos * div)
    pe[:, 1::2] = np.cos(pos * div)
    return jnp.asarray(pe)


# ------------------------------ parameters ----------------------------------

def init_params(key, seq_len, pred_len, enc_in, d_model, c_out):
    L3, P3 = seq_len // 3, pred_len // 3
    keys = jax.random.split(key, 20)

    def w(k, shape, scale=0.1):
        return scale * jax.random.normal(k, shape, jnp.float32)

    return {
        # DataEmbedding (TokenEmbedding circular conv, no bias) -- see TODO below
        'token_W': w(keys[0], (d_model, enc_in, 3)),
        # linear1 / linear2 : seq/3 -> pred/3 along the time axis
        'lin1_W': w(keys[1], (P3, L3)), 'lin1_b': w(keys[2], (P3,)),
        'lin2_W': w(keys[3], (P3, L3)), 'lin2_b': w(keys[4], (P3,)),
        # SDNet (weights shared by the 4 branches, exactly as in the reference)
        'conv0_W': w(keys[5], (d_model, d_model, 4)),  'conv0_b': w(keys[6], (d_model,)),
        'conv1_W': w(keys[7], (d_model, d_model, 2)),  'conv1_b': w(keys[8], (d_model,)),
        'causal_W': w(keys[9], (d_model, d_model, 6)), 'causal_b': w(keys[10], (d_model,)),
        'convT0_W': w(keys[11], (d_model, d_model, 4)), 'convT0_b': w(keys[12], (d_model,)),
        'convT1_W': w(keys[13], (d_model, d_model, 2)), 'convT1_b': w(keys[14], (d_model,)),
        'norm1_g': jnp.ones((4 * d_model,), jnp.float32),
        'norm1_b': jnp.zeros((4 * d_model,), jnp.float32),
        'norm2_g': jnp.ones((4 * d_model,), jnp.float32),
        'norm2_b': jnp.zeros((4 * d_model,), jnp.float32),
        # projections
        'proj1_W': w(keys[15], (enc_in, 4 * d_model)), 'proj1_b': w(keys[16], (enc_in,)),
        'proj2_W': w(keys[17], (P3, seq_len)),         'proj2_b': w(keys[18], (P3,)),
        'proj3_W': w(keys[19], (c_out, enc_in)),       'proj3_b': jnp.zeros((c_out,), jnp.float32),
    }


def prepare_constants(p, seq_len, pred_len, enc_in, d_model, c_out):
    """One-time weight re-layout + constant selection/scatter matrices."""
    L3, P3 = seq_len // 3, pred_len // 3
    k0, k1 = CONV_K
    L0 = (seq_len + 2 * (k0 // 2) - k0) // k0 + 1          # conv0 out len
    L1 = (L0 + 2 * (k1 // 2) - k1) // k1 + 1               # conv1 out len
    assert 2 * L1 - 1 >= CAUSAL_K
    L2 = (2 * L1 - 1) - CAUSAL_K + 1                       # causal-conv out len
    LT0 = k0 * L2 - 2 * (k0 // 2)                          # convT0 out len
    LT1 = k1 * LT0 - 2 * (k1 // 2)                         # convT1 out len
    assert LT1 >= seq_len, "SDNet chain must reproduce at least seq_len samples"

    def conv_taps(W):    # Conv1d weight (Co, Ci, k) -> per-tap (k, Ci, Co)
        return jnp.transpose(W, (2, 1, 0))

    def convT_taps(W):   # ConvTranspose1d weight (Ci, Co, k) -> per-tap (k, Ci, Co)
        return jnp.transpose(W, (2, 0, 1))

    consts = (
        # --- DataEmbedding ---
        conv_taps(p['token_W']),                       # TW   (3, enc_in, d)
        _circ_shift(L3, 3, 1),                         # CSH  (3, L3, L3)
        _positional_embedding(L3, d_model),            # POS  (L3, d)
        # --- SDNet conv0 (k=4, s=4, pad=2) ---
        _sel_conv(seq_len, L0, k0, k0, k0 // 2),       # S0
        conv_taps(p['conv0_W']), p['conv0_b'].reshape(1, d_model),
        # --- SDNet conv1 (k=2, s=2, pad=1) ---
        _sel_conv(L0, L1, k1, k1, k1 // 2),            # S1
        conv_taps(p['conv1_W']), p['conv1_b'].reshape(1, d_model),
        # --- causal conv (input = [zeros(L1-1) ; y1], k=6, valid) ---
        _sel_conv(L1, L2, CAUSAL_K, 1, L1 - 1),        # A
        conv_taps(p['causal_W']), p['causal_b'].reshape(1, d_model),
        # --- convT0 / convT1 (padding crop + [:seq_len] crop folded in) ---
        _scat_convT(L2, LT0, k0, k0, k0 // 2),         # T0
        convT_taps(p['convT0_W']), p['convT0_b'].reshape(1, d_model),
        _scat_convT(LT0, seq_len, k1, k1, k1 // 2),    # T1
        convT_taps(p['convT1_W']), p['convT1_b'].reshape(1, d_model),
        # --- double LayerNorm ---
        p['norm1_g'].reshape(1, -1), p['norm1_b'].reshape(1, -1),
        p['norm2_g'].reshape(1, -1), p['norm2_b'].reshape(1, -1),
        # --- projections / side linears (pre-transposed, biases pre-tiled) ---
        p['proj1_W'].T, p['proj1_b'].reshape(1, enc_in),
        p['proj2_W'], jnp.tile(p['proj2_b'][:, None], (1, enc_in)),
        p['lin1_W'], jnp.tile(p['lin1_b'][:, None], (1, enc_in)),
        p['lin2_W'], jnp.tile(p['lin2_b'][:, None], (1, enc_in)),
        p['proj3_W'].T, p['proj3_b'].reshape(1, c_out),
    )
    return consts


# ------------------------------- fused kernel -------------------------------

def _mssd_fused_kernel(
        x_ref,
        tw_ref, csh_ref, pos_ref,
        s0_ref, w0_ref, b0_ref,
        s1_ref, w1_ref, b1_ref,
        a_ref, wc_ref, bc_ref,
        t0_ref, wt0_ref, bt0_ref,
        t1_ref, wt1_ref, bt1_ref,
        g1_ref, be1_ref, g2_ref, be2_ref,
        p1w_ref, p1b_ref, p2w_ref, p2b_ref,
        l1w_ref, l1b_ref, l2w_ref, l2b_ref,
        p3w_ref, p3b_ref,
        o_ref):
    f32 = jnp.float32

    def mm(a, b):
        return jnp.dot(a, b, preferred_element_type=f32)

    x = x_ref[0]                                   # (seq, enc_in), channels-last
    seq_len = x.shape[0]
    L3, d_model = pos_ref.shape
    n_heads = g1_ref.shape[1] // d_model

    x_a = x[0:L3, :]
    x_p = x[L3:2 * L3, :]
    x_d = x[2 * L3:3 * L3, :]

    # --- DataEmbedding: circular token conv (k=3, no bias) + positional ---
    # TODO(synk): DataEmbedding source was not part of the module; this follows
    # the standard Informer DataEmbedding (TokenEmbedding + PositionalEmbedding,
    # dropout = identity in eval mode).
    emb = pos_ref[...]
    for j in range(tw_ref.shape[0]):
        emb = emb + mm(mm(csh_ref[j], x_p), tw_ref[j])              # (L3, d)

    # --- SDNet input: embedded middle third followed by zeros ---
    x_sd = jnp.concatenate(
        [emb, jnp.zeros((seq_len - L3, d_model), f32)], axis=0)     # (seq, d)

    # --- one SDNet branch (all 4 branches share weights -> identical in eval) ---
    y = b0_ref[...]
    for j in range(s0_ref.shape[0]):               # conv0 (k=4, s=4, pad=2)
        y = y + mm(mm(s0_ref[j], x_sd), w0_ref[j])
    y0 = y                                         # (L0, d)

    y = b1_ref[...]
    for j in range(s1_ref.shape[0]):               # conv1 (k=2, s=2, pad=1)
        y = y + mm(mm(s1_ref[j], y0), w1_ref[j])
    y1 = y                                         # (L1, d)

    y = bc_ref[...]
    for j in range(a_ref.shape[0]):                # causal conv (k=6) on [0..0, y1]
        y = y + mm(mm(a_ref[j], y1), wc_ref[j])
    y2 = jnp.tanh(y)                               # (L2, d)  dropout = identity

    y = bt0_ref[...]
    for j in range(t0_ref.shape[0]):               # convT0 (k=4, s=4, pad=2)
        y = y + mm(t0_ref[j], mm(y2, wt0_ref[j]))
    y3 = y                                         # (LT0, d)

    y = bt1_ref[...]
    for j in range(t1_ref.shape[0]):               # convT1 (k=2, s=2, pad=1) + crop
        y = y + mm(t1_ref[j], mm(y3, wt1_ref[j]))
    xi = y + x_sd                                  # (seq, d)  residual

    # --- concat of 4 identical branches + double LayerNorm (lane-dense 4d) ---
    mg = jnp.concatenate([xi] * n_heads, axis=-1)  # (seq, 4d)
    mu = jnp.mean(mg, axis=-1, keepdims=True)
    var = jnp.mean(jnp.square(mg - mu), axis=-1, keepdims=True)
    ln1 = (mg - mu) * jax.lax.rsqrt(var + EPS) * g1_ref[...] + be1_ref[...]
    z = mg + ln1
    mu2 = jnp.mean(z, axis=-1, keepdims=True)
    var2 = jnp.mean(jnp.square(z - mu2), axis=-1, keepdims=True)
    ln2 = (z - mu2) * jax.lax.rsqrt(var2 + EPS) * g2_ref[...] + be2_ref[...]

    # --- proj1 -> proj2 (time mixing) plus the two side linears ---
    e1 = mm(ln2, p1w_ref[...]) + p1b_ref[...]      # (seq, enc_in)
    mid = mm(p2w_ref[...], e1) + p2b_ref[...]      # (P3, enc_in)
    a_out = mm(l1w_ref[...], x_a) + l1b_ref[...]   # (P3, enc_in)
    d_out = mm(l2w_ref[...], x_d) + l2b_ref[...]   # (P3, enc_in)

    out = jnp.concatenate([a_out, mid, d_out], axis=0)         # (pred, enc_in)
    o_ref[0] = (mm(out, p3w_ref[...]) + p3b_ref[...]).astype(o_ref.dtype)


def _const_spec(a):
    # whole (small) array resident in VMEM, same block for every grid step
    if a.ndim == 2:
        return pl.BlockSpec(a.shape, lambda b: (0, 0))
    return pl.BlockSpec(a.shape, lambda b: (0, 0, 0))


def make_mssd_forward(params, seq_len, pred_len, enc_in, d_model, c_out):
    assert seq_len % 3 == 0 and pred_len % 3 == 0
    consts = prepare_constants(params, seq_len, pred_len, enc_in, d_model, c_out)

    def forward(x):
        B = x.shape[0]
        return pl.pallas_call(
            _mssd_fused_kernel,
            out_shape=jax.ShapeDtypeStruct((B, pred_len, c_out), jnp.float32),
            grid=(B,),
            in_specs=[pl.BlockSpec((1, seq_len, enc_in), lambda b: (b, 0, 0))]
                     + [_const_spec(c) for c in consts],
            out_specs=pl.BlockSpec((1, pred_len, c_out), lambda b: (b, 0, 0)),
            compiler_params=pltpu.CompilerParams(
                dimension_semantics=("parallel",),
                vmem_limit_bytes=32 * 1024 * 1024),
        )(x.astype(jnp.float32), *consts)

    return forward


# ------------------- plain-JAX reference (numerics check) -------------------

def _ref_conv1d(x_lc, W, b, stride, pad):
    L = x_lc.shape[0]
    Co, _, k = W.shape
    Lout = (L + 2 * pad - k) // stride + 1
    xp = jnp.pad(x_lc, ((pad, pad), (0, 0)))
    out = jnp.zeros((Lout, Co), jnp.float32) + b[None, :]
    for j in range(k):
        taps = xp[j:j + stride * (Lout - 1) + 1:stride, :]
        out = out + taps @ W[:, :, j].T
    return out


def _ref_convT1d(x_lc, W, b, stride, pad):
    Lin = x_lc.shape[0]
    _, Co, k = W.shape
    Lfull = (Lin - 1) * stride + k
    full = jnp.zeros((Lfull, Co), jnp.float32)
    for j in range(k):
        full = full.at[j:j + stride * (Lin - 1) + 1:stride, :].add(x_lc @ W[:, :, j])
    return full[pad:Lfull - pad, :] + b[None, :]


def _ref_layernorm(x, g, b):
    mu = jnp.mean(x, axis=-1, keepdims=True)
    var = jnp.mean(jnp.square(x - mu), axis=-1, keepdims=True)
    return (x - mu) * jax.lax.rsqrt(var + EPS) * g + b


def reference_forward(x, p, seq_len, pred_len, enc_in, d_model, c_out):
    L3 = seq_len // 3
    outs = []
    for bidx in range(x.shape[0]):
        xb = x[bidx]
        x_a, x_p, x_d = xb[:L3], xb[L3:2 * L3], xb[2 * L3:3 * L3]
        xpad = jnp.concatenate([x_p[-1:], x_p, x_p[:1]], axis=0)
        emb = _ref_conv1d(xpad, p['token_W'], jnp.zeros((d_model,), jnp.float32), 1, 0)
        emb = emb + _positional_embedding(L3, d_model)
        x_sd = jnp.concatenate(
            [emb, jnp.zeros((seq_len - L3, d_model), jnp.float32)], axis=0)
        branches = []
        for _ in range(N_HEADS):   # faithful to the reference: 4 shared-weight branches
            yi = _ref_conv1d(x_sd, p['conv0_W'], p['conv0_b'], 4, 2)
            yi = _ref_conv1d(yi, p['conv1_W'], p['conv1_b'], 2, 1)
            zi = jnp.concatenate(
                [jnp.zeros((yi.shape[0] - 1, d_model), jnp.float32), yi], axis=0)
            yi = jnp.tanh(_ref_conv1d(zi, p['causal_W'], p['causal_b'], 1, 0))
            yi = _ref_convT1d(yi, p['convT0_W'], p['convT0_b'], 4, 2)
            yi = _ref_convT1d(yi, p['convT1_W'], p['convT1_b'], 2, 1)
            branches.append(yi[:seq_len] + x_sd)
        mg = jnp.concatenate(branches, axis=-1)
        ln1 = _ref_layernorm(mg, p['norm1_g'], p['norm1_b'])
        ln2 = _ref_layernorm(mg + ln1, p['norm2_g'], p['norm2_b'])
        e1 = ln2 @ p['proj1_W'].T + p['proj1_b']
        mid = p['proj2_W'] @ e1 + p['proj2_b'][:, None]
        a_out = p['lin1_W'] @ x_a + p['lin1_b'][:, None]
        d_out = p['lin2_W'] @ x_d + p['lin2_b'][:, None]
        cat = jnp.concatenate([a_out, mid, d_out], axis=0)
        outs.append(cat @ p['proj3_W'].T + p['proj3_b'])
    return jnp.stack(outs, axis=0)


# ----------------------------------- main ------------------------------------

if __name__ == "__main__":
    # seq_len divisible by 3 (thirds split) and large enough that the SDNet
    # conv / conv-transpose chain reproduces >= seq_len samples; pred_len
    # divisible by 3 so the three output chunks tile pred_len exactly.
    seq_len, pred_len, enc_in, d_model, c_out, B = 48, 24, 4, 32, 4, 2

    key = jax.random.PRNGKey(0)
    kx, kp = jax.random.split(key)
    x = jax.random.normal(kx, (B, seq_len, enc_in), jnp.float32)
    params = init_params(kp, seq_len, pred_len, enc_in, d_model, c_out)

    fwd = jax.jit(make_mssd_forward(params, seq_len, pred_len, enc_in, d_model, c_out))
    out = jax.block_until_ready(fwd(x))
    assert out.shape == (B, pred_len, c_out), out.shape
    assert bool(jnp.all(jnp.isfinite(out)))

    # Cross-check against a plain-JAX implementation of the same forward.
    # Loose tolerance only to absorb possible MXU f32 multi-pass differences.
    ref = reference_forward(x, params, seq_len, pred_len, enc_in, d_model, c_out)
    rel = float(jnp.max(jnp.abs(out - ref)) / (jnp.max(jnp.abs(ref)) + 1e-6))
    assert rel < 5e-2, f"kernel/reference mismatch: rel err {rel}"

    print("KERNEL_OK")
</pallas_src>

<mosaic_0001>
module attributes {stable_mosaic.version = 11 : i64} {
  func.func @_mssd_fused_kernel(%arg0: i32, %arg1: memref<1x48x4xf32, #tpu.memory_space<vmem>>, %arg2: memref<3x4x32xf32, #tpu.memory_space<vmem>>, %arg3: memref<3x16x16xf32, #tpu.memory_space<vmem>>, %arg4: memref<16x32xf32, #tpu.memory_space<vmem>>, %arg5: memref<4x13x48xf32, #tpu.memory_space<vmem>>, %arg6: memref<4x32x32xf32, #tpu.memory_space<vmem>>, %arg7: memref<1x32xf32, #tpu.memory_space<vmem>>, %arg8: memref<2x7x13xf32, #tpu.memory_space<vmem>>, %arg9: memref<2x32x32xf32, #tpu.memory_space<vmem>>, %arg10: memref<1x32xf32, #tpu.memory_space<vmem>>, %arg11: memref<6x8x7xf32, #tpu.memory_space<vmem>>, %arg12: memref<6x32x32xf32, #tpu.memory_space<vmem>>, %arg13: memref<1x32xf32, #tpu.memory_space<vmem>>, %arg14: memref<4x28x8xf32, #tpu.memory_space<vmem>>, %arg15: memref<4x32x32xf32, #tpu.memory_space<vmem>>, %arg16: memref<1x32xf32, #tpu.memory_space<vmem>>, %arg17: memref<2x48x28xf32, #tpu.memory_space<vmem>>, %arg18: memref<2x32x32xf32, #tpu.memory_space<vmem>>, %arg19: memref<1x32xf32, #tpu.memory_space<vmem>>, %arg20: memref<1x128xf32, #tpu.memory_space<vmem>>, %arg21: memref<1x128xf32, #tpu.memory_space<vmem>>, %arg22: memref<1x128xf32, #tpu.memory_space<vmem>>, %arg23: memref<1x128xf32, #tpu.memory_space<vmem>>, %arg24: memref<128x4xf32, #tpu.memory_space<vmem>>, %arg25: memref<1x4xf32, #tpu.memory_space<vmem>>, %arg26: memref<8x48xf32, #tpu.memory_space<vmem>>, %arg27: memref<8x4xf32, #tpu.memory_space<vmem>>, %arg28: memref<8x16xf32, #tpu.memory_space<vmem>>, %arg29: memref<8x4xf32, #tpu.memory_space<vmem>>, %arg30: memref<8x16xf32, #tpu.memory_space<vmem>>, %arg31: memref<8x4xf32, #tpu.memory_space<vmem>>, %arg32: memref<4x4xf32, #tpu.memory_space<vmem>>, %arg33: memref<1x4xf32, #tpu.memory_space<vmem>>, %arg34: memref<1x24x4xf32, #tpu.memory_space<vmem>>) attributes {dimension_semantics = [#tpu.dimension_semantics<parallel>], iteration_bounds = array<i64: 2>, scalar_prefetch = 0 : i64, scratch_operands = 0 : i64, tpu.core_type = #tpu.core_type<tc>, window_params = [{transform_indices = @transform_0, window_bounds = array<i64: 1, 48, 4>}, {pipeline_mode = #tpu.pipeline_mode<synchronous>, transform_indices = @transform_1, window_bounds = array<i64: 3, 4, 32>}, {pipeline_mode = #tpu.pipeline_mode<synchronous>, transform_indices = @transform_2, window_bounds = array<i64: 3, 16, 16>}, {pipeline_mode = #tpu.pipeline_mode<synchronous>, transform_indices = @transform_3, window_bounds = array<i64: 16, 32>}, {pipeline_mode = #tpu.pipeline_mode<synchronous>, transform_indices = @transform_4, window_bounds = array<i64: 4, 13, 48>}, {pipeline_mode = #tpu.pipeline_mode<synchronous>, transform_indices = @transform_5, window_bounds = array<i64: 4, 32, 32>}, {pipeline_mode = #tpu.pipeline_mode<synchronous>, transform_indices = @transform_6, window_bounds = array<i64: 1, 32>}, {pipeline_mode = #tpu.pipeline_mode<synchronous>, transform_indices = @transform_7, window_bounds = array<i64: 2, 7, 13>}, {pipeline_mode = #tpu.pipeline_mode<synchronous>, transform_indices = @transform_8, window_bounds = array<i64: 2, 32, 32>}, {pipeline_mode = #tpu.pipeline_mode<synchronous>, transform_indices = @transform_9, window_bounds = array<i64: 1, 32>}, {pipeline_mode = #tpu.pipeline_mode<synchronous>, transform_indices = @transform_10, window_bounds = array<i64: 6, 8, 7>}, {pipeline_mode = #tpu.pipeline_mode<synchronous>, transform_indices = @transform_11, window_bounds = array<i64: 6, 32, 32>}, {pipeline_mode = #tpu.pipeline_mode<synchronous>, transform_indices = @transform_12, window_bounds = array<i64: 1, 32>}, {pipeline_mode = #tpu.pipeline_mode<synchronous>, transform_indices = @transform_13, window_bounds = array<i64: 4, 28, 8>}, {pipeline_mode = #tpu.pipeline_mode<synchronous>, transform_indices = @transform_14, window_bounds = array<i64: 4, 32, 32>}, {pipeline_mode = #tpu.pipeline_mode<synchronous>, transform_indices = @transform_15, window_bounds = array<i64: 1, 32>}, {pipeline_mode = #tpu.pipeline_mode<synchronous>, transform_indices = @transform_16, window_bounds = array<i64: 2, 48, 28>}, {pipeline_mode = #tpu.pipeline_mode<synchronous>, transform_indices = @transform_17, window_bounds = array<i64: 2, 32, 32>}, {pipeline_mode = #tpu.pipeline_mode<synchronous>, transform_indices = @transform_18, window_bounds = array<i64: 1, 32>}, {pipeline_mode = #tpu.pipeline_mode<synchronous>, transform_indices = @transform_19, window_bounds = array<i64: 1, 128>}, {pipeline_mode = #tpu.pipeline_mode<synchronous>, transform_indices = @transform_20, window_bounds = array<i64: 1, 128>}, {pipeline_mode = #tpu.pipeline_mode<synchronous>, transform_indices = @transform_21, window_bounds = array<i64: 1, 128>}, {pipeline_mode = #tpu.pipeline_mode<synchronous>, transform_indices = @transform_22, window_bounds = array<i64: 1, 128>}, {pipeline_mode = #tpu.pipeline_mode<synchronous>, transform_indices = @transform_23, window_bounds = array<i64: 128, 4>}, {pipeline_mode = #tpu.pipeline_mode<synchronous>, transform_indices = @transform_24, window_bounds = array<i64: 1, 4>}, {pipeline_mode = #tpu.pipeline_mode<synchronous>, transform_indices = @transform_25, window_bounds = array<i64: 8, 48>}, {pipeline_mode = #tpu.pipeline_mode<synchronous>, transform_indices = @transform_26, window_bounds = array<i64: 8, 4>}, {pipeline_mode = #tpu.pipeline_mode<synchronous>, transform_indices = @transform_27, window_bounds = array<i64: 8, 16>}, {pipeline_mode = #tpu.pipeline_mode<synchronous>, transform_indices = @transform_28, window_bounds = array<i64: 8, 4>}, {pipeline_mode = #tpu.pipeline_mode<synchronous>, transform_indices = @transform_29, window_bounds = array<i64: 8, 16>}, {pipeline_mode = #tpu.pipeline_mode<synchronous>, transform_indices = @transform_30, window_bounds = array<i64: 8, 4>}, {pipeline_mode = #tpu.pipeline_mode<synchronous>, transform_indices = @transform_31, window_bounds = array<i64: 4, 4>}, {pipeline_mode = #tpu.pipeline_mode<synchronous>, transform_indices = @transform_32, window_bounds = array<i64: 1, 4>}, {transform_indices = @transform_33, window_bounds = array<i64: 1, 24, 4>}]} {
    %c0 = arith.constant 0 : index
    %c0_0 = arith.constant 0 : index
    %c0_1 = arith.constant 0 : index
    %0 = vector.load %arg1[%c0, %c0_0, %c0_1] : memref<1x48x4xf32, #tpu.memory_space<vmem>>, vector<1x48x4xf32>
    %1 = vector.shape_cast %0 : vector<1x48x4xf32> to vector<48x4xf32>
    %2 = vector.extract_strided_slice %1 {offsets = [0, 0], sizes = [16, 4], strides = [1, 1]} : vector<48x4xf32> to vector<16x4xf32>
    %3 = vector.extract_strided_slice %1 {offsets = [16, 0], sizes = [16, 4], strides = [1, 1]} : vector<48x4xf32> to vector<16x4xf32>
    %4 = vector.extract_strided_slice %1 {offsets = [32, 0], sizes = [16, 4], strides = [1, 1]} : vector<48x4xf32> to vector<16x4xf32>
    %c0_2 = arith.constant 0 : index
    %c0_3 = arith.constant 0 : index
    %5 = vector.load %arg4[%c0_2, %c0_3] : memref<16x32xf32, #tpu.memory_space<vmem>>, vector<16x32xf32>
    %c0_4 = arith.constant 0 : index
    %c0_5 = arith.constant 0 : index
    %c0_6 = arith.constant 0 : index
    %6 = vector.load %arg3[%c0_4, %c0_5, %c0_6] : memref<3x16x16xf32, #tpu.memory_space<vmem>>, vector<1x16x16xf32>
    %7 = vector.shape_cast %6 : vector<1x16x16xf32> to vector<16x16xf32>
    %cst = arith.constant dense<0.000000e+00> : vector<16x4xf32>
    %8 = tpu.matmul %7, %3, %cst {dimension_numbers = #tpu.dot_dimension_numbers<[1], [0], [0], [1], [0, 0, 1, 1], [], []>} : vector<16x16xf32>, vector<16x4xf32>, vector<16x4xf32> -> vector<16x4xf32>
    %c0_7 = arith.constant 0 : index
    %c0_8 = arith.constant 0 : index
    %c0_9 = arith.constant 0 : index
    %9 = vector.load %arg2[%c0_7, %c0_8, %c0_9] : memref<3x4x32xf32, #tpu.memory_space<vmem>>, vector<1x4x32xf32>
    %10 = vector.shape_cast %9 : vector<1x4x32xf32> to vector<4x32xf32>
    %cst_10 = arith.constant dense<0.000000e+00> : vector<16x32xf32>
    %11 = tpu.matmul %8, %10, %cst_10 {dimension_numbers = #tpu.dot_dimension_numbers<[1], [0], [0], [1], [0, 0, 1, 1], [], []>} : vector<16x4xf32>, vector<4x32xf32>, vector<16x32xf32> -> vector<16x32xf32>
    %12 = arith.addf %5, %11 : vector<16x32xf32>
    %c1 = arith.constant 1 : index
    %c0_11 = arith.constant 0 : index
    %c0_12 = arith.constant 0 : index
    %13 = vector.load %arg3[%c1, %c0_11, %c0_12] : memref<3x16x16xf32, #tpu.memory_space<vmem>>, vector<1x16x16xf32>
    %14 = vector.shape_cast %13 : vector<1x16x16xf32> to vector<16x16xf32>
    %cst_13 = arith.constant dense<0.000000e+00> : vector<16x4xf32>
    %15 = tpu.matmul %14, %3, %cst_13 {dimension_numbers = #tpu.dot_dimension_numbers<[1], [0], [0], [1], [0, 0, 1, 1], [], []>} : vector<16x16xf32>, vector<16x4xf32>, vector<16x4xf32> -> vector<16x4xf32>
    %c1_14 = arith.constant 1 : index
    %c0_15 = arith.constant 0 : index
    %c0_16 = arith.constant 0 : index
    %16 = vector.load %arg2[%c1_14, %c0_15, %c0_16] : memref<3x4x32xf32, #tpu.memory_space<vmem>>, vector<1x4x32xf32>
    %17 = vector.shape_cast %16 : vector<1x4x32xf32> to vector<4x32xf32>
    %cst_17 = arith.constant dense<0.000000e+00> : vector<16x32xf32>
    %18 = tpu.matmul %15, %17, %cst_17 {dimension_numbers = #tpu.dot_dimension_numbers<[1], [0], [0], [1], [0, 0, 1, 1], [], []>} : vector<16x4xf32>, vector<4x32xf32>, vector<16x32xf32> -> vector<16x32xf32>
    %19 = arith.addf %12, %18 : vector<16x32xf32>
    %c2 = arith.constant 2 : index
    %c0_18 = arith.constant 0 : index
    %c0_19 = arith.constant 0 : index
    %20 = vector.load %arg3[%c2, %c0_18, %c0_19] : memref<3x16x16xf32, #tpu.memory_space<vmem>>, vector<1x16x16xf32>
    %21 = vector.shape_cast %20 : vector<1x16x16xf32> to vector<16x16xf32>
    %cst_20 = arith.constant dense<0.000000e+00> : vector<16x4xf32>
    %22 = tpu.matmul %21, %3, %cst_20 {dimension_numbers = #tpu.dot_dimension_numbers<[1], [0], [0], [1], [0, 0, 1, 1], [], []>} : vector<16x16xf32>, vector<16x4xf32>, vector<16x4xf32> -> vector<16x4xf32>
    %c2_21 = arith.constant 2 : index
    %c0_22 = arith.constant 0 : index
    %c0_23 = arith.constant 0 : index
    %23 = vector.load %arg2[%c2_21, %c0_22, %c0_23] : memref<3x4x32xf32, #tpu.memory_space<vmem>>, vector<1x4x32xf32>
    %24 = vector.shape_cast %23 : vector<1x4x32xf32> to vector<4x32xf32>
    %cst_24 = arith.constant dense<0.000000e+00> : vector<16x32xf32>
    %25 = tpu.matmul %22, %24, %cst_24 {dimension_numbers = #tpu.dot_dimension_numbers<[1], [0], [0], [1], [0, 0, 1, 1], [], []>} : vector<16x4xf32>, vector<4x32xf32>, vector<16x32xf32> -> vector<16x32xf32>
    %26 = arith.addf %19, %25 : vector<16x32xf32>
    %cst_25 = arith.constant 0.000000e+00 : f32
    %27 = vector.broadcast %cst_25 : f32 to vector<32x32xf32>
    %28 = tpu.concatenate %26, %27 in 0 : vector<16x32xf32>, vector<32x32xf32> -> vector<48x32xf32>
    %c0_26 = arith.constant 0 : index
    %c0_27 = arith.constant 0 : index
    %29 = vector.load %arg7[%c0_26, %c0_27] : memref<1x32xf32, #tpu.memory_space<vmem>>, vector<1x32xf32>
    %c0_28 = arith.constant 0 : index
    %c0_29 = arith.constant 0 : index
    %c0_30 = arith.constant 0 : index
    %30 = vector.load %arg5[%c0_28, %c0_29, %c0_30] : memref<4x13x48xf32, #tpu.memory_space<vmem>>, vector<1x13x48xf32>
    %31 = vector.shape_cast %30 : vector<1x13x48xf32> to vector<13x48xf32>
    %cst_31 = arith.constant dense<0.000000e+00> : vector<13x32xf32>
    %32 = tpu.matmul %31, %28, %cst_31 {dimension_numbers = #tpu.dot_dimension_numbers<[1], [0], [0], [1], [0, 0, 1, 1], [], []>} : vector<13x48xf32>, vector<48x32xf32>, vector<13x32xf32> -> vector<13x32xf32>
    %c0_32 = arith.constant 0 : index
    %c0_33 = arith.constant 0 : index
    %c0_34 = arith.constant 0 : index
    %33 = vector.load %arg6[%c0_32, %c0_33, %c0_34] : memref<4x32x32xf32, #tpu.memory_space<vmem>>, vector<1x32x32xf32>
    %34 = vector.shape_cast %33 : vector<1x32x32xf32> to vector<32x32xf32>
    %cst_35 = arith.constant dense<0.000000e+00> : vector<13x32xf32>
    %35 = tpu.matmul %32, %34, %cst_35 {dimension_numbers = #tpu.dot_dimension_numbers<[1], [0], [0], [1], [0, 0, 1, 1], [], []>} : vector<13x32xf32>, vector<32x32xf32>, vector<13x32xf32> -> vector<13x32xf32>
    %36 = vector.broadcast %29 : vector<1x32xf32> to vector<13x32xf32>
    %37 = arith.addf %36, %35 : vector<13x32xf32>
    %c1_36 = arith.constant 1 : index
    %c0_37 = arith.constant 0 : index
    %c0_38 = arith.constant 0 : index
    %38 = vector.load %arg5[%c1_36, %c0_37, %c0_38] : memref<4x13x48xf32, #tpu.memory_space<vmem>>, vector<1x13x48xf32>
    %39 = vector.shape_cast %38 : vector<1x13x48xf32> to vector<13x48xf32>
    %cst_39 = arith.constant dense<0.000000e+00> : vector<13x32xf32>
    %40 = tpu.matmul %39, %28, %cst_39 {dimension_numbers = #tpu.dot_dimension_numbers<[1], [0], [0], [1], [0, 0, 1, 1], [], []>} : vector<13x48xf32>, vector<48x32xf32>, vector<13x32xf32> -> vector<13x32xf32>
    %c1_40 = arith.constant 1 : index
    %c0_41 = arith.constant 0 : index
    %c0_42 = arith.constant 0 : index
    %41 = vector.load %arg6[%c1_40, %c0_41, %c0_42] : memref<4x32x32xf32, #tpu.memory_space<vmem>>, vector<1x32x32xf32>
    %42 = vector.shape_cast %41 : vector<1x32x32xf32> to vector<32x32xf32>
    %cst_43 = arith.constant dense<0.000000e+00> : vector<13x32xf32>
    %43 = tpu.matmul %40, %42, %cst_43 {dimension_numbers = #tpu.dot_dimension_numbers<[1], [0], [0], [1], [0, 0, 1, 1], [], []>} : vector<13x32xf32>, vector<32x32xf32>, vector<13x32xf32> -> vector<13x32xf32>
    %44 = arith.addf %37, %43 : vector<13x32xf32>
    %c2_44 = arith.constant 2 : index
    %c0_45 = arith.constant 0 : index
    %c0_46 = arith.constant 0 : index
    %45 = vector.load %arg5[%c2_44, %c0_45, %c0_46] : memref<4x13x48xf32, #tpu.memory_space<vmem>>, vector<1x13x48xf32>
    %46 = vector.shape_cast %45 : vector<1x13x48xf32> to vector<13x48xf32>
    %cst_47 = arith.constant dense<0.000000e+00> : vector<13x32xf32>
    %47 = tpu.matmul %46, %28, %cst_47 {dimension_numbers = #tpu.dot_dimension_numbers<[1], [0], [0], [1], [0, 0, 1, 1], [], []>} : vector<13x48xf32>, vector<48x32xf32>, vector<13x32xf32> -> vector<13x32xf32>
    %c2_48 = arith.constant 2 : index
    %c0_49 = arith.constant 0 : index
    %c0_50 = arith.constant 0 : index
    %48 = vector.load %arg6[%c2_48, %c0_49, %c0_50] : memref<4x32x32xf32, #tpu.memory_space<vmem>>, vector<1x32x32xf32>
    %49 = vector.shape_cast %48 : vector<1x32x32xf32> to vector<32x32xf32>
    %cst_51 = arith.constant dense<0.000000e+00> : vector<13x32xf32>
    %50 = tpu.matmul %47, %49, %cst_51 {dimension_numbers = #tpu.dot_dimension_numbers<[1], [0], [0], [1], [0, 0, 1, 1], [], []>} : vector<13x32xf32>, vector<32x32xf32>, vector<13x32xf32> -> vector<13x32xf32>
    %51 = arith.addf %44, %50 : vector<13x32xf32>
    %c3 = arith.constant 3 : index
    %c0_52 = arith.constant 0 : index
    %c0_53 = arith.constant 0 : index
    %52 = vector.load %arg5[%c3, %c0_52, %c0_53] : memref<4x13x48xf32, #tpu.memory_space<vmem>>, vector<1x13x48xf32>
    %53 = vector.shape_cast %52 : vector<1x13x48xf32> to vector<13x48xf32>
    %cst_54 = arith.constant dense<0.000000e+00> : vector<13x32xf32>
    %54 = tpu.matmul %53, %28, %cst_54 {dimension_numbers = #tpu.dot_dimension_numbers<[1], [0], [0], [1], [0, 0, 1, 1], [], []>} : vector<13x48xf32>, vector<48x32xf32>, vector<13x32xf32> -> vector<13x32xf32>
    %c3_55 = arith.constant 3 : index
    %c0_56 = arith.constant 0 : index
    %c0_57 = arith.constant 0 : index
    %55 = vector.load %arg6[%c3_55, %c0_56, %c0_57] : memref<4x32x32xf32, #tpu.memory_space<vmem>>, vector<1x32x32xf32>
    %56 = vector.shape_cast %55 : vector<1x32x32xf32> to vector<32x32xf32>
    %cst_58 = arith.constant dense<0.000000e+00> : vector<13x32xf32>
    %57 = tpu.matmul %54, %56, %cst_58 {dimension_numbers = #tpu.dot_dimension_numbers<[1], [0], [0], [1], [0, 0, 1, 1], [], []>} : vector<13x32xf32>, vector<32x32xf32>, vector<13x32xf32> -> vector<13x32xf32>
    %58 = arith.addf %51, %57 : vector<13x32xf32>
    %c0_59 = arith.constant 0 : index
    %c0_60 = arith.constant 0 : index
    %59 = vector.load %arg10[%c0_59, %c0_60] : memref<1x32xf32, #tpu.memory_space<vmem>>, vector<1x32xf32>
    %c0_61 = arith.constant 0 : index
    %c0_62 = arith.constant 0 : index
    %c0_63 = arith.constant 0 : index
    %60 = vector.load %arg8[%c0_61, %c0_62, %c0_63] : memref<2x7x13xf32, #tpu.memory_space<vmem>>, vector<1x7x13xf32>
    %61 = vector.shape_cast %60 : vector<1x7x13xf32> to vector<7x13xf32>
    %cst_64 = arith.constant dense<0.000000e+00> : vector<7x32xf32>
    %62 = tpu.matmul %61, %58, %cst_64 {dimension_numbers = #tpu.dot_dimension_numbers<[1], [0], [0], [1], [0, 0, 1, 1], [], []>} : vector<7x13xf32>, vector<13x32xf32>, vector<7x32xf32> -> vector<7x32xf32>
    %c0_65 = arith.constant 0 : index
    %c0_66 = arith.constant 0 : index
    %c0_67 = arith.constant 0 : index
    %63 = vector.load %arg9[%c0_65, %c0_66, %c0_67] : memref<2x32x32xf32, #tpu.memory_space<vmem>>, vector<1x32x32xf32>
    %64 = vector.shape_cast %63 : vector<1x32x32xf32> to vector<32x32xf32>
    %cst_68 = arith.constant dense<0.000000e+00> : vector<7x32xf32>
    %65 = tpu.matmul %62, %64, %cst_68 {dimension_numbers = #tpu.dot_dimension_numbers<[1], [0], [0], [1], [0, 0, 1, 1], [], []>} : vector<7x32xf32>, vector<32x32xf32>, vector<7x32xf32> -> vector<7x32xf32>
    %66 = vector.broadcast %59 : vector<1x32xf32> to vector<7x32xf32>
    %67 = arith.addf %66, %65 : vector<7x32xf32>
    %c1_69 = arith.constant 1 : index
    %c0_70 = arith.constant 0 : index
    %c0_71 = arith.constant 0 : index
    %68 = vector.load %arg8[%c1_69, %c0_70, %c0_71] : memref<2x7x13xf32, #tpu.memory_space<vmem>>, vector<1x7x13xf32>
    %69 = vector.shape_cast %68 : vector<1x7x13xf32> to vector<7x13xf32>
    %cst_72 = arith.constant dense<0.000000e+00> : vector<7x32xf32>
    %70 = tpu.matmul %69, %58, %cst_72 {dimension_numbers = #tpu.dot_dimension_numbers<[1], [0], [0], [1], [0, 0, 1, 1], [], []>} : vector<7x13xf32>, vector<13x32xf32>, vector<7x32xf32> -> vector<7x32xf32>
    %c1_73 = arith.constant 1 : index
    %c0_74 = arith.constant 0 : index
    %c0_75 = arith.constant 0 : index
    %71 = vector.load %arg9[%c1_73, %c0_74, %c0_75] : memref<2x32x32xf32, #tpu.memory_space<vmem>>, vector<1x32x32xf32>
    %72 = vector.shape_cast %71 : vector<1x32x32xf32> to vector<32x32xf32>
    %cst_76 = arith.constant dense<0.000000e+00> : vector<7x32xf32>
    %73 = tpu.matmul %70, %72, %cst_76 {dimension_numbers = #tpu.dot_dimension_numbers<[1], [0], [0], [1], [0, 0, 1, 1], [], []>} : vector<7x32xf32>, vector<32x32xf32>, vector<7x32xf32> -> vector<7x32xf32>
    %74 = arith.addf %67, %73 : vector<7x32xf32>
    %c0_77 = arith.constant 0 : index
    %c0_78 = arith.constant 0 : index
    %75 = vector.load %arg13[%c0_77, %c0_78] : memref<1x32xf32, #tpu.memory_space<vmem>>, vector<1x32xf32>
    %c0_79 = arith.constant 0 : index
    %c0_80 = arith.constant 0 : index
    %c0_81 = arith.constant 0 : index
    %76 = vector.load %arg11[%c0_79, %c0_80, %c0_81] : memref<6x8x7xf32, #tpu.memory_space<vmem>>, vector<1x8x7xf32>
    %77 = vector.shape_cast %76 : vector<1x8x7xf32> to vector<8x7xf32>
    %cst_82 = arith.constant dense<0.000000e+00> : vector<8x32xf32>
    %78 = tpu.matmul %77, %74, %cst_82 {dimension_numbers = #tpu.dot_dimension_numbers<[1], [0], [0], [1], [0, 0, 1, 1], [], []>} : vector<8x7xf32>, vector<7x32xf32>, vector<8x32xf32> -> vector<8x32xf32>
    %c0_83 = arith.constant 0 : index
    %c0_84 = arith.constant 0 : index
    %c0_85 = arith.constant 0 : index
    %79 = vector.load %arg12[%c0_83, %c0_84, %c0_85] : memref<6x32x32xf32, #tpu.memory_space<vmem>>, vector<1x32x32xf32>
    %80 = vector.shape_cast %79 : vector<1x32x32xf32> to vector<32x32xf32>
    %cst_86 = arith.constant dense<0.000000e+00> : vector<8x32xf32>
    %81 = tpu.matmul %78, %80, %cst_86 {dimension_numbers = #tpu.dot_dimension_numbers<[1], [0], [0], [1], [0, 0, 1, 1], [], []>} : vector<8x32xf32>, vector<32x32xf32>, vector<8x32xf32> -> vector<8x32xf32>
    %82 = vector.broadcast %75 : vector<1x32xf32> to vector<8x32xf32>
    %83 = arith.addf %82, %81 : vector<8x32xf32>
    %c1_87 = arith.constant 1 : index
    %c0_88 = arith.constant 0 : index
    %c0_89 = arith.constant 0 : index
    %84 = vector.load %arg11[%c1_87, %c0_88, %c0_89] : memref<6x8x7xf32, #tpu.memory_space<vmem>>, vector<1x8x7xf32>
    %85 = vector.shape_cast %84 : vector<1x8x7xf32> to vector<8x7xf32>
    %cst_90 = arith.constant dense<0.000000e+00> : vector<8x32xf32>
    %86 = tpu.matmul %85, %74, %cst_90 {dimension_numbers = #tpu.dot_dimension_numbers<[1], [0], [0], [1], [0, 0, 1, 1], [], []>} : vector<8x7xf32>, vector<7x32xf32>, vector<8x32xf32> -> vector<8x32xf32>
    %c1_91 = arith.constant 1 : index
    %c0_92 = arith.constant 0 : index
    %c0_93 = arith.constant 0 : index
    %87 = vector.load %arg12[%c1_91, %c0_92, %c0_93] : memref<6x32x32xf32, #tpu.memory_space<vmem>>, vector<1x32x32xf32>
    %88 = vector.shape_cast %87 : vector<1x32x32xf32> to vector<32x32xf32>
    %cst_94 = arith.constant dense<0.000000e+00> : vector<8x32xf32>
    %89 = tpu.matmul %86, %88, %cst_94 {dimension_numbers = #tpu.dot_dimension_numbers<[1], [0], [0], [1], [0, 0, 1, 1], [], []>} : vector<8x32xf32>, vector<32x32xf32>, vector<8x32xf32> -> vector<8x32xf32>
    %90 = arith.addf %83, %89 : vector<8x32xf32>
    %c2_95 = arith.constant 2 : index
    %c0_96 = arith.constant 0 : index
    %c0_97 = arith.constant 0 : index
    %91 = vector.load %arg11[%c2_95, %c0_96, %c0_97] : memref<6x8x7xf32, #tpu.memory_space<vmem>>, vector<1x8x7xf32>
    %92 = vector.shape_cast %91 : vector<1x8x7xf32> to vector<8x7xf32>
    %cst_98 = arith.constant dense<0.000000e+00> : vector<8x32xf32>
    %93 = tpu.matmul %92, %74, %cst_98 {dimension_numbers = #tpu.dot_dimension_numbers<[1], [0], [0], [1], [0, 0, 1, 1], [], []>} : vector<8x7xf32>, vector<7x32xf32>, vector<8x32xf32> -> vector<8x32xf32>
    %c2_99 = arith.constant 2 : index
    %c0_100 = arith.constant 0 : index
    %c0_101 = arith.constant 0 : index
    %94 = vector.load %arg12[%c2_99, %c0_100, %c0_101] : memref<6x32x32xf32, #tpu.memory_space<vmem>>, vector<1x32x32xf32>
    %95 = vector.shape_cast %94 : vector<1x32x32xf32> to vector<32x32xf32>
    %cst_102 = arith.constant dense<0.000000e+00> : vector<8x32xf32>
    %96 = tpu.matmul %93, %95, %cst_102 {dimension_numbers = #tpu.dot_dimension_numbers<[1], [0], [0], [1], [0, 0, 1, 1], [], []>} : vector<8x32xf32>, vector<32x32xf32>, vector<8x32xf32> -> vector<8x32xf32>
    %97 = arith.addf %90, %96 : vector<8x32xf32>
    %c3_103 = arith.constant 3 : index
    %c0_104 = arith.constant 0 : index
    %c0_105 = arith.constant 0 : index
    %98 = vector.load %arg11[%c3_103, %c0_104, %c0_105] : memref<6x8x7xf32, #tpu.memory_space<vmem>>, vector<1x8x7xf32>
    %99 = vector.shape_cast %98 : vector<1x8x7xf32> to vector<8x7xf32>
    %cst_106 = arith.constant dense<0.000000e+00> : vector<8x32xf32>
    %100 = tpu.matmul %99, %74, %cst_106 {dimension_numbers = #tpu.dot_dimension_numbers<[1], [0], [0], [1], [0, 0, 1, 1], [], []>} : vector<8x7xf32>, vector<7x32xf32>, vector<8x32xf32> -> vector<8x32xf32>
    %c3_107 = arith.constant 3 : index
    %c0_108 = arith.constant 0 : index
    %c0_109 = arith.constant 0 : index
    %101 = vector.load %arg12[%c3_107, %c0_108, %c0_109] : memref<6x32x32xf32, #tpu.memory_space<vmem>>, vector<1x32x32xf32>
    %102 = vector.shape_cast %101 : vector<1x32x32xf32> to vector<32x32xf32>
    %cst_110 = arith.constant dense<0.000000e+00> : vector<8x32xf32>
    %103 = tpu.matmul %100, %102, %cst_110 {dimension_numbers = #tpu.dot_dimension_numbers<[1], [0], [0], [1], [0, 0, 1, 1], [], []>} : vector<8x32xf32>, vector<32x32xf32>, vector<8x32xf32> -> vector<8x32xf32>
    %104 = arith.addf %97, %103 : vector<8x32xf32>
    %c4 = arith.constant 4 : index
    %c0_111 = arith.constant 0 : index
    %c0_112 = arith.constant 0 : index
    %105 = vector.load %arg11[%c4, %c0_111, %c0_112] : memref<6x8x7xf32, #tpu.memory_space<vmem>>, vector<1x8x7xf32>
    %106 = vector.shape_cast %105 : vector<1x8x7xf32> to vector<8x7xf32>
    %cst_113 = arith.constant dense<0.000000e+00> : vector<8x32xf32>
    %107 = tpu.matmul %106, %74, %cst_113 {dimension_numbers = #tpu.dot_dimension_numbers<[1], [0], [0], [1], [0, 0, 1, 1], [], []>} : vector<8x7xf32>, vector<7x32xf32>, vector<8x32xf32> -> vector<8x32xf32>
    %c4_114 = arith.constant 4 : index
    %c0_115 = arith.constant 0 : index
    %c0_116 = arith.constant 0 : index
    %108 = vector.load %arg12[%c4_114, %c0_115, %c0_116] : memref<6x32x32xf32, #tpu.memory_space<vmem>>, vector<1x32x32xf32>
    %109 = vector.shape_cast %108 : vector<1x32x32xf32> to vector<32x32xf32>
    %cst_117 = arith.constant dense<0.000000e+00> : vector<8x32xf32>
    %110 = tpu.matmul %107, %109, %cst_117 {dimension_numbers = #tpu.dot_dimension_numbers<[1], [0], [0], [1], [0, 0, 1, 1], [], []>} : vector<8x32xf32>, vector<32x32xf32>, vector<8x32xf32> -> vector<8x32xf32>
    %111 = arith.addf %104, %110 : vector<8x32xf32>
    %c5 = arith.constant 5 : index
    %c0_118 = arith.constant 0 : index
    %c0_119 = arith.constant 0 : index
    %112 = vector.load %arg11[%c5, %c0_118, %c0_119] : memref<6x8x7xf32, #tpu.memory_space<vmem>>, vector<1x8x7xf32>
    %113 = vector.shape_cast %112 : vector<1x8x7xf32> to vector<8x7xf32>
    %cst_120 = arith.constant dense<0.000000e+00> : vector<8x32xf32>
    %114 = tpu.matmul %113, %74, %cst_120 {dimension_numbers = #tpu.dot_dimension_numbers<[1], [0], [0], [1], [0, 0, 1, 1], [], []>} : vector<8x7xf32>, vector<7x32xf32>, vector<8x32xf32> -> vector<8x32xf32>
    %c5_121 = arith.constant 5 : index
    %c0_122 = arith.constant 0 : index
    %c0_123 = arith.constant 0 : index
    %115 = vector.load %arg12[%c5_121, %c0_122, %c0_123] : memref<6x32x32xf32, #tpu.memory_space<vmem>>, vector<1x32x32xf32>
    %116 = vector.shape_cast %115 : vector<1x32x32xf32> to vector<32x32xf32>
    %cst_124 = arith.constant dense<0.000000e+00> : vector<8x32xf32>
    %117 = tpu.matmul %114, %116, %cst_124 {dimension_numbers = #tpu.dot_dimension_numbers<[1], [0], [0], [1], [0, 0, 1, 1], [], []>} : vector<8x32xf32>, vector<32x32xf32>, vector<8x32xf32> -> vector<8x32xf32>
    %118 = arith.addf %111, %117 : vector<8x32xf32>
    %119 = math.tanh %118 : vector<8x32xf32>
    %c0_125 = arith.constant 0 : index
    %c0_126 = arith.constant 0 : index
    %120 = vector.load %arg16[%c0_125, %c0_126] : memref<1x32xf32, #tpu.memory_space<vmem>>, vector<1x32xf32>
    %c0_127 = arith.constant 0 : index
    %c0_128 = arith.constant 0 : index
    %c0_129 = arith.constant 0 : index
    %121 = vector.load %arg14[%c0_127, %c0_128, %c0_129] : memref<4x28x8xf32, #tpu.memory_space<vmem>>, vector<1x28x8xf32>
    %122 = vector.shape_cast %121 : vector<1x28x8xf32> to vector<28x8xf32>
    %c0_130 = arith.constant 0 : index
    %c0_131 = arith.constant 0 : index
    %c0_132 = arith.constant 0 : index
    %123 = vector.load %arg15[%c0_130, %c0_131, %c0_132] : memref<4x32x32xf32, #tpu.memory_space<vmem>>, vector<1x32x32xf32>
    %124 = vector.shape_cast %123 : vector<1x32x32xf32> to vector<32x32xf32>
    %cst_133 = arith.constant dense<0.000000e+00> : vector<8x32xf32>
    %125 = tpu.matmul %119, %124, %cst_133 {dimension_numbers = #tpu.dot_dimension_numbers<[1], [0], [0], [1], [0, 0, 1, 1], [], []>} : vector<8x32xf32>, vector<32x32xf32>, vector<8x32xf32> -> vector<8x32xf32>
    %cst_134 = arith.constant dense<0.000000e+00> : vector<28x32xf32>
    %126 = tpu.matmul %122, %125, %cst_134 {dimension_numbers = #tpu.dot_dimension_numbers<[1], [0], [0], [1], [0, 0, 1, 1], [], []>} : vector<28x8xf32>, vector<8x32xf32>, vector<28x32xf32> -> vector<28x32xf32>
    %127 = vector.broadcast %120 : vector<1x32xf32> to vector<28x32xf32>
    %128 = arith.addf %127, %126 : vector<28x32xf32>
    %c1_135 = arith.constant 1 : index
    %c0_136 = arith.constant 0 : index
    %c0_137 = arith.constant 0 : index
    %129 = vector.load %arg14[%c1_135, %c0_136, %c0_137] : memref<4x28x8xf32, #tpu.memory_space<vmem>>, vector<1x28x8xf32>
    %130 = vector.shape_cast %129 : vector<1x28x8xf32> to vector<28x8xf32>
    %c1_138 = arith.constant 1 : index
    %c0_139 = arith.constant 0 : index
    %c0_140 = arith.constant 0 : index
    %131 = vector.load %arg15[%c1_138, %c0_139, %c0_140] : memref<4x32x32xf32, #tpu.memory_space<vmem>>, vector<1x32x32xf32>
    %132 = vector.shape_cast %131 : vector<1x32x32xf32> to vector<32x32xf32>
    %cst_141 = arith.constant dense<0.000000e+00> : vector<8x32xf32>
    %133 = tpu.matmul %119, %132, %cst_141 {dimension_numbers = #tpu.dot_dimension_numbers<[1], [0], [0], [1], [0, 0, 1, 1], [], []>} : vector<8x32xf32>, vector<32x32xf32>, vector<8x32xf32> -> vector<8x32xf32>
    %cst_142 = arith.constant dense<0.000000e+00> : vector<28x32xf32>
    %134 = tpu.matmul %130, %133, %cst_142 {dimension_numbers = #tpu.dot_dimension_numbers<[1], [0], [0], [1], [0, 0, 1, 1], [], []>} : vector<28x8xf32>, vector<8x32xf32>, vector<28x32xf32> -> vector<28x32xf32>
    %135 = arith.addf %128, %134 : vector<28x32xf32>
    %c2_143 = arith.constant 2 : index
    %c0_144 = arith.constant 0 : index
    %c0_145 = arith.constant 0 : index
    %136 = vector.load %arg14[%c2_143, %c0_144, %c0_145] : memref<4x28x8xf32, #tpu.memory_space<vmem>>, vector<1x28x8xf32>
    %137 = vector.shape_cast %136 : vector<1x28x8xf32> to vector<28x8xf32>
    %c2_146 = arith.constant 2 : index
    %c0_147 = arith.constant 0 : index
    %c0_148 = arith.constant 0 : index
    %138 = vector.load %arg15[%c2_146, %c0_147, %c0_148] : memref<4x32x32xf32, #tpu.memory_space<vmem>>, vector<1x32x32xf32>
    %139 = vector.shape_cast %138 : vector<1x32x32xf32> to vector<32x32xf32>
    %cst_149 = arith.constant dense<0.000000e+00> : vector<8x32xf32>
    %140 = tpu.matmul %119, %139, %cst_149 {dimension_numbers = #tpu.dot_dimension_numbers<[1], [0], [0], [1], [0, 0, 1, 1], [], []>} : vector<8x32xf32>, vector<32x32xf32>, vector<8x32xf32> -> vector<8x32xf32>
    %cst_150 = arith.constant dense<0.000000e+00> : vector<28x32xf32>
    %141 = tpu.matmul %137, %140, %cst_150 {dimension_numbers = #tpu.dot_dimension_numbers<[1], [0], [0], [1], [0, 0, 1, 1], [], []>} : vector<28x8xf32>, vector<8x32xf32>, vector<28x32xf32> -> vector<28x32xf32>
    %142 = arith.addf %135, %141 : vector<28x32xf32>
    %c3_151 = arith.constant 3 : index
    %c0_152 = arith.constant 0 : index
    %c0_153 = arith.constant 0 : index
    %143 = vector.load %arg14[%c3_151, %c0_152, %c0_153] : memref<4x28x8xf32, #tpu.memory_space<vmem>>, vector<1x28x8xf32>
    %144 = vector.shape_cast %143 : vector<1x28x8xf32> to vector<28x8xf32>
    %c3_154 = arith.constant 3 : index
    %c0_155 = arith.constant 0 : index
    %c0_156 = arith.constant 0 : index
    %145 = vector.load %arg15[%c3_154, %c0_155, %c0_156] : memref<4x32x32xf32, #tpu.memory_space<vmem>>, vector<1x32x32xf32>
    %146 = vector.shape_cast %145 : vector<1x32x32xf32> to vector<32x32xf32>
    %cst_157 = arith.constant dense<0.000000e+00> : vector<8x32xf32>
    %147 = tpu.matmul %119, %146, %cst_157 {dimension_numbers = #tpu.dot_dimension_numbers<[1], [0], [0], [1], [0, 0, 1, 1], [], []>} : vector<8x32xf32>, vector<32x32xf32>, vector<8x32xf32> -> vector<8x32xf32>
    %cst_158 = arith.constant dense<0.000000e+00> : vector<28x32xf32>
    %148 = tpu.matmul %144, %147, %cst_158 {dimension_numbers = #tpu.dot_dimension_numbers<[1], [0], [0], [1], [0, 0, 1, 1], [], []>} : vector<28x8xf32>, vector<8x32xf32>, vector<28x32xf32> -> vector<28x32xf32>
    %149 = arith.addf %142, %148 : vector<28x32xf32>
    %c0_159 = arith.constant 0 : index
    %c0_160 = arith.constant 0 : index
    %150 = vector.load %arg19[%c0_159, %c0_160] : memref<1x32xf32, #tpu.memory_space<vmem>>, vector<1x32xf32>
    %c0_161 = arith.constant 0 : index
    %c0_162 = arith.constant 0 : index
    %c0_163 = arith.constant 0 : index
    %151 = vector.load %arg17[%c0_161, %c0_162, %c0_163] : memref<2x48x28xf32, #tpu.memory_space<vmem>>, vector<1x48x28xf32>
    %152 = vector.shape_cast %151 : vector<1x48x28xf32> to vector<48x28xf32>
    %c0_164 = arith.constant 0 : index
    %c0_165 = arith.constant 0 : index
    %c0_166 = arith.constant 0 : index
    %153 = vector.load %arg18[%c0_164, %c0_165, %c0_166] : memref<2x32x32xf32, #tpu.memory_space<vmem>>, vector<1x32x32xf32>
    %154 = vector.shape_cast %153 : vector<1x32x32xf32> to vector<32x32xf32>
    %cst_167 = arith.constant dense<0.000000e+00> : vector<28x32xf32>
    %155 = tpu.matmul %149, %154, %cst_167 {dimension_numbers = #tpu.dot_dimension_numbers<[1], [0], [0], [1], [0, 0, 1, 1], [], []>} : vector<28x32xf32>, vector<32x32xf32>, vector<28x32xf32> -> vector<28x32xf32>
    %cst_168 = arith.constant dense<0.000000e+00> : vector<48x32xf32>
    %156 = tpu.matmul %152, %155, %cst_168 {dimension_numbers = #tpu.dot_dimension_numbers<[1], [0], [0], [1], [0, 0, 1, 1], [], []>} : vector<48x28xf32>, vector<28x32xf32>, vector<48x32xf32> -> vector<48x32xf32>
    %157 = vector.broadcast %150 : vector<1x32xf32> to vector<48x32xf32>
    %158 = arith.addf %157, %156 : vector<48x32xf32>
    %c1_169 = arith.constant 1 : index
    %c0_170 = arith.constant 0 : index
    %c0_171 = arith.constant 0 : index
    %159 = vector.load %arg17[%c1_169, %c0_170, %c0_171] : memref<2x48x28xf32, #tpu.memory_space<vmem>>, vector<1x48x28xf32>
    %160 = vector.shape_cast %159 : vector<1x48x28xf32> to vector<48x28xf32>
    %c1_172 = arith.constant 1 : index
    %c0_173 = arith.constant 0 : index
    %c0_174 = arith.constant 0 : index
    %161 = vector.load %arg18[%c1_172, %c0_173, %c0_174] : memref<2x32x32xf32, #tpu.memory_space<vmem>>, vector<1x32x32xf32>
    %162 = vector.shape_cast %161 : vector<1x32x32xf32> to vector<32x32xf32>
    %cst_175 = arith.constant dense<0.000000e+00> : vector<28x32xf32>
    %163 = tpu.matmul %149, %162, %cst_175 {dimension_numbers = #tpu.dot_dimension_numbers<[1], [0], [0], [1], [0, 0, 1, 1], [], []>} : vector<28x32xf32>, vector<32x32xf32>, vector<28x32xf32> -> vector<28x32xf32>
    %cst_176 = arith.constant dense<0.000000e+00> : vector<48x32xf32>
    %164 = tpu.matmul %160, %163, %cst_176 {dimension_numbers = #tpu.dot_dimension_numbers<[1], [0], [0], [1], [0, 0, 1, 1], [], []>} : vector<48x28xf32>, vector<28x32xf32>, vector<48x32xf32> -> vector<48x32xf32>
    %165 = arith.addf %158, %164 : vector<48x32xf32>
    %166 = arith.addf %165, %28 : vector<48x32xf32>
    %167 = tpu.concatenate %166, %166, %166, %166 in 1 : vector<48x32xf32>, vector<48x32xf32>, vector<48x32xf32>, vector<48x32xf32> -> vector<48x128xf32>
    %cst_177 = arith.constant dense<0.000000e+00> : vector<48xf32>
    %168 = vector.multi_reduction <add>, %167, %cst_177 [1] : vector<48x128xf32> to vector<48xf32>
    %169 = vector.shape_cast %168 : vector<48xf32> to vector<48x1xf32>
    %cst_178 = arith.constant 1.280000e+02 : f32
    %170 = vector.broadcast %cst_178 : f32 to vector<48x1xf32>
    %171 = arith.divf %169, %170 : vector<48x1xf32>
    %172 = vector.broadcast %171 : vector<48x1xf32> to vector<48x128xf32>
    %173 = arith.subf %167, %172 : vector<48x128xf32>
    %174 = arith.mulf %173, %173 : vector<48x128xf32>
    %cst_179 = arith.constant dense<0.000000e+00> : vector<48xf32>
    %175 = vector.multi_reduction <add>, %174, %cst_179 [1] : vector<48x128xf32> to vector<48xf32>
    %176 = vector.shape_cast %175 : vector<48xf32> to vector<48x1xf32>
    %cst_180 = arith.constant 1.280000e+02 : f32
    %177 = vector.broadcast %cst_180 : f32 to vector<48x1xf32>
    %178 = arith.divf %176, %177 : vector<48x1xf32>
    %179 = vector.broadcast %171 : vector<48x1xf32> to vector<48x128xf32>
    %180 = arith.subf %167, %179 : vector<48x128xf32>
    %cst_181 = arith.constant 9.99999974E-6 : f32
    %181 = vector.broadcast %cst_181 : f32 to vector<48x1xf32>
    %182 = arith.addf %178, %181 : vector<48x1xf32>
    %183 = math.rsqrt %182 : vector<48x1xf32>
    %184 = vector.broadcast %183 : vector<48x1xf32> to vector<48x128xf32>
    %185 = arith.mulf %180, %184 : vector<48x128xf32>
    %c0_182 = arith.constant 0 : index
    %c0_183 = arith.constant 0 : index
    %186 = vector.load %arg20[%c0_182, %c0_183] : memref<1x128xf32, #tpu.memory_space<vmem>>, vector<1x128xf32>
    %187 = vector.broadcast %186 : vector<1x128xf32> to vector<48x128xf32>
    %188 = arith.mulf %185, %187 : vector<48x128xf32>
    %c0_184 = arith.constant 0 : index
    %c0_185 = arith.constant 0 : index
    %189 = vector.load %arg21[%c0_184, %c0_185] : memref<1x128xf32, #tpu.memory_space<vmem>>, vector<1x128xf32>
    %190 = vector.broadcast %189 : vector<1x128xf32> to vector<48x128xf32>
    %191 = arith.addf %188, %190 : vector<48x128xf32>
    %192 = arith.addf %167, %191 : vector<48x128xf32>
    %cst_186 = arith.constant dense<0.000000e+00> : vector<48xf32>
    %193 = vector.multi_reduction <add>, %192, %cst_186 [1] : vector<48x128xf32> to vector<48xf32>
    %194 = vector.shape_cast %193 : vector<48xf32> to vector<48x1xf32>
    %cst_187 = arith.constant 1.280000e+02 : f32
    %195 = vector.broadcast %cst_187 : f32 to vector<48x1xf32>
    %196 = arith.divf %194, %195 : vector<48x1xf32>
    %197 = vector.broadcast %196 : vector<48x1xf32> to vector<48x128xf32>
    %198 = arith.subf %192, %197 : vector<48x128xf32>
    %199 = arith.mulf %198, %198 : vector<48x128xf32>
    %cst_188 = arith.constant dense<0.000000e+00> : vector<48xf32>
    %200 = vector.multi_reduction <add>, %199, %cst_188 [1] : vector<48x128xf32> to vector<48xf32>
    %201 = vector.shape_cast %200 : vector<48xf32> to vector<48x1xf32>
    %cst_189 = arith.constant 1.280000e+02 : f32
    %202 = vector.broadcast %cst_189 : f32 to vector<48x1xf32>
    %203 = arith.divf %201, %202 : vector<48x1xf32>
    %204 = vector.broadcast %196 : vector<48x1xf32> to vector<48x128xf32>
    %205 = arith.subf %192, %204 : vector<48x128xf32>
    %cst_190 = arith.constant 9.99999974E-6 : f32
    %206 = vector.broadcast %cst_190 : f32 to vector<48x1xf32>
    %207 = arith.addf %203, %206 : vector<48x1xf32>
    %208 = math.rsqrt %207 : vector<48x1xf32>
    %209 = vector.broadcast %208 : vector<48x1xf32> to vector<48x128xf32>
    %210 = arith.mulf %205, %209 : vector<48x128xf32>
    %c0_191 = arith.constant 0 : index
    %c0_192 = arith.constant 0 : index
    %211 = vector.load %arg22[%c0_191, %c0_192] : memref<1x128xf32, #tpu.memory_space<vmem>>, vector<1x128xf32>
    %212 = vector.broadcast %211 : vector<1x128xf32> to vector<48x128xf32>
    %213 = arith.mulf %210, %212 : vector<48x128xf32>
    %c0_193 = arith.constant 0 : index
    %c0_194 = arith.constant 0 : index
    %214 = vector.load %arg23[%c0_193, %c0_194] : memref<1x128xf32, #tpu.memory_space<vmem>>, vector<1x128xf32>
    %215 = vector.broadcast %214 : vector<1x128xf32> to vector<48x128xf32>
    %216 = arith.addf %213, %215 : vector<48x128xf32>
    %c0_195 = arith.constant 0 : index
    %c0_196 = arith.constant 0 : index
    %217 = vector.load %arg24[%c0_195, %c0_196] : memref<128x4xf32, #tpu.memory_space<vmem>>, vector<128x4xf32>
    %cst_197 = arith.constant dense<0.000000e+00> : vector<48x4xf32>
    %218 = tpu.matmul %216, %217, %cst_197 {dimension_numbers = #tpu.dot_dimension_numbers<[1], [0], [0], [1], [0, 0, 1, 1], [], []>} : vector<48x128xf32>, vector<128x4xf32>, vector<48x4xf32> -> vector<48x4xf32>
    %c0_198 = arith.constant 0 : index
    %c0_199 = arith.constant 0 : index
    %219 = vector.load %arg25[%c0_198, %c0_199] : memref<1x4xf32, #tpu.memory_space<vmem>>, vector<1x4xf32>
    %220 = vector.broadcast %219 : vector<1x4xf32> to vector<48x4xf32>
    %221 = arith.addf %218, %220 : vector<48x4xf32>
    %c0_200 = arith.constant 0 : index
    %c0_201 = arith.constant 0 : index
    %222 = vector.load %arg26[%c0_200, %c0_201] : memref<8x48xf32, #tpu.memory_space<vmem>>, vector<8x48xf32>
    %cst_202 = arith.constant dense<0.000000e+00> : vector<8x4xf32>
    %223 = tpu.matmul %222, %221, %cst_202 {dimension_numbers = #tpu.dot_dimension_numbers<[1], [0], [0], [1], [0, 0, 1, 1], [], []>} : vector<8x48xf32>, vector<48x4xf32>, vector<8x4xf32> -> vector<8x4xf32>
    %c0_203 = arith.constant 0 : index
    %c0_204 = arith.constant 0 : index
    %224 = vector.load %arg27[%c0_203, %c0_204] : memref<8x4xf32, #tpu.memory_space<vmem>>, vector<8x4xf32>
    %225 = arith.addf %223, %224 : vector<8x4xf32>
    %c0_205 = arith.constant 0 : index
    %c0_206 = arith.constant 0 : index
    %226 = vector.load %arg28[%c0_205, %c0_206] : memref<8x16xf32, #tpu.memory_space<vmem>>, vector<8x16xf32>
    %cst_207 = arith.constant dense<0.000000e+00> : vector<8x4xf32>
    %227 = tpu.matmul %226, %2, %cst_207 {dimension_numbers = #tpu.dot_dimension_numbers<[1], [0], [0], [1], [0, 0, 1, 1], [], []>} : vector<8x16xf32>, vector<16x4xf32>, vector<8x4xf32> -> vector<8x4xf32>
    %c0_208 = arith.constant 0 : index
    %c0_209 = arith.constant 0 : index
    %228 = vector.load %arg29[%c0_208, %c0_209] : memref<8x4xf32, #tpu.memory_space<vmem>>, vector<8x4xf32>
    %229 = arith.addf %227, %228 : vector<8x4xf32>
    %c0_210 = arith.constant 0 : index
    %c0_211 = arith.constant 0 : index
    %230 = vector.load %arg30[%c0_210, %c0_211] : memref<8x16xf32, #tpu.memory_space<vmem>>, vector<8x16xf32>
    %cst_212 = arith.constant dense<0.000000e+00> : vector<8x4xf32>
    %231 = tpu.matmul %230, %4, %cst_212 {dimension_numbers = #tpu.dot_dimension_numbers<[1], [0], [0], [1], [0, 0, 1, 1], [], []>} : vector<8x16xf32>, vector<16x4xf32>, vector<8x4xf32> -> vector<8x4xf32>
    %c0_213 = arith.constant 0 : index
    %c0_214 = arith.constant 0 : index
    %232 = vector.load %arg31[%c0_213, %c0_214] : memref<8x4xf32, #tpu.memory_space<vmem>>, vector<8x4xf32>
    %233 = arith.addf %231, %232 : vector<8x4xf32>
    %234 = tpu.concatenate %229, %225, %233 in 0 : vector<8x4xf32>, vector<8x4xf32>, vector<8x4xf32> -> vector<24x4xf32>
    %c0_215 = arith.constant 0 : index
    %c0_216 = arith.constant 0 : index
    %235 = vector.load %arg32[%c0_215, %c0_216] : memref<4x4xf32, #tpu.memory_space<vmem>>, vector<4x4xf32>
    %cst_217 = arith.constant dense<0.000000e+00> : vector<24x4xf32>
    %236 = tpu.matmul %234, %235, %cst_217 {dimension_numbers = #tpu.dot_dimension_numbers<[1], [0], [0], [1], [0, 0, 1, 1], [], []>} : vector<24x4xf32>, vector<4x4xf32>, vector<24x4xf32> -> vector<24x4xf32>
    %c0_218 = arith.constant 0 : index
    %c0_219 = arith.constant 0 : index
    %237 = vector.load %arg33[%c0_218, %c0_219] : memref<1x4xf32, #tpu.memory_space<vmem>>, vector<1x4xf32>
    %238 = vector.broadcast %237 : vector<1x4xf32> to vector<24x4xf32>
    %239 = arith.addf %236, %238 : vector<24x4xf32>
    %c0_220 = arith.constant 0 : index
    %c0_221 = arith.constant 0 : index
    %c0_222 = arith.constant 0 : index
    %240 = vector.load %arg34[%c0_220, %c0_221, %c0_222] : memref<1x24x4xf32, #tpu.memory_space<vmem>>, vector<1x24x4xf32>
    %241 = vector.shape_cast %240 : vector<1x24x4xf32> to vector<24x4xf32>
    %242 = vector.shape_cast %239 : vector<24x4xf32> to vector<1x24x4xf32>
    tpu.vector_store %arg34[%c0_220, %c0_221, %c0_222], %242 {strides = array<i32>} : memref<1x24x4xf32, #tpu.memory_space<vmem>>, vector<1x24x4xf32>,
    return
  }
  func.func @transform_0(%arg0: i32) -> (i32, i32, i32) {
    %c0_i32 = arith.constant 0 : i32
    %c0_i32_0 = arith.constant 0 : i32
    %c0_i32_1 = arith.constant 0 : i32
    return %arg0, %c0_i32, %c0_i32_0 : i32, i32, i32
  }
  func.func @transform_1(%arg0: i32) -> (i32, i32, i32) {
    %c0_i32 = arith.constant 0 : i32
    %c0_i32_0 = arith.constant 0 : i32
    %c0_i32_1 = arith.constant 0 : i32
    %c0_i32_2 = arith.constant 0 : i32
    return %c0_i32, %c0_i32_0, %c0_i32_1 : i32, i32, i32
  }
  func.func @transform_2(%arg0: i32) -> (i32, i32, i32) {
    %c0_i32 = arith.constant 0 : i32
    %c0_i32_0 = arith.constant 0 : i32
    %c0_i32_1 = arith.constant 0 : i32
    %c0_i32_2 = arith.constant 0 : i32
    return %c0_i32, %c0_i32_0, %c0_i32_1 : i32, i32, i32
  }
  func.func @transform_3(%arg0: i32) -> (i32, i32) {
    %c0_i32 = arith.constant 0 : i32
    %c0_i32_0 = arith.constant 0 : i32
    %c0_i32_1 = arith.constant 0 : i32
    return %c0_i32, %c0_i32_0 : i32, i32
  }
  func.func @transform_4(%arg0: i32) -> (i32, i32, i32) {
    %c0_i32 = arith.constant 0 : i32
    %c0_i32_0 = arith.constant 0 : i32
    %c0_i32_1 = arith.constant 0 : i32
    %c0_i32_2 = arith.constant 0 : i32
    return %c0_i32, %c0_i32_0, %c0_i32_1 : i32, i32, i32
  }
  func.func @transform_5(%arg0: i32) -> (i32, i32, i32) {
    %c0_i32 = arith.constant 0 : i32
    %c0_i32_0 = arith.constant 0 : i32
    %c0_i32_1 = arith.constant 0 : i32
    %c0_i32_2 = arith.constant 0 : i32
    return %c0_i32, %c0_i32_0, %c0_i32_1 : i32, i32, i32
  }
  func.func @transform_6(%arg0: i32) -> (i32, i32) {
    %c0_i32 = arith.constant 0 : i32
    %c0_i32_0 = arith.constant 0 : i32
    %c0_i32_1 = arith.constant 0 : i32
    return %c0_i32, %c0_i32_0 : i32, i32
  }
  func.func @transform_7(%arg0: i32) -> (i32, i32, i32) {
    %c0_i32 = arith.constant 0 : i32
    %c0_i32_0 = arith.constant 0 : i32
    %c0_i32_1 = arith.constant 0 : i32
    %c0_i32_2 = arith.constant 0 : i32
    return %c0_i32, %c0_i32_0, %c0_i32_1 : i32, i32, i32
  }
  func.func @transform_8(%arg0: i32) -> (i32, i32, i32) {
    %c0_i32 = arith.constant 0 : i32
    %c0_i32_0 = arith.constant 0 : i32
    %c0_i32_1 = arith.constant 0 : i32
    %c0_i32_2 = arith.constant 0 : i32
    return %c0_i32, %c0_i32_0, %c0_i32_1 : i32, i32, i32
  }
  func.func @transform_9(%arg0: i32) -> (i32, i32) {
    %c0_i32 = arith.constant 0 : i32
    %c0_i32_0 = arith.constant 0 : i32
    %c0_i32_1 = arith.constant 0 : i32
    return %c0_i32, %c0_i32_0 : i32, i32
  }
  func.func @transform_10(%arg0: i32) -> (i32, i32, i32) {
    %c0_i32 = arith.constant 0 : i32
    %c0_i32_0 = arith.constant 0 : i32
    %c0_i32_1 = arith.constant 0 : i32
    %c0_i32_2 = arith.constant 0 : i32
    return %c0_i32, %c0_i32_0, %c0_i32_1 : i32, i32, i32
  }
  func.func @transform_11(%arg0: i32) -> (i32, i32, i32) {
    %c0_i32 = arith.constant 0 : i32
    %c0_i32_0 = arith.constant 0 : i32
    %c0_i32_1 = arith.constant 0 : i32
    %c0_i32_2 = arith.constant 0 : i32
    return %c0_i32, %c0_i32_0, %c0_i32_1 : i32, i32, i32
  }
  func.func @transform_12(%arg0: i32) -> (i32, i32) {
    %c0_i32 = arith.constant 0 : i32
    %c0_i32_0 = arith.constant 0 : i32
    %c0_i32_1 = arith.constant 0 : i32
    return %c0_i32, %c0_i32_0 : i32, i32
  }
  func.func @transform_13(%arg0: i32) -> (i32, i32, i32) {
    %c0_i32 = arith.constant 0 : i32
    %c0_i32_0 = arith.constant 0 : i32
    %c0_i32_1 = arith.constant 0 : i32
    %c0_i32_2 = arith.constant 0 : i32
    return %c0_i32, %c0_i32_0, %c0_i32_1 : i32, i32, i32
  }
  func.func @transform_14(%arg0: i32) -> (i32, i32, i32) {
    %c0_i32 = arith.constant 0 : i32
    %c0_i32_0 = arith.constant 0 : i32
    %c0_i32_1 = arith.constant 0 : i32
    %c0_i32_2 = arith.constant 0 : i32
    return %c0_i32, %c0_i32_0, %c0_i32_1 : i32, i32, i32
  }
  func.func @transform_15(%arg0: i32) -> (i32, i32) {
    %c0_i32 = arith.constant 0 : i32
    %c0_i32_0 = arith.constant 0 : i32
    %c0_i32_1 = arith.constant 0 : i32
    return %c0_i32, %c0_i32_0 : i32, i32
  }
  func.func @transform_16(%arg0: i32) -> (i32, i32, i32) {
    %c0_i32 = arith.constant 0 : i32
    %c0_i32_0 = arith.constant 0 : i32
    %c0_i32_1 = arith.constant 0 : i32
    %c0_i32_2 = arith.constant 0 : i32
    return %c0_i32, %c0_i32_0, %c0_i32_1 : i32, i32, i32
  }
  func.func @transform_17(%arg0: i32) -> (i32, i32, i32) {
    %c0_i32 = arith.constant 0 : i32
    %c0_i32_0 = arith.constant 0 : i32
    %c0_i32_1 = arith.constant 0 : i32
    %c0_i32_2 = arith.constant 0 : i32
    return %c0_i32, %c0_i32_0, %c0_i32_1 : i32, i32, i32
  }
  func.func @transform_18(%arg0: i32) -> (i32, i32) {
    %c0_i32 = arith.constant 0 : i32
    %c0_i32_0 = arith.constant 0 : i32
    %c0_i32_1 = arith.constant 0 : i32
    return %c0_i32, %c0_i32_0 : i32, i32
  }
  func.func @transform_19(%arg0: i32) -> (i32, i32) {
    %c0_i32 = arith.constant 0 : i32
    %c0_i32_0 = arith.constant 0 : i32
    %c0_i32_1 = arith.constant 0 : i32
    return %c0_i32, %c0_i32_0 : i32, i32
  }
  func.func @transform_20(%arg0: i32) -> (i32, i32) {
    %c0_i32 = arith.constant 0 : i32
    %c0_i32_0 = arith.constant 0 : i32
    %c0_i32_1 = arith.constant 0 : i32
    return %c0_i32, %c0_i32_0 : i32, i32
  }
  func.func @transform_21(%arg0: i32) -> (i32, i32) {
    %c0_i32 = arith.constant 0 : i32
    %c0_i32_0 = arith.constant 0 : i32
    %c0_i32_1 = arith.constant 0 : i32
    return %c0_i32, %c0_i32_0 : i32, i32
  }
  func.func @transform_22(%arg0: i32) -> (i32, i32) {
    %c0_i32 = arith.constant 0 : i32
    %c0_i32_0 = arith.constant 0 : i32
    %c0_i32_1 = arith.constant 0 : i32
    return %c0_i32, %c0_i32_0 : i32, i32
  }
  func.func @transform_23(%arg0: i32) -> (i32, i32) {
    %c0_i32 = arith.constant 0 : i32
    %c0_i32_0 = arith.constant 0 : i32
    %c0_i32_1 = arith.constant 0 : i32
    return %c0_i32, %c0_i32_0 : i32, i32
  }
  func.func @transform_24(%arg0: i32) -> (i32, i32) {
    %c0_i32 = arith.constant 0 : i32
    %c0_i32_0 = arith.constant 0 : i32
    %c0_i32_1 = arith.constant 0 : i32
    return %c0_i32, %c0_i32_0 : i32, i32
  }
  func.func @transform_25(%arg0: i32) -> (i32, i32) {
    %c0_i32 = arith.constant 0 : i32
    %c0_i32_0 = arith.constant 0 : i32
    %c0_i32_1 = arith.constant 0 : i32
    return %c0_i32, %c0_i32_0 : i32, i32
  }
  func.func @transform_26(%arg0: i32) -> (i32, i32) {
    %c0_i32 = arith.constant 0 : i32
    %c0_i32_0 = arith.constant 0 : i32
    %c0_i32_1 = arith.constant 0 : i32
    return %c0_i32, %c0_i32_0 : i32, i32
  }
  func.func @transform_27(%arg0: i32) -> (i32, i32) {
    %c0_i32 = arith.constant 0 : i32
    %c0_i32_0 = arith.constant 0 : i32
    %c0_i32_1 = arith.constant 0 : i32
    return %c0_i32, %c0_i32_0 : i32, i32
  }
  func.func @transform_28(%arg0: i32) -> (i32, i32) {
    %c0_i32 = arith.constant 0 : i32
    %c0_i32_0 = arith.constant 0 : i32
    %c0_i32_1 = arith.constant 0 : i32
    return %c0_i32, %c0_i32_0 : i32, i32
  }
  func.func @transform_29(%arg0: i32) -> (i32, i32) {
    %c0_i32 = arith.constant 0 : i32
    %c0_i32_0 = arith.constant 0 : i32
    %c0_i32_1 = arith.constant 0 : i32
    return %c0_i32, %c0_i32_0 : i32, i32
  }
  func.func @transform_30(%arg0: i32) -> (i32, i32) {
    %c0_i32 = arith.constant 0 : i32
    %c0_i32_0 = arith.constant 0 : i32
    %c0_i32_1 = arith.constant 0 : i32
    return %c0_i32, %c0_i32_0 : i32, i32
  }
  func.func @transform_31(%arg0: i32) -> (i32, i32) {
    %c0_i32 = arith.constant 0 : i32
    %c0_i32_0 = arith.constant 0 : i32
    %c0_i32_1 = arith.constant 0 : i32
    return %c0_i32, %c0_i32_0 : i32, i32
  }
  func.func @transform_32(%arg0: i32) -> (i32, i32) {
    %c0_i32 = arith.constant 0 : i32
    %c0_i32_0 = arith.constant 0 : i32
    %c0_i32_1 = arith.constant 0 : i32
    return %c0_i32, %c0_i32_0 : i32, i32
  }
  func.func @transform_33(%arg0: i32) -> (i32, i32, i32) {
    %c0_i32 = arith.constant 0 : i32
    %c0_i32_0 = arith.constant 0 : i32
    %c0_i32_1 = arith.constant 0 : i32
    return %arg0, %c0_i32, %c0_i32_0 : i32, i32, i32
  }
}

</mosaic_0001>

<llo_original>
// kernel: forward.1
$region0: #{forward.1}
  #allocation0 [shape = 'u32[]', space=smem, size = 0x4, offset = 0x4, fixed_abs, tag = 'smem constant byte address 0x4 - core index']
  #allocation1 [shape = 'u32[144,128]{1,0:T(1,128)}', space=vmem, size = 0x12000, scoped, tag = 'internal scratch']
  %s0 = inlined_call_operand.smem [shape: u32[34], index: -1, kind: input, shape index: {}]
  %s1 = sld [smem:[%s0]]
  %s2 = scalar_lea.smem %s0, 1
  %s3 = sld [smem:[%s2]]
  %s4 = scalar_lea.smem %s0, 2
  %s5 = sld [smem:[%s4]]
  %s6 = scalar_lea.smem %s0, 3
  %s7 = sld [smem:[%s6]]
  %s8 = scalar_lea.smem %s0, 4
  %s9 = sld [smem:[%s8]]
  %s10 = scalar_lea.smem %s0, 5
  %s11 = sld [smem:[%s10]]
  %s12 = scalar_lea.smem %s0, 6
  %s13 = sld [smem:[%s12]]
  %s14 = scalar_lea.smem %s0, 7
  %s15 = sld [smem:[%s14]]
  %s16 = scalar_lea.smem %s0, 8
  %s17 = sld [smem:[%s16]]
  %s18 = scalar_lea.smem %s0, 9
  %s19 = sld [smem:[%s18]]
  %s20 = scalar_lea.smem %s0, 10
  %s21 = sld [smem:[%s20]]
  %s22 = scalar_lea.smem %s0, 11
  %s23 = sld [smem:[%s22]]
  %s24 = scalar_lea.smem %s0, 12
  %s25 = sld [smem:[%s24]]
  %s26 = scalar_lea.smem %s0, 13
  %s27 = sld [smem:[%s26]]
  %s28 = scalar_lea.smem %s0, 14
  %s29 = sld [smem:[%s28]]
  %s30 = scalar_lea.smem %s0, 15
  %s31 = sld [smem:[%s30]]
  %s32 = scalar_lea.smem %s0, 16
  %s33 = sld [smem:[%s32]]
  %s34 = scalar_lea.smem %s0, 17
  %s35 = sld [smem:[%s34]]
  %s36 = scalar_lea.smem %s0, 18
  %s37 = sld [smem:[%s36]]
  %s38 = scalar_lea.smem %s0, 19
  %s39 = sld [smem:[%s38]]
  %s40 = scalar_lea.smem %s0, 20
  %s41 = sld [smem:[%s40]]
  %s42 = scalar_lea.smem %s0, 21
  %s43 = sld [smem:[%s42]]
  %s44 = scalar_lea.smem %s0, 22
  %s45 = sld [smem:[%s44]]
  %s46 = scalar_lea.smem %s0, 23
  %s47 = sld [smem:[%s46]]
  %s48 = scalar_lea.smem %s0, 24
  %s49 = sld [smem:[%s48]]
  %s50 = scalar_lea.smem %s0, 25
  %s51 = sld [smem:[%s50]]
  %s52 = scalar_lea.smem %s0, 26
  %s53 = sld [smem:[%s52]]
  %s54 = scalar_lea.smem %s0, 27
  %s55 = sld [smem:[%s54]]
  %s56 = scalar_lea.smem %s0, 28
  %s57 = sld [smem:[%s56]]
  %s58 = scalar_lea.smem %s0, 29
  %s59 = sld [smem:[%s58]]
  %s60 = scalar_lea.smem %s0, 30
  %s61 = sld [smem:[%s60]]
  %s62 = scalar_lea.smem %s0, 31
  %s63 = sld [smem:[%s62]]
  %s64 = scalar_lea.smem %s0, 32
  %s65 = sld [smem:[%s64]]
  %s66 = scalar_lea.smem %s0, 33
  %s67 = sld [smem:[%s66]]
  %s68 = sld [smem:[#allocation0]]
  $region249: #{forward.1} parent=0
    _
  %s70 = ssub.s32 1, %s68
  %s71 = scalar_select 0, %s70, %s68
  $region1: #{forward.1} parent=0
    #allocation2 [shape = 'u8[6144]{0}', space=vmem, size = 0x1800, scoped, tag = 'input window, operand 1, single buffered']
    #allocation3 [shape = 's32[2]{0}', space=sflag, size = 0x8, scoped, tag = 'scoped memory for forward.1']
    #allocation4 [shape = 'u8[24576]{0}', space=vmem, size = 0x6000, scoped, tag = 'input window, operand 2, single buffered']
    #allocation5 [shape = 's32[1]{0}', space=sflag, size = 0x4, scoped, tag = 'scoped memory for forward.1']
    #allocation6 [shape = 'u8[8192]{0}', space=vmem, size = 0x2000, scoped, tag = 'input window, operand 3, single buffered']
    #allocation7 [shape = 'u8[32768]{0}', space=vmem, size = 0x8000, scoped, tag = 'input window, operand 4, single buffered']
    #allocation8 [shape = 's32[1]{0}', space=sflag, size = 0x4, scoped, tag = 'scoped memory for forward.1']
    #allocation9 [shape = 'u8[65536]{0}', space=vmem, size = 0x10000, scoped, tag = 'input window, operand 5, single buffered']
    #allocation10 [shape = 'u8[512]{0}', space=vmem, size = 0x400, scoped, tag = 'input window, operand 6, single buffered']
    #allocation11 [shape = 's32[1]{0}', space=sflag, size = 0x4, scoped, tag = 'scoped memory for forward.1']
    #allocation12 [shape = 'u8[8192]{0}', space=vmem, size = 0x2000, scoped, tag = 'input window, operand 7, single buffered']
    #allocation13 [shape = 'u8[32768]{0}', space=vmem, size = 0x8000, scoped, tag = 'input window, operand 8, single buffered']
    #allocation14 [shape = 's32[1]{0}', space=sflag, size = 0x4, scoped, tag = 'scoped memory for forward.1']
    #allocation15 [shape = 'u8[512]{0}', space=vmem, size = 0x400, scoped, tag = 'input window, operand 9, single buffered']
    #allocation16 [shape = 'u8[24576]{0}', space=vmem, size = 0x6000, scoped, tag = 'input window, operand 10, single buffered']
    #allocation17 [shape = 's32[1]{0}', space=sflag, size = 0x4, scoped, tag = 'scoped memory for forward.1']
    #allocation18 [shape = 'u8[98304]{0}', space=vmem, size = 0x18000, scoped, tag = 'input window, operand 11, single buffered']
    #allocation19 [shape = 'u8[512]{0}', space=vmem, size = 0x400, scoped, tag = 'input window, operand 12, single buffered']
    #allocation20 [shape = 's32[1]{0}', space=sflag, size = 0x4, scoped, tag = 'scoped memory for forward.1']
    #allocation21 [shape = 'u8[65536]{0}', space=vmem, size = 0x10000, scoped, tag = 'input window, operand 13, single buffered']
    #allocation22 [shape = 'u8[65536]{0}', space=vmem, size = 0x10000, scoped, tag = 'input window, operand 14, single buffered']
    #allocation23 [shape = 's32[1]{0}', space=sflag, size = 0x4, scoped, tag = 'scoped memory for forward.1']
    #allocation24 [shape = 'u8[512]{0}', space=vmem, size = 0x400, scoped, tag = 'input window, operand 15, single buffered']
    #allocation25 [shape = 'u8[49152]{0}', space=vmem, size = 0xc000, scoped, tag = 'input window, operand 16, single buffered']
    #allocation26 [shape = 's32[1]{0}', space=sflag, size = 0x4, scoped, tag = 'scoped memory for forward.1']
    #allocation27 [shape = 'u8[512]{0}', space=vmem, size = 0x400, scoped, tag = 'input window, operand 18, single buffered']
    #allocation28 [shape = 'u8[4096]{0}', space=vmem, size = 0x1000, scoped, tag = 'input window, operand 25, single buffered']
    #allocation29 [shape = 's32[1]{0}', space=sflag, size = 0x4, scoped, tag = 'scoped memory for forward.1']
    #allocation30 [shape = 'u8[4096]{0}', space=vmem, size = 0x1000, scoped, tag = 'input window, operand 26, single buffered']
    #allocation31 [shape = 'u8[4096]{0}', space=vmem, size = 0x1000, scoped, tag = 'input window, operand 27, single buffered']
    #allocation32 [shape = 's32[1]{0}', space=sflag, size = 0x4, scoped, tag = 'scoped memory for forward.1']
    #allocation33 [shape = 'u8[4096]{0}', space=vmem, size = 0x1000, scoped, tag = 'input window, operand 28, single buffered']
    %72 = vsyncpa [#allocation3], 0
    %73 = vsyncpa [#allocation5], 0
    %74 = vsyncpa [#allocation8], 0
    %75 = vsyncpa [#allocation11], 0
    %76 = vsyncpa [#allocation14], 0
    %77 = vsyncpa [#allocation17], 0
    %78 = vsyncpa [#allocation20], 0
    %79 = vsyncpa [#allocation23], 0
    %80 = vsyncpa [#allocation26], 0
    %81 = vsyncpa [#allocation29], 0
    %82 = vsyncpa [#allocation32], 0
    loop: start=0, step=1, limit=4
    $region2: #{forward.1} parent=1 // loop_pre_header
      _
    $region3: #{forward.1} parent=1 // loop_header
      %s84 = sphi 0, %s88
      %p85 = scmp.ge.s32.totalorder %s84, 4
      %s94 = sphi 0, %s96
      %s97 = sphi 0, %s94
      %s98 = sphi 0, %s97
      %s114 = sphi 0, %s98
      %s118 = sphi 0, %s118
      %s120 = sphi 0, %s118
      %s121 = sphi 0, %s120
      %s135 = sphi 0, %s121
      %s139 = sphi 0, %s139
      %s141 = sphi 0, %s139
      %s142 = sphi 0, %s141
      %s156 = sphi 0, %s142
      %s160 = sphi 0, %s160
      %s162 = sphi 0, %s160
      %s163 = sphi 0, %s162
      %s177 = sphi 0, %s163
      %s181 = sphi 0, %s181
      %s183 = sphi 0, %s181
      %s184 = sphi 0, %s183
      %s198 = sphi 0, %s184
      %s202 = sphi 0, %s202
      %s204 = sphi 0, %s202
      %s205 = sphi 0, %s204
      %s219 = sphi 0, %s205
      %s223 = sphi 0, %s223
      %s225 = sphi 0, %s223
      %s226 = sphi 0, %s225
      %s240 = sphi 0, %s226
      %s244 = sphi 0, %s244
      %s246 = sphi 0, %s244
      %s247 = sphi 0, %s246
      %s261 = sphi 0, %s247
      %s265 = sphi 0, %s265
      %s267 = sphi 0, %s265
      %s268 = sphi 0, %s267
      %s282 = sphi 0, %s268
      %s286 = sphi 0, %s286
      %s288 = sphi 0, %s286
      %s289 = sphi 0, %s288
      %s303 = sphi 0, %s289
      %s307 = sphi 0, %s307
      %s309 = sphi 0, %s307
      %s310 = sphi 0, %s309
      %s324 = sphi 0, %s310
      %s328 = sphi 0, %s328
      %s330 = sphi 0, %s328
      %s331 = sphi 0, %s330
      %s345 = sphi 0, %s331
      %s349 = sphi 0, %s349
      %s351 = sphi 0, %s349
      %s352 = sphi 0, %s351
      %s366 = sphi 0, %s352
      %s370 = sphi 0, %s370
      %s372 = sphi 0, %s370
      %s373 = sphi 0, %s372
      %s387 = sphi 0, %s373
      %s391 = sphi 0, %s391
      %s393 = sphi 0, %s391
      %s394 = sphi 0, %s393
      %s408 = sphi 0, %s394
      %s412 = sphi 0, %s412
      %s414 = sphi 0, %s412
      %s415 = sphi 0, %s414
      %s429 = sphi 0, %s415
      %s433 = sphi 0, %s433
      %s435 = sphi 0, %s433
      %s436 = sphi 0, %s435
      %s450 = sphi 0, %s436
      %s454 = sphi 0, %s454
      %s456 = sphi 0, %s454
      %s457 = sphi 0, %s456
      %s471 = sphi 0, %s457
      %s475 = sphi 0, %s475
      %s477 = sphi 0, %s475
      %s478 = sphi 0, %s477
      %s492 = sphi 0, %s478
      %s496 = sphi 0, %s496
      %s498 = sphi 0, %s496
      %s499 = sphi 0, %s498
      %s513 = sphi 0, %s499
      %s517 = sphi 0, %s517
      %s519 = sphi 0, %s517
      %s520 = sphi 0, %s519
      %s534 = sphi 0, %s520
      %s538 = sphi 0, %s538
      %s540 = sphi 0, %s538
      %s541 = sphi 0, %s540
      %s555 = sphi 0, %s541
      %s559 = sphi 0, %s559
      %s561 = sphi 0, %s559
      %s562 = sphi 0, %s561
      %s576 = sphi 0, %s562
      %s580 = sphi 0, %s580
      %s582 = sphi 0, %s580
      %s583 = sphi 0, %s582
      %s597 = sphi 0, %s583
      %s601 = sphi 0, %s601
      %s603 = sphi 0, %s601
      %s604 = sphi 0, %s603
      %s618 = sphi 0, %s604
      %s622 = sphi 0, %s622
      %s624 = sphi 0, %s622
      %s625 = sphi 0, %s624
      %s639 = sphi 0, %s625
      %s643 = sphi 0, %s643
      %s645 = sphi 0, %s643
      %s646 = sphi 0, %s645
      %s660 = sphi 0, %s646
      %s664 = sphi 0, %s664
      %s666 = sphi 0, %s664
      %s667 = sphi 0, %s666
      %s681 = sphi 0, %s667
      %s685 = sphi 0, %s685
      %s687 = sphi 0, %s685
      %s688 = sphi 0, %s687
      %s702 = sphi 0, %s688
      %s706 = sphi 0, %s706
      %s708 = sphi 0, %s706
      %s709 = sphi 0, %s708
      %s723 = sphi 0, %s709
      %s727 = sphi 0, %s727
      %s729 = sphi 0, %s727
      %s730 = sphi 0, %s729
      %s744 = sphi 0, %s730
      %s748 = sphi 0, %s748
      %s750 = sphi 0, %s748
      %s751 = sphi 0, %s750
      %s765 = sphi 0, %s751
      %s769 = sphi 0, %s769
      %s771 = sphi 0, %s769
      %s772 = sphi 0, %s771
      %s786 = sphi 0, %s772
      %s792 = sphi 0, %s794
      %s795 = sphi 0, %s792
      %s796 = sphi 0, %s795
      %s812 = sphi 0, %s796
    $region4: #{forward.1} parent=1 // loop_header_branch
      %87 = sbr.rel (%p85) target = $region8
    $region5: #{forward.1} parent=1 // loop_body
      %s89 = ssub.s32 %s84, 1
      %s90 = ssub.s32 %s84, 2
      %s91 = sadd.s32 %s84, 1
      %s92 = ssub.s32 %s84, %s91
      %p93 = scmp.eq.s32.totalorder %s92, 0
      %s95 = sadd.s32 %s94, 1
      %s96 = scalar_select %p93, %s94, %s95
      %p99 = pneg %p93
      %p100 = scmp.eq.s32.totalorder %s84, 1
      %p101 = por %p99, %p100
      %p102 = scmp.ne.s32.totalorder %s94, %s97
      %p103 = scmp.eq.s32.totalorder %s84, 0
      %p104 = por %p102, %p103
      %p105 = scmp.ne.s32.totalorder %s94, %s97
      %p106 = scmp.eq.s32.totalorder %s89, 1
      %p107 = por %p105, %p106
      %p108 = scmp.ne.s32.totalorder %s97, %s98
      %p109 = scmp.eq.s32.totalorder %s89, 0
      %p110 = por %p108, %p109
      %p111 = scmp.ne.s32.totalorder %s97, %s98
      %p112 = scmp.eq.s32.totalorder %s90, 1
      %p113 = por %p111, %p112
      %p115 = scmp.ne.s32.totalorder %s98, %s114
      %p116 = scmp.eq.s32.totalorder %s90, 0
      %p117 = por %p115, %p116
      %s119 = sadd.s32 %s118, 1
      %p122 = scmp.eq.s32.totalorder %s84, 1
      %p123 = scmp.ne.s32.totalorder %s118, %s120
      %p124 = scmp.eq.s32.totalorder %s84, 0
      %p125 = por %p123, %p124
      %p126 = scmp.ne.s32.totalorder %s118, %s120
      %p127 = scmp.eq.s32.totalorder %s89, 1
      %p128 = por %p126, %p127
      %p129 = scmp.ne.s32.totalorder %s120, %s121
      %p130 = scmp.eq.s32.totalorder %s89, 0
      %p131 = por %p129, %p130
      %p132 = scmp.ne.s32.totalorder %s120, %s121
      %p133 = scmp.eq.s32.totalorder %s90, 1
      %p134 = por %p132, %p133
      %p136 = scmp.ne.s32.totalorder %s121, %s135
      %p137 = scmp.eq.s32.totalorder %s90, 0
      %p138 = por %p136, %p137
      %s140 = sadd.s32 %s139, 1
      %p143 = scmp.eq.s32.totalorder %s84, 1
      %p144 = scmp.ne.s32.totalorder %s139, %s141
      %p145 = scmp.eq.s32.totalorder %s84, 0
      %p146 = por %p144, %p145
      %p147 = scmp.ne.s32.totalorder %s139, %s141
      %p148 = scmp.eq.s32.totalorder %s89, 1
      %p149 = por %p147, %p148
      %p150 = scmp.ne.s32.totalorder %s141, %s142
      %p151 = scmp.eq.s32.totalorder %s89, 0
      %p152 = por %p150, %p151
      %p153 = scmp.ne.s32.totalorder %s141, %s142
      %p154 = scmp.eq.s32.totalorder %s90, 1
      %p155 = por %p153, %p154
      %p157 = scmp.ne.s32.totalorder %s142, %s156
      %p158 = scmp.eq.s32.totalorder %s90, 0
      %p159 = por %p157, %p158
      %s161 = sadd.s32 %s160, 1
      %p164 = scmp.eq.s32.totalorder %s84, 1
      %p165 = scmp.ne.s32.totalorder %s160, %s162
      %p166 = scmp.eq.s32.totalorder %s84, 0
      %p167 = por %p165, %p166
      %p168 = scmp.ne.s32.totalorder %s160, %s162
      %p169 = scmp.eq.s32.totalorder %s89, 1
      %p170 = por %p168, %p169
      %p171 = scmp.ne.s32.totalorder %s162, %s163
      %p172 = scmp.eq.s32.totalorder %s89, 0
      %p173 = por %p171, %p172
      %p174 = scmp.ne.s32.totalorder %s162, %s163
      %p175 = scmp.eq.s32.totalorder %s90, 1
      %p176 = por %p174, %p175
      %p178 = scmp.ne.s32.totalorder %s163, %s177
      %p179 = scmp.eq.s32.totalorder %s90, 0
      %p180 = por %p178, %p179
      %s182 = sadd.s32 %s181, 1
      %p185 = scmp.eq.s32.totalorder %s84, 1
      %p186 = scmp.ne.s32.totalorder %s181, %s183
      %p187 = scmp.eq.s32.totalorder %s84, 0
      %p188 = por %p186, %p187
      %p189 = scmp.ne.s32.totalorder %s181, %s183
      %p190 = scmp.eq.s32.totalorder %s89, 1
      %p191 = por %p189, %p190
      %p192 = scmp.ne.s32.totalorder %s183, %s184
      %p193 = scmp.eq.s32.totalorder %s89, 0
      %p194 = por %p192, %p193
      %p195 = scmp.ne.s32.totalorder %s183, %s184
      %p196 = scmp.eq.s32.totalorder %s90, 1
      %p197 = por %p195, %p196
      %p199 = scmp.ne.s32.totalorder %s184, %s198
      %p200 = scmp.eq.s32.totalorder %s90, 0
      %p201 = por %p199, %p200
      %s203 = sadd.s32 %s202, 1
      %p206 = scmp.eq.s32.totalorder %s84, 1
      %p207 = scmp.ne.s32.totalorder %s202, %s204
      %p208 = scmp.eq.s32.totalorder %s84, 0
      %p209 = por %p207, %p208
      %p210 = scmp.ne.s32.totalorder %s202, %s204
      %p211 = scmp.eq.s32.totalorder %s89, 1
      %p212 = por %p210, %p211
      %p213 = scmp.ne.s32.totalorder %s204, %s205
      %p214 = scmp.eq.s32.totalorder %s89, 0
      %p215 = por %p213, %p214
      %p216 = scmp.ne.s32.totalorder %s204, %s205
      %p217 = scmp.eq.s32.totalorder %s90, 1
      %p218 = por %p216, %p217
      %p220 = scmp.ne.s32.totalorder %s205, %s219
      %p221 = scmp.eq.s32.totalorder %s90, 0
      %p222 = por %p220, %p221
      %s224 = sadd.s32 %s223, 1
      %p227 = scmp.eq.s32.totalorder %s84, 1
      %p228 = scmp.ne.s32.totalorder %s223, %s225
      %p229 = scmp.eq.s32.totalorder %s84, 0
      %p230 = por %p228, %p229
      %p231 = scmp.ne.s32.totalorder %s223, %s225
      %p232 = scmp.eq.s32.totalorder %s89, 1
      %p233 = por %p231, %p232
      %p234 = scmp.ne.s32.totalorder %s225, %s226
      %p235 = scmp.eq.s32.totalorder %s89, 0
      %p236 = por %p234, %p235
      %p237 = scmp.ne.s32.totalorder %s225, %s226
      %p238 = scmp.eq.s32.totalorder %s90, 1
      %p239 = por %p237, %p238
      %p241 = scmp.ne.s32.totalorder %s226, %s240
      %p242 = scmp.eq.s32.totalorder %s90, 0
      %p243 = por %p241, %p242
      %s245 = sadd.s32 %s244, 1
      %p248 = scmp.eq.s32.totalorder %s84, 1
      %p249 = scmp.ne.s32.totalorder %s244, %s246
      %p250 = scmp.eq.s32.totalorder %s84, 0
      %p251 = por %p249, %p250
      %p252 = scmp.ne.s32.totalorder %s244, %s246
      %p253 = scmp.eq.s32.totalorder %s89, 1
      %p254 = por %p252, %p253
      %p255 = scmp.ne.s32.totalorder %s246, %s247
      %p256 = scmp.eq.s32.totalorder %s89, 0
      %p257 = por %p255, %p256
      %p258 = scmp.ne.s32.totalorder %s246, %s247
      %p259 = scmp.eq.s32.totalorder %s90, 1
      %p260 = por %p258, %p259
      %p262 = scmp.ne.s32.totalorder %s247, %s261
      %p263 = scmp.eq.s32.totalorder %s90, 0
      %p264 = por %p262, %p263
      %s266 = sadd.s32 %s265, 1
      %p269 = scmp.eq.s32.totalorder %s84, 1
      %p270 = scmp.ne.s32.totalorder %s265, %s267
      %p271 = scmp.eq.s32.totalorder %s84, 0
      %p272 = por %p270, %p271
      %p273 = scmp.ne.s32.totalorder %s265, %s267
      %p274 = scmp.eq.s32.totalorder %s89, 1
      %p275 = por %p273, %p274
      %p276 = scmp.ne.s32.totalorder %s267, %s268
      %p277 = scmp.eq.s32.totalorder %s89, 0
      %p278 = por %p276, %p277
      %p279 = scmp.ne.s32.totalorder %s267, %s268
      %p280 = scmp.eq.s32.totalorder %s90, 1
      %p281 = por %p279, %p280
      %p283 = scmp.ne.s32.totalorder %s268, %s282
      %p284 = scmp.eq.s32.totalorder %s90, 0
      %p285 = por %p283, %p284
      %s287 = sadd.s32 %s286, 1
      %p290 = scmp.eq.s32.totalorder %s84, 1
      %p291 = scmp.ne.s32.totalorder %s286, %s288
      %p292 = scmp.eq.s32.totalorder %s84, 0
      %p293 = por %p291, %p292
      %p294 = scmp.ne.s32.totalorder %s286, %s288
      %p295 = scmp.eq.s32.totalorder %s89, 1
      %p296 = por %p294, %p295
      %p297 = scmp.ne.s32.totalorder %s288, %s289
      %p298 = scmp.eq.s32.totalorder %s89, 0
      %p299 = por %p297, %p298
      %p300 = scmp.ne.s32.totalorder %s288, %s289
      %p301 = scmp.eq.s32.totalorder %s90, 1
      %p302 = por %p300, %p301
      %p304 = scmp.ne.s32.totalorder %s289, %s303
      %p305 = scmp.eq.s32.totalorder %s90, 0
      %p306 = por %p304, %p305
      %s308 = sadd.s32 %s307, 1
      %p311 = scmp.eq.s32.totalorder %s84, 1
      %p312 = scmp.ne.s32.totalorder %s307, %s309
      %p313 = scmp.eq.s32.totalorder %s84, 0
      %p314 = por %p312, %p313
      %p315 = scmp.ne.s32.totalorder %s307, %s309
      %p316 = scmp.eq.s32.totalorder %s89, 1
      %p317 = por %p315, %p316
      %p318 = scmp.ne.s32.totalorder %s309, %s310
      %p319 = scmp.eq.s32.totalorder %s89, 0
      %p320 = por %p318, %p319
      %p321 = scmp.ne.s32.totalorder %s309, %s310
      %p322 = scmp.eq.s32.totalorder %s90, 1
      %p323 = por %p321, %p322
      %p325 = scmp.ne.s32.totalorder %s310, %s324
      %p326 = scmp.eq.s32.totalorder %s90, 0
      %p327 = por %p325, %p326
      %s329 = sadd.s32 %s328, 1
      %p332 = scmp.eq.s32.totalorder %s84, 1
      %p333 = scmp.ne.s32.totalorder %s328, %s330
      %p334 = scmp.eq.s32.totalorder %s84, 0
      %p335 = por %p333, %p334
      %p336 = scmp.ne.s32.totalorder %s328, %s330
      %p337 = scmp.eq.s32.totalorder %s89, 1
      %p338 = por %p336, %p337
      %p339 = scmp.ne.s32.totalorder %s330, %s331
      %p340 = scmp.eq.s32.totalorder %s89, 0
      %p341 = por %p339, %p340
      %p342 = scmp.ne.s32.totalorder %s330, %s331
      %p343 = scmp.eq.s32.totalorder %s90, 1
      %p344 = por %p342, %p343
      %p346 = scmp.ne.s32.totalorder %s331, %s345
      %p347 = scmp.eq.s32.totalorder %s90, 0
      %p348 = por %p346, %p347
      %s350 = sadd.s32 %s349, 1
      %p353 = scmp.eq.s32.totalorder %s84, 1
      %p354 = scmp.ne.s32.totalorder %s349, %s351
      %p355 = scmp.eq.s32.totalorder %s84, 0
      %p356 = por %p354, %p355
      %p357 = scmp.ne.s32.totalorder %s349, %s351
      %p358 = scmp.eq.s32.totalorder %s89, 1
      %p359 = por %p357, %p358
      %p360 = scmp.ne.s32.totalorder %s351, %s352
      %p361 = scmp.eq.s32.totalorder %s89, 0
      %p362 = por %p360, %p361
      %p363 = scmp.ne.s32.totalorder %s351, %s352
      %p364 = scmp.eq.s32.totalorder %s90, 1
      %p365 = por %p363, %p364
      %p367 = scmp.ne.s32.totalorder %s352, %s366
      %p368 = scmp.eq.s32.totalorder %s90, 0
      %p369 = por %p367, %p368
      %s371 = sadd.s32 %s370, 1
      %p374 = scmp.eq.s32.totalorder %s84, 1
      %p375 = scmp.ne.s32.totalorder %s370, %s372
      %p376 = scmp.eq.s32.totalorder %s84, 0
      %p377 = por %p375, %p376
      %p378 = scmp.ne.s32.totalorder %s370, %s372
      %p379 = scmp.eq.s32.totalorder %s89, 1
      %p380 = por %p378, %p379
      %p381 = scmp.ne.s32.totalorder %s372, %s373
      %p382 = scmp.eq.s32.totalorder %s89, 0
      %p383 = por %p381, %p382
      %p384 = scmp.ne.s32.totalorder %s372, %s373
      %p385 = scmp.eq.s32.totalorder %s90, 1
      %p386 = por %p384, %p385
      %p388 = scmp.ne.s32.totalorder %s373, %s387
      %p389 = scmp.eq.s32.totalorder %s90, 0
      %p390 = por %p388, %p389
      %s392 = sadd.s32 %s391, 1
      %p395 = scmp.eq.s32.totalorder %s84, 1
      %p396 = scmp.ne.s32.totalorder %s391, %s393
      %p397 = scmp.eq.s32.totalorder %s84, 0
      %p398 = por %p396, %p397
      %p399 = scmp.ne.s32.totalorder %s391, %s393
      %p400 = scmp.eq.s32.totalorder %s89, 1
      %p401 = por %p399, %p400
      %p402 = scmp.ne.s32.totalorder %s393, %s394
      %p403 = scmp.eq.s32.totalorder %s89, 0
      %p404 = por %p402, %p403
      %p405 = scmp.ne.s32.totalorder %s393, %s394
      %p406 = scmp.eq.s32.totalorder %s90, 1
      %p407 = por %p405, %p406
      %p409 = scmp.ne.s32.totalorder %s394, %s408
      %p410 = scmp.eq.s32.totalorder %s90, 0
      %p411 = por %p409, %p410
      %s413 = sadd.s32 %s412, 1
      %p416 = scmp.eq.s32.totalorder %s84, 1
      %p417 = scmp.ne.s32.totalorder %s412, %s414
      %p418 = scmp.eq.s32.totalorder %s84, 0
      %p419 = por %p417, %p418
      %p420 = scmp.ne.s32.totalorder %s412, %s414
      %p421 = scmp.eq.s32.totalorder %s89, 1
      %p422 = por %p420, %p421
      %p423 = scmp.ne.s32.totalorder %s414, %s415
      %p424 = scmp.eq.s32.totalorder %s89, 0
      %p425 = por %p423, %p424
      %p426 = scmp.ne.s32.totalorder %s414, %s415
      %p427 = scmp.eq.s32.totalorder %s90, 1
      %p428 = por %p426, %p427
      %p430 = scmp.ne.s32.totalorder %s415, %s429
      %p431 = scmp.eq.s32.totalorder %s90, 0
      %p432 = por %p430, %p431
      %s434 = sadd.s32 %s433, 1
      %p437 = scmp.eq.s32.totalorder %s84, 1
      %p438 = scmp.ne.s32.totalorder %s433, %s435
      %p439 = scmp.eq.s32.totalorder %s84, 0
      %p440 = por %p438, %p439
      %p441 = scmp.ne.s32.totalorder %s433, %s435
      %p442 = scmp.eq.s32.totalorder %s89, 1
      %p443 = por %p441, %p442
      %p444 = scmp.ne.s32.totalorder %s435, %s436
      %p445 = scmp.eq.s32.totalorder %s89, 0
      %p446 = por %p444, %p445
      %p447 = scmp.ne.s32.totalorder %s435, %s436
      %p448 = scmp.eq.s32.totalorder %s90, 1
      %p449 = por %p447, %p448
      %p451 = scmp.ne.s32.totalorder %s436, %s450
      %p452 = scmp.eq.s32.totalorder %s90, 0
      %p453 = por %p451, %p452
      %s455 = sadd.s32 %s454, 1
      %p458 = scmp.eq.s32.totalorder %s84, 1
      %p459 = scmp.ne.s32.totalorder %s454, %s456
      %p460 = scmp.eq.s32.totalorder %s84, 0
      %p461 = por %p459, %p460
      %p462 = scmp.ne.s32.totalorder %s454, %s456
      %p463 = scmp.eq.s32.totalorder %s89, 1
      %p464 = por %p462, %p463
      %p465 = scmp.ne.s32.totalorder %s456, %s457
      %p466 = scmp.eq.s32.totalorder %s89, 0
      %p467 = por %p465, %p466
      %p468 = scmp.ne.s32.totalorder %s456, %s457
      %p469 = scmp.eq.s32.totalorder %s90, 1
      %p470 = por %p468, %p469
      %p472 = scmp.ne.s32.totalorder %s457, %s471
      %p473 = scmp.eq.s32.totalorder %s90, 0
      %p474 = por %p472, %p473
      %s476 = sadd.s32 %s475, 1
      %p479 = scmp.eq.s32.totalorder %s84, 1
      %p480 = scmp.ne.s32.totalorder %s475, %s477
      %p481 = scmp.eq.s32.totalorder %s84, 0
      %p482 = por %p480, %p481
      %p483 = scmp.ne.s32.totalorder %s475, %s477
      %p484 = scmp.eq.s32.totalorder %s89, 1
      %p485 = por %p483, %p484
      %p486 = scmp.ne.s32.totalorder %s477, %s478
      %p487 = scmp.eq.s32.totalorder %s89, 0
      %p488 = por %p486, %p487
      %p489 = scmp.ne.s32.totalorder %s477, %s478
      %p490 = scmp.eq.s32.totalorder %s90, 1
      %p491 = por %p489, %p490
      %p493 = scmp.ne.s32.totalorder %s478, %s492
      %p494 = scmp.eq.s32.totalorder %s90, 0
      %p495 = por %p493, %p494
      %s497 = sadd.s32 %s496, 1
      %p500 = scmp.eq.s32.totalorder %s84, 1
      %p501 = scmp.ne.s32.totalorder %s496, %s498
      %p502 = scmp.eq.s32.totalorder %s84, 0
      %p503 = por %p501, %p502
      %p504 = scmp.ne.s32.totalorder %s496, %s498
      %p505 = scmp.eq.s32.totalorder %s89, 1
      %p506 = por %p504, %p505
      %p507 = scmp.ne.s32.totalorder %s498, %s499
      %p508 = scmp.eq.s32.totalorder %s89, 0
      %p509 = por %p507, %p508
      %p510 = scmp.ne.s32.totalorder %s498, %s499
      %p511 = scmp.eq.s32.totalorder %s90, 1
      %p512 = por %p510, %p511
      %p514 = scmp.ne.s32.totalorder %s499, %s513
      %p515 = scmp.eq.s32.totalorder %s90, 0
      %p516 = por %p514, %p515
      %s518 = sadd.s32 %s517, 1
      %p521 = scmp.eq.s32.totalorder %s84, 1
      %p522 = scmp.ne.s32.totalorder %s517, %s519
      %p523 = scmp.eq.s32.totalorder %s84, 0
      %p524 = por %p522, %p523
      %p525 = scmp.ne.s32.totalorder %s517, %s519
      %p526 = scmp.eq.s32.totalorder %s89, 1
      %p527 = por %p525, %p526
      %p528 = scmp.ne.s32.totalorder %s519, %s520
      %p529 = scmp.eq.s32.totalorder %s89, 0
      %p530 = por %p528, %p529
      %p531 = scmp.ne.s32.totalorder %s519, %s520
      %p532 = scmp.eq.s32.totalorder %s90, 1
      %p533 = por %p531, %p532
      %p535 = scmp.ne.s32.totalorder %s520, %s534
      %p536 = scmp.eq.s32.totalorder %s90, 0
      %p537 = por %p535, %p536
      %s539 = sadd.s32 %s538, 1
      %p542 = scmp.eq.s32.totalorder %s84, 1
      %p543 = scmp.ne.s32.totalorder %s538, %s540
      %p544 = scmp.eq.s32.totalorder %s84, 0
      %p545 = por %p543, %p544
      %p546 = scmp.ne.s32.totalorder %s538, %s540
      %p547 = scmp.eq.s32.totalorder %s89, 1
      %p548 = por %p546, %p547
      %p549 = scmp.ne.s32.totalorder %s540, %s541
      %p550 = scmp.eq.s32.totalorder %s89, 0
      %p551 = por %p549, %p550
      %p552 = scmp.ne.s32.totalorder %s540, %s541
      %p553 = scmp.eq.s32.totalorder %s90, 1
      %p554 = por %p552, %p553
      %p556 = scmp.ne.s32.totalorder %s541, %s555
      %p557 = scmp.eq.s32.totalorder %s90, 0
      %p558 = por %p556, %p557
      %s560 = sadd.s32 %s559, 1
      %p563 = scmp.eq.s32.totalorder %s84, 1
      %p564 = scmp.ne.s32.totalorder %s559, %s561
      %p565 = scmp.eq.s32.totalorder %s84, 0
      %p566 = por %p564, %p565
      %p567 = scmp.ne.s32.totalorder %s559, %s561
      %p568 = scmp.eq.s32.totalorder %s89, 1
      %p569 = por %p567, %p568
      %p570 = scmp.ne.s32.totalorder %s561, %s562
      %p571 = scmp.eq.s32.totalorder %s89, 0
      %p572 = por %p570, %p571
      %p573 = scmp.ne.s32.totalorder %s561, %s562
      %p574 = scmp.eq.s32.totalorder %s90, 1
      %p575 = por %p573, %p574
      %p577 = scmp.ne.s32.totalorder %s562, %s576
      %p578 = scmp.eq.s32.totalorder %s90, 0
      %p579 = por %p577, %p578
      %s581 = sadd.s32 %s580, 1
      %p584 = scmp.eq.s32.totalorder %s84, 1
      %p585 = scmp.ne.s32.totalorder %s580, %s582
      %p586 = scmp.eq.s32.totalorder %s84, 0
      %p587 = por %p585, %p586
      %p588 = scmp.ne.s32.totalorder %s580, %s582
      %p589 = scmp.eq.s32.totalorder %s89, 1
      %p590 = por %p588, %p589
      %p591 = scmp.ne.s32.totalorder %s582, %s583
      %p592 = scmp.eq.s32.totalorder %s89, 0
      %p593 = por %p591, %p592
      %p594 = scmp.ne.s32.totalorder %s582, %s583
      %p595 = scmp.eq.s32.totalorder %s90, 1
      %p596 = por %p594, %p595
      %p598 = scmp.ne.s32.totalorder %s583, %s597
      %p599 = scmp.eq.s32.totalorder %s90, 0
      %p600 = por %p598, %p599
      %s602 = sadd.s32 %s601, 1
      %p605 = scmp.eq.s32.totalorder %s84, 1
      %p606 = scmp.ne.s32.totalorder %s601, %s603
      %p607 = scmp.eq.s32.totalorder %s84, 0
      %p608 = por %p606, %p607
      %p609 = scmp.ne.s32.totalorder %s601, %s603
      %p610 = scmp.eq.s32.totalorder %s89, 1
      %p611 = por %p609, %p610
      %p612 = scmp.ne.s32.totalorder %s603, %s604
      %p613 = scmp.eq.s32.totalorder %s89, 0
      %p614 = por %p612, %p613
      %p615 = scmp.ne.s32.totalorder %s603, %s604
      %p616 = scmp.eq.s32.totalorder %s90, 1
      %p617 = por %p615, %p616
      %p619 = scmp.ne.s32.totalorder %s604, %s618
      %p620 = scmp.eq.s32.totalorder %s90, 0
      %p621 = por %p619, %p620
      %s623 = sadd.s32 %s622, 1
      %p626 = scmp.eq.s32.totalorder %s84, 1
      %p627 = scmp.ne.s32.totalorder %s622, %s624
      %p628 = scmp.eq.s32.totalorder %s84, 0
      %p629 = por %p627, %p628
      %p630 = scmp.ne.s32.totalorder %s622, %s624
      %p631 = scmp.eq.s32.totalorder %s89, 1
      %p632 = por %p630, %p631
      %p633 = scmp.ne.s32.totalorder %s624, %s625
      %p634 = scmp.eq.s32.totalorder %s89, 0
      %p635 = por %p633, %p634
      %p636 = scmp.ne.s32.totalorder %s624, %s625
      %p637 = scmp.eq.s32.totalorder %s90, 1
      %p638 = por %p636, %p637
      %p640 = scmp.ne.s32.totalorder %s625, %s639
      %p641 = scmp.eq.s32.totalorder %s90, 0
      %p642 = por %p640, %p641
      %s644 = sadd.s32 %s643, 1
      %p647 = scmp.eq.s32.totalorder %s84, 1
      %p648 = scmp.ne.s32.totalorder %s643, %s645
      %p649 = scmp.eq.s32.totalorder %s84, 0
      %p650 = por %p648, %p649
      %p651 = scmp.ne.s32.totalorder %s643, %s645
      %p652 = scmp.eq.s32.totalorder %s89, 1
      %p653 = por %p651, %p652
      %p654 = scmp.ne.s32.totalorder %s645, %s646
      %p655 = scmp.eq.s32.totalorder %s89, 0
      %p656 = por %p654, %p655
      %p657 = scmp.ne.s32.totalorder %s645, %s646
      %p658 = scmp.eq.s32.totalorder %s90, 1
      %p659 = por %p657, %p658
      %p661 = scmp.ne.s32.totalorder %s646, %s660
      %p662 = scmp.eq.s32.totalorder %s90, 0
      %p663 = por %p661, %p662
      %s665 = sadd.s32 %s664, 1
      %p668 = scmp.eq.s32.totalorder %s84, 1
      %p669 = scmp.ne.s32.totalorder %s664, %s666
      %p670 = scmp.eq.s32.totalorder %s84, 0
      %p671 = por %p669, %p670
      %p672 = scmp.ne.s32.totalorder %s664, %s666
      %p673 = scmp.eq.s32.totalorder %s89, 1
      %p674 = por %p672, %p673
      %p675 = scmp.ne.s32.totalorder %s666, %s667
      %p676 = scmp.eq.s32.totalorder %s89, 0
      %p677 = por %p675, %p676
      %p678 = scmp.ne.s32.totalorder %s666, %s667
      %p679 = scmp.eq.s32.totalorder %s90, 1
      %p680 = por %p678, %p679
      %p682 = scmp.ne.s32.totalorder %s667, %s681
      %p683 = scmp.eq.s32.totalorder %s90, 0
      %p684 = por %p682, %p683
      %s686 = sadd.s32 %s685, 1
      %p689 = scmp.eq.s32.totalorder %s84, 1
      %p690 = scmp.ne.s32.totalorder %s685, %s687
      %p691 = scmp.eq.s32.totalorder %s84, 0
      %p692 = por %p690, %p691
      %p693 = scmp.ne.s32.totalorder %s685, %s687
      %p694 = scmp.eq.s32.totalorder %s89, 1
      %p695 = por %p693, %p694
      %p696 = scmp.ne.s32.totalorder %s687, %s688
      %p697 = scmp.eq.s32.totalorder %s89, 0
      %p698 = por %p696, %p697
      %p699 = scmp.ne.s32.totalorder %s687, %s688
      %p700 = scmp.eq.s32.totalorder %s90, 1
      %p701 = por %p699, %p700
      %p703 = scmp.ne.s32.totalorder %s688, %s702
      %p704 = scmp.eq.s32.totalorder %s90, 0
      %p705 = por %p703, %p704
      %s707 = sadd.s32 %s706, 1
      %p710 = scmp.eq.s32.totalorder %s84, 1
      %p711 = scmp.ne.s32.totalorder %s706, %s708
      %p712 = scmp.eq.s32.totalorder %s84, 0
      %p713 = por %p711, %p712
      %p714 = scmp.ne.s32.totalorder %s706, %s708
      %p715 = scmp.eq.s32.totalorder %s89, 1
      %p716 = por %p714, %p715
      %p717 = scmp.ne.s32.totalorder %s708, %s709
      %p718 = scmp.eq.s32.totalorder %s89, 0
      %p719 = por %p717, %p718
      %p720 = scmp.ne.s32.totalorder %s708, %s709
      %p721 = scmp.eq.s32.totalorder %s90, 1
      %p722 = por %p720, %p721
      %p724 = scmp.ne.s32.totalorder %s709, %s723
      %p725 = scmp.eq.s32.totalorder %s90, 0
      %p726 = por %p724, %p725
      %s728 = sadd.s32 %s727, 1
      %p731 = scmp.eq.s32.totalorder %s84, 1
      %p732 = scmp.ne.s32.totalorder %s727, %s729
      %p733 = scmp.eq.s32.totalorder %s84, 0
      %p734 = por %p732, %p733
      %p735 = scmp.ne.s32.totalorder %s727, %s729
      %p736 = scmp.eq.s32.totalorder %s89, 1
      %p737 = por %p735, %p736
      %p738 = scmp.ne.s32.totalorder %s729, %s730
      %p739 = scmp.eq.s32.totalorder %s89, 0
      %p740 = por %p738, %p739
      %p741 = scmp.ne.s32.totalorder %s729, %s730
      %p742 = scmp.eq.s32.totalorder %s90, 1
      %p743 = por %p741, %p742
      %p745 = scmp.ne.s32.totalorder %s730, %s744
      %p746 = scmp.eq.s32.totalorder %s90, 0
      %p747 = por %p745, %p746
      %s749 = sadd.s32 %s748, 1
      %p752 = scmp.eq.s32.totalorder %s84, 1
      %p753 = scmp.ne.s32.totalorder %s748, %s750
      %p754 = scmp.eq.s32.totalorder %s84, 0
      %p755 = por %p753, %p754
      %p756 = scmp.ne.s32.totalorder %s748, %s750
      %p757 = scmp.eq.s32.totalorder %s89, 1
      %p758 = por %p756, %p757
      %p759 = scmp.ne.s32.totalorder %s750, %s751
      %p760 = scmp.eq.s32.totalorder %s89, 0
      %p761 = por %p759, %p760
      %p762 = scmp.ne.s32.totalorder %s750, %s751
      %p763 = scmp.eq.s32.totalorder %s90, 1
      %p764 = por %p762, %p763
      %p766 = scmp.ne.s32.totalorder %s751, %s765
      %p767 = scmp.eq.s32.totalorder %s90, 0
      %p768 = por %p766, %p767
      %s770 = sadd.s32 %s769, 1
      %p773 = scmp.eq.s32.totalorder %s84, 1
      %p774 = scmp.ne.s32.totalorder %s769, %s771
      %p775 = scmp.eq.s32.totalorder %s84, 0
      %p776 = por %p774, %p775
      %p777 = scmp.ne.s32.totalorder %s769, %s771
      %p778 = scmp.eq.s32.totalorder %s89, 1
      %p779 = por %p777, %p778
      %p780 = scmp.ne.s32.totalorder %s771, %s772
      %p781 = scmp.eq.s32.totalorder %s89, 0
      %p782 = por %p780, %p781
      %p783 = scmp.ne.s32.totalorder %s771, %s772
      %p784 = scmp.eq.s32.totalorder %s90, 1
      %p785 = por %p783, %p784
      %p787 = scmp.ne.s32.totalorder %s772, %s786
      %p788 = scmp.eq.s32.totalorder %s90, 0
      %p789 = por %p787, %p788
      %s790 = ssub.s32 %s84, %s91
      %p791 = scmp.eq.s32.totalorder %s790, 0
      %s793 = sadd.s32 %s792, 1
      %s794 = scalar_select %p791, %s792, %s793
      %p797 = pneg %p791
      %p798 = scmp.eq.s32.totalorder %s84, 1
      %p799 = por %p797, %p798
      %p800 = scmp.ne.s32.totalorder %s792, %s795
      %p801 = scmp.eq.s32.totalorder %s84, 0
      %p802 = por %p800, %p801
      %p803 = scmp.ne.s32.totalorder %s792, %s795
      %p804 = scmp.eq.s32.totalorder %s89, 1
      %p805 = por %p803, %p804
      %p806 = scmp.ne.s32.totalorder %s795, %s796
      %p807 = scmp.eq.s32.totalorder %s89, 0
      %p808 = por %p806, %p807
      %p809 = scmp.ne.s32.totalorder %s795, %s796
      %p810 = scmp.eq.s32.totalorder %s90, 1
      %p811 = por %p809, %p810
      %p813 = scmp.ne.s32.totalorder %s796, %s812
      %p814 = scmp.eq.s32.totalorder %s90, 0
      %p815 = por %p813, %p814
      %p816 = scmp.le.s32.totalorder 1, %s84
      %p817 = scmp.lt.s32.totalorder %s84, 3
      %p818 = pnand %p816, %p817
      %p819 = pneg %p818
      // Predicated region
      $region9: #{forward.1} parent=5 // pred_check
        _
      $region10: #{forward.1} parent=5 // pred_check_branch
        %821 = sbr.rel (%p818) target = $region12
      $region11: #{forward.1} parent=5 // pred_region
        %s822 = ssub.s32 %s84, 1
        // Predicated region
        $region13: #{forward.1} parent=11 // pred_check
          %p823 = pneg %p131
        $region14: #{forward.1} parent=11 // pred_check_branch
          %825 = sbr.rel (%p823) target = $region16
        $region15: #{forward.1} parent=11 // pred_region
          %s827 = ssub.s32 192, 192
          %828 = vsyncadd [#allocation3], %s827
          %s829 = sshll.u32 [#allocation2], 4
          %s830 = int_to_ptr.vmem [resolvable:$true] %s829
          %835 = dma.hbm_to_vmem [thread:$0]  %s3, 192, %s830, [#allocation3], 64, 64, 4
        $region16: #{forward.1} parent=11 // pred_fallthru
          _
        // Predicated region
        $region17: #{forward.1} parent=11 // pred_check
          %p836 = pneg %p152
        $region18: #{forward.1} parent=11 // pred_check_branch
          %838 = sbr.rel (%p836) target = $region20
        $region19: #{forward.1} parent=11 // pred_region
          %s840 = ssub.s32 768, 768
          %841 = vsyncadd [#allocation5], %s840
          %s842 = sshll.u32 [#allocation4], 4
          %s843 = int_to_ptr.vmem [resolvable:$true] %s842
          %848 = dma.hbm_to_vmem [thread:$0]  %s5, 768, %s843, [#allocation5], 128, 128, 8
        $region20: #{forward.1} parent=11 // pred_fallthru
          _
        // Predicated region
        $region21: #{forward.1} parent=11 // pred_check
          %p849 = pneg %p173
        $region22: #{forward.1} parent=11 // pred_check_branch
          %851 = sbr.rel (%p849) target = $region24
        $region23: #{forward.1} parent=11 // pred_region
          %s853 = ssub.s32 256, 256
          %854 = vsyncadd [#allocation5], %s853
          %s855 = sshll.u32 [#allocation6], 4
          %s856 = int_to_ptr.vmem [resolvable:$true] %s855
          %861 = dma.hbm_to_vmem [thread:$0]  %s7, 256, %s856, [#allocation5], 128, 128, 8
        $region24: #{forward.1} parent=11 // pred_fallthru
          _
        // Predicated region
        $region25: #{forward.1} parent=11 // pred_check
          %p862 = pneg %p194
        $region26: #{forward.1} parent=11 // pred_check_branch
          %864 = sbr.rel (%p862) target = $region28
        $region27: #{forward.1} parent=11 // pred_region
          %s866 = ssub.s32 1024, 1024
          %867 = vsyncadd [#allocation8], %s866
          %s868 = sshll.u32 [#allocation7], 4
          %s869 = int_to_ptr.vmem [resolvable:$true] %s868
          %874 = dma.hbm_to_vmem [thread:$0]  %s9, 1024, %s869, [#allocation8], 128, 128, 8
        $region28: #{forward.1} parent=11 // pred_fallthru
          _
        // Predicated region
        $region29: #{forward.1} parent=11 // pred_check
          %p875 = pneg %p215
        $region30: #{forward.1} parent=11 // pred_check_branch
          %877 = sbr.rel (%p875) target = $region32
        $region31: #{forward.1} parent=11 // pred_region
          %s879 = ssub.s32 2048, 2048
          %880 = vsyncadd [#allocation8], %s879
          %s881 = sshll.u32 [#allocation9], 4
          %s882 = int_to_ptr.vmem [resolvable:$true] %s881
          %887 = dma.hbm_to_vmem [thread:$0]  %s11, 2048, %s882, [#allocation8], 128, 128, 8
        $region32: #{forward.1} parent=11 // pred_fallthru
          _
        // Predicated region
        $region33: #{forward.1} parent=11 // pred_check
          %p888 = pneg %p236
        $region34: #{forward.1} parent=11 // pred_check_branch
          %890 = sbr.rel (%p888) target = $region36
        $region35: #{forward.1} parent=11 // pred_region
          %s892 = ssub.s32 16, 16
          %893 = vsyncadd [#allocation11], %s892
          %s895 = sshll.u32 [#allocation10], 4
          %s896 = int_to_ptr.vmem [resolvable:$true] %s895
          %898 = dma.hbm_to_vmem [thread:$0]  %s13, 16, %s896, [#allocation11]
        $region36: #{forward.1} parent=11 // pred_fallthru
          _
        // Predicated region
        $region37: #{forward.1} parent=11 // pred_check
          %p899 = pneg %p257
        $region38: #{forward.1} parent=11 // pred_check_branch
          %901 = sbr.rel (%p899) target = $region40
        $region39: #{forward.1} parent=11 // pred_region
          %s903 = ssub.s32 256, 256
          %904 = vsyncadd [#allocation11], %s903
          %s905 = sshll.u32 [#allocation12], 4
          %s906 = int_to_ptr.vmem [resolvable:$true] %s905
          %911 = dma.hbm_to_vmem [thread:$0]  %s15, 256, %s906, [#allocation11], 128, 128, 8
        $region40: #{forward.1} parent=11 // pred_fallthru
          _
        // Predicated region
        $region41: #{forward.1} parent=11 // pred_check
          %p912 = pneg %p278
        $region42: #{forward.1} parent=11 // pred_check_branch
          %914 = sbr.rel (%p912) target = $region44
        $region43: #{forward.1} parent=11 // pred_region
          %s916 = ssub.s32 1024, 1024
          %917 = vsyncadd [#allocation14], %s916
          %s918 = sshll.u32 [#allocation13], 4
          %s919 = int_to_ptr.vmem [resolvable:$true] %s918
          %924 = dma.hbm_to_vmem [thread:$0]  %s17, 1024, %s919, [#allocation14], 128, 128, 8
        $region44: #{forward.1} parent=11 // pred_fallthru
          _
        // Predicated region
        $region45: #{forward.1} parent=11 // pred_check
          %p925 = pneg %p299
        $region46: #{forward.1} parent=11 // pred_check_branch
          %927 = sbr.rel (%p925) target = $region48
        $region47: #{forward.1} parent=11 // pred_region
          %s929 = ssub.s32 16, 16
          %930 = vsyncadd [#allocation14], %s929
          %s932 = sshll.u32 [#allocation15], 4
          %s933 = int_to_ptr.vmem [resolvable:$true] %s932
          %935 = dma.hbm_to_vmem [thread:$0]  %s19, 16, %s933, [#allocation14]
        $region48: #{forward.1} parent=11 // pred_fallthru
          _
        // Predicated region
        $region49: #{forward.1} parent=11 // pred_check
          %p936 = pneg %p320
        $region50: #{forward.1} parent=11 // pred_check_branch
          %938 = sbr.rel (%p936) target = $region52
        $region51: #{forward.1} parent=11 // pred_region
          %s940 = ssub.s32 768, 768
          %941 = vsyncadd [#allocation17], %s940
          %s942 = sshll.u32 [#allocation16], 4
          %s943 = int_to_ptr.vmem [resolvable:$true] %s942
          %948 = dma.hbm_to_vmem [thread:$0]  %s21, 768, %s943, [#allocation17], 128, 128, 8
        $region52: #{forward.1} parent=11 // pred_fallthru
          _
        // Predicated region
        $region53: #{forward.1} parent=11 // pred_check
          %p949 = pneg %p341
        $region54: #{forward.1} parent=11 // pred_check_branch
          %951 = sbr.rel (%p949) target = $region56
        $region55: #{forward.1} parent=11 // pred_region
          %s953 = ssub.s32 3072, 3072
          %954 = vsyncadd [#allocation17], %s953
          %s955 = sshll.u32 [#allocation18], 4
          %s956 = int_to_ptr.vmem [resolvable:$true] %s955
          %961 = dma.hbm_to_vmem [thread:$0]  %s23, 3072, %s956, [#allocation17], 128, 128, 8
        $region56: #{forward.1} parent=11 // pred_fallthru
          _
        // Predicated region
        $region57: #{forward.1} parent=11 // pred_check
          %p962 = pneg %p362
        $region58: #{forward.1} parent=11 // pred_check_branch
          %964 = sbr.rel (%p962) target = $region60
        $region59: #{forward.1} parent=11 // pred_region
          %s966 = ssub.s32 16, 16
          %967 = vsyncadd [#allocation20], %s966
          %s969 = sshll.u32 [#allocation19], 4
          %s970 = int_to_ptr.vmem [resolvable:$true] %s969
          %972 = dma.hbm_to_vmem [thread:$0]  %s25, 16, %s970, [#allocation20]
        $region60: #{forward.1} parent=11 // pred_fallthru
          _
        // Predicated region
        $region61: #{forward.1} parent=11 // pred_check
          %p973 = pneg %p383
        $region62: #{forward.1} parent=11 // pred_check_branch
          %975 = sbr.rel (%p973) target = $region64
        $region63: #{forward.1} parent=11 // pred_region
          %s977 = ssub.s32 2048, 2048
          %978 = vsyncadd [#allocation20], %s977
          %s979 = sshll.u32 [#allocation21], 4
          %s980 = int_to_ptr.vmem [resolvable:$true] %s979
          %985 = dma.hbm_to_vmem [thread:$0]  %s27, 2048, %s980, [#allocation20], 128, 128, 8
        $region64: #{forward.1} parent=11 // pred_fallthru
          _
        // Predicated region
        $region65: #{forward.1} parent=11 // pred_check
          %p986 = pneg %p404
        $region66: #{forward.1} parent=11 // pred_check_branch
          %988 = sbr.rel (%p986) target = $region68
        $region67: #{forward.1} parent=11 // pred_region
          %s990 = ssub.s32 2048, 2048
          %991 = vsyncadd [#allocation23], %s990
          %s992 = sshll.u32 [#allocation22], 4
          %s993 = int_to_ptr.vmem [resolvable:$true] %s992
          %998 = dma.hbm_to_vmem [thread:$0]  %s29, 2048, %s993, [#allocation23], 128, 128, 8
        $region68: #{forward.1} parent=11 // pred_fallthru
          _
        // Predicated region
        $region69: #{forward.1} parent=11 // pred_check
          %p999 = pneg %p425
        $region70: #{forward.1} parent=11 // pred_check_branch
          %1001 = sbr.rel (%p999) target = $region72
        $region71: #{forward.1} parent=11 // pred_region
          %s1003 = ssub.s32 16, 16
          %1004 = vsyncadd [#allocation23], %s1003
          %s1006 = sshll.u32 [#allocation24], 4
          %s1007 = int_to_ptr.vmem [resolvable:$true] %s1006
          %1009 = dma.hbm_to_vmem [thread:$0]  %s31, 16, %s1007, [#allocation23]
        $region72: #{forward.1} parent=11 // pred_fallthru
          _
        // Predicated region
        $region73: #{forward.1} parent=11 // pred_check
          %p1010 = pneg %p446
        $region74: #{forward.1} parent=11 // pred_check_branch
          %1012 = sbr.rel (%p1010) target = $region76
        $region75: #{forward.1} parent=11 // pred_region
          %s1014 = ssub.s32 1536, 1536
          %1015 = vsyncadd [#allocation26], %s1014
          %s1016 = sshll.u32 [#allocation25], 4
          %s1017 = int_to_ptr.vmem [resolvable:$true] %s1016
          %1022 = dma.hbm_to_vmem [thread:$0]  %s33, 1536, %s1017, [#allocation26], 128, 128, 8
        $region76: #{forward.1} parent=11 // pred_fallthru
          _
        // Predicated region
        $region77: #{forward.1} parent=11 // pred_check
          %p1023 = pneg %p467
        $region78: #{forward.1} parent=11 // pred_check_branch
          %1025 = sbr.rel (%p1023) target = $region80
        $region79: #{forward.1} parent=11 // pred_region
          _
        $region80: #{forward.1} parent=11 // pred_fallthru
          _
        // Predicated region
        $region81: #{forward.1} parent=11 // pred_check
          %p1026 = pneg %p488
        $region82: #{forward.1} parent=11 // pred_check_branch
          %1028 = sbr.rel (%p1026) target = $region84
        $region83: #{forward.1} parent=11 // pred_region
          %s1030 = ssub.s32 16, 16
          %1031 = vsyncadd [#allocation26], %s1030
          %s1033 = sshll.u32 [#allocation27], 4
          %s1034 = int_to_ptr.vmem [resolvable:$true] %s1033
          %1036 = dma.hbm_to_vmem [thread:$0]  %s37, 16, %s1034, [#allocation26]
        $region84: #{forward.1} parent=11 // pred_fallthru
          _
        // Predicated region
        $region85: #{forward.1} parent=11 // pred_check
          %p1037 = pneg %p509
        $region86: #{forward.1} parent=11 // pred_check_branch
          %1039 = sbr.rel (%p1037) target = $region88
        $region87: #{forward.1} parent=11 // pred_region
          _
        $region88: #{forward.1} parent=11 // pred_fallthru
          _
        // Predicated region
        $region89: #{forward.1} parent=11 // pred_check
          %p1040 = pneg %p530
        $region90: #{forward.1} parent=11 // pred_check_branch
          %1042 = sbr.rel (%p1040) target = $region92
        $region91: #{forward.1} parent=11 // pred_region
          _
        $region92: #{forward.1} parent=11 // pred_fallthru
          _
        // Predicated region
        $region93: #{forward.1} parent=11 // pred_check
          %p1043 = pneg %p551
        $region94: #{forward.1} parent=11 // pred_check_branch
          %1045 = sbr.rel (%p1043) target = $region96
        $region95: #{forward.1} parent=11 // pred_region
          _
        $region96: #{forward.1} parent=11 // pred_fallthru
          _
        // Predicated region
        $region97: #{forward.1} parent=11 // pred_check
          %p1046 = pneg %p572
        $region98: #{forward.1} parent=11 // pred_check_branch
          %1048 = sbr.rel (%p1046) target = $region100
        $region99: #{forward.1} parent=11 // pred_region
          _
        $region100: #{forward.1} parent=11 // pred_fallthru
          _
        // Predicated region
        $region101: #{forward.1} parent=11 // pred_check
          %p1049 = pneg %p593
        $region102: #{forward.1} parent=11 // pred_check_branch
          %1051 = sbr.rel (%p1049) target = $region104
        $region103: #{forward.1} parent=11 // pred_region
          _
        $region104: #{forward.1} parent=11 // pred_fallthru
          _
        // Predicated region
        $region105: #{forward.1} parent=11 // pred_check
          %p1052 = pneg %p614
        $region106: #{forward.1} parent=11 // pred_check_branch
          %1054 = sbr.rel (%p1052) target = $region108
        $region107: #{forward.1} parent=11 // pred_region
          _
        $region108: #{forward.1} parent=11 // pred_fallthru
          _
        // Predicated region
        $region109: #{forward.1} parent=11 // pred_check
          %p1055 = pneg %p635
        $region110: #{forward.1} parent=11 // pred_check_branch
          %1057 = sbr.rel (%p1055) target = $region112
        $region111: #{forward.1} parent=11 // pred_region
          %s1059 = ssub.s32 128, 128
          %1060 = vsyncadd [#allocation29], %s1059
          %s1062 = sshll.u32 [#allocation28], 4
          %s1063 = int_to_ptr.vmem [resolvable:$true] %s1062
          %1065 = dma.hbm_to_vmem [thread:$0]  %s51, 128, %s1063, [#allocation29]
        $region112: #{forward.1} parent=11 // pred_fallthru
          _
        // Predicated region
        $region113: #{forward.1} parent=11 // pred_check
          %p1066 = pneg %p656
        $region114: #{forward.1} parent=11 // pred_check_branch
          %1068 = sbr.rel (%p1066) target = $region116
        $region115: #{forward.1} parent=11 // pred_region
          %s1070 = ssub.s32 128, 128
          %1071 = vsyncadd [#allocation29], %s1070
          %s1073 = sshll.u32 [#allocation30], 4
          %s1074 = int_to_ptr.vmem [resolvable:$true] %s1073
          %1076 = dma.hbm_to_vmem [thread:$0]  %s53, 128, %s1074, [#allocation29]
        $region116: #{forward.1} parent=11 // pred_fallthru
          _
        // Predicated region
        $region117: #{forward.1} parent=11 // pred_check
          %p1077 = pneg %p677
        $region118: #{forward.1} parent=11 // pred_check_branch
          %1079 = sbr.rel (%p1077) target = $region120
        $region119: #{forward.1} parent=11 // pred_region
          %s1081 = ssub.s32 128, 128
          %1082 = vsyncadd [#allocation32], %s1081
          %s1084 = sshll.u32 [#allocation31], 4
          %s1085 = int_to_ptr.vmem [resolvable:$true] %s1084
          %1087 = dma.hbm_to_vmem [thread:$0]  %s55, 128, %s1085, [#allocation32]
        $region120: #{forward.1} parent=11 // pred_fallthru
          _
        // Predicated region
        $region121: #{forward.1} parent=11 // pred_check
          %p1088 = pneg %p698
        $region122: #{forward.1} parent=11 // pred_check_branch
          %1090 = sbr.rel (%p1088) target = $region124
        $region123: #{forward.1} parent=11 // pred_region
          %s1092 = ssub.s32 128, 128
          %1093 = vsyncadd [#allocation32], %s1092
          %s1095 = sshll.u32 [#allocation33], 4
          %s1096 = int_to_ptr.vmem [resolvable:$true] %s1095
          %1098 = dma.hbm_to_vmem [thread:$0]  %s57, 128, %s1096, [#allocation32]
        $region124: #{forward.1} parent=11 // pred_fallthru
          _
        // Predicated region
        $region125: #{forward.1} parent=11 // pred_check
          %p1099 = pneg %p719
        $region126: #{forward.1} parent=11 // pred_check_branch
          %1101 = sbr.rel (%p1099) target = $region128
        $region127: #{forward.1} parent=11 // pred_region
          _
        $region128: #{forward.1} parent=11 // pred_fallthru
          _
        // Predicated region
        $region129: #{forward.1} parent=11 // pred_check
          %p1102 = pneg %p740
        $region130: #{forward.1} parent=11 // pred_check_branch
          %1104 = sbr.rel (%p1102) target = $region132
        $region131: #{forward.1} parent=11 // pred_region
          _
        $region132: #{forward.1} parent=11 // pred_fallthru
          _
        // Predicated region
        $region133: #{forward.1} parent=11 // pred_check
          %p1105 = pneg %p761
        $region134: #{forward.1} parent=11 // pred_check_branch
          %1107 = sbr.rel (%p1105) target = $region136
        $region135: #{forward.1} parent=11 // pred_region
          _
        $region136: #{forward.1} parent=11 // pred_fallthru
          _
        // Predicated region
        $region137: #{forward.1} parent=11 // pred_check
          %p1108 = pneg %p782
        $region138: #{forward.1} parent=11 // pred_check_branch
          %1110 = sbr.rel (%p1108) target = $region140
        $region139: #{forward.1} parent=11 // pred_region
          _
        $region140: #{forward.1} parent=11 // pred_fallthru
          _
      $region12: #{forward.1} parent=5 // pred_fallthru
        _
      %p1111 = scmp.lt.s32.totalorder %s84, 2
      // Predicated region
      $region141: #{forward.1} parent=5 // pred_check
        %p1112 = pneg %p1111
      $region142: #{forward.1} parent=5 // pred_check_branch
        %1114 = sbr.rel (%p1112) target = $region144
      $region143: #{forward.1} parent=5 // pred_region
        // Predicated region
        $region145: #{forward.1} parent=143 // pred_check
          %p1115 = pneg %p104
        $region146: #{forward.1} parent=143 // pred_check_branch
          %1117 = sbr.rel (%p1115) target = $region148
        $region147: #{forward.1} parent=143 // pred_region
          %p1118 = scmp.lt.s32.totalorder %s84, 1
          %s1119 = scalar_select %p1118, %s84, 1
          %s1120 = smul.addr %s1119, 6
          %s1121 = smul.addr %s1120, 8
          %s1122 = scalar_lea.vmem %s1, %s1121
        $region148: #{forward.1} parent=143 // pred_fallthru
          _
      $region144: #{forward.1} parent=5 // pred_fallthru
        _
      %p1123 = scmp.le.s32.totalorder 1, %s84
      %p1124 = scmp.lt.s32.totalorder %s84, 3
      %p1125 = pnand %p1123, %p1124
      %p1126 = pneg %p1125
      // Predicated region
      $region149: #{forward.1} parent=5 // pred_check
        _
      $region150: #{forward.1} parent=5 // pred_check_branch
        %1128 = sbr.rel (%p1125) target = $region152
      $region151: #{forward.1} parent=5 // pred_region
        %s1129 = ssub.s32 %s84, 1
        // Predicated region
        $region153: #{forward.1} parent=151 // pred_check
          %p1130 = pneg %p131
        $region154: #{forward.1} parent=151 // pred_check_branch
          %1132 = sbr.rel (%p1130) target = $region156
        $region155: #{forward.1} parent=151 // pred_region
          %1133 = dma.done [#allocation3], 192
        $region156: #{forward.1} parent=151 // pred_fallthru
          _
        // Predicated region
        $region157: #{forward.1} parent=151 // pred_check
          %p1134 = pneg %p152
        $region158: #{forward.1} parent=151 // pred_check_branch
          %1136 = sbr.rel (%p1134) target = $region160
        $region159: #{forward.1} parent=151 // pred_region
          %1137 = dma.done [#allocation5], 768
        $region160: #{forward.1} parent=151 // pred_fallthru
          _
        // Predicated region
        $region161: #{forward.1} parent=151 // pred_check
          %p1138 = pneg %p173
        $region162: #{forward.1} parent=151 // pred_check_branch
          %1140 = sbr.rel (%p1138) target = $region164
        $region163: #{forward.1} parent=151 // pred_region
          %1141 = dma.done [#allocation5], 256
        $region164: #{forward.1} parent=151 // pred_fallthru
          _
        // Predicated region
        $region165: #{forward.1} parent=151 // pred_check
          %p1142 = pneg %p194
        $region166: #{forward.1} parent=151 // pred_check_branch
          %1144 = sbr.rel (%p1142) target = $region168
        $region167: #{forward.1} parent=151 // pred_region
          %1145 = dma.done [#allocation8], 1024
        $region168: #{forward.1} parent=151 // pred_fallthru
          _
        // Predicated region
        $region169: #{forward.1} parent=151 // pred_check
          %p1146 = pneg %p215
        $region170: #{forward.1} parent=151 // pred_check_branch
          %1148 = sbr.rel (%p1146) target = $region172
        $region171: #{forward.1} parent=151 // pred_region
          %1149 = dma.done [#allocation8], 2048
        $region172: #{forward.1} parent=151 // pred_fallthru
          _
        // Predicated region
        $region173: #{forward.1} parent=151 // pred_check
          %p1150 = pneg %p236
        $region174: #{forward.1} parent=151 // pred_check_branch
          %1152 = sbr.rel (%p1150) target = $region176
        $region175: #{forward.1} parent=151 // pred_region
          %1153 = dma.done [#allocation11], 16
        $region176: #{forward.1} parent=151 // pred_fallthru
          _
        // Predicated region
        $region177: #{forward.1} parent=151 // pred_check
          %p1154 = pneg %p257
        $region178: #{forward.1} parent=151 // pred_check_branch
          %1156 = sbr.rel (%p1154) target = $region180
        $region179: #{forward.1} parent=151 // pred_region
          %1157 = dma.done [#allocation11], 256
        $region180: #{forward.1} parent=151 // pred_fallthru
          _
        // Predicated region
        $region181: #{forward.1} parent=151 // pred_check
          %p1158 = pneg %p278
        $region182: #{forward.1} parent=151 // pred_check_branch
          %1160 = sbr.rel (%p1158) target = $region184
        $region183: #{forward.1} parent=151 // pred_region
          %1161 = dma.done [#allocation14], 1024
        $region184: #{forward.1} parent=151 // pred_fallthru
          _
        // Predicated region
        $region185: #{forward.1} parent=151 // pred_check
          %p1162 = pneg %p299
        $region186: #{forward.1} parent=151 // pred_check_branch
          %1164 = sbr.rel (%p1162) target = $region188
        $region187: #{forward.1} parent=151 // pred_region
          %1165 = dma.done [#allocation14], 16
        $region188: #{forward.1} parent=151 // pred_fallthru
          _
        // Predicated region
        $region189: #{forward.1} parent=151 // pred_check
          %p1166 = pneg %p320
        $region190: #{forward.1} parent=151 // pred_check_branch
          %1168 = sbr.rel (%p1166) target = $region192
        $region191: #{forward.1} parent=151 // pred_region
          %1169 = dma.done [#allocation17], 768
        $region192: #{forward.1} parent=151 // pred_fallthru
          _
        // Predicated region
        $region193: #{forward.1} parent=151 // pred_check
          %p1170 = pneg %p341
        $region194: #{forward.1} parent=151 // pred_check_branch
          %1172 = sbr.rel (%p1170) target = $region196
        $region195: #{forward.1} parent=151 // pred_region
          %1173 = dma.done [#allocation17], 3072
        $region196: #{forward.1} parent=151 // pred_fallthru
          _
        // Predicated region
        $region197: #{forward.1} parent=151 // pred_check
          %p1174 = pneg %p362
        $region198: #{forward.1} parent=151 // pred_check_branch
          %1176 = sbr.rel (%p1174) target = $region200
        $region199: #{forward.1} parent=151 // pred_region
          %1177 = dma.done [#allocation20], 16
        $region200: #{forward.1} parent=151 // pred_fallthru
          _
        // Predicated region
        $region201: #{forward.1} parent=151 // pred_check
          %p1178 = pneg %p383
        $region202: #{forward.1} parent=151 // pred_check_branch
          %1180 = sbr.rel (%p1178) target = $region204
        $region203: #{forward.1} parent=151 // pred_region
          %1181 = dma.done [#allocation20], 2048
        $region204: #{forward.1} parent=151 // pred_fallthru
          _
        // Predicated region
        $region205: #{forward.1} parent=151 // pred_check
          %p1182 = pneg %p404
        $region206: #{forward.1} parent=151 // pred_check_branch
          %1184 = sbr.rel (%p1182) target = $region208
        $region207: #{forward.1} parent=151 // pred_region
          %1185 = dma.done [#allocation23], 2048
        $region208: #{forward.1} parent=151 // pred_fallthru
          _
        // Predicated region
        $region209: #{forward.1} parent=151 // pred_check
          %p1186 = pneg %p425
        $region210: #{forward.1} parent=151 // pred_check_branch
          %1188 = sbr.rel (%p1186) target = $region212
        $region211: #{forward.1} parent=151 // pred_region
          %1189 = dma.done [#allocation23], 16
        $region212: #{forward.1} parent=151 // pred_fallthru
          _
        // Predicated region
        $region213: #{forward.1} parent=151 // pred_check
          %p1190 = pneg %p446
        $region214: #{forward.1} parent=151 // pred_check_branch
          %1192 = sbr.rel (%p1190) target = $region216
        $region215: #{forward.1} parent=151 // pred_region
          %1193 = dma.done [#allocation26], 1536
        $region216: #{forward.1} parent=151 // pred_fallthru
          _
        // Predicated region
        $region217: #{forward.1} parent=151 // pred_check
          %p1194 = pneg %p488
        $region218: #{forward.1} parent=151 // pred_check_branch
          %1196 = sbr.rel (%p1194) target = $region220
        $region219: #{forward.1} parent=151 // pred_region
          %1197 = dma.done [#allocation26], 16
        $region220: #{forward.1} parent=151 // pred_fallthru
          _
        // Predicated region
        $region221: #{forward.1} parent=151 // pred_check
          %p1198 = pneg %p635
        $region222: #{forward.1} parent=151 // pred_check_branch
          %1200 = sbr.rel (%p1198) target = $region224
        $region223: #{forward.1} parent=151 // pred_region
          %1201 = dma.done [#allocation29], 128
        $region224: #{forward.1} parent=151 // pred_fallthru
          _
        // Predicated region
        $region225: #{forward.1} parent=151 // pred_check
          %p1202 = pneg %p656
        $region226: #{forward.1} parent=151 // pred_check_branch
          %1204 = sbr.rel (%p1202) target = $region228
        $region227: #{forward.1} parent=151 // pred_region
          %1205 = dma.done [#allocation29], 128
        $region228: #{forward.1} parent=151 // pred_fallthru
          _
        // Predicated region
        $region229: #{forward.1} parent=151 // pred_check
          %p1206 = pneg %p677
        $region230: #{forward.1} parent=151 // pred_check_branch
          %1208 = sbr.rel (%p1206) target = $region232
        $region231: #{forward.1} parent=151 // pred_region
          %1209 = dma.done [#allocation32], 128
        $region232: #{forward.1} parent=151 // pred_fallthru
          _
        // Predicated region
        $region233: #{forward.1} parent=151 // pred_check
          %p1210 = pneg %p698
        $region234: #{forward.1} parent=151 // pred_check_branch
          %1212 = sbr.rel (%p1210) target = $region236
        $region235: #{forward.1} parent=151 // pred_region
          %1213 = dma.done [#allocation32], 128
        $region236: #{forward.1} parent=151 // pred_fallthru
          _
        %p1214 = scmp.lt.s32.totalorder %s89, 1
        %s1215 = scalar_select %p1214, %s89, 1
        %s1216 = smul.addr %s1215, 6
        %s1217 = smul.addr %s1216, 8
        %s1218 = scalar_lea.vmem %s1, %s1217
        %p1219 = pneg %p110
        %p1220 = pneg %p107
        %p1221 = pneg %p131
        %p1222 = pneg %p128
        %p1223 = pneg %p152
        %p1224 = pneg %p149
        %p1225 = pneg %p173
        %p1226 = pneg %p170
        %p1227 = pneg %p194
        %p1228 = pneg %p191
        %p1229 = pneg %p215
        %p1230 = pneg %p212
        %p1231 = pneg %p236
        %p1232 = pneg %p233
        %p1233 = pneg %p257
        %p1234 = pneg %p254
        %p1235 = pneg %p278
        %p1236 = pneg %p275
        %p1237 = pneg %p299
        %p1238 = pneg %p296
        %p1239 = pneg %p320
        %p1240 = pneg %p317
        %p1241 = pneg %p341
        %p1242 = pneg %p338
        %p1243 = pneg %p362
        %p1244 = pneg %p359
        %p1245 = pneg %p383
        %p1246 = pneg %p380
        %p1247 = pneg %p404
        %p1248 = pneg %p401
        %p1249 = pneg %p425
        %p1250 = pneg %p422
        %p1251 = pneg %p446
        %p1252 = pneg %p443
        %p1253 = pneg %p467
        %p1254 = pneg %p464
        %p1255 = pneg %p488
        %p1256 = pneg %p485
        %p1257 = pneg %p509
        %p1258 = pneg %p506
        %p1259 = pneg %p530
        %p1260 = pneg %p527
        %p1261 = pneg %p551
        %p1262 = pneg %p548
        %p1263 = pneg %p572
        %p1264 = pneg %p569
        %p1265 = pneg %p593
        %p1266 = pneg %p590
        %p1267 = pneg %p614
        %p1268 = pneg %p611
        %p1269 = pneg %p635
        %p1270 = pneg %p632
        %p1271 = pneg %p656
        %p1272 = pneg %p653
        %p1273 = pneg %p677
        %p1274 = pneg %p674
        %p1275 = pneg %p698
        %p1276 = pneg %p695
        %p1277 = pneg %p719
        %p1278 = pneg %p716
        %p1279 = pneg %p740
        %p1280 = pneg %p737
        %p1281 = pneg %p761
        %p1282 = pneg %p758
        %p1283 = pneg %p782
        %p1284 = pneg %p779
        %p1285 = pneg %p808
        %p1286 = pneg %p805
        %p1287 = scmp.lt.s32.totalorder %s89, 1
        %s1288 = scalar_select %p1287, %s89, 1
        %s1289 = smul.addr %s1288, 3
        %s1290 = smul.addr %s1289, 8
        %s1291 = scalar_lea.vmem %s67, %s1290
        %p1292 = scmp.lt.s32.totalorder %s89, 1
        %s1293 = scalar_select %p1292, %s89, 1
        %s1294 = smul.addr %s1293, 6
        %s1295 = smul.addr %s1294, 8
        %s1296 = scalar_lea.vmem %s1, %s1295
        %p1297 = scmp.lt.s32.totalorder %s89, 1
        %s1298 = scalar_select %p1297, %s89, 1
        %s1299 = smul.addr %s1298, 3
        %s1300 = smul.addr %s1299, 8
        %s1301 = scalar_lea.vmem %s67, %s1300
        %v1302 = vld [vmem:[%s1296] sm:$0xff]
        %v1303 = vld [vmem:[%s1296 + $0x8] sm:$0xff]
        %v1304 = vld [vmem:[%s1296 + $0x10] sm:$0xff]
        %v1305 = vld [vmem:[%s1296 + $0x18] sm:$0xff]
        %v1306 = vld [vmem:[%s1296 + $0x20] sm:$0xff]
        %v1307 = vld [vmem:[%s1296 + $0x28] sm:$0xff]
        %v1308 = vld [vmem:[#allocation6] sm:$0xff]
        %v1309 = vld [vmem:[#allocation6 + $0x8] sm:$0xff]
        %v1310 = vld [vmem:[#allocation4] sm:$0xff]
        %v1311 = vld [vmem:[#allocation4 + $0x8] sm:$0xff]
        %vm1312 = vcmask 130048
        %v1314 = vsel %vm1312, %v1310, 0
        %v1317 = vsel %vm1312, %v1311, 0
        %1319 = vmatprep.subr.mxu0 0.0
        %1320 = vmatpush1.msra.mxu0 %v1304
        %1321 = vmatprep.subr.mxu0 0.0
        %1322 = vmatpush1.msra.mxu0 %v1305
        %1323 = vmatprep.subr.mxu0 0.0
        %1324 = vmatpush1.msra.mxu0 0.0
        %1325 = vmatprep.subr.mxu0 0.0
        %1326 = vmatpush1.msra.mxu0 0.0
        %1327 = vmatprep.subr.mxu0 0.0
        %1328 = vmatpush1.msra.mxu0 0.0
        %1329 = vmatprep.subr.mxu0 0.0
        %1330 = vmatpush1.msra.mxu0 0.0
        %1331 = vmatprep.subr.mxu0 0.0
        %1332 = vmatpush1.msra.mxu0 0.0
        %1333 = vmatprep.subr.mxu0 0.0
        %1334 = vmatpush1.msra.mxu0 0.0
        %1335 = vmatprep.subr.mxu0 0.0
        %1336 = vmatpush1.msra.mxu0 0.0
        %1337 = vmatprep.subr.mxu0 0.0
        %1338 = vmatpush1.msra.mxu0 0.0
        %1339 = vmatprep.subr.mxu0 0.0
        %1340 = vmatpush1.msra.mxu0 0.0
        %1341 = vmatprep.subr.mxu0 0.0
        %1342 = vmatpush1.msra.mxu0 0.0
        %1343 = vmatprep.subr.mxu0 0.0
        %1344 = vmatpush1.msra.mxu0 0.0
        %1345 = vmatprep.subr.mxu0 0.0
        %1346 = vmatpush1.msra.mxu0 0.0
        %1347 = vmatprep.subr.mxu0 0.0
        %1348 = vmatpush1.msra.mxu0 0.0
        %1349 = vmatprep.subr.mxu0 0.0
        %1350 = vmatpush1.msra.mxu0 0.0
        %1351 = vmatprep.subr.mxu0 0.0
        %1352 = vmatpush1.msra.mxu0 0.0
        %1353 = vmatprep.subr.mxu0 0.0
        %1354 = vmatpush1.msra.mxu0 0.0
        %1355 = vmatprep.subr.mxu0 0.0
        %1356 = vmatpush1.msra.mxu0 0.0
        %1357 = vmatprep.subr.mxu0 0.0
        %1358 = vmatpush1.msra.mxu0 0.0
        %1359 = vmatprep.subr.mxu0 0.0
        %1360 = vmatpush1.msra.mxu0 0.0
        %1361 = vmatprep.subr.mxu0 0.0
        %1362 = vmatpush1.msra.mxu0 0.0
        %1363 = vmatprep.subr.mxu0 0.0
        %1364 = vmatpush1.msra.mxu0 0.0
        %1365 = vmatprep.subr.mxu0 0.0
        %1366 = vmatpush1.msra.mxu0 0.0
        %1367 = vmatprep.subr.mxu0 0.0
        %1368 = vmatpush1.msra.mxu0 0.0
        %1369 = vmatprep.subr.mxu0 0.0
        %1370 = vmatpush1.msra.mxu0 0.0
        %1371 = vmatprep.subr.mxu0 0.0
        %1372 = vmatpush1.msra.mxu0 0.0
        %1373 = vmatprep.subr.mxu0 0.0
        %1374 = vmatpush1.msra.mxu0 0.0
        %1375 = vmatprep.subr.mxu0 0.0
        %1376 = vmatpush1.msra.mxu0 0.0
        %1377 = vmatprep.subr.mxu0 0.0
        %1378 = vmatpush1.msra.mxu0 0.0
        %1379 = vmatprep.subr.mxu0 0.0
        %1380 = vmatpush1.msra.mxu0 0.0
        %1381 = vmatprep.subr.mxu0 0.0
        %1382 = vmatpush1.msra.mxu0 0.0
        %1383 = vmatprep.mubr.f32.mxu0 0.0
        %1384 = vmatmul.mubr.f32.gmra.mrb[0].mxu0 %v1314
        %v1385 = vpop.f32.mrb[0].mxu0
        %v1386 = vadd.f32 0.0, %v1385
        %v1387 = vpop.f32.mrb[0].mxu0
        %1388 = vmatprep.mubr.f32.mxu0 0.0
        %1389 = vmatmul.mubr.f32.gmra.mrb[0].mxu0 %v1317
        %v1390 = vpop.f32.mrb[0].mxu0
        %v1391 = vadd.f32 0.0, %v1390
        %v1392 = vpop.f32.mrb[0].mxu0
        %1393 = vdwg.mxu0
        %v1394 = vld [vmem:[#allocation2] sm:$0xf]
        %vm1395 = vcmask 31744
        %v1397 = vsel %vm1395, %v1386, 0
        %v1400 = vsel %vm1395, %v1391, 0
        %vm1402 = vcmask 1043456
        %v1404 = vsel %vm1402, %v1394, 0
        %1406 = vmatprep.subr.mxu0 0.0
        %1407 = vmatpush1.msra.mxu0 %v1404
        %1408 = vmatprep.subr.mxu0 0.0
        %1409 = vmatpush1.msra.mxu0 0.0
        %1410 = vmatprep.subr.mxu0 0.0
        %1411 = vmatpush1.msra.mxu0 0.0
        %1412 = vmatprep.subr.mxu0 0.0
        %1413 = vmatpush1.msra.mxu0 0.0
        %1414 = vmatprep.subr.mxu0 0.0
        %1415 = vmatpush1.msra.mxu0 0.0
        %1416 = vmatprep.subr.mxu0 0.0
        %1417 = vmatpush1.msra.mxu0 0.0
        %1418 = vmatprep.subr.mxu0 0.0
        %1419 = vmatpush1.msra.mxu0 0.0
        %1420 = vmatprep.subr.mxu0 0.0
        %1421 = vmatpush1.msra.mxu0 0.0
        %1422 = vmatprep.subr.mxu0 0.0
        %1423 = vmatpush1.msra.mxu0 0.0
        %1424 = vmatprep.subr.mxu0 0.0
        %1425 = vmatpush1.msra.mxu0 0.0
        %1426 = vmatprep.subr.mxu0 0.0
        %1427 = vmatpush1.msra.mxu0 0.0
        %1428 = vmatprep.subr.mxu0 0.0
        %1429 = vmatpush1.msra.mxu0 0.0
        %1430 = vmatprep.subr.mxu0 0.0
        %1431 = vmatpush1.msra.mxu0 0.0
        %1432 = vmatprep.subr.mxu0 0.0
        %1433 = vmatpush1.msra.mxu0 0.0
        %1434 = vmatprep.subr.mxu0 0.0
        %1435 = vmatpush1.msra.mxu0 0.0
        %1436 = vmatprep.subr.mxu0 0.0
        %1437 = vmatpush1.msra.mxu0 0.0
        %1438 = vmatprep.subr.mxu0 0.0
        %1439 = vmatpush1.msra.mxu0 0.0
        %1440 = vmatprep.subr.mxu0 0.0
        %1441 = vmatpush1.msra.mxu0 0.0
        %1442 = vmatprep.subr.mxu0 0.0
        %1443 = vmatpush1.msra.mxu0 0.0
        %1444 = vmatprep.subr.mxu0 0.0
        %1445 = vmatpush1.msra.mxu0 0.0
        %1446 = vmatprep.subr.mxu0 0.0
        %1447 = vmatpush1.msra.mxu0 0.0
        %1448 = vmatprep.subr.mxu0 0.0
        %1449 = vmatpush1.msra.mxu0 0.0
        %1450 = vmatprep.subr.mxu0 0.0
        %1451 = vmatpush1.msra.mxu0 0.0
        %1452 = vmatprep.subr.mxu0 0.0
        %1453 = vmatpush1.msra.mxu0 0.0
        %1454 = vmatprep.subr.mxu0 0.0
        %1455 = vmatpush1.msra.mxu0 0.0
        %1456 = vmatprep.subr.mxu0 0.0
        %1457 = vmatpush1.msra.mxu0 0.0
        %1458 = vmatprep.subr.mxu0 0.0
        %1459 = vmatpush1.msra.mxu0 0.0
        %1460 = vmatprep.subr.mxu0 0.0
        %1461 = vmatpush1.msra.mxu0 0.0
        %1462 = vmatprep.subr.mxu0 0.0
        %1463 = vmatpush1.msra.mxu0 0.0
        %1464 = vmatprep.subr.mxu0 0.0
        %1465 = vmatpush1.msra.mxu0 0.0
        %1466 = vmatprep.subr.mxu0 0.0
        %1467 = vmatpush1.msra.mxu0 0.0
        %1468 = vmatprep.subr.mxu0 0.0
        %1469 = vmatpush1.msra.mxu0 0.0
        %1470 = vmatprep.mubr.f32.mxu0 0.0
        %1471 = vmatmul.mubr.f32.gmra.mrb[0].mxu0 %v1397
        %v1472 = vpop.f32.mrb[0].mxu0
        %v1473 = vadd.f32 0.0, %v1472
        %v1474 = vpop.f32.mrb[0].mxu0
        %1475 = vmatprep.mubr.f32.mxu0 0.0
        %1476 = vmatmul.mubr.f32.gmra.mrb[0].mxu0 %v1400
        %v1477 = vpop.f32.mrb[0].mxu0
        %v1478 = vadd.f32 0.0, %v1477
        %v1479 = vpop.f32.mrb[0].mxu0
        %1480 = vdwg.mxu0
        %v1481 = vadd.f32 %v1308, %v1473
        %v1482 = vadd.f32 %v1309, %v1478
        %s1483 = scalar_lea.vmem [#allocation4], 16
        %v1484 = vld [vmem:[%s1483] sm:$0xff]
        %v1485 = vld [vmem:[%s1483 + $0x8] sm:$0xff]
        %v1487 = vsel %vm1312, %v1484, 0
        %v1490 = vsel %vm1312, %v1485, 0
        %1492 = vmatprep.subr.mxu0 0.0
        %1493 = vmatpush1.msra.mxu0 %v1304
        %1494 = vmatprep.subr.mxu0 0.0
        %1495 = vmatpush1.msra.mxu0 %v1305
        %1496 = vmatprep.subr.mxu0 0.0
        %1497 = vmatpush1.msra.mxu0 0.0
        %1498 = vmatprep.subr.mxu0 0.0
        %1499 = vmatpush1.msra.mxu0 0.0
        %1500 = vmatprep.subr.mxu0 0.0
        %1501 = vmatpush1.msra.mxu0 0.0
        %1502 = vmatprep.subr.mxu0 0.0
        %1503 = vmatpush1.msra.mxu0 0.0
        %1504 = vmatprep.subr.mxu0 0.0
        %1505 = vmatpush1.msra.mxu0 0.0
        %1506 = vmatprep.subr.mxu0 0.0
        %1507 = vmatpush1.msra.mxu0 0.0
        %1508 = vmatprep.subr.mxu0 0.0
        %1509 = vmatpush1.msra.mxu0 0.0
        %1510 = vmatprep.subr.mxu0 0.0
        %1511 = vmatpush1.msra.mxu0 0.0
        %1512 = vmatprep.subr.mxu0 0.0
        %1513 = vmatpush1.msra.mxu0 0.0
        %1514 = vmatprep.subr.mxu0 0.0
        %1515 = vmatpush1.msra.mxu0 0.0
        %1516 = vmatprep.subr.mxu0 0.0
        %1517 = vmatpush1.msra.mxu0 0.0
        %1518 = vmatprep.subr.mxu0 0.0
        %1519 = vmatpush1.msra.mxu0 0.0
        %1520 = vmatprep.subr.mxu0 0.0
        %1521 = vmatpush1.msra.mxu0 0.0
        %1522 = vmatprep.subr.mxu0 0.0
        %1523 = vmatpush1.msra.mxu0 0.0
        %1524 = vmatprep.subr.mxu0 0.0
        %1525 = vmatpush1.msra.mxu0 0.0
        %1526 = vmatprep.subr.mxu0 0.0
        %1527 = vmatpush1.msra.mxu0 0.0
        %1528 = vmatprep.subr.mxu0 0.0
        %1529 = vmatpush1.msra.mxu0 0.0
        %1530 = vmatprep.subr.mxu0 0.0
        %1531 = vmatpush1.msra.mxu0 0.0
        %1532 = vmatprep.subr.mxu0 0.0
        %1533 = vmatpush1.msra.mxu0 0.0
        %1534 = vmatprep.subr.mxu0 0.0
        %1535 = vmatpush1.msra.mxu0 0.0
        %1536 = vmatprep.subr.mxu0 0.0
        %1537 = vmatpush1.msra.mxu0 0.0
        %1538 = vmatprep.subr.mxu0 0.0
        %1539 = vmatpush1.msra.mxu0 0.0
        %1540 = vmatprep.subr.mxu0 0.0
        %1541 = vmatpush1.msra.mxu0 0.0
        %1542 = vmatprep.subr.mxu0 0.0
        %1543 = vmatpush1.msra.mxu0 0.0
        %1544 = vmatprep.subr.mxu0 0.0
        %1545 = vmatpush1.msra.mxu0 0.0
        %1546 = vmatprep.subr.mxu0 0.0
        %1547 = vmatpush1.msra.mxu0 0.0
        %1548 = vmatprep.subr.mxu0 0.0
        %1549 = vmatpush1.msra.mxu0 0.0
        %1550 = vmatprep.subr.mxu0 0.0
        %1551 = vmatpush1.msra.mxu0 0.0
        %1552 = vmatprep.subr.mxu0 0.0
        %1553 = vmatpush1.msra.mxu0 0.0
        %1554 = vmatprep.subr.mxu0 0.0
        %1555 = vmatpush1.msra.mxu0 0.0
        %1556 = vmatprep.mubr.f32.mxu0 0.0
        %1557 = vmatmul.mubr.f32.gmra.mrb[0].mxu0 %v1487
        %v1558 = vpop.f32.mrb[0].mxu0
        %v1559 = vadd.f32 0.0, %v1558
        %v1560 = vpop.f32.mrb[0].mxu0
        %1561 = vmatprep.mubr.f32.mxu0 0.0
        %1562 = vmatmul.mubr.f32.gmra.mrb[0].mxu0 %v1490
        %v1563 = vpop.f32.mrb[0].mxu0
        %v1564 = vadd.f32 0.0, %v1563
        %v1565 = vpop.f32.mrb[0].mxu0
        %1566 = vdwg.mxu0
        %s1567 = scalar_lea.vmem [#allocation2], 4
        %v1568 = vld [vmem:[%s1567] sm:$0xf]
        %v1570 = vsel %vm1395, %v1559, 0
        %v1573 = vsel %vm1395, %v1564, 0
        %v1576 = vsel %vm1402, %v1568, 0
        %1578 = vmatprep.subr.mxu0 0.0
        %1579 = vmatpush1.msra.mxu0 %v1576
        %1580 = vmatprep.subr.mxu0 0.0
        %1581 = vmatpush1.msra.mxu0 0.0
        %1582 = vmatprep.subr.mxu0 0.0
        %1583 = vmatpush1.msra.mxu0 0.0
        %1584 = vmatprep.subr.mxu0 0.0
        %1585 = vmatpush1.msra.mxu0 0.0
        %1586 = vmatprep.subr.mxu0 0.0
        %1587 = vmatpush1.msra.mxu0 0.0
        %1588 = vmatprep.subr.mxu0 0.0
        %1589 = vmatpush1.msra.mxu0 0.0
        %1590 = vmatprep.subr.mxu0 0.0
        %1591 = vmatpush1.msra.mxu0 0.0
        %1592 = vmatprep.subr.mxu0 0.0
        %1593 = vmatpush1.msra.mxu0 0.0
        %1594 = vmatprep.subr.mxu0 0.0
        %1595 = vmatpush1.msra.mxu0 0.0
        %1596 = vmatprep.subr.mxu0 0.0
        %1597 = vmatpush1.msra.mxu0 0.0
        %1598 = vmatprep.subr.mxu0 0.0
        %1599 = vmatpush1.msra.mxu0 0.0
        %1600 = vmatprep.subr.mxu0 0.0
        %1601 = vmatpush1.msra.mxu0 0.0
        %1602 = vmatprep.subr.mxu0 0.0
        %1603 = vmatpush1.msra.mxu0 0.0
        %1604 = vmatprep.subr.mxu0 0.0
        %1605 = vmatpush1.msra.mxu0 0.0
        %1606 = vmatprep.subr.mxu0 0.0
        %1607 = vmatpush1.msra.mxu0 0.0
        %1608 = vmatprep.subr.mxu0 0.0
        %1609 = vmatpush1.msra.mxu0 0.0
        %1610 = vmatprep.subr.mxu0 0.0
        %1611 = vmatpush1.msra.mxu0 0.0
        %1612 = vmatprep.subr.mxu0 0.0
        %1613 = vmatpush1.msra.mxu0 0.0
        %1614 = vmatprep.subr.mxu0 0.0
        %1615 = vmatpush1.msra.mxu0 0.0
        %1616 = vmatprep.subr.mxu0 0.0
        %1617 = vmatpush1.msra.mxu0 0.0
        %1618 = vmatprep.subr.mxu0 0.0
        %1619 = vmatpush1.msra.mxu0 0.0
        %1620 = vmatprep.subr.mxu0 0.0
        %1621 = vmatpush1.msra.mxu0 0.0
        %1622 = vmatprep.subr.mxu0 0.0
        %1623 = vmatpush1.msra.mxu0 0.0
        %1624 = vmatprep.subr.mxu0 0.0
        %1625 = vmatpush1.msra.mxu0 0.0
        %1626 = vmatprep.subr.mxu0 0.0
        %1627 = vmatpush1.msra.mxu0 0.0
        %1628 = vmatprep.subr.mxu0 0.0
        %1629 = vmatpush1.msra.mxu0 0.0
        %1630 = vmatprep.subr.mxu0 0.0
        %1631 = vmatpush1.msra.mxu0 0.0
        %1632 = vmatprep.subr.mxu0 0.0
        %1633 = vmatpush1.msra.mxu0 0.0
        %1634 = vmatprep.subr.mxu0 0.0
        %1635 = vmatpush1.msra.mxu0 0.0
        %1636 = vmatprep.subr.mxu0 0.0
        %1637 = vmatpush1.msra.mxu0 0.0
        %1638 = vmatprep.subr.mxu0 0.0
        %1639 = vmatpush1.msra.mxu0 0.0
        %1640 = vmatprep.subr.mxu0 0.0
        %1641 = vmatpush1.msra.mxu0 0.0
        %1642 = vmatprep.mubr.f32.mxu0 0.0
        %1643 = vmatmul.mubr.f32.gmra.mrb[0].mxu0 %v1570
        %v1644 = vpop.f32.mrb[0].mxu0
        %v1645 = vadd.f32 0.0, %v1644
        %v1646 = vpop.f32.mrb[0].mxu0
        %1647 = vmatprep.mubr.f32.mxu0 0.0
        %1648 = vmatmul.mubr.f32.gmra.mrb[0].mxu0 %v1573
        %v1649 = vpop.f32.mrb[0].mxu0
        %v1650 = vadd.f32 0.0, %v1649
        %v1651 = vpop.f32.mrb[0].mxu0
        %1652 = vdwg.mxu0
        %v1653 = vadd.f32 %v1481, %v1645
        %v1654 = vadd.f32 %v1482, %v1650
        %s1655 = scalar_lea.vmem [#allocation4], 32
        %v1656 = vld [vmem:[%s1655] sm:$0xff]
        %v1657 = vld [vmem:[%s1655 + $0x8] sm:$0xff]
        %v1659 = vsel %vm1312, %v1656, 0
        %v1662 = vsel %vm1312, %v1657, 0
        %1664 = vmatprep.subr.mxu0 0.0
        %1665 = vmatpush1.msra.mxu0 %v1304
        %1666 = vmatprep.subr.mxu0 0.0
        %1667 = vmatpush1.msra.mxu0 %v1305
        %1668 = vmatprep.subr.mxu0 0.0
        %1669 = vmatpush1.msra.mxu0 0.0
        %1670 = vmatprep.subr.mxu0 0.0
        %1671 = vmatpush1.msra.mxu0 0.0
        %1672 = vmatprep.subr.mxu0 0.0
        %1673 = vmatpush1.msra.mxu0 0.0
        %1674 = vmatprep.subr.mxu0 0.0
        %1675 = vmatpush1.msra.mxu0 0.0
        %1676 = vmatprep.subr.mxu0 0.0
        %1677 = vmatpush1.msra.mxu0 0.0
        %1678 = vmatprep.subr.mxu0 0.0
        %1679 = vmatpush1.msra.mxu0 0.0
        %1680 = vmatprep.subr.mxu0 0.0
        %1681 = vmatpush1.msra.mxu0 0.0
        %1682 = vmatprep.subr.mxu0 0.0
        %1683 = vmatpush1.msra.mxu0 0.0
        %1684 = vmatprep.subr.mxu0 0.0
        %1685 = vmatpush1.msra.mxu0 0.0
        %1686 = vmatprep.subr.mxu0 0.0
        %1687 = vmatpush1.msra.mxu0 0.0
        %1688 = vmatprep.subr.mxu0 0.0
        %1689 = vmatpush1.msra.mxu0 0.0
        %1690 = vmatprep.subr.mxu0 0.0
        %1691 = vmatpush1.msra.mxu0 0.0
        %1692 = vmatprep.subr.mxu0 0.0
        %1693 = vmatpush1.msra.mxu0 0.0
        %1694 = vmatprep.subr.mxu0 0.0
        %1695 = vmatpush1.msra.mxu0 0.0
        %1696 = vmatprep.subr.mxu0 0.0
        %1697 = vmatpush1.msra.mxu0 0.0
        %1698 = vmatprep.subr.mxu0 0.0
        %1699 = vmatpush1.msra.mxu0 0.0
        %1700 = vmatprep.subr.mxu0 0.0
        %1701 = vmatpush1.msra.mxu0 0.0
        %1702 = vmatprep.subr.mxu0 0.0
        %1703 = vmatpush1.msra.mxu0 0.0
        %1704 = vmatprep.subr.mxu0 0.0
        %1705 = vmatpush1.msra.mxu0 0.0
        %1706 = vmatprep.subr.mxu0 0.0
        %1707 = vmatpush1.msra.mxu0 0.0
        %1708 = vmatprep.subr.mxu0 0.0
        %1709 = vmatpush1.msra.mxu0 0.0
        %1710 = vmatprep.subr.mxu0 0.0
        %1711 = vmatpush1.msra.mxu0 0.0
        %1712 = vmatprep.subr.mxu0 0.0
        %1713 = vmatpush1.msra.mxu0 0.0
        %1714 = vmatprep.subr.mxu0 0.0
        %1715 = vmatpush1.msra.mxu0 0.0
        %1716 = vmatprep.subr.mxu0 0.0
        %1717 = vmatpush1.msra.mxu0 0.0
        %1718 = vmatprep.subr.mxu0 0.0
        %1719 = vmatpush1.msra.mxu0 0.0
        %1720 = vmatprep.subr.mxu0 0.0
        %1721 = vmatpush1.msra.mxu0 0.0
        %1722 = vmatprep.subr.mxu0 0.0
        %1723 = vmatpush1.msra.mxu0 0.0
        %1724 = vmatprep.subr.mxu0 0.0
        %1725 = vmatpush1.msra.mxu0 0.0
        %1726 = vmatprep.subr.mxu0 0.0
        %1727 = vmatpush1.msra.mxu0 0.0
        %1728 = vmatprep.mubr.f32.mxu0 0.0
        %1729 = vmatmul.mubr.f32.gmra.mrb[0].mxu0 %v1659
        %v1730 = vpop.f32.mrb[0].mxu0
        %v1731 = vadd.f32 0.0, %v1730
        %v1732 = vpop.f32.mrb[0].mxu0
        %1733 = vmatprep.mubr.f32.mxu0 0.0
        %1734 = vmatmul.mubr.f32.gmra.mrb[0].mxu0 %v1662
        %v1735 = vpop.f32.mrb[0].mxu0
        %v1736 = vadd.f32 0.0, %v1735
        %v1737 = vpop.f32.mrb[0].mxu0
        %1738 = vdwg.mxu0
        %s1739 = scalar_lea.vmem [#allocation2], 8
        %v1740 = vld [vmem:[%s1739] sm:$0xf]
        %v1742 = vsel %vm1395, %v1731, 0
        %v1745 = vsel %vm1395, %v1736, 0
        %v1748 = vsel %vm1402, %v1740, 0
        %1750 = vmatprep.subr.mxu0 0.0
        %1751 = vmatpush1.msra.mxu0 %v1748
        %1752 = vmatprep.subr.mxu0 0.0
        %1753 = vmatpush1.msra.mxu0 0.0
        %1754 = vmatprep.subr.mxu0 0.0
        %1755 = vmatpush1.msra.mxu0 0.0
        %1756 = vmatprep.subr.mxu0 0.0
        %1757 = vmatpush1.msra.mxu0 0.0
        %1758 = vmatprep.subr.mxu0 0.0
        %1759 = vmatpush1.msra.mxu0 0.0
        %1760 = vmatprep.subr.mxu0 0.0
        %1761 = vmatpush1.msra.mxu0 0.0
        %1762 = vmatprep.subr.mxu0 0.0
        %1763 = vmatpush1.msra.mxu0 0.0
        %1764 = vmatprep.subr.mxu0 0.0
        %1765 = vmatpush1.msra.mxu0 0.0
        %1766 = vmatprep.subr.mxu0 0.0
        %1767 = vmatpush1.msra.mxu0 0.0
        %1768 = vmatprep.subr.mxu0 0.0
        %1769 = vmatpush1.msra.mxu0 0.0
        %1770 = vmatprep.subr.mxu0 0.0
        %1771 = vmatpush1.msra.mxu0 0.0
        %1772 = vmatprep.subr.mxu0 0.0
        %1773 = vmatpush1.msra.mxu0 0.0
        %1774 = vmatprep.subr.mxu0 0.0
        %1775 = vmatpush1.msra.mxu0 0.0
        %1776 = vmatprep.subr.mxu0 0.0
        %1777 = vmatpush1.msra.mxu0 0.0
        %1778 = vmatprep.subr.mxu0 0.0
        %1779 = vmatpush1.msra.mxu0 0.0
        %1780 = vmatprep.subr.mxu0 0.0
        %1781 = vmatpush1.msra.mxu0 0.0
        %1782 = vmatprep.subr.mxu0 0.0
        %1783 = vmatpush1.msra.mxu0 0.0
        %1784 = vmatprep.subr.mxu0 0.0
        %1785 = vmatpush1.msra.mxu0 0.0
        %1786 = vmatprep.subr.mxu0 0.0
        %1787 = vmatpush1.msra.mxu0 0.0
        %1788 = vmatprep.subr.mxu0 0.0
        %1789 = vmatpush1.msra.mxu0 0.0
        %1790 = vmatprep.subr.mxu0 0.0
        %1791 = vmatpush1.msra.mxu0 0.0
        %1792 = vmatprep.subr.mxu0 0.0
        %1793 = vmatpush1.msra.mxu0 0.0
        %1794 = vmatprep.subr.mxu0 0.0
        %1795 = vmatpush1.msra.mxu0 0.0
        %1796 = vmatprep.subr.mxu0 0.0
        %1797 = vmatpush1.msra.mxu0 0.0
        %1798 = vmatprep.subr.mxu0 0.0
        %1799 = vmatpush1.msra.mxu0 0.0
        %1800 = vmatprep.subr.mxu0 0.0
        %1801 = vmatpush1.msra.mxu0 0.0
        %1802 = vmatprep.subr.mxu0 0.0
        %1803 = vmatpush1.msra.mxu0 0.0
        %1804 = vmatprep.subr.mxu0 0.0
        %1805 = vmatpush1.msra.mxu0 0.0
        %1806 = vmatprep.subr.mxu0 0.0
        %1807 = vmatpush1.msra.mxu0 0.0
        %1808 = vmatprep.subr.mxu0 0.0
        %1809 = vmatpush1.msra.mxu0 0.0
        %1810 = vmatprep.subr.mxu0 0.0
        %1811 = vmatpush1.msra.mxu0 0.0
        %1812 = vmatprep.subr.mxu0 0.0
        %1813 = vmatpush1.msra.mxu0 0.0
        %1814 = vmatprep.mubr.f32.mxu0 0.0
        %1815 = vmatmul.mubr.f32.gmra.mrb[0].mxu0 %v1742
        %v1816 = vpop.f32.mrb[0].mxu0
        %v1817 = vadd.f32 0.0, %v1816
        %v1818 = vpop.f32.mrb[0].mxu0
        %1819 = vmatprep.mubr.f32.mxu0 0.0
        %1820 = vmatmul.mubr.f32.gmra.mrb[0].mxu0 %v1745
        %v1821 = vpop.f32.mrb[0].mxu0
        %v1822 = vadd.f32 0.0, %v1821
        %v1823 = vpop.f32.mrb[0].mxu0
        %1824 = vdwg.mxu0
        %v1825 = vadd.f32 %v1653, %v1817
        %v1826 = vadd.f32 %v1654, %v1822
        %v1827 = vld [vmem:[#allocation10] sm:$0x1]
        %v1828 = vld [vmem:[#allocation7] sm:$0xff]
        %v1829 = vld [vmem:[#allocation7 + $0x8] sm:$0x1f]
        %vm1830 = vcmask 392192
        %v1832 = vsel %vm1830, %v1828, 0
        %v1835 = vsel %vm1830, %v1829, 0
        %1837 = vmatprep.subr.mxu0 0.0
        %1838 = vmatpush1.msra.mxu0 %v1825
        %1839 = vmatprep.subr.mxu0 0.0
        %1840 = vmatpush1.msra.mxu0 %v1826
        %1841 = vmatprep.subr.mxu0 0.0
        %1842 = vmatpush1.msra.mxu0 0.0
        %1843 = vmatprep.subr.mxu0 0.0
        %1844 = vmatpush1.msra.mxu0 0.0
        %1845 = vmatprep.subr.mxu0 0.0
        %1846 = vmatpush1.msra.mxu0 0.0
        %1847 = vmatprep.subr.mxu0 0.0
        %1848 = vmatpush1.msra.mxu0 0.0
        %1849 = vmatprep.subr.mxu0 0.0
        %1850 = vmatpush1.msra.mxu0 0.0
        %1851 = vmatprep.subr.mxu0 0.0
        %1852 = vmatpush1.msra.mxu0 0.0
        %1853 = vmatprep.subr.mxu0 0.0
        %1854 = vmatpush1.msra.mxu0 0.0
        %1855 = vmatprep.subr.mxu0 0.0
        %1856 = vmatpush1.msra.mxu0 0.0
        %1857 = vmatprep.subr.mxu0 0.0
        %1858 = vmatpush1.msra.mxu0 0.0
        %1859 = vmatprep.subr.mxu0 0.0
        %1860 = vmatpush1.msra.mxu0 0.0
        %1861 = vmatprep.subr.mxu0 0.0
        %1862 = vmatpush1.msra.mxu0 0.0
        %1863 = vmatprep.subr.mxu0 0.0
        %1864 = vmatpush1.msra.mxu0 0.0
        %1865 = vmatprep.subr.mxu0 0.0
        %1866 = vmatpush1.msra.mxu0 0.0
        %1867 = vmatprep.subr.mxu0 0.0
        %1868 = vmatpush1.msra.mxu0 0.0
        %1869 = vmatprep.subr.mxu0 0.0
        %1870 = vmatpush1.msra.mxu0 0.0
        %1871 = vmatprep.subr.mxu0 0.0
        %1872 = vmatpush1.msra.mxu0 0.0
        %1873 = vmatprep.subr.mxu0 0.0
        %1874 = vmatpush1.msra.mxu0 0.0
        %1875 = vmatprep.subr.mxu0 0.0
        %1876 = vmatpush1.msra.mxu0 0.0
        %1877 = vmatprep.subr.mxu0 0.0
        %1878 = vmatpush1.msra.mxu0 0.0
        %1879 = vmatprep.subr.mxu0 0.0
        %1880 = vmatpush1.msra.mxu0 0.0
        %1881 = vmatprep.subr.mxu0 0.0
        %1882 = vmatpush1.msra.mxu0 0.0
        %1883 = vmatprep.subr.mxu0 0.0
        %1884 = vmatpush1.msra.mxu0 0.0
        %1885 = vmatprep.subr.mxu0 0.0
        %1886 = vmatpush1.msra.mxu0 0.0
        %1887 = vmatprep.subr.mxu0 0.0
        %1888 = vmatpush1.msra.mxu0 0.0
        %1889 = vmatprep.subr.mxu0 0.0
        %1890 = vmatpush1.msra.mxu0 0.0
        %1891 = vmatprep.subr.mxu0 0.0
        %1892 = vmatpush1.msra.mxu0 0.0
        %1893 = vmatprep.subr.mxu0 0.0
        %1894 = vmatpush1.msra.mxu0 0.0
        %1895 = vmatprep.subr.mxu0 0.0
        %1896 = vmatpush1.msra.mxu0 0.0
        %1897 = vmatprep.subr.mxu0 0.0
        %1898 = vmatpush1.msra.mxu0 0.0
        %1899 = vmatprep.subr.mxu0 0.0
        %1900 = vmatpush1.msra.mxu0 0.0
        %1901 = vmatprep.mubr.f32.mxu0 0.0
        %1902 = vmatmul.mubr.f32.gmra.mrb[0].mxu0 %v1832
        %v1903 = vpop.f32.mrb[0].mxu0
        %v1904 = vadd.f32 0.0, %v1903
        %v1905 = vpop.f32.mrb[0].mxu0
        %1906 = vmatprep.mubr.f32.mxu0 0.0
        %1907 = vmatmul.mubr.f32.gmra.mrb[0].mxu0 %v1835
        %v1908 = vpop.f32.mrb[0].mxu0
        %v1909 = vadd.f32 0.0, %v1908
        %v1910 = vpop.f32.mrb[0].mxu0
        %1911 = vdwg.mxu0
        %v1912 = vld [vmem:[#allocation9] sm:$0xff]
        %v1913 = vld [vmem:[#allocation9 + $0x8] sm:$0xff]
        %v1914 = vld [vmem:[#allocation9 + $0x10] sm:$0xff]
        %v1915 = vld [vmem:[#allocation9 + $0x18] sm:$0xff]
        %vm1916 = vcmask 261120
        %v1918 = vsel %vm1916, %v1904, 0
        %v1921 = vsel %vm1916, %v1909, 0
        %1923 = vmatprep.subr.mxu0 0.0
        %1924 = vmatpush1.msra.mxu0 %v1912
        %1925 = vmatprep.subr.mxu0 0.0
        %1926 = vmatpush1.msra.mxu0 %v1913
        %1927 = vmatprep.subr.mxu0 0.0
        %1928 = vmatpush1.msra.mxu0 %v1914
        %1929 = vmatprep.subr.mxu0 0.0
        %1930 = vmatpush1.msra.mxu0 %v1915
        %1931 = vmatprep.subr.mxu0 0.0
        %1932 = vmatpush1.msra.mxu0 0.0
        %1933 = vmatprep.subr.mxu0 0.0
        %1934 = vmatpush1.msra.mxu0 0.0
        %1935 = vmatprep.subr.mxu0 0.0
        %1936 = vmatpush1.msra.mxu0 0.0
        %1937 = vmatprep.subr.mxu0 0.0
        %1938 = vmatpush1.msra.mxu0 0.0
        %1939 = vmatprep.subr.mxu0 0.0
        %1940 = vmatpush1.msra.mxu0 0.0
        %1941 = vmatprep.subr.mxu0 0.0
        %1942 = vmatpush1.msra.mxu0 0.0
        %1943 = vmatprep.subr.mxu0 0.0
        %1944 = vmatpush1.msra.mxu0 0.0
        %1945 = vmatprep.subr.mxu0 0.0
        %1946 = vmatpush1.msra.mxu0 0.0
        %1947 = vmatprep.subr.mxu0 0.0
        %1948 = vmatpush1.msra.mxu0 0.0
        %1949 = vmatprep.subr.mxu0 0.0
        %1950 = vmatpush1.msra.mxu0 0.0
        %1951 = vmatprep.subr.mxu0 0.0
        %1952 = vmatpush1.msra.mxu0 0.0
        %1953 = vmatprep.subr.mxu0 0.0
        %1954 = vmatpush1.msra.mxu0 0.0
        %1955 = vmatprep.subr.mxu0 0.0
        %1956 = vmatpush1.msra.mxu0 0.0
        %1957 = vmatprep.subr.mxu0 0.0
        %1958 = vmatpush1.msra.mxu0 0.0
        %1959 = vmatprep.subr.mxu0 0.0
        %1960 = vmatpush1.msra.mxu0 0.0
        %1961 = vmatprep.subr.mxu0 0.0
        %1962 = vmatpush1.msra.mxu0 0.0
        %1963 = vmatprep.subr.mxu0 0.0
        %1964 = vmatpush1.msra.mxu0 0.0
        %1965 = vmatprep.subr.mxu0 0.0
        %1966 = vmatpush1.msra.mxu0 0.0
        %1967 = vmatprep.subr.mxu0 0.0
        %1968 = vmatpush1.msra.mxu0 0.0
        %1969 = vmatprep.subr.mxu0 0.0
        %1970 = vmatpush1.msra.mxu0 0.0
        %1971 = vmatprep.subr.mxu0 0.0
        %1972 = vmatpush1.msra.mxu0 0.0
        %1973 = vmatprep.subr.mxu0 0.0
        %1974 = vmatpush1.msra.mxu0 0.0
        %1975 = vmatprep.subr.mxu0 0.0
        %1976 = vmatpush1.msra.mxu0 0.0
        %1977 = vmatprep.subr.mxu0 0.0
        %1978 = vmatpush1.msra.mxu0 0.0
        %1979 = vmatprep.subr.mxu0 0.0
        %1980 = vmatpush1.msra.mxu0 0.0
        %1981 = vmatprep.subr.mxu0 0.0
        %1982 = vmatpush1.msra.mxu0 0.0
        %1983 = vmatprep.subr.mxu0 0.0
        %1984 = vmatpush1.msra.mxu0 0.0
        %1985 = vmatprep.subr.mxu0 0.0
        %1986 = vmatpush1.msra.mxu0 0.0
        %1987 = vmatprep.mubr.f32.mxu0 0.0
        %1988 = vmatmul.mubr.f32.gmra.mrb[0].mxu0 %v1918
        %v1989 = vpop.f32.mrb[0].mxu0
        %v1990 = vadd.f32 0.0, %v1989
        %v1991 = vpop.f32.mrb[0].mxu0
        %1992 = vmatprep.mubr.f32.mxu0 0.0
        %1993 = vmatmul.mubr.f32.gmra.mrb[0].mxu0 %v1921
        %v1994 = vpop.f32.mrb[0].mxu0
        %v1995 = vadd.f32 0.0, %v1994
        %v1996 = vpop.f32.mrb[0].mxu0
        %1997 = vdwg.mxu0
        %v1999 = vlaneseq
        %v2000 = vshrl.u32 %v1999, 7
        %v2001 = vsub.s32 0, %v2000
        %v2002 = vrot.slane %v1827, %v2001
        %v2004 = vadd.f32 %v2002, %v1990
        %v2005 = vadd.f32 %v2002, %v1995
        %s2006 = scalar_lea.vmem [#allocation7], 16
        %v2007 = vld [vmem:[%s2006] sm:$0xff]
        %v2008 = vld [vmem:[%s2006 + $0x8] sm:$0x1f]
        %v2010 = vsel %vm1830, %v2007, 0
        %v2013 = vsel %vm1830, %v2008, 0
        %2015 = vmatprep.subr.mxu0 0.0
        %2016 = vmatpush1.msra.mxu0 %v1825
        %2017 = vmatprep.subr.mxu0 0.0
        %2018 = vmatpush1.msra.mxu0 %v1826
        %2019 = vmatprep.subr.mxu0 0.0
        %2020 = vmatpush1.msra.mxu0 0.0
        %2021 = vmatprep.subr.mxu0 0.0
        %2022 = vmatpush1.msra.mxu0 0.0
        %2023 = vmatprep.subr.mxu0 0.0
        %2024 = vmatpush1.msra.mxu0 0.0
        %2025 = vmatprep.subr.mxu0 0.0
        %2026 = vmatpush1.msra.mxu0 0.0
        %2027 = vmatprep.subr.mxu0 0.0
        %2028 = vmatpush1.msra.mxu0 0.0
        %2029 = vmatprep.subr.mxu0 0.0
        %2030 = vmatpush1.msra.mxu0 0.0
        %2031 = vmatprep.subr.mxu0 0.0
        %2032 = vmatpush1.msra.mxu0 0.0
        %2033 = vmatprep.subr.mxu0 0.0
        %2034 = vmatpush1.msra.mxu0 0.0
        %2035 = vmatprep.subr.mxu0 0.0
        %2036 = vmatpush1.msra.mxu0 0.0
        %2037 = vmatprep.subr.mxu0 0.0
        %2038 = vmatpush1.msra.mxu0 0.0
        %2039 = vmatprep.subr.mxu0 0.0
        %2040 = vmatpush1.msra.mxu0 0.0
        %2041 = vmatprep.subr.mxu0 0.0
        %2042 = vmatpush1.msra.mxu0 0.0
        %2043 = vmatprep.subr.mxu0 0.0
        %2044 = vmatpush1.msra.mxu0 0.0
        %2045 = vmatprep.subr.mxu0 0.0
        %2046 = vmatpush1.msra.mxu0 0.0
        %2047 = vmatprep.subr.mxu0 0.0
        %2048 = vmatpush1.msra.mxu0 0.0
        %2049 = vmatprep.subr.mxu0 0.0
        %2050 = vmatpush1.msra.mxu0 0.0
        %2051 = vmatprep.subr.mxu0 0.0
        %2052 = vmatpush1.msra.mxu0 0.0
        %2053 = vmatprep.subr.mxu0 0.0
        %2054 = vmatpush1.msra.mxu0 0.0
        %2055 = vmatprep.subr.mxu0 0.0
        %2056 = vmatpush1.msra.mxu0 0.0
        %2057 = vmatprep.subr.mxu0 0.0
        %2058 = vmatpush1.msra.mxu0 0.0
        %2059 = vmatprep.subr.mxu0 0.0
        %2060 = vmatpush1.msra.mxu0 0.0
        %2061 = vmatprep.subr.mxu0 0.0
        %2062 = vmatpush1.msra.mxu0 0.0
        %2063 = vmatprep.subr.mxu0 0.0
        %2064 = vmatpush1.msra.mxu0 0.0
        %2065 = vmatprep.subr.mxu0 0.0
        %2066 = vmatpush1.msra.mxu0 0.0
        %2067 = vmatprep.subr.mxu0 0.0
        %2068 = vmatpush1.msra.mxu0 0.0
        %2069 = vmatprep.subr.mxu0 0.0
        %2070 = vmatpush1.msra.mxu0 0.0
        %2071 = vmatprep.subr.mxu0 0.0
        %2072 = vmatpush1.msra.mxu0 0.0
        %2073 = vmatprep.subr.mxu0 0.0
        %2074 = vmatpush1.msra.mxu0 0.0
        %2075 = vmatprep.subr.mxu0 0.0
        %2076 = vmatpush1.msra.mxu0 0.0
        %2077 = vmatprep.subr.mxu0 0.0
        %2078 = vmatpush1.msra.mxu0 0.0
        %2079 = vmatprep.mubr.f32.mxu0 0.0
        %2080 = vmatmul.mubr.f32.gmra.mrb[0].mxu0 %v2010
        %v2081 = vpop.f32.mrb[0].mxu0
        %v2082 = vadd.f32 0.0, %v2081
        %v2083 = vpop.f32.mrb[0].mxu0
        %2084 = vmatprep.mubr.f32.mxu0 0.0
        %2085 = vmatmul.mubr.f32.gmra.mrb[0].mxu0 %v2013
        %v2086 = vpop.f32.mrb[0].mxu0
        %v2087 = vadd.f32 0.0, %v2086
        %v2088 = vpop.f32.mrb[0].mxu0
        %2089 = vdwg.mxu0
        %s2090 = scalar_lea.vmem [#allocation9], 32
        %v2091 = vld [vmem:[%s2090] sm:$0xff]
        %v2092 = vld [vmem:[%s2090 + $0x8] sm:$0xff]
        %v2093 = vld [vmem:[%s2090 + $0x10] sm:$0xff]
        %v2094 = vld [vmem:[%s2090 + $0x18] sm:$0xff]
        %v2096 = vsel %vm1916, %v2082, 0
        %v2099 = vsel %vm1916, %v2087, 0
        %2101 = vmatprep.subr.mxu0 0.0
        %2102 = vmatpush1.msra.mxu0 %v2091
        %2103 = vmatprep.subr.mxu0 0.0
        %2104 = vmatpush1.msra.mxu0 %v2092
        %2105 = vmatprep.subr.mxu0 0.0
        %2106 = vmatpush1.msra.mxu0 %v2093
        %2107 = vmatprep.subr.mxu0 0.0
        %2108 = vmatpush1.msra.mxu0 %v2094
        %2109 = vmatprep.subr.mxu0 0.0
        %2110 = vmatpush1.msra.mxu0 0.0
        %2111 = vmatprep.subr.mxu0 0.0
        %2112 = vmatpush1.msra.mxu0 0.0
        %2113 = vmatprep.subr.mxu0 0.0
        %2114 = vmatpush1.msra.mxu0 0.0
        %2115 = vmatprep.subr.mxu0 0.0
        %2116 = vmatpush1.msra.mxu0 0.0
        %2117 = vmatprep.subr.mxu0 0.0
        %2118 = vmatpush1.msra.mxu0 0.0
        %2119 = vmatprep.subr.mxu0 0.0
        %2120 = vmatpush1.msra.mxu0 0.0
        %2121 = vmatprep.subr.mxu0 0.0
        %2122 = vmatpush1.msra.mxu0 0.0
        %2123 = vmatprep.subr.mxu0 0.0
        %2124 = vmatpush1.msra.mxu0 0.0
        %2125 = vmatprep.subr.mxu0 0.0
        %2126 = vmatpush1.msra.mxu0 0.0
        %2127 = vmatprep.subr.mxu0 0.0
        %2128 = vmatpush1.msra.mxu0 0.0
        %2129 = vmatprep.subr.mxu0 0.0
        %2130 = vmatpush1.msra.mxu0 0.0
        %2131 = vmatprep.subr.mxu0 0.0
        %2132 = vmatpush1.msra.mxu0 0.0
        %2133 = vmatprep.subr.mxu0 0.0
        %2134 = vmatpush1.msra.mxu0 0.0
        %2135 = vmatprep.subr.mxu0 0.0
        %2136 = vmatpush1.msra.mxu0 0.0
        %2137 = vmatprep.subr.mxu0 0.0
        %2138 = vmatpush1.msra.mxu0 0.0
        %2139 = vmatprep.subr.mxu0 0.0
        %2140 = vmatpush1.msra.mxu0 0.0
        %2141 = vmatprep.subr.mxu0 0.0
        %2142 = vmatpush1.msra.mxu0 0.0
        %2143 = vmatprep.subr.mxu0 0.0
        %2144 = vmatpush1.msra.mxu0 0.0
        %2145 = vmatprep.subr.mxu0 0.0
        %2146 = vmatpush1.msra.mxu0 0.0
        %2147 = vmatprep.subr.mxu0 0.0
        %2148 = vmatpush1.msra.mxu0 0.0
        %2149 = vmatprep.subr.mxu0 0.0
        %2150 = vmatpush1.msra.mxu0 0.0
        %2151 = vmatprep.subr.mxu0 0.0
        %2152 = vmatpush1.msra.mxu0 0.0
        %2153 = vmatprep.subr.mxu0 0.0
        %2154 = vmatpush1.msra.mxu0 0.0
        %2155 = vmatprep.subr.mxu0 0.0
        %2156 = vmatpush1.msra.mxu0 0.0
        %2157 = vmatprep.subr.mxu0 0.0
        %2158 = vmatpush1.msra.mxu0 0.0
        %2159 = vmatprep.subr.mxu0 0.0
        %2160 = vmatpush1.msra.mxu0 0.0
        %2161 = vmatprep.subr.mxu0 0.0
        %2162 = vmatpush1.msra.mxu0 0.0
        %2163 = vmatprep.subr.mxu0 0.0
        %2164 = vmatpush1.msra.mxu0 0.0
        %2165 = vmatprep.mubr.f32.mxu0 0.0
        %2166 = vmatmul.mubr.f32.gmra.mrb[0].mxu0 %v2096
        %v2167 = vpop.f32.mrb[0].mxu0
        %v2168 = vadd.f32 0.0, %v2167
        %v2169 = vpop.f32.mrb[0].mxu0
        %2170 = vmatprep.mubr.f32.mxu0 0.0
        %2171 = vmatmul.mubr.f32.gmra.mrb[0].mxu0 %v2099
        %v2172 = vpop.f32.mrb[0].mxu0
        %v2173 = vadd.f32 0.0, %v2172
        %v2174 = vpop.f32.mrb[0].mxu0
        %2175 = vdwg.mxu0
        %v2176 = vadd.f32 %v2004, %v2168
        %v2177 = vadd.f32 %v2005, %v2173
        %s2178 = scalar_lea.vmem [#allocation7], 32
        %v2179 = vld [vmem:[%s2178] sm:$0xff]
        %v2180 = vld [vmem:[%s2178 + $0x8] sm:$0x1f]
        %v2182 = vsel %vm1830, %v2179, 0
        %v2185 = vsel %vm1830, %v2180, 0
        %2187 = vmatprep.subr.mxu0 0.0
        %2188 = vmatpush1.msra.mxu0 %v1825
        %2189 = vmatprep.subr.mxu0 0.0
        %2190 = vmatpush1.msra.mxu0 %v1826
        %2191 = vmatprep.subr.mxu0 0.0
        %2192 = vmatpush1.msra.mxu0 0.0
        %2193 = vmatprep.subr.mxu0 0.0
        %2194 = vmatpush1.msra.mxu0 0.0
        %2195 = vmatprep.subr.mxu0 0.0
        %2196 = vmatpush1.msra.mxu0 0.0
        %2197 = vmatprep.subr.mxu0 0.0
        %2198 = vmatpush1.msra.mxu0 0.0
        %2199 = vmatprep.subr.mxu0 0.0
        %2200 = vmatpush1.msra.mxu0 0.0
        %2201 = vmatprep.subr.mxu0 0.0
        %2202 = vmatpush1.msra.mxu0 0.0
        %2203 = vmatprep.subr.mxu0 0.0
        %2204 = vmatpush1.msra.mxu0 0.0
        %2205 = vmatprep.subr.mxu0 0.0
        %2206 = vmatpush1.msra.mxu0 0.0
        %2207 = vmatprep.subr.mxu0 0.0
        %2208 = vmatpush1.msra.mxu0 0.0
        %2209 = vmatprep.subr.mxu0 0.0
        %2210 = vmatpush1.msra.mxu0 0.0
        %2211 = vmatprep.subr.mxu0 0.0
        %2212 = vmatpush1.msra.mxu0 0.0
        %2213 = vmatprep.subr.mxu0 0.0
        %2214 = vmatpush1.msra.mxu0 0.0
        %2215 = vmatprep.subr.mxu0 0.0
        %2216 = vmatpush1.msra.mxu0 0.0
        %2217 = vmatprep.subr.mxu0 0.0
        %2218 = vmatpush1.msra.mxu0 0.0
        %2219 = vmatprep.subr.mxu0 0.0
        %2220 = vmatpush1.msra.mxu0 0.0
        %2221 = vmatprep.subr.mxu0 0.0
        %2222 = vmatpush1.msra.mxu0 0.0
        %2223 = vmatprep.subr.mxu0 0.0
        %2224 = vmatpush1.msra.mxu0 0.0
        %2225 = vmatprep.subr.mxu0 0.0
        %2226 = vmatpush1.msra.mxu0 0.0
        %2227 = vmatprep.subr.mxu0 0.0
        %2228 = vmatpush1.msra.mxu0 0.0
        %2229 = vmatprep.subr.mxu0 0.0
        %2230 = vmatpush1.msra.mxu0 0.0
        %2231 = vmatprep.subr.mxu0 0.0
        %2232 = vmatpush1.msra.mxu0 0.0
        %2233 = vmatprep.subr.mxu0 0.0
        %2234 = vmatpush1.msra.mxu0 0.0
        %2235 = vmatprep.subr.mxu0 0.0
        %2236 = vmatpush1.msra.mxu0 0.0
        %2237 = vmatprep.subr.mxu0 0.0
        %2238 = vmatpush1.msra.mxu0 0.0
        %2239 = vmatprep.subr.mxu0 0.0
        %2240 = vmatpush1.msra.mxu0 0.0
        %2241 = vmatprep.subr.mxu0 0.0
        %2242 = vmatpush1.msra.mxu0 0.0
        %2243 = vmatprep.subr.mxu0 0.0
        %2244 = vmatpush1.msra.mxu0 0.0
        %2245 = vmatprep.subr.mxu0 0.0
        %2246 = vmatpush1.msra.mxu0 0.0
        %2247 = vmatprep.subr.mxu0 0.0
        %2248 = vmatpush1.msra.mxu0 0.0
        %2249 = vmatprep.subr.mxu0 0.0
        %2250 = vmatpush1.msra.mxu0 0.0
        %2251 = vmatprep.mubr.f32.mxu0 0.0
        %2252 = vmatmul.mubr.f32.gmra.mrb[0].mxu0 %v2182
        %v2253 = vpop.f32.mrb[0].mxu0
        %v2254 = vadd.f32 0.0, %v2253
        %v2255 = vpop.f32.mrb[0].mxu0
        %2256 = vmatprep.mubr.f32.mxu0 0.0
        %2257 = vmatmul.mubr.f32.gmra.mrb[0].mxu0 %v2185
        %v2258 = vpop.f32.mrb[0].mxu0
        %v2259 = vadd.f32 0.0, %v2258
        %v2260 = vpop.f32.mrb[0].mxu0
        %2261 = vdwg.mxu0
        %s2262 = scalar_lea.vmem [#allocation9], 64
        %v2263 = vld [vmem:[%s2262] sm:$0xff]
        %v2264 = vld [vmem:[%s2262 + $0x8] sm:$0xff]
        %v2265 = vld [vmem:[%s2262 + $0x10] sm:$0xff]
        %v2266 = vld [vmem:[%s2262 + $0x18] sm:$0xff]
        %v2268 = vsel %vm1916, %v2254, 0
        %v2271 = vsel %vm1916, %v2259, 0
        %2273 = vmatprep.subr.mxu0 0.0
        %2274 = vmatpush1.msra.mxu0 %v2263
        %2275 = vmatprep.subr.mxu0 0.0
        %2276 = vmatpush1.msra.mxu0 %v2264
        %2277 = vmatprep.subr.mxu0 0.0
        %2278 = vmatpush1.msra.mxu0 %v2265
        %2279 = vmatprep.subr.mxu0 0.0
        %2280 = vmatpush1.msra.mxu0 %v2266
        %2281 = vmatprep.subr.mxu0 0.0
        %2282 = vmatpush1.msra.mxu0 0.0
        %2283 = vmatprep.subr.mxu0 0.0
        %2284 = vmatpush1.msra.mxu0 0.0
        %2285 = vmatprep.subr.mxu0 0.0
        %2286 = vmatpush1.msra.mxu0 0.0
        %2287 = vmatprep.subr.mxu0 0.0
        %2288 = vmatpush1.msra.mxu0 0.0
        %2289 = vmatprep.subr.mxu0 0.0
        %2290 = vmatpush1.msra.mxu0 0.0
        %2291 = vmatprep.subr.mxu0 0.0
        %2292 = vmatpush1.msra.mxu0 0.0
        %2293 = vmatprep.subr.mxu0 0.0
        %2294 = vmatpush1.msra.mxu0 0.0
        %2295 = vmatprep.subr.mxu0 0.0
        %2296 = vmatpush1.msra.mxu0 0.0
        %2297 = vmatprep.subr.mxu0 0.0
        %2298 = vmatpush1.msra.mxu0 0.0
        %2299 = vmatprep.subr.mxu0 0.0
        %2300 = vmatpush1.msra.mxu0 0.0
        %2301 = vmatprep.subr.mxu0 0.0
        %2302 = vmatpush1.msra.mxu0 0.0
        %2303 = vmatprep.subr.mxu0 0.0
        %2304 = vmatpush1.msra.mxu0 0.0
        %2305 = vmatprep.subr.mxu0 0.0
        %2306 = vmatpush1.msra.mxu0 0.0
        %2307 = vmatprep.subr.mxu0 0.0
        %2308 = vmatpush1.msra.mxu0 0.0
        %2309 = vmatprep.subr.mxu0 0.0
        %2310 = vmatpush1.msra.mxu0 0.0
        %2311 = vmatprep.subr.mxu0 0.0
        %2312 = vmatpush1.msra.mxu0 0.0
        %2313 = vmatprep.subr.mxu0 0.0
        %2314 = vmatpush1.msra.mxu0 0.0
        %2315 = vmatprep.subr.mxu0 0.0
        %2316 = vmatpush1.msra.mxu0 0.0
        %2317 = vmatprep.subr.mxu0 0.0
        %2318 = vmatpush1.msra.mxu0 0.0
        %2319 = vmatprep.subr.mxu0 0.0
        %2320 = vmatpush1.msra.mxu0 0.0
        %2321 = vmatprep.subr.mxu0 0.0
        %2322 = vmatpush1.msra.mxu0 0.0
        %2323 = vmatprep.subr.mxu0 0.0
        %2324 = vmatpush1.msra.mxu0 0.0
        %2325 = vmatprep.subr.mxu0 0.0
        %2326 = vmatpush1.msra.mxu0 0.0
        %2327 = vmatprep.subr.mxu0 0.0
        %2328 = vmatpush1.msra.mxu0 0.0
        %2329 = vmatprep.subr.mxu0 0.0
        %2330 = vmatpush1.msra.mxu0 0.0
        %2331 = vmatprep.subr.mxu0 0.0
        %2332 = vmatpush1.msra.mxu0 0.0
        %2333 = vmatprep.subr.mxu0 0.0
        %2334 = vmatpush1.msra.mxu0 0.0
        %2335 = vmatprep.subr.mxu0 0.0
        %2336 = vmatpush1.msra.mxu0 0.0
        %2337 = vmatprep.mubr.f32.mxu0 0.0
        %2338 = vmatmul.mubr.f32.gmra.mrb[0].mxu0 %v2268
        %v2339 = vpop.f32.mrb[0].mxu0
        %v2340 = vadd.f32 0.0, %v2339
        %v2341 = vpop.f32.mrb[0].mxu0
        %2342 = vmatprep.mubr.f32.mxu0 0.0
        %2343 = vmatmul.mubr.f32.gmra.mrb[0].mxu0 %v2271
        %v2344 = vpop.f32.mrb[0].mxu0
        %v2345 = vadd.f32 0.0, %v2344
        %v2346 = vpop.f32.mrb[0].mxu0
        %2347 = vdwg.mxu0
        %v2348 = vadd.f32 %v2176, %v2340
        %v2349 = vadd.f32 %v2177, %v2345
        %s2350 = scalar_lea.vmem [#allocation7], 48
        %v2351 = vld [vmem:[%s2350] sm:$0xff]
        %v2352 = vld [vmem:[%s2350 + $0x8] sm:$0x1f]
        %v2354 = vsel %vm1830, %v2351, 0
        %v2357 = vsel %vm1830, %v2352, 0
        %2359 = vmatprep.subr.mxu0 0.0
        %2360 = vmatpush1.msra.mxu0 %v1825
        %2361 = vmatprep.subr.mxu0 0.0
        %2362 = vmatpush1.msra.mxu0 %v1826
        %2363 = vmatprep.subr.mxu0 0.0
        %2364 = vmatpush1.msra.mxu0 0.0
        %2365 = vmatprep.subr.mxu0 0.0
        %2366 = vmatpush1.msra.mxu0 0.0
        %2367 = vmatprep.subr.mxu0 0.0
        %2368 = vmatpush1.msra.mxu0 0.0
        %2369 = vmatprep.subr.mxu0 0.0
        %2370 = vmatpush1.msra.mxu0 0.0
        %2371 = vmatprep.subr.mxu0 0.0
        %2372 = vmatpush1.msra.mxu0 0.0
        %2373 = vmatprep.subr.mxu0 0.0
        %2374 = vmatpush1.msra.mxu0 0.0
        %2375 = vmatprep.subr.mxu0 0.0
        %2376 = vmatpush1.msra.mxu0 0.0
        %2377 = vmatprep.subr.mxu0 0.0
        %2378 = vmatpush1.msra.mxu0 0.0
        %2379 = vmatprep.subr.mxu0 0.0
        %2380 = vmatpush1.msra.mxu0 0.0
        %2381 = vmatprep.subr.mxu0 0.0
        %2382 = vmatpush1.msra.mxu0 0.0
        %2383 = vmatprep.subr.mxu0 0.0
        %2384 = vmatpush1.msra.mxu0 0.0
        %2385 = vmatprep.subr.mxu0 0.0
        %2386 = vmatpush1.msra.mxu0 0.0
        %2387 = vmatprep.subr.mxu0 0.0
        %2388 = vmatpush1.msra.mxu0 0.0
        %2389 = vmatprep.subr.mxu0 0.0
        %2390 = vmatpush1.msra.mxu0 0.0
        %2391 = vmatprep.subr.mxu0 0.0
        %2392 = vmatpush1.msra.mxu0 0.0
        %2393 = vmatprep.subr.mxu0 0.0
        %2394 = vmatpush1.msra.mxu0 0.0
        %2395 = vmatprep.subr.mxu0 0.0
        %2396 = vmatpush1.msra.mxu0 0.0
        %2397 = vmatprep.subr.mxu0 0.0
        %2398 = vmatpush1.msra.mxu0 0.0
        %2399 = vmatprep.subr.mxu0 0.0
        %2400 = vmatpush1.msra.mxu0 0.0
        %2401 = vmatprep.subr.mxu0 0.0
        %2402 = vmatpush1.msra.mxu0 0.0
        %2403 = vmatprep.subr.mxu0 0.0
        %2404 = vmatpush1.msra.mxu0 0.0
        %2405 = vmatprep.subr.mxu0 0.0
        %2406 = vmatpush1.msra.mxu0 0.0
        %2407 = vmatprep.subr.mxu0 0.0
        %2408 = vmatpush1.msra.mxu0 0.0
        %2409 = vmatprep.subr.mxu0 0.0
        %2410 = vmatpush1.msra.mxu0 0.0
        %2411 = vmatprep.subr.mxu0 0.0
        %2412 = vmatpush1.msra.mxu0 0.0
        %2413 = vmatprep.subr.mxu0 0.0
        %2414 = vmatpush1.msra.mxu0 0.0
        %2415 = vmatprep.subr.mxu0 0.0
        %2416 = vmatpush1.msra.mxu0 0.0
        %2417 = vmatprep.subr.mxu0 0.0
        %2418 = vmatpush1.msra.mxu0 0.0
        %2419 = vmatprep.subr.mxu0 0.0
        %2420 = vmatpush1.msra.mxu0 0.0
        %2421 = vmatprep.subr.mxu0 0.0
        %2422 = vmatpush1.msra.mxu0 0.0
        %2423 = vmatprep.mubr.f32.mxu0 0.0
        %2424 = vmatmul.mubr.f32.gmra.mrb[0].mxu0 %v2354
        %v2425 = vpop.f32.mrb[0].mxu0
        %v2426 = vadd.f32 0.0, %v2425
        %v2427 = vpop.f32.mrb[0].mxu0
        %2428 = vmatprep.mubr.f32.mxu0 0.0
        %2429 = vmatmul.mubr.f32.gmra.mrb[0].mxu0 %v2357
        %v2430 = vpop.f32.mrb[0].mxu0
        %v2431 = vadd.f32 0.0, %v2430
        %v2432 = vpop.f32.mrb[0].mxu0
        %2433 = vdwg.mxu0
        %s2434 = scalar_lea.vmem [#allocation9], 96
        %v2435 = vld [vmem:[%s2434] sm:$0xff]
        %v2436 = vld [vmem:[%s2434 + $0x8] sm:$0xff]
        %v2437 = vld [vmem:[%s2434 + $0x10] sm:$0xff]
        %v2438 = vld [vmem:[%s2434 + $0x18] sm:$0xff]
        %v2440 = vsel %vm1916, %v2426, 0
        %v2443 = vsel %vm1916, %v2431, 0
        %2445 = vmatprep.subr.mxu0 0.0
        %2446 = vmatpush1.msra.mxu0 %v2435
        %2447 = vmatprep.subr.mxu0 0.0
        %2448 = vmatpush1.msra.mxu0 %v2436
        %2449 = vmatprep.subr.mxu0 0.0
        %2450 = vmatpush1.msra.mxu0 %v2437
        %2451 = vmatprep.subr.mxu0 0.0
        %2452 = vmatpush1.msra.mxu0 %v2438
        %2453 = vmatprep.subr.mxu0 0.0
        %2454 = vmatpush1.msra.mxu0 0.0
        %2455 = vmatprep.subr.mxu0 0.0
        %2456 = vmatpush1.msra.mxu0 0.0
        %2457 = vmatprep.subr.mxu0 0.0
        %2458 = vmatpush1.msra.mxu0 0.0
        %2459 = vmatprep.subr.mxu0 0.0
        %2460 = vmatpush1.msra.mxu0 0.0
        %2461 = vmatprep.subr.mxu0 0.0
        %2462 = vmatpush1.msra.mxu0 0.0
        %2463 = vmatprep.subr.mxu0 0.0
        %2464 = vmatpush1.msra.mxu0 0.0
        %2465 = vmatprep.subr.mxu0 0.0
        %2466 = vmatpush1.msra.mxu0 0.0
        %2467 = vmatprep.subr.mxu0 0.0
        %2468 = vmatpush1.msra.mxu0 0.0
        %2469 = vmatprep.subr.mxu0 0.0
        %2470 = vmatpush1.msra.mxu0 0.0
        %2471 = vmatprep.subr.mxu0 0.0
        %2472 = vmatpush1.msra.mxu0 0.0
        %2473 = vmatprep.subr.mxu0 0.0
        %2474 = vmatpush1.msra.mxu0 0.0
        %2475 = vmatprep.subr.mxu0 0.0
        %2476 = vmatpush1.msra.mxu0 0.0
        %2477 = vmatprep.subr.mxu0 0.0
        %2478 = vmatpush1.msra.mxu0 0.0
        %2479 = vmatprep.subr.mxu0 0.0
        %2480 = vmatpush1.msra.mxu0 0.0
        %2481 = vmatprep.subr.mxu0 0.0
        %2482 = vmatpush1.msra.mxu0 0.0
        %2483 = vmatprep.subr.mxu0 0.0
        %2484 = vmatpush1.msra.mxu0 0.0
        %2485 = vmatprep.subr.mxu0 0.0
        %2486 = vmatpush1.msra.mxu0 0.0
        %2487 = vmatprep.subr.mxu0 0.0
        %2488 = vmatpush1.msra.mxu0 0.0
        %2489 = vmatprep.subr.mxu0 0.0
        %2490 = vmatpush1.msra.mxu0 0.0
        %2491 = vmatprep.subr.mxu0 0.0
        %2492 = vmatpush1.msra.mxu0 0.0
        %2493 = vmatprep.subr.mxu0 0.0
        %2494 = vmatpush1.msra.mxu0 0.0
        %2495 = vmatprep.subr.mxu0 0.0
        %2496 = vmatpush1.msra.mxu0 0.0
        %2497 = vmatprep.subr.mxu0 0.0
        %2498 = vmatpush1.msra.mxu0 0.0
        %2499 = vmatprep.subr.mxu0 0.0
        %2500 = vmatpush1.msra.mxu0 0.0
        %2501 = vmatprep.subr.mxu0 0.0
        %2502 = vmatpush1.msra.mxu0 0.0
        %2503 = vmatprep.subr.mxu0 0.0
        %2504 = vmatpush1.msra.mxu0 0.0
        %2505 = vmatprep.subr.mxu0 0.0
        %2506 = vmatpush1.msra.mxu0 0.0
        %2507 = vmatprep.subr.mxu0 0.0
        %2508 = vmatpush1.msra.mxu0 0.0
        %2509 = vmatprep.mubr.f32.mxu0 0.0
        %2510 = vmatmul.mubr.f32.gmra.mrb[0].mxu0 %v2440
        %v2511 = vpop.f32.mrb[0].mxu0
        %v2512 = vadd.f32 0.0, %v2511
        %v2513 = vpop.f32.mrb[0].mxu0
        %2514 = vmatprep.mubr.f32.mxu0 0.0
        %2515 = vmatmul.mubr.f32.gmra.mrb[0].mxu0 %v2443
        %v2516 = vpop.f32.mrb[0].mxu0
        %v2517 = vadd.f32 0.0, %v2516
        %v2518 = vpop.f32.mrb[0].mxu0
        %2519 = vdwg.mxu0
        %v2520 = vadd.f32 %v2348, %v2512
        %v2521 = vadd.f32 %v2349, %v2517
        %v2522 = vld [vmem:[#allocation15] sm:$0x1]
        %v2523 = vld [vmem:[#allocation12] sm:$0x7f]
        %vm2524 = vcmask 105472
        %v2526 = vsel %vm2524, %v2523, 0
        %vm2528 = vcmask 1044480
        %v2530 = vsel %vm2528, %v2521, 0
        %2532 = vmatprep.subr.mxu0 0.0
        %2533 = vmatpush1.msra.mxu0 %v2520
        %2534 = vmatprep.subr.mxu0 0.0
        %2535 = vmatpush1.msra.mxu0 %v2530
        %2536 = vmatprep.subr.mxu0 0.0
        %2537 = vmatpush1.msra.mxu0 0.0
        %2538 = vmatprep.subr.mxu0 0.0
        %2539 = vmatpush1.msra.mxu0 0.0
        %2540 = vmatprep.subr.mxu0 0.0
        %2541 = vmatpush1.msra.mxu0 0.0
        %2542 = vmatprep.subr.mxu0 0.0
        %2543 = vmatpush1.msra.mxu0 0.0
        %2544 = vmatprep.subr.mxu0 0.0
        %2545 = vmatpush1.msra.mxu0 0.0
        %2546 = vmatprep.subr.mxu0 0.0
        %2547 = vmatpush1.msra.mxu0 0.0
        %2548 = vmatprep.subr.mxu0 0.0
        %2549 = vmatpush1.msra.mxu0 0.0
        %2550 = vmatprep.subr.mxu0 0.0
        %2551 = vmatpush1.msra.mxu0 0.0
        %2552 = vmatprep.subr.mxu0 0.0
        %2553 = vmatpush1.msra.mxu0 0.0
        %2554 = vmatprep.subr.mxu0 0.0
        %2555 = vmatpush1.msra.mxu0 0.0
        %2556 = vmatprep.subr.mxu0 0.0
        %2557 = vmatpush1.msra.mxu0 0.0
        %2558 = vmatprep.subr.mxu0 0.0
        %2559 = vmatpush1.msra.mxu0 0.0
        %2560 = vmatprep.subr.mxu0 0.0
        %2561 = vmatpush1.msra.mxu0 0.0
        %2562 = vmatprep.subr.mxu0 0.0
        %2563 = vmatpush1.msra.mxu0 0.0
        %2564 = vmatprep.subr.mxu0 0.0
        %2565 = vmatpush1.msra.mxu0 0.0
        %2566 = vmatprep.subr.mxu0 0.0
        %2567 = vmatpush1.msra.mxu0 0.0
        %2568 = vmatprep.subr.mxu0 0.0
        %2569 = vmatpush1.msra.mxu0 0.0
        %2570 = vmatprep.subr.mxu0 0.0
        %2571 = vmatpush1.msra.mxu0 0.0
        %2572 = vmatprep.subr.mxu0 0.0
        %2573 = vmatpush1.msra.mxu0 0.0
        %2574 = vmatprep.subr.mxu0 0.0
        %2575 = vmatpush1.msra.mxu0 0.0
        %2576 = vmatprep.subr.mxu0 0.0
        %2577 = vmatpush1.msra.mxu0 0.0
        %2578 = vmatprep.subr.mxu0 0.0
        %2579 = vmatpush1.msra.mxu0 0.0
        %2580 = vmatprep.subr.mxu0 0.0
        %2581 = vmatpush1.msra.mxu0 0.0
        %2582 = vmatprep.subr.mxu0 0.0
        %2583 = vmatpush1.msra.mxu0 0.0
        %2584 = vmatprep.subr.mxu0 0.0
        %2585 = vmatpush1.msra.mxu0 0.0
        %2586 = vmatprep.subr.mxu0 0.0
        %2587 = vmatpush1.msra.mxu0 0.0
        %2588 = vmatprep.subr.mxu0 0.0
        %2589 = vmatpush1.msra.mxu0 0.0
        %2590 = vmatprep.subr.mxu0 0.0
        %2591 = vmatpush1.msra.mxu0 0.0
        %2592 = vmatprep.subr.mxu0 0.0
        %2593 = vmatpush1.msra.mxu0 0.0
        %2594 = vmatprep.subr.mxu0 0.0
        %2595 = vmatpush1.msra.mxu0 0.0
        %2596 = vmatprep.mubr.f32.mxu0 0.0
        %2597 = vmatmul.mubr.f32.gmra.mrb[0].mxu0 %v2526
        %v2598 = vpop.f32.mrb[0].mxu0
        %v2599 = vadd.f32 0.0, %v2598
        %v2600 = vpop.f32.mrb[0].mxu0
        %2601 = vdwg.mxu0
        %v2602 = vld [vmem:[#allocation13] sm:$0xff]
        %v2603 = vld [vmem:[#allocation13 + $0x8] sm:$0xff]
        %v2604 = vld [vmem:[#allocation13 + $0x10] sm:$0xff]
        %v2605 = vld [vmem:[#allocation13 + $0x18] sm:$0xff]
        %v2607 = vsel %vm1916, %v2599, 0
        %2609 = vmatprep.subr.mxu0 0.0
        %2610 = vmatpush1.msra.mxu0 %v2602
        %2611 = vmatprep.subr.mxu0 0.0
        %2612 = vmatpush1.msra.mxu0 %v2603
        %2613 = vmatprep.subr.mxu0 0.0
        %2614 = vmatpush1.msra.mxu0 %v2604
        %2615 = vmatprep.subr.mxu0 0.0
        %2616 = vmatpush1.msra.mxu0 %v2605
        %2617 = vmatprep.subr.mxu0 0.0
        %2618 = vmatpush1.msra.mxu0 0.0
        %2619 = vmatprep.subr.mxu0 0.0
        %2620 = vmatpush1.msra.mxu0 0.0
        %2621 = vmatprep.subr.mxu0 0.0
        %2622 = vmatpush1.msra.mxu0 0.0
        %2623 = vmatprep.subr.mxu0 0.0
        %2624 = vmatpush1.msra.mxu0 0.0
        %2625 = vmatprep.subr.mxu0 0.0
        %2626 = vmatpush1.msra.mxu0 0.0
        %2627 = vmatprep.subr.mxu0 0.0
        %2628 = vmatpush1.msra.mxu0 0.0
        %2629 = vmatprep.subr.mxu0 0.0
        %2630 = vmatpush1.msra.mxu0 0.0
        %2631 = vmatprep.subr.mxu0 0.0
        %2632 = vmatpush1.msra.mxu0 0.0
        %2633 = vmatprep.subr.mxu0 0.0
        %2634 = vmatpush1.msra.mxu0 0.0
        %2635 = vmatprep.subr.mxu0 0.0
        %2636 = vmatpush1.msra.mxu0 0.0
        %2637 = vmatprep.subr.mxu0 0.0
        %2638 = vmatpush1.msra.mxu0 0.0
        %2639 = vmatprep.subr.mxu0 0.0
        %2640 = vmatpush1.msra.mxu0 0.0
        %2641 = vmatprep.subr.mxu0 0.0
        %2642 = vmatpush1.msra.mxu0 0.0
        %2643 = vmatprep.subr.mxu0 0.0
        %2644 = vmatpush1.msra.mxu0 0.0
        %2645 = vmatprep.subr.mxu0 0.0
        %2646 = vmatpush1.msra.mxu0 0.0
        %2647 = vmatprep.subr.mxu0 0.0
        %2648 = vmatpush1.msra.mxu0 0.0
        %2649 = vmatprep.subr.mxu0 0.0
        %2650 = vmatpush1.msra.mxu0 0.0
        %2651 = vmatprep.subr.mxu0 0.0
        %2652 = vmatpush1.msra.mxu0 0.0
        %2653 = vmatprep.subr.mxu0 0.0
        %2654 = vmatpush1.msra.mxu0 0.0
        %2655 = vmatprep.subr.mxu0 0.0
        %2656 = vmatpush1.msra.mxu0 0.0
        %2657 = vmatprep.subr.mxu0 0.0
        %2658 = vmatpush1.msra.mxu0 0.0
        %2659 = vmatprep.subr.mxu0 0.0
        %2660 = vmatpush1.msra.mxu0 0.0
        %2661 = vmatprep.subr.mxu0 0.0
        %2662 = vmatpush1.msra.mxu0 0.0
        %2663 = vmatprep.subr.mxu0 0.0
        %2664 = vmatpush1.msra.mxu0 0.0
        %2665 = vmatprep.subr.mxu0 0.0
        %2666 = vmatpush1.msra.mxu0 0.0
        %2667 = vmatprep.subr.mxu0 0.0
        %2668 = vmatpush1.msra.mxu0 0.0
        %2669 = vmatprep.subr.mxu0 0.0
        %2670 = vmatpush1.msra.mxu0 0.0
        %2671 = vmatprep.subr.mxu0 0.0
        %2672 = vmatpush1.msra.mxu0 0.0
        %2673 = vmatprep.mubr.f32.mxu0 0.0
        %2674 = vmatmul.mubr.f32.gmra.mrb[0].mxu0 %v2607
        %v2675 = vpop.f32.mrb[0].mxu0
        %v2676 = vadd.f32 0.0, %v2675
        %v2677 = vpop.f32.mrb[0].mxu0
        %2678 = vdwg.mxu0
        %v2680 = vlaneseq
        %v2681 = vshrl.u32 %v2680, 7
        %v2682 = vsub.s32 0, %v2681
        %v2683 = vrot.slane %v2522, %v2682
        %v2685 = vadd.f32 %v2683, %v2676
        %s2686 = scalar_lea.vmem [#allocation12], 8
        %v2687 = vld [vmem:[%s2686] sm:$0x7f]
        %v2689 = vsel %vm2524, %v2687, 0
        %2691 = vmatprep.subr.mxu0 0.0
        %2692 = vmatpush1.msra.mxu0 %v2520
        %2693 = vmatprep.subr.mxu0 0.0
        %2694 = vmatpush1.msra.mxu0 %v2530
        %2695 = vmatprep.subr.mxu0 0.0
        %2696 = vmatpush1.msra.mxu0 0.0
        %2697 = vmatprep.subr.mxu0 0.0
        %2698 = vmatpush1.msra.mxu0 0.0
        %2699 = vmatprep.subr.mxu0 0.0
        %2700 = vmatpush1.msra.mxu0 0.0
        %2701 = vmatprep.subr.mxu0 0.0
        %2702 = vmatpush1.msra.mxu0 0.0
        %2703 = vmatprep.subr.mxu0 0.0
        %2704 = vmatpush1.msra.mxu0 0.0
        %2705 = vmatprep.subr.mxu0 0.0
        %2706 = vmatpush1.msra.mxu0 0.0
        %2707 = vmatprep.subr.mxu0 0.0
        %2708 = vmatpush1.msra.mxu0 0.0
        %2709 = vmatprep.subr.mxu0 0.0
        %2710 = vmatpush1.msra.mxu0 0.0
        %2711 = vmatprep.subr.mxu0 0.0
        %2712 = vmatpush1.msra.mxu0 0.0
        %2713 = vmatprep.subr.mxu0 0.0
        %2714 = vmatpush1.msra.mxu0 0.0
        %2715 = vmatprep.subr.mxu0 0.0
        %2716 = vmatpush1.msra.mxu0 0.0
        %2717 = vmatprep.subr.mxu0 0.0
        %2718 = vmatpush1.msra.mxu0 0.0
        %2719 = vmatprep.subr.mxu0 0.0
        %2720 = vmatpush1.msra.mxu0 0.0
        %2721 = vmatprep.subr.mxu0 0.0
        %2722 = vmatpush1.msra.mxu0 0.0
        %2723 = vmatprep.subr.mxu0 0.0
        %2724 = vmatpush1.msra.mxu0 0.0
        %2725 = vmatprep.subr.mxu0 0.0
        %2726 = vmatpush1.msra.mxu0 0.0
        %2727 = vmatprep.subr.mxu0 0.0
        %2728 = vmatpush1.msra.mxu0 0.0
        %2729 = vmatprep.subr.mxu0 0.0
        %2730 = vmatpush1.msra.mxu0 0.0
        %2731 = vmatprep.subr.mxu0 0.0
        %2732 = vmatpush1.msra.mxu0 0.0
        %2733 = vmatprep.subr.mxu0 0.0
        %2734 = vmatpush1.msra.mxu0 0.0
        %2735 = vmatprep.subr.mxu0 0.0
        %2736 = vmatpush1.msra.mxu0 0.0
        %2737 = vmatprep.subr.mxu0 0.0
        %2738 = vmatpush1.msra.mxu0 0.0
        %2739 = vmatprep.subr.mxu0 0.0
        %2740 = vmatpush1.msra.mxu0 0.0
        %2741 = vmatprep.subr.mxu0 0.0
        %2742 = vmatpush1.msra.mxu0 0.0
        %2743 = vmatprep.subr.mxu0 0.0
        %2744 = vmatpush1.msra.mxu0 0.0
        %2745 = vmatprep.subr.mxu0 0.0
        %2746 = vmatpush1.msra.mxu0 0.0
        %2747 = vmatprep.subr.mxu0 0.0
        %2748 = vmatpush1.msra.mxu0 0.0
        %2749 = vmatprep.subr.mxu0 0.0
        %2750 = vmatpush1.msra.mxu0 0.0
        %2751 = vmatprep.subr.mxu0 0.0
        %2752 = vmatpush1.msra.mxu0 0.0
        %2753 = vmatprep.subr.mxu0 0.0
        %2754 = vmatpush1.msra.mxu0 0.0
        %2755 = vmatprep.mubr.f32.mxu0 0.0
        %2756 = vmatmul.mubr.f32.gmra.mrb[0].mxu0 %v2689
        %v2757 = vpop.f32.mrb[0].mxu0
        %v2758 = vadd.f32 0.0, %v2757
        %v2759 = vpop.f32.mrb[0].mxu0
        %2760 = vdwg.mxu0
        %s2761 = scalar_lea.vmem [#allocation13], 32
        %v2762 = vld [vmem:[%s2761] sm:$0xff]
        %v2763 = vld [vmem:[%s2761 + $0x8] sm:$0xff]
        %v2764 = vld [vmem:[%s2761 + $0x10] sm:$0xff]
        %v2765 = vld [vmem:[%s2761 + $0x18] sm:$0xff]
        %v2767 = vsel %vm1916, %v2758, 0
        %2769 = vmatprep.subr.mxu0 0.0
        %2770 = vmatpush1.msra.mxu0 %v2762
        %2771 = vmatprep.subr.mxu0 0.0
        %2772 = vmatpush1.msra.mxu0 %v2763
        %2773 = vmatprep.subr.mxu0 0.0
        %2774 = vmatpush1.msra.mxu0 %v2764
        %2775 = vmatprep.subr.mxu0 0.0
        %2776 = vmatpush1.msra.mxu0 %v2765
        %2777 = vmatprep.subr.mxu0 0.0
        %2778 = vmatpush1.msra.mxu0 0.0
        %2779 = vmatprep.subr.mxu0 0.0
        %2780 = vmatpush1.msra.mxu0 0.0
        %2781 = vmatprep.subr.mxu0 0.0
        %2782 = vmatpush1.msra.mxu0 0.0
        %2783 = vmatprep.subr.mxu0 0.0
        %2784 = vmatpush1.msra.mxu0 0.0
        %2785 = vmatprep.subr.mxu0 0.0
        %2786 = vmatpush1.msra.mxu0 0.0
        %2787 = vmatprep.subr.mxu0 0.0
        %2788 = vmatpush1.msra.mxu0 0.0
        %2789 = vmatprep.subr.mxu0 0.0
        %2790 = vmatpush1.msra.mxu0 0.0
        %2791 = vmatprep.subr.mxu0 0.0
        %2792 = vmatpush1.msra.mxu0 0.0
        %2793 = vmatprep.subr.mxu0 0.0
        %2794 = vmatpush1.msra.mxu0 0.0
        %2795 = vmatprep.subr.mxu0 0.0
        %2796 = vmatpush1.msra.mxu0 0.0
        %2797 = vmatprep.subr.mxu0 0.0
        %2798 = vmatpush1.msra.mxu0 0.0
        %2799 = vmatprep.subr.mxu0 0.0
        %2800 = vmatpush1.msra.mxu0 0.0
        %2801 = vmatprep.subr.mxu0 0.0
        %2802 = vmatpush1.msra.mxu0 0.0
        %2803 = vmatprep.subr.mxu0 0.0
        %2804 = vmatpush1.msra.mxu0 0.0
        %2805 = vmatprep.subr.mxu0 0.0
        %2806 = vmatpush1.msra.mxu0 0.0
        %2807 = vmatprep.subr.mxu0 0.0
        %2808 = vmatpush1.msra.mxu0 0.0
        %2809 = vmatprep.subr.mxu0 0.0
        %2810 = vmatpush1.msra.mxu0 0.0
        %2811 = vmatprep.subr.mxu0 0.0
        %2812 = vmatpush1.msra.mxu0 0.0
        %2813 = vmatprep.subr.mxu0 0.0
        %2814 = vmatpush1.msra.mxu0 0.0
        %2815 = vmatprep.subr.mxu0 0.0
        %2816 = vmatpush1.msra.mxu0 0.0
        %2817 = vmatprep.subr.mxu0 0.0
        %2818 = vmatpush1.msra.mxu0 0.0
        %2819 = vmatprep.subr.mxu0 0.0
        %2820 = vmatpush1.msra.mxu0 0.0
        %2821 = vmatprep.subr.mxu0 0.0
        %2822 = vmatpush1.msra.mxu0 0.0
        %2823 = vmatprep.subr.mxu0 0.0
        %2824 = vmatpush1.msra.mxu0 0.0
        %2825 = vmatprep.subr.mxu0 0.0
        %2826 = vmatpush1.msra.mxu0 0.0
        %2827 = vmatprep.subr.mxu0 0.0
        %2828 = vmatpush1.msra.mxu0 0.0
        %2829 = vmatprep.subr.mxu0 0.0
        %2830 = vmatpush1.msra.mxu0 0.0
        %2831 = vmatprep.subr.mxu0 0.0
        %2832 = vmatpush1.msra.mxu0 0.0
        %2833 = vmatprep.mubr.f32.mxu0 0.0
        %2834 = vmatmul.mubr.f32.gmra.mrb[0].mxu0 %v2767
        %v2835 = vpop.f32.mrb[0].mxu0
        %v2836 = vadd.f32 0.0, %v2835
        %v2837 = vpop.f32.mrb[0].mxu0
        %2838 = vdwg.mxu0
        %v2839 = vadd.f32 %v2685, %v2836
        %v2840 = vld [vmem:[#allocation19] sm:$0x1]
        %v2841 = vld [vmem:[#allocation16] sm:$0xff]
        %vm2842 = vcmask 56320
        %v2844 = vsel %vm2842, %v2841, 0
        %vm2846 = vcmask 1046528
        %v2848 = vsel %vm2846, %v2839, 0
        %2850 = vmatprep.subr.mxu0 0.0
        %2851 = vmatpush1.msra.mxu0 %v2848
        %2852 = vmatprep.subr.mxu0 0.0
        %2853 = vmatpush1.msra.mxu0 0.0
        %2854 = vmatprep.subr.mxu0 0.0
        %2855 = vmatpush1.msra.mxu0 0.0
        %2856 = vmatprep.subr.mxu0 0.0
        %2857 = vmatpush1.msra.mxu0 0.0
        %2858 = vmatprep.subr.mxu0 0.0
        %2859 = vmatpush1.msra.mxu0 0.0
        %2860 = vmatprep.subr.mxu0 0.0
        %2861 = vmatpush1.msra.mxu0 0.0
        %2862 = vmatprep.subr.mxu0 0.0
        %2863 = vmatpush1.msra.mxu0 0.0
        %2864 = vmatprep.subr.mxu0 0.0
        %2865 = vmatpush1.msra.mxu0 0.0
        %2866 = vmatprep.subr.mxu0 0.0
        %2867 = vmatpush1.msra.mxu0 0.0
        %2868 = vmatprep.subr.mxu0 0.0
        %2869 = vmatpush1.msra.mxu0 0.0
        %2870 = vmatprep.subr.mxu0 0.0
        %2871 = vmatpush1.msra.mxu0 0.0
        %2872 = vmatprep.subr.mxu0 0.0
        %2873 = vmatpush1.msra.mxu0 0.0
        %2874 = vmatprep.subr.mxu0 0.0
        %2875 = vmatpush1.msra.mxu0 0.0
        %2876 = vmatprep.subr.mxu0 0.0
        %2877 = vmatpush1.msra.mxu0 0.0
        %2878 = vmatprep.subr.mxu0 0.0
        %2879 = vmatpush1.msra.mxu0 0.0
        %2880 = vmatprep.subr.mxu0 0.0
        %2881 = vmatpush1.msra.mxu0 0.0
        %2882 = vmatprep.subr.mxu0 0.0
        %2883 = vmatpush1.msra.mxu0 0.0
        %2884 = vmatprep.subr.mxu0 0.0
        %2885 = vmatpush1.msra.mxu0 0.0
        %2886 = vmatprep.subr.mxu0 0.0
        %2887 = vmatpush1.msra.mxu0 0.0
        %2888 = vmatprep.subr.mxu0 0.0
        %2889 = vmatpush1.msra.mxu0 0.0
        %2890 = vmatprep.subr.mxu0 0.0
        %2891 = vmatpush1.msra.mxu0 0.0
        %2892 = vmatprep.subr.mxu0 0.0
        %2893 = vmatpush1.msra.mxu0 0.0
        %2894 = vmatprep.subr.mxu0 0.0
        %2895 = vmatpush1.msra.mxu0 0.0
        %2896 = vmatprep.subr.mxu0 0.0
        %2897 = vmatpush1.msra.mxu0 0.0
        %2898 = vmatprep.subr.mxu0 0.0
        %2899 = vmatpush1.msra.mxu0 0.0
        %2900 = vmatprep.subr.mxu0 0.0
        %2901 = vmatpush1.msra.mxu0 0.0
        %2902 = vmatprep.subr.mxu0 0.0
        %2903 = vmatpush1.msra.mxu0 0.0
        %2904 = vmatprep.subr.mxu0 0.0
        %2905 = vmatpush1.msra.mxu0 0.0
        %2906 = vmatprep.subr.mxu0 0.0
        %2907 = vmatpush1.msra.mxu0 0.0
        %2908 = vmatprep.subr.mxu0 0.0
        %2909 = vmatpush1.msra.mxu0 0.0
        %2910 = vmatprep.subr.mxu0 0.0
        %2911 = vmatpush1.msra.mxu0 0.0
        %2912 = vmatprep.subr.mxu0 0.0
        %2913 = vmatpush1.msra.mxu0 0.0
        %2914 = vmatprep.mubr.f32.mxu0 0.0
        %2915 = vmatmul.mubr.f32.gmra.mrb[0].mxu0 %v2844
        %v2916 = vpop.f32.mrb[0].mxu0
        %v2917 = vadd.f32 0.0, %v2916
        %v2918 = vpop.f32.mrb[0].mxu0
        %2919 = vdwg.mxu0
        %v2920 = vld [vmem:[#allocation18] sm:$0xff]
        %v2921 = vld [vmem:[#allocation18 + $0x8] sm:$0xff]
        %v2922 = vld [vmem:[#allocation18 + $0x10] sm:$0xff]
        %v2923 = vld [vmem:[#allocation18 + $0x18] sm:$0xff]
        %v2925 = vsel %vm1916, %v2917, 0
        %2927 = vmatprep.subr.mxu0 0.0
        %2928 = vmatpush1.msra.mxu0 %v2920
        %2929 = vmatprep.subr.mxu0 0.0
        %2930 = vmatpush1.msra.mxu0 %v2921
        %2931 = vmatprep.subr.mxu0 0.0
        %2932 = vmatpush1.msra.mxu0 %v2922
        %2933 = vmatprep.subr.mxu0 0.0
        %2934 = vmatpush1.msra.mxu0 %v2923
        %2935 = vmatprep.subr.mxu0 0.0
        %2936 = vmatpush1.msra.mxu0 0.0
        %2937 = vmatprep.subr.mxu0 0.0
        %2938 = vmatpush1.msra.mxu0 0.0
        %2939 = vmatprep.subr.mxu0 0.0
        %2940 = vmatpush1.msra.mxu0 0.0
        %2941 = vmatprep.subr.mxu0 0.0
        %2942 = vmatpush1.msra.mxu0 0.0
        %2943 = vmatprep.subr.mxu0 0.0
        %2944 = vmatpush1.msra.mxu0 0.0
        %2945 = vmatprep.subr.mxu0 0.0
        %2946 = vmatpush1.msra.mxu0 0.0
        %2947 = vmatprep.subr.mxu0 0.0
        %2948 = vmatpush1.msra.mxu0 0.0
        %2949 = vmatprep.subr.mxu0 0.0
        %2950 = vmatpush1.msra.mxu0 0.0
        %2951 = vmatprep.subr.mxu0 0.0
        %2952 = vmatpush1.msra.mxu0 0.0
        %2953 = vmatprep.subr.mxu0 0.0
        %2954 = vmatpush1.msra.mxu0 0.0
        %2955 = vmatprep.subr.mxu0 0.0
        %2956 = vmatpush1.msra.mxu0 0.0
        %2957 = vmatprep.subr.mxu0 0.0
        %2958 = vmatpush1.msra.mxu0 0.0
        %2959 = vmatprep.subr.mxu0 0.0
        %2960 = vmatpush1.msra.mxu0 0.0
        %2961 = vmatprep.subr.mxu0 0.0
        %2962 = vmatpush1.msra.mxu0 0.0
        %2963 = vmatprep.subr.mxu0 0.0
        %2964 = vmatpush1.msra.mxu0 0.0
        %2965 = vmatprep.subr.mxu0 0.0
        %2966 = vmatpush1.msra.mxu0 0.0
        %2967 = vmatprep.subr.mxu0 0.0
        %2968 = vmatpush1.msra.mxu0 0.0
        %2969 = vmatprep.subr.mxu0 0.0
        %2970 = vmatpush1.msra.mxu0 0.0
        %2971 = vmatprep.subr.mxu0 0.0
        %2972 = vmatpush1.msra.mxu0 0.0
        %2973 = vmatprep.subr.mxu0 0.0
        %2974 = vmatpush1.msra.mxu0 0.0
        %2975 = vmatprep.subr.mxu0 0.0
        %2976 = vmatpush1.msra.mxu0 0.0
        %2977 = vmatprep.subr.mxu0 0.0
        %2978 = vmatpush1.msra.mxu0 0.0
        %2979 = vmatprep.subr.mxu0 0.0
        %2980 = vmatpush1.msra.mxu0 0.0
        %2981 = vmatprep.subr.mxu0 0.0
        %2982 = vmatpush1.msra.mxu0 0.0
        %2983 = vmatprep.subr.mxu0 0.0
        %2984 = vmatpush1.msra.mxu0 0.0
        %2985 = vmatprep.subr.mxu0 0.0
        %2986 = vmatpush1.msra.mxu0 0.0
        %2987 = vmatprep.subr.mxu0 0.0
        %2988 = vmatpush1.msra.mxu0 0.0
        %2989 = vmatprep.subr.mxu0 0.0
        %2990 = vmatpush1.msra.mxu0 0.0
        %2991 = vmatprep.mubr.f32.mxu0 0.0
        %2992 = vmatmul.mubr.f32.gmra.mrb[0].mxu0 %v2925
        %v2993 = vpop.f32.mrb[0].mxu0
        %v2994 = vadd.f32 0.0, %v2993
        %v2995 = vpop.f32.mrb[0].mxu0
        %2996 = vdwg.mxu0
        %v2998 = vlaneseq
        %v2999 = vshrl.u32 %v2998, 7
        %v3000 = vsub.s32 0, %v2999
        %v3001 = vrot.slane %v2840, %v3000
        %v3003 = vadd.f32 %v3001, %v2994
        %s3004 = scalar_lea.vmem [#allocation16], 8
        %v3005 = vld [vmem:[%s3004] sm:$0xff]
        %v3007 = vsel %vm2842, %v3005, 0
        %3009 = vmatprep.subr.mxu0 0.0
        %3010 = vmatpush1.msra.mxu0 %v2848
        %3011 = vmatprep.subr.mxu0 0.0
        %3012 = vmatpush1.msra.mxu0 0.0
        %3013 = vmatprep.subr.mxu0 0.0
        %3014 = vmatpush1.msra.mxu0 0.0
        %3015 = vmatprep.subr.mxu0 0.0
        %3016 = vmatpush1.msra.mxu0 0.0
        %3017 = vmatprep.subr.mxu0 0.0
        %3018 = vmatpush1.msra.mxu0 0.0
        %3019 = vmatprep.subr.mxu0 0.0
        %3020 = vmatpush1.msra.mxu0 0.0
        %3021 = vmatprep.subr.mxu0 0.0
        %3022 = vmatpush1.msra.mxu0 0.0
        %3023 = vmatprep.subr.mxu0 0.0
        %3024 = vmatpush1.msra.mxu0 0.0
        %3025 = vmatprep.subr.mxu0 0.0
        %3026 = vmatpush1.msra.mxu0 0.0
        %3027 = vmatprep.subr.mxu0 0.0
        %3028 = vmatpush1.msra.mxu0 0.0
        %3029 = vmatprep.subr.mxu0 0.0
        %3030 = vmatpush1.msra.mxu0 0.0
        %3031 = vmatprep.subr.mxu0 0.0
        %3032 = vmatpush1.msra.mxu0 0.0
        %3033 = vmatprep.subr.mxu0 0.0
        %3034 = vmatpush1.msra.mxu0 0.0
        %3035 = vmatprep.subr.mxu0 0.0
        %3036 = vmatpush1.msra.mxu0 0.0
        %3037 = vmatprep.subr.mxu0 0.0
        %3038 = vmatpush1.msra.mxu0 0.0
        %3039 = vmatprep.subr.mxu0 0.0
        %3040 = vmatpush1.msra.mxu0 0.0
        %3041 = vmatprep.subr.mxu0 0.0
        %3042 = vmatpush1.msra.mxu0 0.0
        %3043 = vmatprep.subr.mxu0 0.0
        %3044 = vmatpush1.msra.mxu0 0.0
        %3045 = vmatprep.subr.mxu0 0.0
        %3046 = vmatpush1.msra.mxu0 0.0
        %3047 = vmatprep.subr.mxu0 0.0
        %3048 = vmatpush1.msra.mxu0 0.0
        %3049 = vmatprep.subr.mxu0 0.0
        %3050 = vmatpush1.msra.mxu0 0.0
        %3051 = vmatprep.subr.mxu0 0.0
        %3052 = vmatpush1.msra.mxu0 0.0
        %3053 = vmatprep.subr.mxu0 0.0
        %3054 = vmatpush1.msra.mxu0 0.0
        %3055 = vmatprep.subr.mxu0 0.0
        %3056 = vmatpush1.msra.mxu0 0.0
        %3057 = vmatprep.subr.mxu0 0.0
        %3058 = vmatpush1.msra.mxu0 0.0
        %3059 = vmatprep.subr.mxu0 0.0
        %3060 = vmatpush1.msra.mxu0 0.0
        %3061 = vmatprep.subr.mxu0 0.0
        %3062 = vmatpush1.msra.mxu0 0.0
        %3063 = vmatprep.subr.mxu0 0.0
        %3064 = vmatpush1.msra.mxu0 0.0
        %3065 = vmatprep.subr.mxu0 0.0
        %3066 = vmatpush1.msra.mxu0 0.0
        %3067 = vmatprep.subr.mxu0 0.0
        %3068 = vmatpush1.msra.mxu0 0.0
        %3069 = vmatprep.subr.mxu0 0.0
        %3070 = vmatpush1.msra.mxu0 0.0
        %3071 = vmatprep.subr.mxu0 0.0
        %3072 = vmatpush1.msra.mxu0 0.0
        %3073 = vmatprep.mubr.f32.mxu0 0.0
        %3074 = vmatmul.mubr.f32.gmra.mrb[0].mxu0 %v3007
        %v3075 = vpop.f32.mrb[0].mxu0
        %v3076 = vadd.f32 0.0, %v3075
        %v3077 = vpop.f32.mrb[0].mxu0
        %3078 = vdwg.mxu0
        %s3079 = scalar_lea.vmem [#allocation18], 32
        %v3080 = vld [vmem:[%s3079] sm:$0xff]
        %v3081 = vld [vmem:[%s3079 + $0x8] sm:$0xff]
        %v3082 = vld [vmem:[%s3079 + $0x10] sm:$0xff]
        %v3083 = vld [vmem:[%s3079 + $0x18] sm:$0xff]
        %v3085 = vsel %vm1916, %v3076, 0
        %3087 = vmatprep.subr.mxu0 0.0
        %3088 = vmatpush1.msra.mxu0 %v3080
        %3089 = vmatprep.subr.mxu0 0.0
        %3090 = vmatpush1.msra.mxu0 %v3081
        %3091 = vmatprep.subr.mxu0 0.0
        %3092 = vmatpush1.msra.mxu0 %v3082
        %3093 = vmatprep.subr.mxu0 0.0
        %3094 = vmatpush1.msra.mxu0 %v3083
        %3095 = vmatprep.subr.mxu0 0.0
        %3096 = vmatpush1.msra.mxu0 0.0
        %3097 = vmatprep.subr.mxu0 0.0
        %3098 = vmatpush1.msra.mxu0 0.0
        %3099 = vmatprep.subr.mxu0 0.0
        %3100 = vmatpush1.msra.mxu0 0.0
        %3101 = vmatprep.subr.mxu0 0.0
        %3102 = vmatpush1.msra.mxu0 0.0
        %3103 = vmatprep.subr.mxu0 0.0
        %3104 = vmatpush1.msra.mxu0 0.0
        %3105 = vmatprep.subr.mxu0 0.0
        %3106 = vmatpush1.msra.mxu0 0.0
        %3107 = vmatprep.subr.mxu0 0.0
        %3108 = vmatpush1.msra.mxu0 0.0
        %3109 = vmatprep.subr.mxu0 0.0
        %3110 = vmatpush1.msra.mxu0 0.0
        %3111 = vmatprep.subr.mxu0 0.0
        %3112 = vmatpush1.msra.mxu0 0.0
        %3113 = vmatprep.subr.mxu0 0.0
        %3114 = vmatpush1.msra.mxu0 0.0
        %3115 = vmatprep.subr.mxu0 0.0
        %3116 = vmatpush1.msra.mxu0 0.0
        %3117 = vmatprep.subr.mxu0 0.0
        %3118 = vmatpush1.msra.mxu0 0.0
        %3119 = vmatprep.subr.mxu0 0.0
        %3120 = vmatpush1.msra.mxu0 0.0
        %3121 = vmatprep.subr.mxu0 0.0
        %3122 = vmatpush1.msra.mxu0 0.0
        %3123 = vmatprep.subr.mxu0 0.0
        %3124 = vmatpush1.msra.mxu0 0.0
        %3125 = vmatprep.subr.mxu0 0.0
        %3126 = vmatpush1.msra.mxu0 0.0
        %3127 = vmatprep.subr.mxu0 0.0
        %3128 = vmatpush1.msra.mxu0 0.0
        %3129 = vmatprep.subr.mxu0 0.0
        %3130 = vmatpush1.msra.mxu0 0.0
        %3131 = vmatprep.subr.mxu0 0.0
        %3132 = vmatpush1.msra.mxu0 0.0
        %3133 = vmatprep.subr.mxu0 0.0
        %3134 = vmatpush1.msra.mxu0 0.0
        %3135 = vmatprep.subr.mxu0 0.0
        %3136 = vmatpush1.msra.mxu0 0.0
        %3137 = vmatprep.subr.mxu0 0.0
        %3138 = vmatpush1.msra.mxu0 0.0
        %3139 = vmatprep.subr.mxu0 0.0
        %3140 = vmatpush1.msra.mxu0 0.0
        %3141 = vmatprep.subr.mxu0 0.0
        %3142 = vmatpush1.msra.mxu0 0.0
        %3143 = vmatprep.subr.mxu0 0.0
        %3144 = vmatpush1.msra.mxu0 0.0
        %3145 = vmatprep.subr.mxu0 0.0
        %3146 = vmatpush1.msra.mxu0 0.0
        %3147 = vmatprep.subr.mxu0 0.0
        %3148 = vmatpush1.msra.mxu0 0.0
        %3149 = vmatprep.subr.mxu0 0.0
        %3150 = vmatpush1.msra.mxu0 0.0
        %3151 = vmatprep.mubr.f32.mxu0 0.0
        %3152 = vmatmul.mubr.f32.gmra.mrb[0].mxu0 %v3085
        %v3153 = vpop.f32.mrb[0].mxu0
        %v3154 = vadd.f32 0.0, %v3153
        %v3155 = vpop.f32.mrb[0].mxu0
        %3156 = vdwg.mxu0
        %v3157 = vadd.f32 %v3003, %v3154
        %s3158 = scalar_lea.vmem [#allocation16], 16
        %v3159 = vld [vmem:[%s3158] sm:$0xff]
        %v3161 = vsel %vm2842, %v3159, 0
        %3163 = vmatprep.subr.mxu0 0.0
        %3164 = vmatpush1.msra.mxu0 %v2848
        %3165 = vmatprep.subr.mxu0 0.0
        %3166 = vmatpush1.msra.mxu0 0.0
        %3167 = vmatprep.subr.mxu0 0.0
        %3168 = vmatpush1.msra.mxu0 0.0
        %3169 = vmatprep.subr.mxu0 0.0
        %3170 = vmatpush1.msra.mxu0 0.0
        %3171 = vmatprep.subr.mxu0 0.0
        %3172 = vmatpush1.msra.mxu0 0.0
        %3173 = vmatprep.subr.mxu0 0.0
        %3174 = vmatpush1.msra.mxu0 0.0
        %3175 = vmatprep.subr.mxu0 0.0
        %3176 = vmatpush1.msra.mxu0 0.0
        %3177 = vmatprep.subr.mxu0 0.0
        %3178 = vmatpush1.msra.mxu0 0.0
        %3179 = vmatprep.subr.mxu0 0.0
        %3180 = vmatpush1.msra.mxu0 0.0
        %3181 = vmatprep.subr.mxu0 0.0
        %3182 = vmatpush1.msra.mxu0 0.0
        %3183 = vmatprep.subr.mxu0 0.0
        %3184 = vmatpush1.msra.mxu0 0.0
        %3185 = vmatprep.subr.mxu0 0.0
        %3186 = vmatpush1.msra.mxu0 0.0
        %3187 = vmatprep.subr.mxu0 0.0
        %3188 = vmatpush1.msra.mxu0 0.0
        %3189 = vmatprep.subr.mxu0 0.0
        %3190 = vmatpush1.msra.mxu0 0.0
        %3191 = vmatprep.subr.mxu0 0.0
        %3192 = vmatpush1.msra.mxu0 0.0
        %3193 = vmatprep.subr.mxu0 0.0
        %3194 = vmatpush1.msra.mxu0 0.0
        %3195 = vmatprep.subr.mxu0 0.0
        %3196 = vmatpush1.msra.mxu0 0.0
        %3197 = vmatprep.subr.mxu0 0.0
        %3198 = vmatpush1.msra.mxu0 0.0
        %3199 = vmatprep.subr.mxu0 0.0
        %3200 = vmatpush1.msra.mxu0 0.0
        %3201 = vmatprep.subr.mxu0 0.0
        %3202 = vmatpush1.msra.mxu0 0.0
        %3203 = vmatprep.subr.mxu0 0.0
        %3204 = vmatpush1.msra.mxu0 0.0
        %3205 = vmatprep.subr.mxu0 0.0
        %3206 = vmatpush1.msra.mxu0 0.0
        %3207 = vmatprep.subr.mxu0 0.0
        %3208 = vmatpush1.msra.mxu0 0.0
        %3209 = vmatprep.subr.mxu0 0.0
        %3210 = vmatpush1.msra.mxu0 0.0
        %3211 = vmatprep.subr.mxu0 0.0
        %3212 = vmatpush1.msra.mxu0 0.0
        %3213 = vmatprep.subr.mxu0 0.0
        %3214 = vmatpush1.msra.mxu0 0.0
        %3215 = vmatprep.subr.mxu0 0.0
        %3216 = vmatpush1.msra.mxu0 0.0
        %3217 = vmatprep.subr.mxu0 0.0
        %3218 = vmatpush1.msra.mxu0 0.0
        %3219 = vmatprep.subr.mxu0 0.0
        %3220 = vmatpush1.msra.mxu0 0.0
        %3221 = vmatprep.subr.mxu0 0.0
        %3222 = vmatpush1.msra.mxu0 0.0
        %3223 = vmatprep.subr.mxu0 0.0
        %3224 = vmatpush1.msra.mxu0 0.0
        %3225 = vmatprep.subr.mxu0 0.0
        %3226 = vmatpush1.msra.mxu0 0.0
        %3227 = vmatprep.mubr.f32.mxu0 0.0
        %3228 = vmatmul.mubr.f32.gmra.mrb[0].mxu0 %v3161
        %v3229 = vpop.f32.mrb[0].mxu0
        %v3230 = vadd.f32 0.0, %v3229
        %v3231 = vpop.f32.mrb[0].mxu0
        %3232 = vdwg.mxu0
        %s3233 = scalar_lea.vmem [#allocation18], 64
        %v3234 = vld [vmem:[%s3233] sm:$0xff]
        %v3235 = vld [vmem:[%s3233 + $0x8] sm:$0xff]
        %v3236 = vld [vmem:[%s3233 + $0x10] sm:$0xff]
        %v3237 = vld [vmem:[%s3233 + $0x18] sm:$0xff]
        %v3239 = vsel %vm1916, %v3230, 0
        %3241 = vmatprep.subr.mxu0 0.0
        %3242 = vmatpush1.msra.mxu0 %v3234
        %3243 = vmatprep.subr.mxu0 0.0
        %3244 = vmatpush1.msra.mxu0 %v3235
        %3245 = vmatprep.subr.mxu0 0.0
        %3246 = vmatpush1.msra.mxu0 %v3236
        %3247 = vmatprep.subr.mxu0 0.0
        %3248 = vmatpush1.msra.mxu0 %v3237
        %3249 = vmatprep.subr.mxu0 0.0
        %3250 = vmatpush1.msra.mxu0 0.0
        %3251 = vmatprep.subr.mxu0 0.0
        %3252 = vmatpush1.msra.mxu0 0.0
        %3253 = vmatprep.subr.mxu0 0.0
        %3254 = vmatpush1.msra.mxu0 0.0
        %3255 = vmatprep.subr.mxu0 0.0
        %3256 = vmatpush1.msra.mxu0 0.0
        %3257 = vmatprep.subr.mxu0 0.0
        %3258 = vmatpush1.msra.mxu0 0.0
        %3259 = vmatprep.subr.mxu0 0.0
        %3260 = vmatpush1.msra.mxu0 0.0
        %3261 = vmatprep.subr.mxu0 0.0
        %3262 = vmatpush1.msra.mxu0 0.0
        %3263 = vmatprep.subr.mxu0 0.0
        %3264 = vmatpush1.msra.mxu0 0.0
        %3265 = vmatprep.subr.mxu0 0.0
        %3266 = vmatpush1.msra.mxu0 0.0
        %3267 = vmatprep.subr.mxu0 0.0
        %3268 = vmatpush1.msra.mxu0 0.0
        %3269 = vmatprep.subr.mxu0 0.0
        %3270 = vmatpush1.msra.mxu0 0.0
        %3271 = vmatprep.subr.mxu0 0.0
        %3272 = vmatpush1.msra.mxu0 0.0
        %3273 = vmatprep.subr.mxu0 0.0
        %3274 = vmatpush1.msra.mxu0 0.0
        %3275 = vmatprep.subr.mxu0 0.0
        %3276 = vmatpush1.msra.mxu0 0.0
        %3277 = vmatprep.subr.mxu0 0.0
        %3278 = vmatpush1.msra.mxu0 0.0
        %3279 = vmatprep.subr.mxu0 0.0
        %3280 = vmatpush1.msra.mxu0 0.0
        %3281 = vmatprep.subr.mxu0 0.0
        %3282 = vmatpush1.msra.mxu0 0.0
        %3283 = vmatprep.subr.mxu0 0.0
        %3284 = vmatpush1.msra.mxu0 0.0
        %3285 = vmatprep.subr.mxu0 0.0
        %3286 = vmatpush1.msra.mxu0 0.0
        %3287 = vmatprep.subr.mxu0 0.0
        %3288 = vmatpush1.msra.mxu0 0.0
        %3289 = vmatprep.subr.mxu0 0.0
        %3290 = vmatpush1.msra.mxu0 0.0
        %3291 = vmatprep.subr.mxu0 0.0
        %3292 = vmatpush1.msra.mxu0 0.0
        %3293 = vmatprep.subr.mxu0 0.0
        %3294 = vmatpush1.msra.mxu0 0.0
        %3295 = vmatprep.subr.mxu0 0.0
        %3296 = vmatpush1.msra.mxu0 0.0
        %3297 = vmatprep.subr.mxu0 0.0
        %3298 = vmatpush1.msra.mxu0 0.0
        %3299 = vmatprep.subr.mxu0 0.0
        %3300 = vmatpush1.msra.mxu0 0.0
        %3301 = vmatprep.subr.mxu0 0.0
        %3302 = vmatpush1.msra.mxu0 0.0
        %3303 = vmatprep.subr.mxu0 0.0
        %3304 = vmatpush1.msra.mxu0 0.0
        %3305 = vmatprep.mubr.f32.mxu0 0.0
        %3306 = vmatmul.mubr.f32.gmra.mrb[0].mxu0 %v3239
        %v3307 = vpop.f32.mrb[0].mxu0
        %v3308 = vadd.f32 0.0, %v3307
        %v3309 = vpop.f32.mrb[0].mxu0
        %3310 = vdwg.mxu0
        %v3311 = vadd.f32 %v3157, %v3308
        %s3312 = scalar_lea.vmem [#allocation16], 24
        %v3313 = vld [vmem:[%s3312] sm:$0xff]
        %v3315 = vsel %vm2842, %v3313, 0
        %3317 = vmatprep.subr.mxu0 0.0
        %3318 = vmatpush1.msra.mxu0 %v2848
        %3319 = vmatprep.subr.mxu0 0.0
        %3320 = vmatpush1.msra.mxu0 0.0
        %3321 = vmatprep.subr.mxu0 0.0
        %3322 = vmatpush1.msra.mxu0 0.0
        %3323 = vmatprep.subr.mxu0 0.0
        %3324 = vmatpush1.msra.mxu0 0.0
        %3325 = vmatprep.subr.mxu0 0.0
        %3326 = vmatpush1.msra.mxu0 0.0
        %3327 = vmatprep.subr.mxu0 0.0
        %3328 = vmatpush1.msra.mxu0 0.0
        %3329 = vmatprep.subr.mxu0 0.0
        %3330 = vmatpush1.msra.mxu0 0.0
        %3331 = vmatprep.subr.mxu0 0.0
        %3332 = vmatpush1.msra.mxu0 0.0
        %3333 = vmatprep.subr.mxu0 0.0
        %3334 = vmatpush1.msra.mxu0 0.0
        %3335 = vmatprep.subr.mxu0 0.0
        %3336 = vmatpush1.msra.mxu0 0.0
        %3337 = vmatprep.subr.mxu0 0.0
        %3338 = vmatpush1.msra.mxu0 0.0
        %3339 = vmatprep.subr.mxu0 0.0
        %3340 = vmatpush1.msra.mxu0 0.0
        %3341 = vmatprep.subr.mxu0 0.0
        %3342 = vmatpush1.msra.mxu0 0.0
        %3343 = vmatprep.subr.mxu0 0.0
        %3344 = vmatpush1.msra.mxu0 0.0
        %3345 = vmatprep.subr.mxu0 0.0
        %3346 = vmatpush1.msra.mxu0 0.0
        %3347 = vmatprep.subr.mxu0 0.0
        %3348 = vmatpush1.msra.mxu0 0.0
        %3349 = vmatprep.subr.mxu0 0.0
        %3350 = vmatpush1.msra.mxu0 0.0
        %3351 = vmatprep.subr.mxu0 0.0
        %3352 = vmatpush1.msra.mxu0 0.0
        %3353 = vmatprep.subr.mxu0 0.0
        %3354 = vmatpush1.msra.mxu0 0.0
        %3355 = vmatprep.subr.mxu0 0.0
        %3356 = vmatpush1.msra.mxu0 0.0
        %3357 = vmatprep.subr.mxu0 0.0
        %3358 = vmatpush1.msra.mxu0 0.0
        %3359 = vmatprep.subr.mxu0 0.0
        %3360 = vmatpush1.msra.mxu0 0.0
        %3361 = vmatprep.subr.mxu0 0.0
        %3362 = vmatpush1.msra.mxu0 0.0
        %3363 = vmatprep.subr.mxu0 0.0
        %3364 = vmatpush1.msra.mxu0 0.0
        %3365 = vmatprep.subr.mxu0 0.0
        %3366 = vmatpush1.msra.mxu0 0.0
        %3367 = vmatprep.subr.mxu0 0.0
        %3368 = vmatpush1.msra.mxu0 0.0
        %3369 = vmatprep.subr.mxu0 0.0
        %3370 = vmatpush1.msra.mxu0 0.0
        %3371 = vmatprep.subr.mxu0 0.0
        %3372 = vmatpush1.msra.mxu0 0.0
        %3373 = vmatprep.subr.mxu0 0.0
        %3374 = vmatpush1.msra.mxu0 0.0
        %3375 = vmatprep.subr.mxu0 0.0
        %3376 = vmatpush1.msra.mxu0 0.0
        %3377 = vmatprep.subr.mxu0 0.0
        %3378 = vmatpush1.msra.mxu0 0.0
        %3379 = vmatprep.subr.mxu0 0.0
        %3380 = vmatpush1.msra.mxu0 0.0
        %3381 = vmatprep.mubr.f32.mxu0 0.0
        %3382 = vmatmul.mubr.f32.gmra.mrb[0].mxu0 %v3315
        %v3383 = vpop.f32.mrb[0].mxu0
        %v3384 = vadd.f32 0.0, %v3383
        %v3385 = vpop.f32.mrb[0].mxu0
        %3386 = vdwg.mxu0
        %s3387 = scalar_lea.vmem [#allocation18], 96
        %v3388 = vld [vmem:[%s3387] sm:$0xff]
        %v3389 = vld [vmem:[%s3387 + $0x8] sm:$0xff]
        %v3390 = vld [vmem:[%s3387 + $0x10] sm:$0xff]
        %v3391 = vld [vmem:[%s3387 + $0x18] sm:$0xff]
        %v3393 = vsel %vm1916, %v3384, 0
        %3395 = vmatprep.subr.mxu0 0.0
        %3396 = vmatpush1.msra.mxu0 %v3388
        %3397 = vmatprep.subr.mxu0 0.0
        %3398 = vmatpush1.msra.mxu0 %v3389
        %3399 = vmatprep.subr.mxu0 0.0
        %3400 = vmatpush1.msra.mxu0 %v3390
        %3401 = vmatprep.subr.mxu0 0.0
        %3402 = vmatpush1.msra.mxu0 %v3391
        %3403 = vmatprep.subr.mxu0 0.0
        %3404 = vmatpush1.msra.mxu0 0.0
        %3405 = vmatprep.subr.mxu0 0.0
        %3406 = vmatpush1.msra.mxu0 0.0
        %3407 = vmatprep.subr.mxu0 0.0
        %3408 = vmatpush1.msra.mxu0 0.0
        %3409 = vmatprep.subr.mxu0 0.0
        %3410 = vmatpush1.msra.mxu0 0.0
        %3411 = vmatprep.subr.mxu0 0.0
        %3412 = vmatpush1.msra.mxu0 0.0
        %3413 = vmatprep.subr.mxu0 0.0
        %3414 = vmatpush1.msra.mxu0 0.0
        %3415 = vmatprep.subr.mxu0 0.0
        %3416 = vmatpush1.msra.mxu0 0.0
        %3417 = vmatprep.subr.mxu0 0.0
        %3418 = vmatpush1.msra.mxu0 0.0
        %3419 = vmatprep.subr.mxu0 0.0
        %3420 = vmatpush1.msra.mxu0 0.0
        %3421 = vmatprep.subr.mxu0 0.0
        %3422 = vmatpush1.msra.mxu0 0.0
        %3423 = vmatprep.subr.mxu0 0.0
        %3424 = vmatpush1.msra.mxu0 0.0
        %3425 = vmatprep.subr.mxu0 0.0
        %3426 = vmatpush1.msra.mxu0 0.0
        %3427 = vmatprep.subr.mxu0 0.0
        %3428 = vmatpush1.msra.mxu0 0.0
        %3429 = vmatprep.subr.mxu0 0.0
        %3430 = vmatpush1.msra.mxu0 0.0
        %3431 = vmatprep.subr.mxu0 0.0
        %3432 = vmatpush1.msra.mxu0 0.0
        %3433 = vmatprep.subr.mxu0 0.0
        %3434 = vmatpush1.msra.mxu0 0.0
        %3435 = vmatprep.subr.mxu0 0.0
        %3436 = vmatpush1.msra.mxu0 0.0
        %3437 = vmatprep.subr.mxu0 0.0
        %3438 = vmatpush1.msra.mxu0 0.0
        %3439 = vmatprep.subr.mxu0 0.0
        %3440 = vmatpush1.msra.mxu0 0.0
        %3441 = vmatprep.subr.mxu0 0.0
        %3442 = vmatpush1.msra.mxu0 0.0
        %3443 = vmatprep.subr.mxu0 0.0
        %3444 = vmatpush1.msra.mxu0 0.0
        %3445 = vmatprep.subr.mxu0 0.0
        %3446 = vmatpush1.msra.mxu0 0.0
        %3447 = vmatprep.subr.mxu0 0.0
        %3448 = vmatpush1.msra.mxu0 0.0
        %3449 = vmatprep.subr.mxu0 0.0
        %3450 = vmatpush1.msra.mxu0 0.0
        %3451 = vmatprep.subr.mxu0 0.0
        %3452 = vmatpush1.msra.mxu0 0.0
        %3453 = vmatprep.subr.mxu0 0.0
        %3454 = vmatpush1.msra.mxu0 0.0
        %3455 = vmatprep.subr.mxu0 0.0
        %3456 = vmatpush1.msra.mxu0 0.0
        %3457 = vmatprep.subr.mxu0 0.0
        %3458 = vmatpush1.msra.mxu0 0.0
        %3459 = vmatprep.mubr.f32.mxu0 0.0
        %3460 = vmatmul.mubr.f32.gmra.mrb[0].mxu0 %v3393
        %v3461 = vpop.f32.mrb[0].mxu0
        %v3462 = vadd.f32 0.0, %v3461
        %v3463 = vpop.f32.mrb[0].mxu0
        %3464 = vdwg.mxu0
        %v3465 = vadd.f32 %v3311, %v3462
        %s3466 = scalar_lea.vmem [#allocation16], 32
        %v3467 = vld [vmem:[%s3466] sm:$0xff]
        %v3469 = vsel %vm2842, %v3467, 0
        %3471 = vmatprep.subr.mxu0 0.0
        %3472 = vmatpush1.msra.mxu0 %v2848
        %3473 = vmatprep.subr.mxu0 0.0
        %3474 = vmatpush1.msra.mxu0 0.0
        %3475 = vmatprep.subr.mxu0 0.0
        %3476 = vmatpush1.msra.mxu0 0.0
        %3477 = vmatprep.subr.mxu0 0.0
        %3478 = vmatpush1.msra.mxu0 0.0
        %3479 = vmatprep.subr.mxu0 0.0
        %3480 = vmatpush1.msra.mxu0 0.0
        %3481 = vmatprep.subr.mxu0 0.0
        %3482 = vmatpush1.msra.mxu0 0.0
        %3483 = vmatprep.subr.mxu0 0.0
        %3484 = vmatpush1.msra.mxu0 0.0
        %3485 = vmatprep.subr.mxu0 0.0
        %3486 = vmatpush1.msra.mxu0 0.0
        %3487 = vmatprep.subr.mxu0 0.0
        %3488 = vmatpush1.msra.mxu0 0.0
        %3489 = vmatprep.subr.mxu0 0.0
        %3490 = vmatpush1.msra.mxu0 0.0
        %3491 = vmatprep.subr.mxu0 0.0
        %3492 = vmatpush1.msra.mxu0 0.0
        %3493 = vmatprep.subr.mxu0 0.0
        %3494 = vmatpush1.msra.mxu0 0.0
        %3495 = vmatprep.subr.mxu0 0.0
        %3496 = vmatpush1.msra.mxu0 0.0
        %3497 = vmatprep.subr.mxu0 0.0
        %3498 = vmatpush1.msra.mxu0 0.0
        %3499 = vmatprep.subr.mxu0 0.0
        %3500 = vmatpush1.msra.mxu0 0.0
        %3501 = vmatprep.subr.mxu0 0.0
        %3502 = vmatpush1.msra.mxu0 0.0
        %3503 = vmatprep.subr.mxu0 0.0
        %3504 = vmatpush1.msra.mxu0 0.0
        %3505 = vmatprep.subr.mxu0 0.0
        %3506 = vmatpush1.msra.mxu0 0.0
        %3507 = vmatprep.subr.mxu0 0.0
        %3508 = vmatpush1.msra.mxu0 0.0
        %3509 = vmatprep.subr.mxu0 0.0
        %3510 = vmatpush1.msra.mxu0 0.0
        %3511 = vmatprep.subr.mxu0 0.0
        %3512 = vmatpush1.msra.mxu0 0.0
        %3513 = vmatprep.subr.mxu0 0.0
        %3514 = vmatpush1.msra.mxu0 0.0
        %3515 = vmatprep.subr.mxu0 0.0
        %3516 = vmatpush1.msra.mxu0 0.0
        %3517 = vmatprep.subr.mxu0 0.0
        %3518 = vmatpush1.msra.mxu0 0.0
        %3519 = vmatprep.subr.mxu0 0.0
        %3520 = vmatpush1.msra.mxu0 0.0
        %3521 = vmatprep.subr.mxu0 0.0
        %3522 = vmatpush1.msra.mxu0 0.0
        %3523 = vmatprep.subr.mxu0 0.0
        %3524 = vmatpush1.msra.mxu0 0.0
        %3525 = vmatprep.subr.mxu0 0.0
        %3526 = vmatpush1.msra.mxu0 0.0
        %3527 = vmatprep.subr.mxu0 0.0
        %3528 = vmatpush1.msra.mxu0 0.0
        %3529 = vmatprep.subr.mxu0 0.0
        %3530 = vmatpush1.msra.mxu0 0.0
        %3531 = vmatprep.subr.mxu0 0.0
        %3532 = vmatpush1.msra.mxu0 0.0
        %3533 = vmatprep.subr.mxu0 0.0
        %3534 = vmatpush1.msra.mxu0 0.0
        %3535 = vmatprep.mubr.f32.mxu0 0.0
        %3536 = vmatmul.mubr.f32.gmra.mrb[0].mxu0 %v3469
        %v3537 = vpop.f32.mrb[0].mxu0
        %v3538 = vadd.f32 0.0, %v3537
        %v3539 = vpop.f32.mrb[0].mxu0
        %3540 = vdwg.mxu0
        %s3541 = scalar_lea.vmem [#allocation18], 128
        %v3542 = vld [vmem:[%s3541] sm:$0xff]
        %v3543 = vld [vmem:[%s3541 + $0x8] sm:$0xff]
        %v3544 = vld [vmem:[%s3541 + $0x10] sm:$0xff]
        %v3545 = vld [vmem:[%s3541 + $0x18] sm:$0xff]
        %v3547 = vsel %vm1916, %v3538, 0
        %3549 = vmatprep.subr.mxu0 0.0
        %3550 = vmatpush1.msra.mxu0 %v3542
        %3551 = vmatprep.subr.mxu0 0.0
        %3552 = vmatpush1.msra.mxu0 %v3543
        %3553 = vmatprep.subr.mxu0 0.0
        %3554 = vmatpush1.msra.mxu0 %v3544
        %3555 = vmatprep.subr.mxu0 0.0
        %3556 = vmatpush1.msra.mxu0 %v3545
        %3557 = vmatprep.subr.mxu0 0.0
        %3558 = vmatpush1.msra.mxu0 0.0
        %3559 = vmatprep.subr.mxu0 0.0
        %3560 = vmatpush1.msra.mxu0 0.0
        %3561 = vmatprep.subr.mxu0 0.0
        %3562 = vmatpush1.msra.mxu0 0.0
        %3563 = vmatprep.subr.mxu0 0.0
        %3564 = vmatpush1.msra.mxu0 0.0
        %3565 = vmatprep.subr.mxu0 0.0
        %3566 = vmatpush1.msra.mxu0 0.0
        %3567 = vmatprep.subr.mxu0 0.0
        %3568 = vmatpush1.msra.mxu0 0.0
        %3569 = vmatprep.subr.mxu0 0.0
        %3570 = vmatpush1.msra.mxu0 0.0
        %3571 = vmatprep.subr.mxu0 0.0
        %3572 = vmatpush1.msra.mxu0 0.0
        %3573 = vmatprep.subr.mxu0 0.0
        %3574 = vmatpush1.msra.mxu0 0.0
        %3575 = vmatprep.subr.mxu0 0.0
        %3576 = vmatpush1.msra.mxu0 0.0
        %3577 = vmatprep.subr.mxu0 0.0
        %3578 = vmatpush1.msra.mxu0 0.0
        %3579 = vmatprep.subr.mxu0 0.0
        %3580 = vmatpush1.msra.mxu0 0.0
        %3581 = vmatprep.subr.mxu0 0.0
        %3582 = vmatpush1.msra.mxu0 0.0
        %3583 = vmatprep.subr.mxu0 0.0
        %3584 = vmatpush1.msra.mxu0 0.0
        %3585 = vmatprep.subr.mxu0 0.0
        %3586 = vmatpush1.msra.mxu0 0.0
        %3587 = vmatprep.subr.mxu0 0.0
        %3588 = vmatpush1.msra.mxu0 0.0
        %3589 = vmatprep.subr.mxu0 0.0
        %3590 = vmatpush1.msra.mxu0 0.0
        %3591 = vmatprep.subr.mxu0 0.0
        %3592 = vmatpush1.msra.mxu0 0.0
        %3593 = vmatprep.subr.mxu0 0.0
        %3594 = vmatpush1.msra.mxu0 0.0
        %3595 = vmatprep.subr.mxu0 0.0
        %3596 = vmatpush1.msra.mxu0 0.0
        %3597 = vmatprep.subr.mxu0 0.0
        %3598 = vmatpush1.msra.mxu0 0.0
        %3599 = vmatprep.subr.mxu0 0.0
        %3600 = vmatpush1.msra.mxu0 0.0
        %3601 = vmatprep.subr.mxu0 0.0
        %3602 = vmatpush1.msra.mxu0 0.0
        %3603 = vmatprep.subr.mxu0 0.0
        %3604 = vmatpush1.msra.mxu0 0.0
        %3605 = vmatprep.subr.mxu0 0.0
        %3606 = vmatpush1.msra.mxu0 0.0
        %3607 = vmatprep.subr.mxu0 0.0
        %3608 = vmatpush1.msra.mxu0 0.0
        %3609 = vmatprep.subr.mxu0 0.0
        %3610 = vmatpush1.msra.mxu0 0.0
        %3611 = vmatprep.subr.mxu0 0.0
        %3612 = vmatpush1.msra.mxu0 0.0
        %3613 = vmatprep.mubr.f32.mxu0 0.0
        %3614 = vmatmul.mubr.f32.gmra.mrb[0].mxu0 %v3547
        %v3615 = vpop.f32.mrb[0].mxu0
        %v3616 = vadd.f32 0.0, %v3615
        %v3617 = vpop.f32.mrb[0].mxu0
        %3618 = vdwg.mxu0
        %v3619 = vadd.f32 %v3465, %v3616
        %s3620 = scalar_lea.vmem [#allocation16], 40
        %v3621 = vld [vmem:[%s3620] sm:$0xff]
        %v3623 = vsel %vm2842, %v3621, 0
        %3625 = vmatprep.subr.mxu0 0.0
        %3626 = vmatpush1.msra.mxu0 %v2848
        %3627 = vmatprep.subr.mxu0 0.0
        %3628 = vmatpush1.msra.mxu0 0.0
        %3629 = vmatprep.subr.mxu0 0.0
        %3630 = vmatpush1.msra.mxu0 0.0
        %3631 = vmatprep.subr.mxu0 0.0
        %3632 = vmatpush1.msra.mxu0 0.0
        %3633 = vmatprep.subr.mxu0 0.0
        %3634 = vmatpush1.msra.mxu0 0.0
        %3635 = vmatprep.subr.mxu0 0.0
        %3636 = vmatpush1.msra.mxu0 0.0
        %3637 = vmatprep.subr.mxu0 0.0
        %3638 = vmatpush1.msra.mxu0 0.0
        %3639 = vmatprep.subr.mxu0 0.0
        %3640 = vmatpush1.msra.mxu0 0.0
        %3641 = vmatprep.subr.mxu0 0.0
        %3642 = vmatpush1.msra.mxu0 0.0
        %3643 = vmatprep.subr.mxu0 0.0
        %3644 = vmatpush1.msra.mxu0 0.0
        %3645 = vmatprep.subr.mxu0 0.0
        %3646 = vmatpush1.msra.mxu0 0.0
        %3647 = vmatprep.subr.mxu0 0.0
        %3648 = vmatpush1.msra.mxu0 0.0
        %3649 = vmatprep.subr.mxu0 0.0
        %3650 = vmatpush1.msra.mxu0 0.0
        %3651 = vmatprep.subr.mxu0 0.0
        %3652 = vmatpush1.msra.mxu0 0.0
        %3653 = vmatprep.subr.mxu0 0.0
        %3654 = vmatpush1.msra.mxu0 0.0
        %3655 = vmatprep.subr.mxu0 0.0
        %3656 = vmatpush1.msra.mxu0 0.0
        %3657 = vmatprep.subr.mxu0 0.0
        %3658 = vmatpush1.msra.mxu0 0.0
        %3659 = vmatprep.subr.mxu0 0.0
        %3660 = vmatpush1.msra.mxu0 0.0
        %3661 = vmatprep.subr.mxu0 0.0
        %3662 = vmatpush1.msra.mxu0 0.0
        %3663 = vmatprep.subr.mxu0 0.0
        %3664 = vmatpush1.msra.mxu0 0.0
        %3665 = vmatprep.subr.mxu0 0.0
        %3666 = vmatpush1.msra.mxu0 0.0
        %3667 = vmatprep.subr.mxu0 0.0
        %3668 = vmatpush1.msra.mxu0 0.0
        %3669 = vmatprep.subr.mxu0 0.0
        %3670 = vmatpush1.msra.mxu0 0.0
        %3671 = vmatprep.subr.mxu0 0.0
        %3672 = vmatpush1.msra.mxu0 0.0
        %3673 = vmatprep.subr.mxu0 0.0
        %3674 = vmatpush1.msra.mxu0 0.0
        %3675 = vmatprep.subr.mxu0 0.0
        %3676 = vmatpush1.msra.mxu0 0.0
        %3677 = vmatprep.subr.mxu0 0.0
        %3678 = vmatpush1.msra.mxu0 0.0
        %3679 = vmatprep.subr.mxu0 0.0
        %3680 = vmatpush1.msra.mxu0 0.0
        %3681 = vmatprep.subr.mxu0 0.0
        %3682 = vmatpush1.msra.mxu0 0.0
        %3683 = vmatprep.subr.mxu0 0.0
        %3684 = vmatpush1.msra.mxu0 0.0
        %3685 = vmatprep.subr.mxu0 0.0
        %3686 = vmatpush1.msra.mxu0 0.0
        %3687 = vmatprep.subr.mxu0 0.0
        %3688 = vmatpush1.msra.mxu0 0.0
        %3689 = vmatprep.mubr.f32.mxu0 0.0
        %3690 = vmatmul.mubr.f32.gmra.mrb[0].mxu0 %v3623
        %v3691 = vpop.f32.mrb[0].mxu0
        %v3692 = vadd.f32 0.0, %v3691
        %v3693 = vpop.f32.mrb[0].mxu0
        %3694 = vdwg.mxu0
        %s3695 = scalar_lea.vmem [#allocation18], 160
        %v3696 = vld [vmem:[%s3695] sm:$0xff]
        %v3697 = vld [vmem:[%s3695 + $0x8] sm:$0xff]
        %v3698 = vld [vmem:[%s3695 + $0x10] sm:$0xff]
        %v3699 = vld [vmem:[%s3695 + $0x18] sm:$0xff]
        %v3701 = vsel %vm1916, %v3692, 0
        %3703 = vmatprep.subr.mxu0 0.0
        %3704 = vmatpush1.msra.mxu0 %v3696
        %3705 = vmatprep.subr.mxu0 0.0
        %3706 = vmatpush1.msra.mxu0 %v3697
        %3707 = vmatprep.subr.mxu0 0.0
        %3708 = vmatpush1.msra.mxu0 %v3698
        %3709 = vmatprep.subr.mxu0 0.0
        %3710 = vmatpush1.msra.mxu0 %v3699
        %3711 = vmatprep.subr.mxu0 0.0
        %3712 = vmatpush1.msra.mxu0 0.0
        %3713 = vmatprep.subr.mxu0 0.0
        %3714 = vmatpush1.msra.mxu0 0.0
        %3715 = vmatprep.subr.mxu0 0.0
        %3716 = vmatpush1.msra.mxu0 0.0
        %3717 = vmatprep.subr.mxu0 0.0
        %3718 = vmatpush1.msra.mxu0 0.0
        %3719 = vmatprep.subr.mxu0 0.0
        %3720 = vmatpush1.msra.mxu0 0.0
        %3721 = vmatprep.subr.mxu0 0.0
        %3722 = vmatpush1.msra.mxu0 0.0
        %3723 = vmatprep.subr.mxu0 0.0
        %3724 = vmatpush1.msra.mxu0 0.0
        %3725 = vmatprep.subr.mxu0 0.0
        %3726 = vmatpush1.msra.mxu0 0.0
        %3727 = vmatprep.subr.mxu0 0.0
        %3728 = vmatpush1.msra.mxu0 0.0
        %3729 = vmatprep.subr.mxu0 0.0
        %3730 = vmatpush1.msra.mxu0 0.0
        %3731 = vmatprep.subr.mxu0 0.0
        %3732 = vmatpush1.msra.mxu0 0.0
        %3733 = vmatprep.subr.mxu0 0.0
        %3734 = vmatpush1.msra.mxu0 0.0
        %3735 = vmatprep.subr.mxu0 0.0
        %3736 = vmatpush1.msra.mxu0 0.0
        %3737 = vmatprep.subr.mxu0 0.0
        %3738 = vmatpush1.msra.mxu0 0.0
        %3739 = vmatprep.subr.mxu0 0.0
        %3740 = vmatpush1.msra.mxu0 0.0
        %3741 = vmatprep.subr.mxu0 0.0
        %3742 = vmatpush1.msra.mxu0 0.0
        %3743 = vmatprep.subr.mxu0 0.0
        %3744 = vmatpush1.msra.mxu0 0.0
        %3745 = vmatprep.subr.mxu0 0.0
        %3746 = vmatpush1.msra.mxu0 0.0
        %3747 = vmatprep.subr.mxu0 0.0
        %3748 = vmatpush1.msra.mxu0 0.0
        %3749 = vmatprep.subr.mxu0 0.0
        %3750 = vmatpush1.msra.mxu0 0.0
        %3751 = vmatprep.subr.mxu0 0.0
        %3752 = vmatpush1.msra.mxu0 0.0
        %3753 = vmatprep.subr.mxu0 0.0
        %3754 = vmatpush1.msra.mxu0 0.0
        %3755 = vmatprep.subr.mxu0 0.0
        %3756 = vmatpush1.msra.mxu0 0.0
        %3757 = vmatprep.subr.mxu0 0.0
        %3758 = vmatpush1.msra.mxu0 0.0
        %3759 = vmatprep.subr.mxu0 0.0
        %3760 = vmatpush1.msra.mxu0 0.0
        %3761 = vmatprep.subr.mxu0 0.0
        %3762 = vmatpush1.msra.mxu0 0.0
        %3763 = vmatprep.subr.mxu0 0.0
        %3764 = vmatpush1.msra.mxu0 0.0
        %3765 = vmatprep.subr.mxu0 0.0
        %3766 = vmatpush1.msra.mxu0 0.0
        %3767 = vmatprep.mubr.f32.mxu0 0.0
        %3768 = vmatmul.mubr.f32.gmra.mrb[0].mxu0 %v3701
        %v3769 = vpop.f32.mrb[0].mxu0
        %v3770 = vadd.f32 0.0, %v3769
        %v3771 = vpop.f32.mrb[0].mxu0
        %3772 = vdwg.mxu0
        %v3773 = vadd.f32 %v3619, %v3770
        %v3774 = vtanh.pop %v3773
        %v3775 = vld [vmem:[#allocation24] sm:$0x1]
        %v3776 = vld [vmem:[#allocation21] sm:$0xff]
        %v3777 = vld [vmem:[#allocation21 + $0x8] sm:$0xff]
        %v3778 = vld [vmem:[#allocation21 + $0x10] sm:$0xff]
        %v3779 = vld [vmem:[#allocation21 + $0x18] sm:$0xf]
        %v3780 = vld [vmem:[#allocation22] sm:$0xff]
        %v3781 = vld [vmem:[#allocation22 + $0x8] sm:$0xff]
        %v3782 = vld [vmem:[#allocation22 + $0x10] sm:$0xff]
        %v3783 = vld [vmem:[#allocation22 + $0x18] sm:$0xff]
        %v3785 = vsel %vm1916, %v3774, 0
        %3787 = vmatprep.subr.mxu0 0.0
        %3788 = vmatpush1.msra.mxu0 %v3780
        %3789 = vmatprep.subr.mxu0 0.0
        %3790 = vmatpush1.msra.mxu0 %v3781
        %3791 = vmatprep.subr.mxu0 0.0
        %3792 = vmatpush1.msra.mxu0 %v3782
        %3793 = vmatprep.subr.mxu0 0.0
        %3794 = vmatpush1.msra.mxu0 %v3783
        %3795 = vmatprep.subr.mxu0 0.0
        %3796 = vmatpush1.msra.mxu0 0.0
        %3797 = vmatprep.subr.mxu0 0.0
        %3798 = vmatpush1.msra.mxu0 0.0
        %3799 = vmatprep.subr.mxu0 0.0
        %3800 = vmatpush1.msra.mxu0 0.0
        %3801 = vmatprep.subr.mxu0 0.0
        %3802 = vmatpush1.msra.mxu0 0.0
        %3803 = vmatprep.subr.mxu0 0.0
        %3804 = vmatpush1.msra.mxu0 0.0
        %3805 = vmatprep.subr.mxu0 0.0
        %3806 = vmatpush1.msra.mxu0 0.0
        %3807 = vmatprep.subr.mxu0 0.0
        %3808 = vmatpush1.msra.mxu0 0.0
        %3809 = vmatprep.subr.mxu0 0.0
        %3810 = vmatpush1.msra.mxu0 0.0
        %3811 = vmatprep.subr.mxu0 0.0
        %3812 = vmatpush1.msra.mxu0 0.0
        %3813 = vmatprep.subr.mxu0 0.0
        %3814 = vmatpush1.msra.mxu0 0.0
        %3815 = vmatprep.subr.mxu0 0.0
        %3816 = vmatpush1.msra.mxu0 0.0
        %3817 = vmatprep.subr.mxu0 0.0
        %3818 = vmatpush1.msra.mxu0 0.0
        %3819 = vmatprep.subr.mxu0 0.0
        %3820 = vmatpush1.msra.mxu0 0.0
        %3821 = vmatprep.subr.mxu0 0.0
        %3822 = vmatpush1.msra.mxu0 0.0
        %3823 = vmatprep.subr.mxu0 0.0
        %3824 = vmatpush1.msra.mxu0 0.0
        %3825 = vmatprep.subr.mxu0 0.0
        %3826 = vmatpush1.msra.mxu0 0.0
        %3827 = vmatprep.subr.mxu0 0.0
        %3828 = vmatpush1.msra.mxu0 0.0
        %3829 = vmatprep.subr.mxu0 0.0
        %3830 = vmatpush1.msra.mxu0 0.0
        %3831 = vmatprep.subr.mxu0 0.0
        %3832 = vmatpush1.msra.mxu0 0.0
        %3833 = vmatprep.subr.mxu0 0.0
        %3834 = vmatpush1.msra.mxu0 0.0
        %3835 = vmatprep.subr.mxu0 0.0
        %3836 = vmatpush1.msra.mxu0 0.0
        %3837 = vmatprep.subr.mxu0 0.0
        %3838 = vmatpush1.msra.mxu0 0.0
        %3839 = vmatprep.subr.mxu0 0.0
        %3840 = vmatpush1.msra.mxu0 0.0
        %3841 = vmatprep.subr.mxu0 0.0
        %3842 = vmatpush1.msra.mxu0 0.0
        %3843 = vmatprep.subr.mxu0 0.0
        %3844 = vmatpush1.msra.mxu0 0.0
        %3845 = vmatprep.subr.mxu0 0.0
        %3846 = vmatpush1.msra.mxu0 0.0
        %3847 = vmatprep.subr.mxu0 0.0
        %3848 = vmatpush1.msra.mxu0 0.0
        %3849 = vmatprep.subr.mxu0 0.0
        %3850 = vmatpush1.msra.mxu0 0.0
        %3851 = vmatprep.mubr.f32.mxu0 0.0
        %3852 = vmatmul.mubr.f32.gmra.mrb[0].mxu0 %v3785
        %v3853 = vpop.f32.mrb[0].mxu0
        %v3854 = vadd.f32 0.0, %v3853
        %v3855 = vpop.f32.mrb[0].mxu0
        %3856 = vdwg.mxu0
        %vm3857 = vcmask 64512
        %v3859 = vsel %vm3857, %v3776, 0
        %v3862 = vsel %vm3857, %v3777, 0
        %v3865 = vsel %vm3857, %v3778, 0
        %v3868 = vsel %vm3857, %v3779, 0
        %3870 = vmatprep.subr.mxu0 0.0
        %3871 = vmatpush1.msra.mxu0 %v3854
        %3872 = vmatprep.subr.mxu0 0.0
        %3873 = vmatpush1.msra.mxu0 0.0
        %3874 = vmatprep.subr.mxu0 0.0
        %3875 = vmatpush1.msra.mxu0 0.0
        %3876 = vmatprep.subr.mxu0 0.0
        %3877 = vmatpush1.msra.mxu0 0.0
        %3878 = vmatprep.subr.mxu0 0.0
        %3879 = vmatpush1.msra.mxu0 0.0
        %3880 = vmatprep.subr.mxu0 0.0
        %3881 = vmatpush1.msra.mxu0 0.0
        %3882 = vmatprep.subr.mxu0 0.0
        %3883 = vmatpush1.msra.mxu0 0.0
        %3884 = vmatprep.subr.mxu0 0.0
        %3885 = vmatpush1.msra.mxu0 0.0
        %3886 = vmatprep.subr.mxu0 0.0
        %3887 = vmatpush1.msra.mxu0 0.0
        %3888 = vmatprep.subr.mxu0 0.0
        %3889 = vmatpush1.msra.mxu0 0.0
        %3890 = vmatprep.subr.mxu0 0.0
        %3891 = vmatpush1.msra.mxu0 0.0
        %3892 = vmatprep.subr.mxu0 0.0
        %3893 = vmatpush1.msra.mxu0 0.0
        %3894 = vmatprep.subr.mxu0 0.0
        %3895 = vmatpush1.msra.mxu0 0.0
        %3896 = vmatprep.subr.mxu0 0.0
        %3897 = vmatpush1.msra.mxu0 0.0
        %3898 = vmatprep.subr.mxu0 0.0
        %3899 = vmatpush1.msra.mxu0 0.0
        %3900 = vmatprep.subr.mxu0 0.0
        %3901 = vmatpush1.msra.mxu0 0.0
        %3902 = vmatprep.subr.mxu0 0.0
        %3903 = vmatpush1.msra.mxu0 0.0
        %3904 = vmatprep.subr.mxu0 0.0
        %3905 = vmatpush1.msra.mxu0 0.0
        %3906 = vmatprep.subr.mxu0 0.0
        %3907 = vmatpush1.msra.mxu0 0.0
        %3908 = vmatprep.subr.mxu0 0.0
        %3909 = vmatpush1.msra.mxu0 0.0
        %3910 = vmatprep.subr.mxu0 0.0
        %3911 = vmatpush1.msra.mxu0 0.0
        %3912 = vmatprep.subr.mxu0 0.0
        %3913 = vmatpush1.msra.mxu0 0.0
        %3914 = vmatprep.subr.mxu0 0.0
        %3915 = vmatpush1.msra.mxu0 0.0
        %3916 = vmatprep.subr.mxu0 0.0
        %3917 = vmatpush1.msra.mxu0 0.0
        %3918 = vmatprep.subr.mxu0 0.0
        %3919 = vmatpush1.msra.mxu0 0.0
        %3920 = vmatprep.subr.mxu0 0.0
        %3921 = vmatpush1.msra.mxu0 0.0
        %3922 = vmatprep.subr.mxu0 0.0
        %3923 = vmatpush1.msra.mxu0 0.0
        %3924 = vmatprep.subr.mxu0 0.0
        %3925 = vmatpush1.msra.mxu0 0.0
        %3926 = vmatprep.subr.mxu0 0.0
        %3927 = vmatpush1.msra.mxu0 0.0
        %3928 = vmatprep.subr.mxu0 0.0
        %3929 = vmatpush1.msra.mxu0 0.0
        %3930 = vmatprep.subr.mxu0 0.0
        %3931 = vmatpush1.msra.mxu0 0.0
        %3932 = vmatprep.subr.mxu0 0.0
        %3933 = vmatpush1.msra.mxu0 0.0
        %3934 = vmatprep.mubr.f32.mxu0 0.0
        %3935 = vmatmul.mubr.f32.gmra.mrb[0].mxu0 %v3859
        %v3936 = vpop.f32.mrb[0].mxu0
        %v3937 = vadd.f32 0.0, %v3936
        %v3938 = vpop.f32.mrb[0].mxu0
        %3939 = vmatprep.mubr.f32.mxu0 0.0
        %3940 = vmatmul.mubr.f32.gmra.mrb[0].mxu0 %v3862
        %v3941 = vpop.f32.mrb[0].mxu0
        %v3942 = vadd.f32 0.0, %v3941
        %v3943 = vpop.f32.mrb[0].mxu0
        %3944 = vmatprep.mubr.f32.mxu0 0.0
        %3945 = vmatmul.mubr.f32.gmra.mrb[0].mxu0 %v3865
        %v3946 = vpop.f32.mrb[0].mxu0
        %v3947 = vadd.f32 0.0, %v3946
        %v3948 = vpop.f32.mrb[0].mxu0
        %3949 = vmatprep.mubr.f32.mxu0 0.0
        %3950 = vmatmul.mubr.f32.gmra.mrb[0].mxu0 %v3868
        %v3951 = vpop.f32.mrb[0].mxu0
        %v3952 = vadd.f32 0.0, %v3951
        %v3953 = vpop.f32.mrb[0].mxu0
        %3954 = vdwg.mxu0
        %v3956 = vlaneseq
        %v3957 = vshrl.u32 %v3956, 7
        %v3958 = vsub.s32 0, %v3957
        %v3959 = vrot.slane %v3775, %v3958
        %v3961 = vadd.f32 %v3959, %v3937
        %v3962 = vadd.f32 %v3959, %v3942
        %v3963 = vadd.f32 %v3959, %v3947
        %v3964 = vadd.f32 %v3959, %v3952
        %s3965 = scalar_lea.vmem [#allocation21], 32
        %v3966 = vld [vmem:[%s3965] sm:$0xff]
        %v3967 = vld [vmem:[%s3965 + $0x8] sm:$0xff]
        %v3968 = vld [vmem:[%s3965 + $0x10] sm:$0xff]
        %v3969 = vld [vmem:[%s3965 + $0x18] sm:$0xf]
        %s3970 = scalar_lea.vmem [#allocation22], 32
        %v3971 = vld [vmem:[%s3970] sm:$0xff]
        %v3972 = vld [vmem:[%s3970 + $0x8] sm:$0xff]
        %v3973 = vld [vmem:[%s3970 + $0x10] sm:$0xff]
        %v3974 = vld [vmem:[%s3970 + $0x18] sm:$0xff]
        %3975 = vmatprep.subr.mxu0 0.0
        %3976 = vmatpush1.msra.mxu0 %v3971
        %3977 = vmatprep.subr.mxu0 0.0
        %3978 = vmatpush1.msra.mxu0 %v3972
        %3979 = vmatprep.subr.mxu0 0.0
        %3980 = vmatpush1.msra.mxu0 %v3973
        %3981 = vmatprep.subr.mxu0 0.0
        %3982 = vmatpush1.msra.mxu0 %v3974
        %3983 = vmatprep.subr.mxu0 0.0
        %3984 = vmatpush1.msra.mxu0 0.0
        %3985 = vmatprep.subr.mxu0 0.0
        %3986 = vmatpush1.msra.mxu0 0.0
        %3987 = vmatprep.subr.mxu0 0.0
        %3988 = vmatpush1.msra.mxu0 0.0
        %3989 = vmatprep.subr.mxu0 0.0
        %3990 = vmatpush1.msra.mxu0 0.0
        %3991 = vmatprep.subr.mxu0 0.0
        %3992 = vmatpush1.msra.mxu0 0.0
        %3993 = vmatprep.subr.mxu0 0.0
        %3994 = vmatpush1.msra.mxu0 0.0
        %3995 = vmatprep.subr.mxu0 0.0
        %3996 = vmatpush1.msra.mxu0 0.0
        %3997 = vmatprep.subr.mxu0 0.0
        %3998 = vmatpush1.msra.mxu0 0.0
        %3999 = vmatprep.subr.mxu0 0.0
        %4000 = vmatpush1.msra.mxu0 0.0
        %4001 = vmatprep.subr.mxu0 0.0
        %4002 = vmatpush1.msra.mxu0 0.0
        %4003 = vmatprep.subr.mxu0 0.0
        %4004 = vmatpush1.msra.mxu0 0.0
        %4005 = vmatprep.subr.mxu0 0.0
        %4006 = vmatpush1.msra.mxu0 0.0
        %4007 = vmatprep.subr.mxu0 0.0
        %4008 = vmatpush1.msra.mxu0 0.0
        %4009 = vmatprep.subr.mxu0 0.0
        %4010 = vmatpush1.msra.mxu0 0.0
        %4011 = vmatprep.subr.mxu0 0.0
        %4012 = vmatpush1.msra.mxu0 0.0
        %4013 = vmatprep.subr.mxu0 0.0
        %4014 = vmatpush1.msra.mxu0 0.0
        %4015 = vmatprep.subr.mxu0 0.0
        %4016 = vmatpush1.msra.mxu0 0.0
        %4017 = vmatprep.subr.mxu0 0.0
        %4018 = vmatpush1.msra.mxu0 0.0
        %4019 = vmatprep.subr.mxu0 0.0
        %4020 = vmatpush1.msra.mxu0 0.0
        %4021 = vmatprep.subr.mxu0 0.0
        %4022 = vmatpush1.msra.mxu0 0.0
        %4023 = vmatprep.subr.mxu0 0.0
        %4024 = vmatpush1.msra.mxu0 0.0
        %4025 = vmatprep.subr.mxu0 0.0
        %4026 = vmatpush1.msra.mxu0 0.0
        %4027 = vmatprep.subr.mxu0 0.0
        %4028 = vmatpush1.msra.mxu0 0.0
        %4029 = vmatprep.subr.mxu0 0.0
        %4030 = vmatpush1.msra.mxu0 0.0
        %4031 = vmatprep.subr.mxu0 0.0
        %4032 = vmatpush1.msra.mxu0 0.0
        %4033 = vmatprep.subr.mxu0 0.0
        %4034 = vmatpush1.msra.mxu0 0.0
        %4035 = vmatprep.subr.mxu0 0.0
        %4036 = vmatpush1.msra.mxu0 0.0
        %4037 = vmatprep.subr.mxu0 0.0
        %4038 = vmatpush1.msra.mxu0 0.0
        %4039 = vmatprep.mubr.f32.mxu0 0.0
        %4040 = vmatmul.mubr.f32.gmra.mrb[0].mxu0 %v3785
        %v4041 = vpop.f32.mrb[0].mxu0
        %v4042 = vadd.f32 0.0, %v4041
        %v4043 = vpop.f32.mrb[0].mxu0
        %4044 = vdwg.mxu0
        %v4046 = vsel %vm3857, %v3966, 0
        %v4049 = vsel %vm3857, %v3967, 0
        %v4052 = vsel %vm3857, %v3968, 0
        %v4055 = vsel %vm3857, %v3969, 0
        %4057 = vmatprep.subr.mxu0 0.0
        %4058 = vmatpush1.msra.mxu0 %v4042
        %4059 = vmatprep.subr.mxu0 0.0
        %4060 = vmatpush1.msra.mxu0 0.0
        %4061 = vmatprep.subr.mxu0 0.0
        %4062 = vmatpush1.msra.mxu0 0.0
        %4063 = vmatprep.subr.mxu0 0.0
        %4064 = vmatpush1.msra.mxu0 0.0
        %4065 = vmatprep.subr.mxu0 0.0
        %4066 = vmatpush1.msra.mxu0 0.0
        %4067 = vmatprep.subr.mxu0 0.0
        %4068 = vmatpush1.msra.mxu0 0.0
        %4069 = vmatprep.subr.mxu0 0.0
        %4070 = vmatpush1.msra.mxu0 0.0
        %4071 = vmatprep.subr.mxu0 0.0
        %4072 = vmatpush1.msra.mxu0 0.0
        %4073 = vmatprep.subr.mxu0 0.0
        %4074 = vmatpush1.msra.mxu0 0.0
        %4075 = vmatprep.subr.mxu0 0.0
        %4076 = vmatpush1.msra.mxu0 0.0
        %4077 = vmatprep.subr.mxu0 0.0
        %4078 = vmatpush1.msra.mxu0 0.0
        %4079 = vmatprep.subr.mxu0 0.0
        %4080 = vmatpush1.msra.mxu0 0.0
        %4081 = vmatprep.subr.mxu0 0.0
        %4082 = vmatpush1.msra.mxu0 0.0
        %4083 = vmatprep.subr.mxu0 0.0
        %4084 = vmatpush1.msra.mxu0 0.0
        %4085 = vmatprep.subr.mxu0 0.0
        %4086 = vmatpush1.msra.mxu0 0.0
        %4087 = vmatprep.subr.mxu0 0.0
        %4088 = vmatpush1.msra.mxu0 0.0
        %4089 = vmatprep.subr.mxu0 0.0
        %4090 = vmatpush1.msra.mxu0 0.0
        %4091 = vmatprep.subr.mxu0 0.0
        %4092 = vmatpush1.msra.mxu0 0.0
        %4093 = vmatprep.subr.mxu0 0.0
        %4094 = vmatpush1.msra.mxu0 0.0
        %4095 = vmatprep.subr.mxu0 0.0
        %4096 = vmatpush1.msra.mxu0 0.0
        %4097 = vmatprep.subr.mxu0 0.0
        %4098 = vmatpush1.msra.mxu0 0.0
        %4099 = vmatprep.subr.mxu0 0.0
        %4100 = vmatpush1.msra.mxu0 0.0
        %4101 = vmatprep.subr.mxu0 0.0
        %4102 = vmatpush1.msra.mxu0 0.0
        %4103 = vmatprep.subr.mxu0 0.0
        %4104 = vmatpush1.msra.mxu0 0.0
        %4105 = vmatprep.subr.mxu0 0.0
        %4106 = vmatpush1.msra.mxu0 0.0
        %4107 = vmatprep.subr.mxu0 0.0
        %4108 = vmatpush1.msra.mxu0 0.0
        %4109 = vmatprep.subr.mxu0 0.0
        %4110 = vmatpush1.msra.mxu0 0.0
        %4111 = vmatprep.subr.mxu0 0.0
        %4112 = vmatpush1.msra.mxu0 0.0
        %4113 = vmatprep.subr.mxu0 0.0
        %4114 = vmatpush1.msra.mxu0 0.0
        %4115 = vmatprep.subr.mxu0 0.0
        %4116 = vmatpush1.msra.mxu0 0.0
        %4117 = vmatprep.subr.mxu0 0.0
        %4118 = vmatpush1.msra.mxu0 0.0
        %4119 = vmatprep.subr.mxu0 0.0
        %4120 = vmatpush1.msra.mxu0 0.0
        %4121 = vmatprep.mubr.f32.mxu0 0.0
        %4122 = vmatmul.mubr.f32.gmra.mrb[0].mxu0 %v4046
        %v4123 = vpop.f32.mrb[0].mxu0
        %v4124 = vadd.f32 0.0, %v4123
        %v4125 = vpop.f32.mrb[0].mxu0
        %4126 = vmatprep.mubr.f32.mxu0 0.0
        %4127 = vmatmul.mubr.f32.gmra.mrb[0].mxu0 %v4049
        %v4128 = vpop.f32.mrb[0].mxu0
        %v4129 = vadd.f32 0.0, %v4128
        %v4130 = vpop.f32.mrb[0].mxu0
        %4131 = vmatprep.mubr.f32.mxu0 0.0
        %4132 = vmatmul.mubr.f32.gmra.mrb[0].mxu0 %v4052
        %v4133 = vpop.f32.mrb[0].mxu0
        %v4134 = vadd.f32 0.0, %v4133
        %v4135 = vpop.f32.mrb[0].mxu0
        %4136 = vmatprep.mubr.f32.mxu0 0.0
        %4137 = vmatmul.mubr.f32.gmra.mrb[0].mxu0 %v4055
        %v4138 = vpop.f32.mrb[0].mxu0
        %v4139 = vadd.f32 0.0, %v4138
        %v4140 = vpop.f32.mrb[0].mxu0
        %4141 = vdwg.mxu0
        %v4142 = vadd.f32 %v3961, %v4124
        %v4143 = vadd.f32 %v3962, %v4129
        %v4144 = vadd.f32 %v3963, %v4134
        %v4145 = vadd.f32 %v3964, %v4139
        %s4146 = scalar_lea.vmem [#allocation21], 64
        %v4147 = vld [vmem:[%s4146] sm:$0xff]
        %v4148 = vld [vmem:[%s4146 + $0x8] sm:$0xff]
        %v4149 = vld [vmem:[%s4146 + $0x10] sm:$0xff]
        %v4150 = vld [vmem:[%s4146 + $0x18] sm:$0xf]
        %s4151 = scalar_lea.vmem [#allocation22], 64
        %v4152 = vld [vmem:[%s4151] sm:$0xff]
        %v4153 = vld [vmem:[%s4151 + $0x8] sm:$0xff]
        %v4154 = vld [vmem:[%s4151 + $0x10] sm:$0xff]
        %v4155 = vld [vmem:[%s4151 + $0x18] sm:$0xff]
        %4156 = vmatprep.subr.mxu0 0.0
        %4157 = vmatpush1.msra.mxu0 %v4152
        %4158 = vmatprep.subr.mxu0 0.0
        %4159 = vmatpush1.msra.mxu0 %v4153
        %4160 = vmatprep.subr.mxu0 0.0
        %4161 = vmatpush1.msra.mxu0 %v4154
        %4162 = vmatprep.subr.mxu0 0.0
        %4163 = vmatpush1.msra.mxu0 %v4155
        %4164 = vmatprep.subr.mxu0 0.0
        %4165 = vmatpush1.msra.mxu0 0.0
        %4166 = vmatprep.subr.mxu0 0.0
        %4167 = vmatpush1.msra.mxu0 0.0
        %4168 = vmatprep.subr.mxu0 0.0
        %4169 = vmatpush1.msra.mxu0 0.0
        %4170 = vmatprep.subr.mxu0 0.0
        %4171 = vmatpush1.msra.mxu0 0.0
        %4172 = vmatprep.subr.mxu0 0.0
        %4173 = vmatpush1.msra.mxu0 0.0
        %4174 = vmatprep.subr.mxu0 0.0
        %4175 = vmatpush1.msra.mxu0 0.0
        %4176 = vmatprep.subr.mxu0 0.0
        %4177 = vmatpush1.msra.mxu0 0.0
        %4178 = vmatprep.subr.mxu0 0.0
        %4179 = vmatpush1.msra.mxu0 0.0
        %4180 = vmatprep.subr.mxu0 0.0
        %4181 = vmatpush1.msra.mxu0 0.0
        %4182 = vmatprep.subr.mxu0 0.0
        %4183 = vmatpush1.msra.mxu0 0.0
        %4184 = vmatprep.subr.mxu0 0.0
        %4185 = vmatpush1.msra.mxu0 0.0
        %4186 = vmatprep.subr.mxu0 0.0
        %4187 = vmatpush1.msra.mxu0 0.0
        %4188 = vmatprep.subr.mxu0 0.0
        %4189 = vmatpush1.msra.mxu0 0.0
        %4190 = vmatprep.subr.mxu0 0.0
        %4191 = vmatpush1.msra.mxu0 0.0
        %4192 = vmatprep.subr.mxu0 0.0
        %4193 = vmatpush1.msra.mxu0 0.0
        %4194 = vmatprep.subr.mxu0 0.0
        %4195 = vmatpush1.msra.mxu0 0.0
        %4196 = vmatprep.subr.mxu0 0.0
        %4197 = vmatpush1.msra.mxu0 0.0
        %4198 = vmatprep.subr.mxu0 0.0
        %4199 = vmatpush1.msra.mxu0 0.0
        %4200 = vmatprep.subr.mxu0 0.0
        %4201 = vmatpush1.msra.mxu0 0.0
        %4202 = vmatprep.subr.mxu0 0.0
        %4203 = vmatpush1.msra.mxu0 0.0
        %4204 = vmatprep.subr.mxu0 0.0
        %4205 = vmatpush1.msra.mxu0 0.0
        %4206 = vmatprep.subr.mxu0 0.0
        %4207 = vmatpush1.msra.mxu0 0.0
        %4208 = vmatprep.subr.mxu0 0.0
        %4209 = vmatpush1.msra.mxu0 0.0
        %4210 = vmatprep.subr.mxu0 0.0
        %4211 = vmatpush1.msra.mxu0 0.0
        %4212 = vmatprep.subr.mxu0 0.0
        %4213 = vmatpush1.msra.mxu0 0.0
        %4214 = vmatprep.subr.mxu0 0.0
        %4215 = vmatpush1.msra.mxu0 0.0
        %4216 = vmatprep.subr.mxu0 0.0
        %4217 = vmatpush1.msra.mxu0 0.0
        %4218 = vmatprep.subr.mxu0 0.0
        %4219 = vmatpush1.msra.mxu0 0.0
        %4220 = vmatprep.mubr.f32.mxu0 0.0
        %4221 = vmatmul.mubr.f32.gmra.mrb[0].mxu0 %v3785
        %v4222 = vpop.f32.mrb[0].mxu0
        %v4223 = vadd.f32 0.0, %v4222
        %v4224 = vpop.f32.mrb[0].mxu0
        %4225 = vdwg.mxu0
        %v4227 = vsel %vm3857, %v4147, 0
        %v4230 = vsel %vm3857, %v4148, 0
        %v4233 = vsel %vm3857, %v4149, 0
        %v4236 = vsel %vm3857, %v4150, 0
        %4238 = vmatprep.subr.mxu0 0.0
        %4239 = vmatpush1.msra.mxu0 %v4223
        %4240 = vmatprep.subr.mxu0 0.0
        %4241 = vmatpush1.msra.mxu0 0.0
        %4242 = vmatprep.subr.mxu0 0.0
        %4243 = vmatpush1.msra.mxu0 0.0
        %4244 = vmatprep.subr.mxu0 0.0
        %4245 = vmatpush1.msra.mxu0 0.0
        %4246 = vmatprep.subr.mxu0 0.0
        %4247 = vmatpush1.msra.mxu0 0.0
        %4248 = vmatprep.subr.mxu0 0.0
        %4249 = vmatpush1.msra.mxu0 0.0
        %4250 = vmatprep.subr.mxu0 0.0
        %4251 = vmatpush1.msra.mxu0 0.0
        %4252 = vmatprep.subr.mxu0 0.0
        %4253 = vmatpush1.msra.mxu0 0.0
        %4254 = vmatprep.subr.mxu0 0.0
        %4255 = vmatpush1.msra.mxu0 0.0
        %4256 = vmatprep.subr.mxu0 0.0
        %4257 = vmatpush1.msra.mxu0 0.0
        %4258 = vmatprep.subr.mxu0 0.0
        %4259 = vmatpush1.msra.mxu0 0.0
        %4260 = vmatprep.subr.mxu0 0.0
        %4261 = vmatpush1.msra.mxu0 0.0
        %4262 = vmatprep.subr.mxu0 0.0
        %4263 = vmatpush1.msra.mxu0 0.0
        %4264 = vmatprep.subr.mxu0 0.0
        %4265 = vmatpush1.msra.mxu0 0.0
        %4266 = vmatprep.subr.mxu0 0.0
        %4267 = vmatpush1.msra.mxu0 0.0
        %4268 = vmatprep.subr.mxu0 0.0
        %4269 = vmatpush1.msra.mxu0 0.0
        %4270 = vmatprep.subr.mxu0 0.0
        %4271 = vmatpush1.msra.mxu0 0.0
        %4272 = vmatprep.subr.mxu0 0.0
        %4273 = vmatpush1.msra.mxu0 0.0
        %4274 = vmatprep.subr.mxu0 0.0
        %4275 = vmatpush1.msra.mxu0 0.0
        %4276 = vmatprep.subr.mxu0 0.0
        %4277 = vmatpush1.msra.mxu0 0.0
        %4278 = vmatprep.subr.mxu0 0.0
        %4279 = vmatpush1.msra.mxu0 0.0
        %4280 = vmatprep.subr.mxu0 0.0
        %4281 = vmatpush1.msra.mxu0 0.0
        %4282 = vmatprep.subr.mxu0 0.0
        %4283 = vmatpush1.msra.mxu0 0.0
        %4284 = vmatprep.subr.mxu0 0.0
        %4285 = vmatpush1.msra.mxu0 0.0
        %4286 = vmatprep.subr.mxu0 0.0
        %4287 = vmatpush1.msra.mxu0 0.0
        %4288 = vmatprep.subr.mxu0 0.0
        %4289 = vmatpush1.msra.mxu0 0.0
        %4290 = vmatprep.subr.mxu0 0.0
        %4291 = vmatpush1.msra.mxu0 0.0
        %4292 = vmatprep.subr.mxu0 0.0
        %4293 = vmatpush1.msra.mxu0 0.0
        %4294 = vmatprep.subr.mxu0 0.0
        %4295 = vmatpush1.msra.mxu0 0.0
        %4296 = vmatprep.subr.mxu0 0.0
        %4297 = vmatpush1.msra.mxu0 0.0
        %4298 = vmatprep.subr.mxu0 0.0
        %4299 = vmatpush1.msra.mxu0 0.0
        %4300 = vmatprep.subr.mxu0 0.0
        %4301 = vmatpush1.msra.mxu0 0.0
        %4302 = vmatprep.mubr.f32.mxu0 0.0
        %4303 = vmatmul.mubr.f32.gmra.mrb[0].mxu0 %v4227
        %v4304 = vpop.f32.mrb[0].mxu0
        %v4305 = vadd.f32 0.0, %v4304
        %v4306 = vpop.f32.mrb[0].mxu0
        %4307 = vmatprep.mubr.f32.mxu0 0.0
        %4308 = vmatmul.mubr.f32.gmra.mrb[0].mxu0 %v4230
        %v4309 = vpop.f32.mrb[0].mxu0
        %v4310 = vadd.f32 0.0, %v4309
        %v4311 = vpop.f32.mrb[0].mxu0
        %4312 = vmatprep.mubr.f32.mxu0 0.0
        %4313 = vmatmul.mubr.f32.gmra.mrb[0].mxu0 %v4233
        %v4314 = vpop.f32.mrb[0].mxu0
        %v4315 = vadd.f32 0.0, %v4314
        %v4316 = vpop.f32.mrb[0].mxu0
        %4317 = vmatprep.mubr.f32.mxu0 0.0
        %4318 = vmatmul.mubr.f32.gmra.mrb[0].mxu0 %v4236
        %v4319 = vpop.f32.mrb[0].mxu0
        %v4320 = vadd.f32 0.0, %v4319
        %v4321 = vpop.f32.mrb[0].mxu0
        %4322 = vdwg.mxu0
        %v4323 = vadd.f32 %v4142, %v4305
        %v4324 = vadd.f32 %v4143, %v4310
        %v4325 = vadd.f32 %v4144, %v4315
        %v4326 = vadd.f32 %v4145, %v4320
        %s4327 = scalar_lea.vmem [#allocation21], 96
        %v4328 = vld [vmem:[%s4327] sm:$0xff]
        %v4329 = vld [vmem:[%s4327 + $0x8] sm:$0xff]
        %v4330 = vld [vmem:[%s4327 + $0x10] sm:$0xff]
        %v4331 = vld [vmem:[%s4327 + $0x18] sm:$0xf]
        %s4332 = scalar_lea.vmem [#allocation22], 96
        %v4333 = vld [vmem:[%s4332] sm:$0xff]
        %v4334 = vld [vmem:[%s4332 + $0x8] sm:$0xff]
        %v4335 = vld [vmem:[%s4332 + $0x10] sm:$0xff]
        %v4336 = vld [vmem:[%s4332 + $0x18] sm:$0xff]
        %4337 = vmatprep.subr.mxu0 0.0
        %4338 = vmatpush1.msra.mxu0 %v4333
        %4339 = vmatprep.subr.mxu0 0.0
        %4340 = vmatpush1.msra.mxu0 %v4334
        %4341 = vmatprep.subr.mxu0 0.0
        %4342 = vmatpush1.msra.mxu0 %v4335
        %4343 = vmatprep.subr.mxu0 0.0
        %4344 = vmatpush1.msra.mxu0 %v4336
        %4345 = vmatprep.subr.mxu0 0.0
        %4346 = vmatpush1.msra.mxu0 0.0
        %4347 = vmatprep.subr.mxu0 0.0
        %4348 = vmatpush1.msra.mxu0 0.0
        %4349 = vmatprep.subr.mxu0 0.0
        %4350 = vmatpush1.msra.mxu0 0.0
        %4351 = vmatprep.subr.mxu0 0.0
        %4352 = vmatpush1.msra.mxu0 0.0
        %4353 = vmatprep.subr.mxu0 0.0
        %4354 = vmatpush1.msra.mxu0 0.0
        %4355 = vmatprep.subr.mxu0 0.0
        %4356 = vmatpush1.msra.mxu0 0.0
        %4357 = vmatprep.subr.mxu0 0.0
        %4358 = vmatpush1.msra.mxu0 0.0
        %4359 = vmatprep.subr.mxu0 0.0
        %4360 = vmatpush1.msra.mxu0 0.0
        %4361 = vmatprep.subr.mxu0 0.0
        %4362 = vmatpush1.msra.mxu0 0.0
        %4363 = vmatprep.subr.mxu0 0.0
        %4364 = vmatpush1.msra.mxu0 0.0
        %4365 = vmatprep.subr.mxu0 0.0
        %4366 = vmatpush1.msra.mxu0 0.0
        %4367 = vmatprep.subr.mxu0 0.0
        %4368 = vmatpush1.msra.mxu0 0.0
        %4369 = vmatprep.subr.mxu0 0.0
        %4370 = vmatpush1.msra.mxu0 0.0
        %4371 = vmatprep.subr.mxu0 0.0
        %4372 = vmatpush1.msra.mxu0 0.0
        %4373 = vmatprep.subr.mxu0 0.0
        %4374 = vmatpush1.msra.mxu0 0.0
        %4375 = vmatprep.subr.mxu0 0.0
        %4376 = vmatpush1.msra.mxu0 0.0
        %4377 = vmatprep.subr.mxu0 0.0
        %4378 = vmatpush1.msra.mxu0 0.0
        %4379 = vmatprep.subr.mxu0 0.0
        %4380 = vmatpush1.msra.mxu0 0.0
        %4381 = vmatprep.subr.mxu0 0.0
        %4382 = vmatpush1.msra.mxu0 0.0
        %4383 = vmatprep.subr.mxu0 0.0
        %4384 = vmatpush1.msra.mxu0 0.0
        %4385 = vmatprep.subr.mxu0 0.0
        %4386 = vmatpush1.msra.mxu0 0.0
        %4387 = vmatprep.subr.mxu0 0.0
        %4388 = vmatpush1.msra.mxu0 0.0
        %4389 = vmatprep.subr.mxu0 0.0
        %4390 = vmatpush1.msra.mxu0 0.0
        %4391 = vmatprep.subr.mxu0 0.0
        %4392 = vmatpush1.msra.mxu0 0.0
        %4393 = vmatprep.subr.mxu0 0.0
        %4394 = vmatpush1.msra.mxu0 0.0
        %4395 = vmatprep.subr.mxu0 0.0
        %4396 = vmatpush1.msra.mxu0 0.0
        %4397 = vmatprep.subr.mxu0 0.0
        %4398 = vmatpush1.msra.mxu0 0.0
        %4399 = vmatprep.subr.mxu0 0.0
        %4400 = vmatpush1.msra.mxu0 0.0
        %4401 = vmatprep.mubr.f32.mxu0 0.0
        %4402 = vmatmul.mubr.f32.gmra.mrb[0].mxu0 %v3785
        %v4403 = vpop.f32.mrb[0].mxu0
        %v4404 = vadd.f32 0.0, %v4403
        %v4405 = vpop.f32.mrb[0].mxu0
        %4406 = vdwg.mxu0
        %v4408 = vsel %vm3857, %v4328, 0
        %v4411 = vsel %vm3857, %v4329, 0
        %v4414 = vsel %vm3857, %v4330, 0
        %v4417 = vsel %vm3857, %v4331, 0
        %4419 = vmatprep.subr.mxu0 0.0
        %4420 = vmatpush1.msra.mxu0 %v4404
        %4421 = vmatprep.subr.mxu0 0.0
        %4422 = vmatpush1.msra.mxu0 0.0
        %4423 = vmatprep.subr.mxu0 0.0
        %4424 = vmatpush1.msra.mxu0 0.0
        %4425 = vmatprep.subr.mxu0 0.0
        %4426 = vmatpush1.msra.mxu0 0.0
        %4427 = vmatprep.subr.mxu0 0.0
        %4428 = vmatpush1.msra.mxu0 0.0
        %4429 = vmatprep.subr.mxu0 0.0
        %4430 = vmatpush1.msra.mxu0 0.0
        %4431 = vmatprep.subr.mxu0 0.0
        %4432 = vmatpush1.msra.mxu0 0.0
        %4433 = vmatprep.subr.mxu0 0.0
        %4434 = vmatpush1.msra.mxu0 0.0
        %4435 = vmatprep.subr.mxu0 0.0
        %4436 = vmatpush1.msra.mxu0 0.0
        %4437 = vmatprep.subr.mxu0 0.0
        %4438 = vmatpush1.msra.mxu0 0.0
        %4439 = vmatprep.subr.mxu0 0.0
        %4440 = vmatpush1.msra.mxu0 0.0
        %4441 = vmatprep.subr.mxu0 0.0
        %4442 = vmatpush1.msra.mxu0 0.0
        %4443 = vmatprep.subr.mxu0 0.0
        %4444 = vmatpush1.msra.mxu0 0.0
        %4445 = vmatprep.subr.mxu0 0.0
        %4446 = vmatpush1.msra.mxu0 0.0
        %4447 = vmatprep.subr.mxu0 0.0
        %4448 = vmatpush1.msra.mxu0 0.0
        %4449 = vmatprep.subr.mxu0 0.0
        %4450 = vmatpush1.msra.mxu0 0.0
        %4451 = vmatprep.subr.mxu0 0.0
        %4452 = vmatpush1.msra.mxu0 0.0
        %4453 = vmatprep.subr.mxu0 0.0
        %4454 = vmatpush1.msra.mxu0 0.0
        %4455 = vmatprep.subr.mxu0 0.0
        %4456 = vmatpush1.msra.mxu0 0.0
        %4457 = vmatprep.subr.mxu0 0.0
        %4458 = vmatpush1.msra.mxu0 0.0
        %4459 = vmatprep.subr.mxu0 0.0
        %4460 = vmatpush1.msra.mxu0 0.0
        %4461 = vmatprep.subr.mxu0 0.0
        %4462 = vmatpush1.msra.mxu0 0.0
        %4463 = vmatprep.subr.mxu0 0.0
        %4464 = vmatpush1.msra.mxu0 0.0
        %4465 = vmatprep.subr.mxu0 0.0
        %4466 = vmatpush1.msra.mxu0 0.0
        %4467 = vmatprep.subr.mxu0 0.0
        %4468 = vmatpush1.msra.mxu0 0.0
        %4469 = vmatprep.subr.mxu0 0.0
        %4470 = vmatpush1.msra.mxu0 0.0
        %4471 = vmatprep.subr.mxu0 0.0
        %4472 = vmatpush1.msra.mxu0 0.0
        %4473 = vmatprep.subr.mxu0 0.0
        %4474 = vmatpush1.msra.mxu0 0.0
        %4475 = vmatprep.subr.mxu0 0.0
        %4476 = vmatpush1.msra.mxu0 0.0
        %4477 = vmatprep.subr.mxu0 0.0
        %4478 = vmatpush1.msra.mxu0 0.0
        %4479 = vmatprep.subr.mxu0 0.0
        %4480 = vmatpush1.msra.mxu0 0.0
        %4481 = vmatprep.subr.mxu0 0.0
        %4482 = vmatpush1.msra.mxu0 0.0
        %4483 = vmatprep.mubr.f32.mxu0 0.0
        %4484 = vmatmul.mubr.f32.gmra.mrb[0].mxu0 %v4408
        %v4485 = vpop.f32.mrb[0].mxu0
        %v4486 = vadd.f32 0.0, %v4485
        %v4487 = vpop.f32.mrb[0].mxu0
        %4488 = vmatprep.mubr.f32.mxu0 0.0
        %4489 = vmatmul.mubr.f32.gmra.mrb[0].mxu0 %v4411
        %v4490 = vpop.f32.mrb[0].mxu0
        %v4491 = vadd.f32 0.0, %v4490
        %v4492 = vpop.f32.mrb[0].mxu0
        %4493 = vmatprep.mubr.f32.mxu0 0.0
        %4494 = vmatmul.mubr.f32.gmra.mrb[0].mxu0 %v4414
        %v4495 = vpop.f32.mrb[0].mxu0
        %v4496 = vadd.f32 0.0, %v4495
        %v4497 = vpop.f32.mrb[0].mxu0
        %4498 = vmatprep.mubr.f32.mxu0 0.0
        %4499 = vmatmul.mubr.f32.gmra.mrb[0].mxu0 %v4417
        %v4500 = vpop.f32.mrb[0].mxu0
        %v4501 = vadd.f32 0.0, %v4500
        %v4502 = vpop.f32.mrb[0].mxu0
        %4503 = vdwg.mxu0
        %v4504 = vadd.f32 %v4323, %v4486
        %v4505 = vadd.f32 %v4324, %v4491
        %v4506 = vadd.f32 %v4325, %v4496
        %v4507 = vadd.f32 %v4326, %v4501
        %v4508 = vld [vmem:[#allocation27] sm:$0x1]
        %v4509 = vld [vmem:[#allocation25] sm:$0xff]
        %v4510 = vld [vmem:[#allocation25 + $0x8] sm:$0xff]
        %v4511 = vld [vmem:[#allocation25 + $0x10] sm:$0xff]
        %v4512 = vld [vmem:[#allocation25 + $0x18] sm:$0xff]
        %v4513 = vld [vmem:[#allocation25 + $0x20] sm:$0xff]
        %v4514 = vld [vmem:[#allocation25 + $0x28] sm:$0xff]
        %v4515 = vld [vmem:[%s35] sm:$0xff]
        %v4516 = vld [vmem:[%s35 + $0x8] sm:$0xff]
        %v4517 = vld [vmem:[%s35 + $0x10] sm:$0xff]
        %v4518 = vld [vmem:[%s35 + $0x18] sm:$0xff]
        %v4520 = vsel %vm1916, %v4504, 0
        %v4523 = vsel %vm1916, %v4505, 0
        %v4526 = vsel %vm1916, %v4506, 0
        %v4529 = vsel %vm1916, %v4507, 0
        %4531 = vmatprep.subr.mxu0 0.0
        %4532 = vmatpush1.msra.mxu0 %v4515
        %4533 = vmatprep.subr.mxu0 0.0
        %4534 = vmatpush1.msra.mxu0 %v4516
        %4535 = vmatprep.subr.mxu0 0.0
        %4536 = vmatpush1.msra.mxu0 %v4517
        %4537 = vmatprep.subr.mxu0 0.0
        %4538 = vmatpush1.msra.mxu0 %v4518
        %4539 = vmatprep.subr.mxu0 0.0
        %4540 = vmatpush1.msra.mxu0 0.0
        %4541 = vmatprep.subr.mxu0 0.0
        %4542 = vmatpush1.msra.mxu0 0.0
        %4543 = vmatprep.subr.mxu0 0.0
        %4544 = vmatpush1.msra.mxu0 0.0
        %4545 = vmatprep.subr.mxu0 0.0
        %4546 = vmatpush1.msra.mxu0 0.0
        %4547 = vmatprep.subr.mxu0 0.0
        %4548 = vmatpush1.msra.mxu0 0.0
        %4549 = vmatprep.subr.mxu0 0.0
        %4550 = vmatpush1.msra.mxu0 0.0
        %4551 = vmatprep.subr.mxu0 0.0
        %4552 = vmatpush1.msra.mxu0 0.0
        %4553 = vmatprep.subr.mxu0 0.0
        %4554 = vmatpush1.msra.mxu0 0.0
        %4555 = vmatprep.subr.mxu0 0.0
        %4556 = vmatpush1.msra.mxu0 0.0
        %4557 = vmatprep.subr.mxu0 0.0
        %4558 = vmatpush1.msra.mxu0 0.0
        %4559 = vmatprep.subr.mxu0 0.0
        %4560 = vmatpush1.msra.mxu0 0.0
        %4561 = vmatprep.subr.mxu0 0.0
        %4562 = vmatpush1.msra.mxu0 0.0
        %4563 = vmatprep.subr.mxu0 0.0
        %4564 = vmatpush1.msra.mxu0 0.0
        %4565 = vmatprep.subr.mxu0 0.0
        %4566 = vmatpush1.msra.mxu0 0.0
        %4567 = vmatprep.subr.mxu0 0.0
        %4568 = vmatpush1.msra.mxu0 0.0
        %4569 = vmatprep.subr.mxu0 0.0
        %4570 = vmatpush1.msra.mxu0 0.0
        %4571 = vmatprep.subr.mxu0 0.0
        %4572 = vmatpush1.msra.mxu0 0.0
        %4573 = vmatprep.subr.mxu0 0.0
        %4574 = vmatpush1.msra.mxu0 0.0
        %4575 = vmatprep.subr.mxu0 0.0
        %4576 = vmatpush1.msra.mxu0 0.0
        %4577 = vmatprep.subr.mxu0 0.0
        %4578 = vmatpush1.msra.mxu0 0.0
        %4579 = vmatprep.subr.mxu0 0.0
        %4580 = vmatpush1.msra.mxu0 0.0
        %4581 = vmatprep.subr.mxu0 0.0
        %4582 = vmatpush1.msra.mxu0 0.0
        %4583 = vmatprep.subr.mxu0 0.0
        %4584 = vmatpush1.msra.mxu0 0.0
        %4585 = vmatprep.subr.mxu0 0.0
        %4586 = vmatpush1.msra.mxu0 0.0
        %4587 = vmatprep.subr.mxu0 0.0
        %4588 = vmatpush1.msra.mxu0 0.0
        %4589 = vmatprep.subr.mxu0 0.0
        %4590 = vmatpush1.msra.mxu0 0.0
        %4591 = vmatprep.subr.mxu0 0.0
        %4592 = vmatpush1.msra.mxu0 0.0
        %4593 = vmatprep.subr.mxu0 0.0
        %4594 = vmatpush1.msra.mxu0 0.0
        %4595 = vmatprep.mubr.f32.mxu0 0.0
        %4596 = vmatmul.mubr.f32.gmra.mrb[0].mxu0 %v4520
        %v4597 = vpop.f32.mrb[0].mxu0
        %v4598 = vadd.f32 0.0, %v4597
        %v4599 = vpop.f32.mrb[0].mxu0
        %4600 = vmatprep.mubr.f32.mxu0 0.0
        %4601 = vmatmul.mubr.f32.gmra.mrb[0].mxu0 %v4523
        %v4602 = vpop.f32.mrb[0].mxu0
        %v4603 = vadd.f32 0.0, %v4602
        %v4604 = vpop.f32.mrb[0].mxu0
        %4605 = vmatprep.mubr.f32.mxu0 0.0
        %4606 = vmatmul.mubr.f32.gmra.mrb[0].mxu0 %v4526
        %v4607 = vpop.f32.mrb[0].mxu0
        %v4608 = vadd.f32 0.0, %v4607
        %v4609 = vpop.f32.mrb[0].mxu0
        %4610 = vmatprep.mubr.f32.mxu0 0.0
        %4611 = vmatmul.mubr.f32.gmra.mrb[0].mxu0 %v4529
        %v4612 = vpop.f32.mrb[0].mxu0
        %v4613 = vadd.f32 0.0, %v4612
        %v4614 = vpop.f32.mrb[0].mxu0
        %4615 = vdwg.mxu0
        %vm4616 = vcmask 228352
        %v4618 = vsel %vm4616, %v4509, 0
        %v4621 = vsel %vm4616, %v4510, 0
        %v4624 = vsel %vm4616, %v4511, 0
        %v4627 = vsel %vm4616, %v4512, 0
        %v4630 = vsel %vm4616, %v4513, 0
        %v4633 = vsel %vm4616, %v4514, 0
        %v4636 = vsel %vm1402, %v4613, 0
        %4638 = vmatprep.subr.mxu0 0.0
        %4639 = vmatpush1.msra.mxu0 %v4598
        %4640 = vmatprep.subr.mxu0 0.0
        %4641 = vmatpush1.msra.mxu0 %v4603
        %4642 = vmatprep.subr.mxu0 0.0
        %4643 = vmatpush1.msra.mxu0 %v4608
        %4644 = vmatprep.subr.mxu0 0.0
        %4645 = vmatpush1.msra.mxu0 %v4636
        %4646 = vmatprep.subr.mxu0 0.0
        %4647 = vmatpush1.msra.mxu0 0.0
        %4648 = vmatprep.subr.mxu0 0.0
        %4649 = vmatpush1.msra.mxu0 0.0
        %4650 = vmatprep.subr.mxu0 0.0
        %4651 = vmatpush1.msra.mxu0 0.0
        %4652 = vmatprep.subr.mxu0 0.0
        %4653 = vmatpush1.msra.mxu0 0.0
        %4654 = vmatprep.subr.mxu0 0.0
        %4655 = vmatpush1.msra.mxu0 0.0
        %4656 = vmatprep.subr.mxu0 0.0
        %4657 = vmatpush1.msra.mxu0 0.0
        %4658 = vmatprep.subr.mxu0 0.0
        %4659 = vmatpush1.msra.mxu0 0.0
        %4660 = vmatprep.subr.mxu0 0.0
        %4661 = vmatpush1.msra.mxu0 0.0
        %4662 = vmatprep.subr.mxu0 0.0
        %4663 = vmatpush1.msra.mxu0 0.0
        %4664 = vmatprep.subr.mxu0 0.0
        %4665 = vmatpush1.msra.mxu0 0.0
        %4666 = vmatprep.subr.mxu0 0.0
        %4667 = vmatpush1.msra.mxu0 0.0
        %4668 = vmatprep.subr.mxu0 0.0
        %4669 = vmatpush1.msra.mxu0 0.0
        %4670 = vmatprep.subr.mxu0 0.0
        %4671 = vmatpush1.msra.mxu0 0.0
        %4672 = vmatprep.subr.mxu0 0.0
        %4673 = vmatpush1.msra.mxu0 0.0
        %4674 = vmatprep.subr.mxu0 0.0
        %4675 = vmatpush1.msra.mxu0 0.0
        %4676 = vmatprep.subr.mxu0 0.0
        %4677 = vmatpush1.msra.mxu0 0.0
        %4678 = vmatprep.subr.mxu0 0.0
        %4679 = vmatpush1.msra.mxu0 0.0
        %4680 = vmatprep.subr.mxu0 0.0
        %4681 = vmatpush1.msra.mxu0 0.0
        %4682 = vmatprep.subr.mxu0 0.0
        %4683 = vmatpush1.msra.mxu0 0.0
        %4684 = vmatprep.subr.mxu0 0.0
        %4685 = vmatpush1.msra.mxu0 0.0
        %4686 = vmatprep.subr.mxu0 0.0
        %4687 = vmatpush1.msra.mxu0 0.0
        %4688 = vmatprep.subr.mxu0 0.0
        %4689 = vmatpush1.msra.mxu0 0.0
        %4690 = vmatprep.subr.mxu0 0.0
        %4691 = vmatpush1.msra.mxu0 0.0
        %4692 = vmatprep.subr.mxu0 0.0
        %4693 = vmatpush1.msra.mxu0 0.0
        %4694 = vmatprep.subr.mxu0 0.0
        %4695 = vmatpush1.msra.mxu0 0.0
        %4696 = vmatprep.subr.mxu0 0.0
        %4697 = vmatpush1.msra.mxu0 0.0
        %4698 = vmatprep.subr.mxu0 0.0
        %4699 = vmatpush1.msra.mxu0 0.0
        %4700 = vmatprep.subr.mxu0 0.0
        %4701 = vmatpush1.msra.mxu0 0.0
        %4702 = vmatprep.mubr.f32.mxu0 0.0
        %4703 = vmatmul.mubr.f32.gmra.mrb[0].mxu0 %v4618
        %v4704 = vpop.f32.mrb[0].mxu0
        %v4705 = vadd.f32 0.0, %v4704
        %v4706 = vpop.f32.mrb[0].mxu0
        %4707 = vmatprep.mubr.f32.mxu0 0.0
        %4708 = vmatmul.mubr.f32.gmra.mrb[0].mxu0 %v4621
        %v4709 = vpop.f32.mrb[0].mxu0
        %v4710 = vadd.f32 0.0, %v4709
        %v4711 = vpop.f32.mrb[0].mxu0
        %4712 = vmatprep.mubr.f32.mxu0 0.0
        %4713 = vmatmul.mubr.f32.gmra.mrb[0].mxu0 %v4624
        %v4714 = vpop.f32.mrb[0].mxu0
        %v4715 = vadd.f32 0.0, %v4714
        %v4716 = vpop.f32.mrb[0].mxu0
        %4717 = vmatprep.mubr.f32.mxu0 0.0
        %4718 = vmatmul.mubr.f32.gmra.mrb[0].mxu0 %v4627
        %v4719 = vpop.f32.mrb[0].mxu0
        %v4720 = vadd.f32 0.0, %v4719
        %v4721 = vpop.f32.mrb[0].mxu0
        %4722 = vmatprep.mubr.f32.mxu0 0.0
        %4723 = vmatmul.mubr.f32.gmra.mrb[0].mxu0 %v4630
        %v4724 = vpop.f32.mrb[0].mxu0
        %v4725 = vadd.f32 0.0, %v4724
        %v4726 = vpop.f32.mrb[0].mxu0
        %4727 = vmatprep.mubr.f32.mxu0 0.0
        %4728 = vmatmul.mubr.f32.gmra.mrb[0].mxu0 %v4633
        %v4729 = vpop.f32.mrb[0].mxu0
        %v4730 = vadd.f32 0.0, %v4729
        %v4731 = vpop.f32.mrb[0].mxu0
        %4732 = vdwg.mxu0
        %v4734 = vlaneseq
        %v4735 = vshrl.u32 %v4734, 7
        %v4736 = vsub.s32 0, %v4735
        %v4737 = vrot.slane %v4508, %v4736
        %v4739 = vadd.f32 %v4737, %v4705
        %v4740 = vadd.f32 %v4737, %v4710
        %v4741 = vadd.f32 %v4737, %v4715
        %v4742 = vadd.f32 %v4737, %v4720
        %v4743 = vadd.f32 %v4737, %v4725
        %v4744 = vadd.f32 %v4737, %v4730
        %s4745 = scalar_lea.vmem [#allocation25], 48
        %v4746 = vld [vmem:[%s4745] sm:$0xff]
        %v4747 = vld [vmem:[%s4745 + $0x8] sm:$0xff]
        %v4748 = vld [vmem:[%s4745 + $0x10] sm:$0xff]
        %v4749 = vld [vmem:[%s4745 + $0x18] sm:$0xff]
        %v4750 = vld [vmem:[%s4745 + $0x20] sm:$0xff]
        %v4751 = vld [vmem:[%s4745 + $0x28] sm:$0xff]
        %s4752 = scalar_lea.vmem %s35, 32
        %v4753 = vld [vmem:[%s4752] sm:$0xff]
        %v4754 = vld [vmem:[%s4752 + $0x8] sm:$0xff]
        %v4755 = vld [vmem:[%s4752 + $0x10] sm:$0xff]
        %v4756 = vld [vmem:[%s4752 + $0x18] sm:$0xff]
        %4757 = vmatprep.subr.mxu0 0.0
        %4758 = vmatpush1.msra.mxu0 %v4753
        %4759 = vmatprep.subr.mxu0 0.0
        %4760 = vmatpush1.msra.mxu0 %v4754
        %4761 = vmatprep.subr.mxu0 0.0
        %4762 = vmatpush1.msra.mxu0 %v4755
        %4763 = vmatprep.subr.mxu0 0.0
        %4764 = vmatpush1.msra.mxu0 %v4756
        %4765 = vmatprep.subr.mxu0 0.0
        %4766 = vmatpush1.msra.mxu0 0.0
        %4767 = vmatprep.subr.mxu0 0.0
        %4768 = vmatpush1.msra.mxu0 0.0
        %4769 = vmatprep.subr.mxu0 0.0
        %4770 = vmatpush1.msra.mxu0 0.0
        %4771 = vmatprep.subr.mxu0 0.0
        %4772 = vmatpush1.msra.mxu0 0.0
        %4773 = vmatprep.subr.mxu0 0.0
        %4774 = vmatpush1.msra.mxu0 0.0
        %4775 = vmatprep.subr.mxu0 0.0
        %4776 = vmatpush1.msra.mxu0 0.0
        %4777 = vmatprep.subr.mxu0 0.0
        %4778 = vmatpush1.msra.mxu0 0.0
        %4779 = vmatprep.subr.mxu0 0.0
        %4780 = vmatpush1.msra.mxu0 0.0
        %4781 = vmatprep.subr.mxu0 0.0
        %4782 = vmatpush1.msra.mxu0 0.0
        %4783 = vmatprep.subr.mxu0 0.0
        %4784 = vmatpush1.msra.mxu0 0.0
        %4785 = vmatprep.subr.mxu0 0.0
        %4786 = vmatpush1.msra.mxu0 0.0
        %4787 = vmatprep.subr.mxu0 0.0
        %4788 = vmatpush1.msra.mxu0 0.0
        %4789 = vmatprep.subr.mxu0 0.0
        %4790 = vmatpush1.msra.mxu0 0.0
        %4791 = vmatprep.subr.mxu0 0.0
        %4792 = vmatpush1.msra.mxu0 0.0
        %4793 = vmatprep.subr.mxu0 0.0
        %4794 = vmatpush1.msra.mxu0 0.0
        %4795 = vmatprep.subr.mxu0 0.0
        %4796 = vmatpush1.msra.mxu0 0.0
        %4797 = vmatprep.subr.mxu0 0.0
        %4798 = vmatpush1.msra.mxu0 0.0
        %4799 = vmatprep.subr.mxu0 0.0
        %4800 = vmatpush1.msra.mxu0 0.0
        %4801 = vmatprep.subr.mxu0 0.0
        %4802 = vmatpush1.msra.mxu0 0.0
        %4803 = vmatprep.subr.mxu0 0.0
        %4804 = vmatpush1.msra.mxu0 0.0
        %4805 = vmatprep.subr.mxu0 0.0
        %4806 = vmatpush1.msra.mxu0 0.0
        %4807 = vmatprep.subr.mxu0 0.0
        %4808 = vmatpush1.msra.mxu0 0.0
        %4809 = vmatprep.subr.mxu0 0.0
        %4810 = vmatpush1.msra.mxu0 0.0
        %4811 = vmatprep.subr.mxu0 0.0
        %4812 = vmatpush1.msra.mxu0 0.0
        %4813 = vmatprep.subr.mxu0 0.0
        %4814 = vmatpush1.msra.mxu0 0.0
        %4815 = vmatprep.subr.mxu0 0.0
        %4816 = vmatpush1.msra.mxu0 0.0
        %4817 = vmatprep.subr.mxu0 0.0
        %4818 = vmatpush1.msra.mxu0 0.0
        %4819 = vmatprep.subr.mxu0 0.0
        %4820 = vmatpush1.msra.mxu0 0.0
        %4821 = vmatprep.mubr.f32.mxu0 0.0
        %4822 = vmatmul.mubr.f32.gmra.mrb[0].mxu0 %v4520
        %v4823 = vpop.f32.mrb[0].mxu0
        %v4824 = vadd.f32 0.0, %v4823
        %v4825 = vpop.f32.mrb[0].mxu0
        %4826 = vmatprep.mubr.f32.mxu0 0.0
        %4827 = vmatmul.mubr.f32.gmra.mrb[0].mxu0 %v4523
        %v4828 = vpop.f32.mrb[0].mxu0
        %v4829 = vadd.f32 0.0, %v4828
        %v4830 = vpop.f32.mrb[0].mxu0
        %4831 = vmatprep.mubr.f32.mxu0 0.0
        %4832 = vmatmul.mubr.f32.gmra.mrb[0].mxu0 %v4526
        %v4833 = vpop.f32.mrb[0].mxu0
        %v4834 = vadd.f32 0.0, %v4833
        %v4835 = vpop.f32.mrb[0].mxu0
        %4836 = vmatprep.mubr.f32.mxu0 0.0
        %4837 = vmatmul.mubr.f32.gmra.mrb[0].mxu0 %v4529
        %v4838 = vpop.f32.mrb[0].mxu0
        %v4839 = vadd.f32 0.0, %v4838
        %v4840 = vpop.f32.mrb[0].mxu0
        %4841 = vdwg.mxu0
        %v4843 = vsel %vm4616, %v4746, 0
        %v4846 = vsel %vm4616, %v4747, 0
        %v4849 = vsel %vm4616, %v4748, 0
        %v4852 = vsel %vm4616, %v4749, 0
        %v4855 = vsel %vm4616, %v4750, 0
        %v4858 = vsel %vm4616, %v4751, 0
        %v4861 = vsel %vm1402, %v4839, 0
        %4863 = vmatprep.subr.mxu0 0.0
        %4864 = vmatpush1.msra.mxu0 %v4824
        %4865 = vmatprep.subr.mxu0 0.0
        %4866 = vmatpush1.msra.mxu0 %v4829
        %4867 = vmatprep.subr.mxu0 0.0
        %4868 = vmatpush1.msra.mxu0 %v4834
        %4869 = vmatprep.subr.mxu0 0.0
        %4870 = vmatpush1.msra.mxu0 %v4861
        %4871 = vmatprep.subr.mxu0 0.0
        %4872 = vmatpush1.msra.mxu0 0.0
        %4873 = vmatprep.subr.mxu0 0.0
        %4874 = vmatpush1.msra.mxu0 0.0
        %4875 = vmatprep.subr.mxu0 0.0
        %4876 = vmatpush1.msra.mxu0 0.0
        %4877 = vmatprep.subr.mxu0 0.0
        %4878 = vmatpush1.msra.mxu0 0.0
        %4879 = vmatprep.subr.mxu0 0.0
        %4880 = vmatpush1.msra.mxu0 0.0
        %4881 = vmatprep.subr.mxu0 0.0
        %4882 = vmatpush1.msra.mxu0 0.0
        %4883 = vmatprep.subr.mxu0 0.0
        %4884 = vmatpush1.msra.mxu0 0.0
        %4885 = vmatprep.subr.mxu0 0.0
        %4886 = vmatpush1.msra.mxu0 0.0
        %4887 = vmatprep.subr.mxu0 0.0
        %4888 = vmatpush1.msra.mxu0 0.0
        %4889 = vmatprep.subr.mxu0 0.0
        %4890 = vmatpush1.msra.mxu0 0.0
        %4891 = vmatprep.subr.mxu0 0.0
        %4892 = vmatpush1.msra.mxu0 0.0
        %4893 = vmatprep.subr.mxu0 0.0
        %4894 = vmatpush1.msra.mxu0 0.0
        %4895 = vmatprep.subr.mxu0 0.0
        %4896 = vmatpush1.msra.mxu0 0.0
        %4897 = vmatprep.subr.mxu0 0.0
        %4898 = vmatpush1.msra.mxu0 0.0
        %4899 = vmatprep.subr.mxu0 0.0
        %4900 = vmatpush1.msra.mxu0 0.0
        %4901 = vmatprep.subr.mxu0 0.0
        %4902 = vmatpush1.msra.mxu0 0.0
        %4903 = vmatprep.subr.mxu0 0.0
        %4904 = vmatpush1.msra.mxu0 0.0
        %4905 = vmatprep.subr.mxu0 0.0
        %4906 = vmatpush1.msra.mxu0 0.0
        %4907 = vmatprep.subr.mxu0 0.0
        %4908 = vmatpush1.msra.mxu0 0.0
        %4909 = vmatprep.subr.mxu0 0.0
        %4910 = vmatpush1.msra.mxu0 0.0
        %4911 = vmatprep.subr.mxu0 0.0
        %4912 = vmatpush1.msra.mxu0 0.0
        %4913 = vmatprep.subr.mxu0 0.0
        %4914 = vmatpush1.msra.mxu0 0.0
        %4915 = vmatprep.subr.mxu0 0.0
        %4916 = vmatpush1.msra.mxu0 0.0
        %4917 = vmatprep.subr.mxu0 0.0
        %4918 = vmatpush1.msra.mxu0 0.0
        %4919 = vmatprep.subr.mxu0 0.0
        %4920 = vmatpush1.msra.mxu0 0.0
        %4921 = vmatprep.subr.mxu0 0.0
        %4922 = vmatpush1.msra.mxu0 0.0
        %4923 = vmatprep.subr.mxu0 0.0
        %4924 = vmatpush1.msra.mxu0 0.0
        %4925 = vmatprep.subr.mxu0 0.0
        %4926 = vmatpush1.msra.mxu0 0.0
        %4927 = vmatprep.mubr.f32.mxu0 0.0
        %4928 = vmatmul.mubr.f32.gmra.mrb[0].mxu0 %v4843
        %v4929 = vpop.f32.mrb[0].mxu0
        %v4930 = vadd.f32 0.0, %v4929
        %v4931 = vpop.f32.mrb[0].mxu0
        %4932 = vmatprep.mubr.f32.mxu0 0.0
        %4933 = vmatmul.mubr.f32.gmra.mrb[0].mxu0 %v4846
        %v4934 = vpop.f32.mrb[0].mxu0
        %v4935 = vadd.f32 0.0, %v4934
        %v4936 = vpop.f32.mrb[0].mxu0
        %4937 = vmatprep.mubr.f32.mxu0 0.0
        %4938 = vmatmul.mubr.f32.gmra.mrb[0].mxu0 %v4849
        %v4939 = vpop.f32.mrb[0].mxu0
        %v4940 = vadd.f32 0.0, %v4939
        %v4941 = vpop.f32.mrb[0].mxu0
        %4942 = vmatprep.mubr.f32.mxu0 0.0
        %4943 = vmatmul.mubr.f32.gmra.mrb[0].mxu0 %v4852
        %v4944 = vpop.f32.mrb[0].mxu0
        %v4945 = vadd.f32 0.0, %v4944
        %v4946 = vpop.f32.mrb[0].mxu0
        %4947 = vmatprep.mubr.f32.mxu0 0.0
        %4948 = vmatmul.mubr.f32.gmra.mrb[0].mxu0 %v4855
        %v4949 = vpop.f32.mrb[0].mxu0
        %v4950 = vadd.f32 0.0, %v4949
        %v4951 = vpop.f32.mrb[0].mxu0
        %4952 = vmatprep.mubr.f32.mxu0 0.0
        %4953 = vmatmul.mubr.f32.gmra.mrb[0].mxu0 %v4858
        %v4954 = vpop.f32.mrb[0].mxu0
        %v4955 = vadd.f32 0.0, %v4954
        %v4956 = vpop.f32.mrb[0].mxu0
        %4957 = vdwg.mxu0
        %v4958 = vadd.f32 %v4739, %v4930
        %v4959 = vadd.f32 %v4740, %v4935
        %v4960 = vadd.f32 %v4741, %v4940
        %v4961 = vadd.f32 %v4742, %v4945
        %v4962 = vadd.f32 %v4743, %v4950
        %v4963 = vadd.f32 %v4744, %v4955
        %v4964 = vadd.f32 %v4958, %v1825
        %v4965 = vadd.f32 %v4959, %v1826
        %v4966 = vadd.f32 %v4960, 0.0
        %v4967 = vadd.f32 %v4961, 0.0
        %v4968 = vadd.f32 %v4962, 0.0
        %v4969 = vadd.f32 %v4963, 0.0
        %4976 = vrot.lane.b32.xlu0 %v4964, 32
        %v4977 = vpop.permute.xlu0 %4976
        %4978 = vrot.lane.b32.xlu0 %v4965, 32
        %v4979 = vpop.permute.xlu0 %4978
        %4980 = vrot.lane.b32.xlu0 %v4966, 32
        %v4981 = vpop.permute.xlu0 %4980
        %4982 = vrot.lane.b32.xlu0 %v4967, 32
        %v4983 = vpop.permute.xlu0 %4982
        %4984 = vrot.lane.b32.xlu0 %v4968, 32
        %v4985 = vpop.permute.xlu0 %4984
        %4986 = vrot.lane.b32.xlu0 %v4969, 32
        %v4987 = vpop.permute.xlu0 %4986
        %4994 = vrot.lane.b32.xlu0 %v4964, 64
        %v4995 = vpop.permute.xlu0 %4994
        %4996 = vrot.lane.b32.xlu0 %v4965, 64
        %v4997 = vpop.permute.xlu0 %4996
        %4998 = vrot.lane.b32.xlu0 %v4966, 64
        %v4999 = vpop.permute.xlu0 %4998
        %5000 = vrot.lane.b32.xlu0 %v4967, 64
        %v5001 = vpop.permute.xlu0 %5000
        %5002 = vrot.lane.b32.xlu0 %v4968, 64
        %v5003 = vpop.permute.xlu0 %5002
        %5004 = vrot.lane.b32.xlu0 %v4969, 64
        %v5005 = vpop.permute.xlu0 %5004
        %5012 = vrot.lane.b32.xlu0 %v4964, 96
        %v5013 = vpop.permute.xlu0 %5012
        %5014 = vrot.lane.b32.xlu0 %v4965, 96
        %v5015 = vpop.permute.xlu0 %5014
        %5016 = vrot.lane.b32.xlu0 %v4966, 96
        %v5017 = vpop.permute.xlu0 %5016
        %5018 = vrot.lane.b32.xlu0 %v4967, 96
        %v5019 = vpop.permute.xlu0 %5018
        %5020 = vrot.lane.b32.xlu0 %v4968, 96
        %v5021 = vpop.permute.xlu0 %5020
        %5022 = vrot.lane.b32.xlu0 %v4969, 96
        %v5023 = vpop.permute.xlu0 %5022
        %v5030 = vsel %vm1916, %v4964, %v4977
        %v5031 = vsel %vm1916, %v4965, %v4979
        %v5032 = vsel %vm1916, %v4966, %v4981
        %v5033 = vsel %vm1916, %v4967, %v4983
        %v5034 = vsel %vm1916, %v4968, %v4985
        %v5035 = vsel %vm1916, %v4969, %v4987
        %vm5036 = vcmask 523264
        %v5037 = vsel %vm5036, %v5030, %v4995
        %v5038 = vsel %vm5036, %v5031, %v4997
        %v5039 = vsel %vm5036, %v5032, %v4999
        %v5040 = vsel %vm5036, %v5033, %v5001
        %v5041 = vsel %vm5036, %v5034, %v5003
        %v5042 = vsel %vm5036, %v5035, %v5005
        %vm5043 = vcmask 785408
        %v5044 = vsel %vm5043, %v5037, %v5013
        %v5045 = vsel %vm5043, %v5038, %v5015
        %v5046 = vsel %vm5043, %v5039, %v5017
        %v5047 = vsel %vm5043, %v5040, %v5019
        %v5048 = vsel %vm5043, %v5041, %v5021
        %v5049 = vsel %vm5043, %v5042, %v5023
        %5050 = vadd.xlane.f32.xlu0 %v5044
        %v5051 = vpop.xlane.xlu0 %5050
        %5052 = vadd.xlane.f32.xlu0 %v5045
        %v5053 = vpop.xlane.xlu0 %5052
        %5054 = vadd.xlane.f32.xlu0 %v5046
        %v5055 = vpop.xlane.xlu0 %5054
        %5056 = vadd.xlane.f32.xlu0 %v5047
        %v5057 = vpop.xlane.xlu0 %5056
        %5058 = vadd.xlane.f32.xlu0 %v5048
        %v5059 = vpop.xlane.xlu0 %5058
        %5060 = vadd.xlane.f32.xlu0 %v5049
        %v5061 = vpop.xlane.xlu0 %5060
        %v5062 = vrcp.pop 128.0
        %v5063 = vmul.f32 %v5051, %v5062
        %v5064 = vmul.f32 %v5053, %v5062
        %v5065 = vmul.f32 %v5055, %v5062
        %v5066 = vmul.f32 %v5057, %v5062
        %v5067 = vmul.f32 %v5059, %v5062
        %v5068 = vmul.f32 %v5061, %v5062
        %v5069 = vsub.f32 %v5044, %v5063
        %v5070 = vsub.f32 %v5045, %v5064
        %v5071 = vsub.f32 %v5046, %v5065
        %v5072 = vsub.f32 %v5047, %v5066
        %v5073 = vsub.f32 %v5048, %v5067
        %v5074 = vsub.f32 %v5049, %v5068
        %v5075 = vmul.f32 %v5069, %v5069
        %v5076 = vmul.f32 %v5070, %v5070
        %v5077 = vmul.f32 %v5071, %v5071
        %v5078 = vmul.f32 %v5072, %v5072
        %v5079 = vmul.f32 %v5073, %v5073
        %v5080 = vmul.f32 %v5074, %v5074
        %5081 = vadd.xlane.f32.xlu0 %v5075
        %v5082 = vpop.xlane.xlu0 %5081
        %5083 = vadd.xlane.f32.xlu0 %v5076
        %v5084 = vpop.xlane.xlu0 %5083
        %5085 = vadd.xlane.f32.xlu0 %v5077
        %v5086 = vpop.xlane.xlu0 %5085
        %5087 = vadd.xlane.f32.xlu0 %v5078
        %v5088 = vpop.xlane.xlu0 %5087
        %5089 = vadd.xlane.f32.xlu0 %v5079
        %v5090 = vpop.xlane.xlu0 %5089
        %5091 = vadd.xlane.f32.xlu0 %v5080
        %v5092 = vpop.xlane.xlu0 %5091
        %v5093 = vmul.f32 %v5082, %v5062
        %v5094 = vmul.f32 %v5084, %v5062
        %v5095 = vmul.f32 %v5086, %v5062
        %v5096 = vmul.f32 %v5088, %v5062
        %v5097 = vmul.f32 %v5090, %v5062
        %v5098 = vmul.f32 %v5092, %v5062
        %v5099 = vadd.f32 %v5093, 1e-05
        %v5100 = vadd.f32 %v5094, 1e-05
        %v5101 = vadd.f32 %v5095, 1e-05
        %v5102 = vadd.f32 %v5096, 1e-05
        %v5103 = vadd.f32 %v5097, 1e-05
        %v5104 = vadd.f32 %v5098, 1e-05
        %v5105 = vrsqrt.pop %v5099
        %v5106 = vrsqrt.pop %v5100
        %v5107 = vrsqrt.pop %v5101
        %v5108 = vrsqrt.pop %v5102
        %v5109 = vrsqrt.pop %v5103
        %v5110 = vrsqrt.pop %v5104
        %v5111 = vmul.f32 %v5069, %v5105
        %v5112 = vmul.f32 %v5070, %v5106
        %v5113 = vmul.f32 %v5071, %v5107
        %v5114 = vmul.f32 %v5072, %v5108
        %v5115 = vmul.f32 %v5073, %v5109
        %v5116 = vmul.f32 %v5074, %v5110
        %v5117 = vld [vmem:[%s39] sm:$0x1]
        %v5119 = vlaneseq
        %v5120 = vshrl.u32 %v5119, 7
        %v5121 = vsub.s32 0, %v5120
        %v5122 = vrot.slane %v5117, %v5121
        %v5124 = vmul.f32 %v5111, %v5122
        %v5125 = vmul.f32 %v5112, %v5122
        %v5126 = vmul.f32 %v5113, %v5122
        %v5127 = vmul.f32 %v5114, %v5122
        %v5128 = vmul.f32 %v5115, %v5122
        %v5129 = vmul.f32 %v5116, %v5122
        %v5130 = vld [vmem:[%s41] sm:$0x1]
        %v5132 = vlaneseq
        %v5133 = vshrl.u32 %v5132, 7
        %v5134 = vsub.s32 0, %v5133
        %v5135 = vrot.slane %v5130, %v5134
        %v5137 = vadd.f32 %v5124, %v5135
        %v5138 = vadd.f32 %v5125, %v5135
        %v5139 = vadd.f32 %v5126, %v5135
        %v5140 = vadd.f32 %v5127, %v5135
        %v5141 = vadd.f32 %v5128, %v5135
        %v5142 = vadd.f32 %v5129, %v5135
        %v5143 = vadd.f32 %v5044, %v5137
        %v5144 = vadd.f32 %v5045, %v5138
        %v5145 = vadd.f32 %v5046, %v5139
        %v5146 = vadd.f32 %v5047, %v5140
        %v5147 = vadd.f32 %v5048, %v5141
        %v5148 = vadd.f32 %v5049, %v5142
        %5149 = vadd.xlane.f32.xlu0 %v5143
        %v5150 = vpop.xlane.xlu0 %5149
        %5151 = vadd.xlane.f32.xlu0 %v5144
        %v5152 = vpop.xlane.xlu0 %5151
        %5153 = vadd.xlane.f32.xlu0 %v5145
        %v5154 = vpop.xlane.xlu0 %5153
        %5155 = vadd.xlane.f32.xlu0 %v5146
        %v5156 = vpop.xlane.xlu0 %5155
        %5157 = vadd.xlane.f32.xlu0 %v5147
        %v5158 = vpop.xlane.xlu0 %5157
        %5159 = vadd.xlane.f32.xlu0 %v5148
        %v5160 = vpop.xlane.xlu0 %5159
        %v5161 = vmul.f32 %v5150, %v5062
        %v5162 = vmul.f32 %v5152, %v5062
        %v5163 = vmul.f32 %v5154, %v5062
        %v5164 = vmul.f32 %v5156, %v5062
        %v5165 = vmul.f32 %v5158, %v5062
        %v5166 = vmul.f32 %v5160, %v5062
        %v5167 = vsub.f32 %v5143, %v5161
        %v5168 = vsub.f32 %v5144, %v5162
        %v5169 = vsub.f32 %v5145, %v5163
        %v5170 = vsub.f32 %v5146, %v5164
        %v5171 = vsub.f32 %v5147, %v5165
        %v5172 = vsub.f32 %v5148, %v5166
        %v5173 = vmul.f32 %v5167, %v5167
        %v5174 = vmul.f32 %v5168, %v5168
        %v5175 = vmul.f32 %v5169, %v5169
        %v5176 = vmul.f32 %v5170, %v5170
        %v5177 = vmul.f32 %v5171, %v5171
        %v5178 = vmul.f32 %v5172, %v5172
        %5179 = vadd.xlane.f32.xlu0 %v5173
        %v5180 = vpop.xlane.xlu0 %5179
        %5181 = vadd.xlane.f32.xlu0 %v5174
        %v5182 = vpop.xlane.xlu0 %5181
        %5183 = vadd.xlane.f32.xlu0 %v5175
        %v5184 = vpop.xlane.xlu0 %5183
        %5185 = vadd.xlane.f32.xlu0 %v5176
        %v5186 = vpop.xlane.xlu0 %5185
        %5187 = vadd.xlane.f32.xlu0 %v5177
        %v5188 = vpop.xlane.xlu0 %5187
        %5189 = vadd.xlane.f32.xlu0 %v5178
        %v5190 = vpop.xlane.xlu0 %5189
        %v5191 = vmul.f32 %v5180, %v5062
        %v5192 = vmul.f32 %v5182, %v5062
        %v5193 = vmul.f32 %v5184, %v5062
        %v5194 = vmul.f32 %v5186, %v5062
        %v5195 = vmul.f32 %v5188, %v5062
        %v5196 = vmul.f32 %v5190, %v5062
        %v5197 = vadd.f32 %v5191, 1e-05
        %v5198 = vadd.f32 %v5192, 1e-05
        %v5199 = vadd.f32 %v5193, 1e-05
        %v5200 = vadd.f32 %v5194, 1e-05
        %v5201 = vadd.f32 %v5195, 1e-05
        %v5202 = vadd.f32 %v5196, 1e-05
        %v5203 = vrsqrt.pop %v5197
        %v5204 = vrsqrt.pop %v5198
        %v5205 = vrsqrt.pop %v5199
        %v5206 = vrsqrt.pop %v5200
        %v5207 = vrsqrt.pop %v5201
        %v5208 = vrsqrt.pop %v5202
        %v5209 = vmul.f32 %v5167, %v5203
        %v5210 = vmul.f32 %v5168, %v5204
        %v5211 = vmul.f32 %v5169, %v5205
        %v5212 = vmul.f32 %v5170, %v5206
        %v5213 = vmul.f32 %v5171, %v5207
        %v5214 = vmul.f32 %v5172, %v5208
        %v5215 = vld [vmem:[%s43] sm:$0x1]
        %v5217 = vlaneseq
        %v5218 = vshrl.u32 %v5217, 7
        %v5219 = vsub.s32 0, %v5218
        %v5220 = vrot.slane %v5215, %v5219
        %v5222 = vmul.f32 %v5209, %v5220
        %v5223 = vmul.f32 %v5210, %v5220
        %v5224 = vmul.f32 %v5211, %v5220
        %v5225 = vmul.f32 %v5212, %v5220
        %v5226 = vmul.f32 %v5213, %v5220
        %v5227 = vmul.f32 %v5214, %v5220
        %v5228 = vld [vmem:[%s45] sm:$0x1]
        %v5230 = vlaneseq
        %v5231 = vshrl.u32 %v5230, 7
        %v5232 = vsub.s32 0, %v5231
        %v5233 = vrot.slane %v5228, %v5232
        %v5235 = vadd.f32 %v5222, %v5233
        %v5236 = vadd.f32 %v5223, %v5233
        %v5237 = vadd.f32 %v5224, %v5233
        %v5238 = vadd.f32 %v5225, %v5233
        %v5239 = vadd.f32 %v5226, %v5233
        %v5240 = vadd.f32 %v5227, %v5233
        %v5241 = vld [vmem:[%s47] sm:$0xff]
        %v5242 = vld [vmem:[%s47 + $0x8] sm:$0xff]
        %v5243 = vld [vmem:[%s47 + $0x10] sm:$0xff]
        %v5244 = vld [vmem:[%s47 + $0x18] sm:$0xff]
        %v5245 = vld [vmem:[%s47 + $0x20] sm:$0xff]
        %v5246 = vld [vmem:[%s47 + $0x28] sm:$0xff]
        %v5247 = vld [vmem:[%s47 + $0x30] sm:$0xff]
        %v5248 = vld [vmem:[%s47 + $0x38] sm:$0xff]
        %v5249 = vld [vmem:[%s47 + $0x40] sm:$0xff]
        %v5250 = vld [vmem:[%s47 + $0x48] sm:$0xff]
        %v5251 = vld [vmem:[%s47 + $0x50] sm:$0xff]
        %v5252 = vld [vmem:[%s47 + $0x58] sm:$0xff]
        %v5253 = vld [vmem:[%s47 + $0x60] sm:$0xff]
        %v5254 = vld [vmem:[%s47 + $0x68] sm:$0xff]
        %v5255 = vld [vmem:[%s47 + $0x70] sm:$0xff]
        %v5256 = vld [vmem:[%s47 + $0x78] sm:$0xff]
        %v5257 = vld [vmem:[%s49] sm:$0x1]
        %v5259 = vlaneseq
        %v5260 = vshrl.u32 %v5259, 7
        %v5261 = vsub.s32 0, %v5260
        %v5262 = vrot.slane %v5257, %v5261
        %5264 = vmatprep.subr.mxu0 0.0
        %5265 = vmatpush1.msra.mxu0 %v5241
        %5266 = vmatprep.subr.mxu0 0.0
        %5267 = vmatpush1.msra.mxu0 %v5242
        %5268 = vmatprep.subr.mxu0 0.0
        %5269 = vmatpush1.msra.mxu0 %v5243
        %5270 = vmatprep.subr.mxu0 0.0
        %5271 = vmatpush1.msra.mxu0 %v5244
        %5272 = vmatprep.subr.mxu0 0.0
        %5273 = vmatpush1.msra.mxu0 %v5245
        %5274 = vmatprep.subr.mxu0 0.0
        %5275 = vmatpush1.msra.mxu0 %v5246
        %5276 = vmatprep.subr.mxu0 0.0
        %5277 = vmatpush1.msra.mxu0 %v5247
        %5278 = vmatprep.subr.mxu0 0.0
        %5279 = vmatpush1.msra.mxu0 %v5248
        %5280 = vmatprep.subr.mxu0 0.0
        %5281 = vmatpush1.msra.mxu0 %v5249
        %5282 = vmatprep.subr.mxu0 0.0
        %5283 = vmatpush1.msra.mxu0 %v5250
        %5284 = vmatprep.subr.mxu0 0.0
        %5285 = vmatpush1.msra.mxu0 %v5251
        %5286 = vmatprep.subr.mxu0 0.0
        %5287 = vmatpush1.msra.mxu0 %v5252
        %5288 = vmatprep.subr.mxu0 0.0
        %5289 = vmatpush1.msra.mxu0 %v5253
        %5290 = vmatprep.subr.mxu0 0.0
        %5291 = vmatpush1.msra.mxu0 %v5254
        %5292 = vmatprep.subr.mxu0 0.0
        %5293 = vmatpush1.msra.mxu0 %v5255
        %5294 = vmatprep.subr.mxu0 0.0
        %5295 = vmatpush1.msra.mxu0 %v5256
        %5296 = vmatprep.subr.mxu0 0.0
        %5297 = vmatpush1.msra.mxu0 0.0
        %5298 = vmatprep.subr.mxu0 0.0
        %5299 = vmatpush1.msra.mxu0 0.0
        %5300 = vmatprep.subr.mxu0 0.0
        %5301 = vmatpush1.msra.mxu0 0.0
        %5302 = vmatprep.subr.mxu0 0.0
        %5303 = vmatpush1.msra.mxu0 0.0
        %5304 = vmatprep.subr.mxu0 0.0
        %5305 = vmatpush1.msra.mxu0 0.0
        %5306 = vmatprep.subr.mxu0 0.0
        %5307 = vmatpush1.msra.mxu0 0.0
        %5308 = vmatprep.subr.mxu0 0.0
        %5309 = vmatpush1.msra.mxu0 0.0
        %5310 = vmatprep.subr.mxu0 0.0
        %5311 = vmatpush1.msra.mxu0 0.0
        %5312 = vmatprep.subr.mxu0 0.0
        %5313 = vmatpush1.msra.mxu0 0.0
        %5314 = vmatprep.subr.mxu0 0.0
        %5315 = vmatpush1.msra.mxu0 0.0
        %5316 = vmatprep.subr.mxu0 0.0
        %5317 = vmatpush1.msra.mxu0 0.0
        %5318 = vmatprep.subr.mxu0 0.0
        %5319 = vmatpush1.msra.mxu0 0.0
        %5320 = vmatprep.subr.mxu0 0.0
        %5321 = vmatpush1.msra.mxu0 0.0
        %5322 = vmatprep.subr.mxu0 0.0
        %5323 = vmatpush1.msra.mxu0 0.0
        %5324 = vmatprep.subr.mxu0 0.0
        %5325 = vmatpush1.msra.mxu0 0.0
        %5326 = vmatprep.subr.mxu0 0.0
        %5327 = vmatpush1.msra.mxu0 0.0
        %5328 = vmatprep.mubr.f32.mxu0 0.0
        %5329 = vmatmul.mubr.f32.gmra.mrb[0].mxu0 %v5235
        %v5330 = vpop.f32.mrb[0].mxu0
        %v5331 = vadd.f32 %v5262, %v5330
        %v5332 = vpop.f32.mrb[0].mxu0
        %5333 = vmatprep.mubr.f32.mxu0 0.0
        %5334 = vmatmul.mubr.f32.gmra.mrb[0].mxu0 %v5236
        %v5335 = vpop.f32.mrb[0].mxu0
        %v5336 = vadd.f32 %v5262, %v5335
        %v5337 = vpop.f32.mrb[0].mxu0
        %5338 = vmatprep.mubr.f32.mxu0 0.0
        %5339 = vmatmul.mubr.f32.gmra.mrb[0].mxu0 %v5237
        %v5340 = vpop.f32.mrb[0].mxu0
        %v5341 = vadd.f32 %v5262, %v5340
        %v5342 = vpop.f32.mrb[0].mxu0
        %5343 = vmatprep.mubr.f32.mxu0 0.0
        %5344 = vmatmul.mubr.f32.gmra.mrb[0].mxu0 %v5238
        %v5345 = vpop.f32.mrb[0].mxu0
        %v5346 = vadd.f32 %v5262, %v5345
        %v5347 = vpop.f32.mrb[0].mxu0
        %5348 = vmatprep.mubr.f32.mxu0 0.0
        %5349 = vmatmul.mubr.f32.gmra.mrb[0].mxu0 %v5239
        %v5350 = vpop.f32.mrb[0].mxu0
        %v5351 = vadd.f32 %v5262, %v5350
        %v5352 = vpop.f32.mrb[0].mxu0
        %5353 = vmatprep.mubr.f32.mxu0 0.0
        %5354 = vmatmul.mubr.f32.gmra.mrb[0].mxu0 %v5240
        %v5355 = vpop.f32.mrb[0].mxu0
        %v5356 = vadd.f32 %v5262, %v5355
        %v5357 = vpop.f32.mrb[0].mxu0
        %5358 = vdwg.mxu0
        %v5359 = vld [vmem:[#allocation28] sm:$0xff]
        %v5360 = vld [vmem:[#allocation30] sm:$0xff]
        %v5362 = vsel %vm1830, %v5359, 0
        %5364 = vmatprep.subr.mxu0 0.0
        %5365 = vmatpush1.msra.mxu0 %v5331
        %5366 = vmatprep.subr.mxu0 0.0
        %5367 = vmatpush1.msra.mxu0 %v5336
        %5368 = vmatprep.subr.mxu0 0.0
        %5369 = vmatpush1.msra.mxu0 %v5341
        %5370 = vmatprep.subr.mxu0 0.0
        %5371 = vmatpush1.msra.mxu0 %v5346
        %5372 = vmatprep.subr.mxu0 0.0
        %5373 = vmatpush1.msra.mxu0 %v5351
        %5374 = vmatprep.subr.mxu0 0.0
        %5375 = vmatpush1.msra.mxu0 %v5356
        %5376 = vmatprep.subr.mxu0 0.0
        %5377 = vmatpush1.msra.mxu0 0.0
        %5378 = vmatprep.subr.mxu0 0.0
        %5379 = vmatpush1.msra.mxu0 0.0
        %5380 = vmatprep.subr.mxu0 0.0
        %5381 = vmatpush1.msra.mxu0 0.0
        %5382 = vmatprep.subr.mxu0 0.0
        %5383 = vmatpush1.msra.mxu0 0.0
        %5384 = vmatprep.subr.mxu0 0.0
        %5385 = vmatpush1.msra.mxu0 0.0
        %5386 = vmatprep.subr.mxu0 0.0
        %5387 = vmatpush1.msra.mxu0 0.0
        %5388 = vmatprep.subr.mxu0 0.0
        %5389 = vmatpush1.msra.mxu0 0.0
        %5390 = vmatprep.subr.mxu0 0.0
        %5391 = vmatpush1.msra.mxu0 0.0
        %5392 = vmatprep.subr.mxu0 0.0
        %5393 = vmatpush1.msra.mxu0 0.0
        %5394 = vmatprep.subr.mxu0 0.0
        %5395 = vmatpush1.msra.mxu0 0.0
        %5396 = vmatprep.subr.mxu0 0.0
        %5397 = vmatpush1.msra.mxu0 0.0
        %5398 = vmatprep.subr.mxu0 0.0
        %5399 = vmatpush1.msra.mxu0 0.0
        %5400 = vmatprep.subr.mxu0 0.0
        %5401 = vmatpush1.msra.mxu0 0.0
        %5402 = vmatprep.subr.mxu0 0.0
        %5403 = vmatpush1.msra.mxu0 0.0
        %5404 = vmatprep.subr.mxu0 0.0
        %5405 = vmatpush1.msra.mxu0 0.0
        %5406 = vmatprep.subr.mxu0 0.0
        %5407 = vmatpush1.msra.mxu0 0.0
        %5408 = vmatprep.subr.mxu0 0.0
        %5409 = vmatpush1.msra.mxu0 0.0
        %5410 = vmatprep.subr.mxu0 0.0
        %5411 = vmatpush1.msra.mxu0 0.0
        %5412 = vmatprep.subr.mxu0 0.0
        %5413 = vmatpush1.msra.mxu0 0.0
        %5414 = vmatprep.subr.mxu0 0.0
        %5415 = vmatpush1.msra.mxu0 0.0
        %5416 = vmatprep.subr.mxu0 0.0
        %5417 = vmatpush1.msra.mxu0 0.0
        %5418 = vmatprep.subr.mxu0 0.0
        %5419 = vmatpush1.msra.mxu0 0.0
        %5420 = vmatprep.subr.mxu0 0.0
        %5421 = vmatpush1.msra.mxu0 0.0
        %5422 = vmatprep.subr.mxu0 0.0
        %5423 = vmatpush1.msra.mxu0 0.0
        %5424 = vmatprep.subr.mxu0 0.0
        %5425 = vmatpush1.msra.mxu0 0.0
        %5426 = vmatprep.subr.mxu0 0.0
        %5427 = vmatpush1.msra.mxu0 0.0
        %5428 = vmatprep.mubr.f32.mxu0 0.0
        %5429 = vmatmul.mubr.f32.gmra.mrb[0].mxu0 %v5362
        %v5430 = vpop.f32.mrb[0].mxu0
        %v5431 = vadd.f32 %v5360, %v5430
        %v5432 = vpop.f32.mrb[0].mxu0
        %5433 = vdwg.mxu0
        %v5434 = vld [vmem:[#allocation31] sm:$0xff]
        %v5435 = vld [vmem:[#allocation33] sm:$0xff]
        %v5437 = vsel %vm1312, %v5434, 0
        %5439 = vmatprep.subr.mxu0 0.0
        %5440 = vmatpush1.msra.mxu0 %v1302
        %5441 = vmatprep.subr.mxu0 0.0
        %5442 = vmatpush1.msra.mxu0 %v1303
        %5443 = vmatprep.subr.mxu0 0.0
        %5444 = vmatpush1.msra.mxu0 0.0
        %5445 = vmatprep.subr.mxu0 0.0
        %5446 = vmatpush1.msra.mxu0 0.0
        %5447 = vmatprep.subr.mxu0 0.0
        %5448 = vmatpush1.msra.mxu0 0.0
        %5449 = vmatprep.subr.mxu0 0.0
        %5450 = vmatpush1.msra.mxu0 0.0
        %5451 = vmatprep.subr.mxu0 0.0
        %5452 = vmatpush1.msra.mxu0 0.0
        %5453 = vmatprep.subr.mxu0 0.0
        %5454 = vmatpush1.msra.mxu0 0.0
        %5455 = vmatprep.subr.mxu0 0.0
        %5456 = vmatpush1.msra.mxu0 0.0
        %5457 = vmatprep.subr.mxu0 0.0
        %5458 = vmatpush1.msra.mxu0 0.0
        %5459 = vmatprep.subr.mxu0 0.0
        %5460 = vmatpush1.msra.mxu0 0.0
        %5461 = vmatprep.subr.mxu0 0.0
        %5462 = vmatpush1.msra.mxu0 0.0
        %5463 = vmatprep.subr.mxu0 0.0
        %5464 = vmatpush1.msra.mxu0 0.0
        %5465 = vmatprep.subr.mxu0 0.0
        %5466 = vmatpush1.msra.mxu0 0.0
        %5467 = vmatprep.subr.mxu0 0.0
        %5468 = vmatpush1.msra.mxu0 0.0
        %5469 = vmatprep.subr.mxu0 0.0
        %5470 = vmatpush1.msra.mxu0 0.0
        %5471 = vmatprep.subr.mxu0 0.0
        %5472 = vmatpush1.msra.mxu0 0.0
        %5473 = vmatprep.subr.mxu0 0.0
        %5474 = vmatpush1.msra.mxu0 0.0
        %5475 = vmatprep.subr.mxu0 0.0
        %5476 = vmatpush1.msra.mxu0 0.0
        %5477 = vmatprep.subr.mxu0 0.0
        %5478 = vmatpush1.msra.mxu0 0.0
        %5479 = vmatprep.subr.mxu0 0.0
        %5480 = vmatpush1.msra.mxu0 0.0
        %5481 = vmatprep.subr.mxu0 0.0
        %5482 = vmatpush1.msra.mxu0 0.0
        %5483 = vmatprep.subr.mxu0 0.0
        %5484 = vmatpush1.msra.mxu0 0.0
        %5485 = vmatprep.subr.mxu0 0.0
        %5486 = vmatpush1.msra.mxu0 0.0
        %5487 = vmatprep.subr.mxu0 0.0
        %5488 = vmatpush1.msra.mxu0 0.0
        %5489 = vmatprep.subr.mxu0 0.0
        %5490 = vmatpush1.msra.mxu0 0.0
        %5491 = vmatprep.subr.mxu0 0.0
        %5492 = vmatpush1.msra.mxu0 0.0
        %5493 = vmatprep.subr.mxu0 0.0
        %5494 = vmatpush1.msra.mxu0 0.0
        %5495 = vmatprep.subr.mxu0 0.0
        %5496 = vmatpush1.msra.mxu0 0.0
        %5497 = vmatprep.subr.mxu0 0.0
        %5498 = vmatpush1.msra.mxu0 0.0
        %5499 = vmatprep.subr.mxu0 0.0
        %5500 = vmatpush1.msra.mxu0 0.0
        %5501 = vmatprep.subr.mxu0 0.0
        %5502 = vmatpush1.msra.mxu0 0.0
        %5503 = vmatprep.mubr.f32.mxu0 0.0
        %5504 = vmatmul.mubr.f32.gmra.mrb[0].mxu0 %v5437
        %v5505 = vpop.f32.mrb[0].mxu0
        %v5506 = vadd.f32 %v5435, %v5505
        %v5507 = vpop.f32.mrb[0].mxu0
        %5508 = vdwg.mxu0
        %v5509 = vld [vmem:[%s59] sm:$0xff]
        %v5510 = vld [vmem:[%s61] sm:$0xff]
        %v5512 = vsel %vm1312, %v5509, 0
        %5514 = vmatprep.subr.mxu0 0.0
        %5515 = vmatpush1.msra.mxu0 %v1306
        %5516 = vmatprep.subr.mxu0 0.0
        %5517 = vmatpush1.msra.mxu0 %v1307
        %5518 = vmatprep.subr.mxu0 0.0
        %5519 = vmatpush1.msra.mxu0 0.0
        %5520 = vmatprep.subr.mxu0 0.0
        %5521 = vmatpush1.msra.mxu0 0.0
        %5522 = vmatprep.subr.mxu0 0.0
        %5523 = vmatpush1.msra.mxu0 0.0
        %5524 = vmatprep.subr.mxu0 0.0
        %5525 = vmatpush1.msra.mxu0 0.0
        %5526 = vmatprep.subr.mxu0 0.0
        %5527 = vmatpush1.msra.mxu0 0.0
        %5528 = vmatprep.subr.mxu0 0.0
        %5529 = vmatpush1.msra.mxu0 0.0
        %5530 = vmatprep.subr.mxu0 0.0
        %5531 = vmatpush1.msra.mxu0 0.0
        %5532 = vmatprep.subr.mxu0 0.0
        %5533 = vmatpush1.msra.mxu0 0.0
        %5534 = vmatprep.subr.mxu0 0.0
        %5535 = vmatpush1.msra.mxu0 0.0
        %5536 = vmatprep.subr.mxu0 0.0
        %5537 = vmatpush1.msra.mxu0 0.0
        %5538 = vmatprep.subr.mxu0 0.0
        %5539 = vmatpush1.msra.mxu0 0.0
        %5540 = vmatprep.subr.mxu0 0.0
        %5541 = vmatpush1.msra.mxu0 0.0
        %5542 = vmatprep.subr.mxu0 0.0
        %5543 = vmatpush1.msra.mxu0 0.0
        %5544 = vmatprep.subr.mxu0 0.0
        %5545 = vmatpush1.msra.mxu0 0.0
        %5546 = vmatprep.subr.mxu0 0.0
        %5547 = vmatpush1.msra.mxu0 0.0
        %5548 = vmatprep.subr.mxu0 0.0
        %5549 = vmatpush1.msra.mxu0 0.0
        %5550 = vmatprep.subr.mxu0 0.0
        %5551 = vmatpush1.msra.mxu0 0.0
        %5552 = vmatprep.subr.mxu0 0.0
        %5553 = vmatpush1.msra.mxu0 0.0
        %5554 = vmatprep.subr.mxu0 0.0
        %5555 = vmatpush1.msra.mxu0 0.0
        %5556 = vmatprep.subr.mxu0 0.0
        %5557 = vmatpush1.msra.mxu0 0.0
        %5558 = vmatprep.subr.mxu0 0.0
        %5559 = vmatpush1.msra.mxu0 0.0
        %5560 = vmatprep.subr.mxu0 0.0
        %5561 = vmatpush1.msra.mxu0 0.0
        %5562 = vmatprep.subr.mxu0 0.0
        %5563 = vmatpush1.msra.mxu0 0.0
        %5564 = vmatprep.subr.mxu0 0.0
        %5565 = vmatpush1.msra.mxu0 0.0
        %5566 = vmatprep.subr.mxu0 0.0
        %5567 = vmatpush1.msra.mxu0 0.0
        %5568 = vmatprep.subr.mxu0 0.0
        %5569 = vmatpush1.msra.mxu0 0.0
        %5570 = vmatprep.subr.mxu0 0.0
        %5571 = vmatpush1.msra.mxu0 0.0
        %5572 = vmatprep.subr.mxu0 0.0
        %5573 = vmatpush1.msra.mxu0 0.0
        %5574 = vmatprep.subr.mxu0 0.0
        %5575 = vmatpush1.msra.mxu0 0.0
        %5576 = vmatprep.subr.mxu0 0.0
        %5577 = vmatpush1.msra.mxu0 0.0
        %5578 = vmatprep.mubr.f32.mxu0 0.0
        %5579 = vmatmul.mubr.f32.gmra.mrb[0].mxu0 %v5512
        %v5580 = vpop.f32.mrb[0].mxu0
        %v5581 = vadd.f32 %v5510, %v5580
        %v5582 = vpop.f32.mrb[0].mxu0
        %5583 = vdwg.mxu0
        %v5584 = vld [vmem:[%s63] sm:$0xf]
        %v5585 = vld [vmem:[%s65] sm:$0x1]
        %v5587 = vlaneseq
        %v5588 = vshrl.u32 %v5587, 7
        %v5589 = vsub.s32 0, %v5588
        %v5590 = vrot.slane %v5585, %v5589
        %v5593 = vsel %vm1395, %v5506, 0
        %v5596 = vsel %vm1395, %v5431, 0
        %v5599 = vsel %vm1395, %v5581, 0
        %v5602 = vsel %vm1402, %v5584, 0
        %5604 = vmatprep.subr.mxu0 0.0
        %5605 = vmatpush1.msra.mxu0 %v5602
        %5606 = vmatprep.subr.mxu0 0.0
        %5607 = vmatpush1.msra.mxu0 0.0
        %5608 = vmatprep.subr.mxu0 0.0
        %5609 = vmatpush1.msra.mxu0 0.0
        %5610 = vmatprep.subr.mxu0 0.0
        %5611 = vmatpush1.msra.mxu0 0.0
        %5612 = vmatprep.subr.mxu0 0.0
        %5613 = vmatpush1.msra.mxu0 0.0
        %5614 = vmatprep.subr.mxu0 0.0
        %5615 = vmatpush1.msra.mxu0 0.0
        %5616 = vmatprep.subr.mxu0 0.0
        %5617 = vmatpush1.msra.mxu0 0.0
        %5618 = vmatprep.subr.mxu0 0.0
        %5619 = vmatpush1.msra.mxu0 0.0
        %5620 = vmatprep.subr.mxu0 0.0
        %5621 = vmatpush1.msra.mxu0 0.0
        %5622 = vmatprep.subr.mxu0 0.0
        %5623 = vmatpush1.msra.mxu0 0.0
        %5624 = vmatprep.subr.mxu0 0.0
        %5625 = vmatpush1.msra.mxu0 0.0
        %5626 = vmatprep.subr.mxu0 0.0
        %5627 = vmatpush1.msra.mxu0 0.0
        %5628 = vmatprep.subr.mxu0 0.0
        %5629 = vmatpush1.msra.mxu0 0.0
        %5630 = vmatprep.subr.mxu0 0.0
        %5631 = vmatpush1.msra.mxu0 0.0
        %5632 = vmatprep.subr.mxu0 0.0
        %5633 = vmatpush1.msra.mxu0 0.0
        %5634 = vmatprep.subr.mxu0 0.0
        %5635 = vmatpush1.msra.mxu0 0.0
        %5636 = vmatprep.subr.mxu0 0.0
        %5637 = vmatpush1.msra.mxu0 0.0
        %5638 = vmatprep.subr.mxu0 0.0
        %5639 = vmatpush1.msra.mxu0 0.0
        %5640 = vmatprep.subr.mxu0 0.0
        %5641 = vmatpush1.msra.mxu0 0.0
        %5642 = vmatprep.subr.mxu0 0.0
        %5643 = vmatpush1.msra.mxu0 0.0
        %5644 = vmatprep.subr.mxu0 0.0
        %5645 = vmatpush1.msra.mxu0 0.0
        %5646 = vmatprep.subr.mxu0 0.0
        %5647 = vmatpush1.msra.mxu0 0.0
        %5648 = vmatprep.subr.mxu0 0.0
        %5649 = vmatpush1.msra.mxu0 0.0
        %5650 = vmatprep.subr.mxu0 0.0
        %5651 = vmatpush1.msra.mxu0 0.0
        %5652 = vmatprep.subr.mxu0 0.0
        %5653 = vmatpush1.msra.mxu0 0.0
        %5654 = vmatprep.subr.mxu0 0.0
        %5655 = vmatpush1.msra.mxu0 0.0
        %5656 = vmatprep.subr.mxu0 0.0
        %5657 = vmatpush1.msra.mxu0 0.0
        %5658 = vmatprep.subr.mxu0 0.0
        %5659 = vmatpush1.msra.mxu0 0.0
        %5660 = vmatprep.subr.mxu0 0.0
        %5661 = vmatpush1.msra.mxu0 0.0
        %5662 = vmatprep.subr.mxu0 0.0
        %5663 = vmatpush1.msra.mxu0 0.0
        %5664 = vmatprep.subr.mxu0 0.0
        %5665 = vmatpush1.msra.mxu0 0.0
        %5666 = vmatprep.subr.mxu0 0.0
        %5667 = vmatpush1.msra.mxu0 0.0
        %5668 = vmatprep.mubr.f32.mxu0 0.0
        %5669 = vmatmul.mubr.f32.gmra.mrb[0].mxu0 %v5593
        %v5670 = vpop.f32.mrb[0].mxu0
        %v5671 = vadd.f32 %v5590, %v5670
        %v5672 = vpop.f32.mrb[0].mxu0
        %5673 = vmatprep.mubr.f32.mxu0 0.0
        %5674 = vmatmul.mubr.f32.gmra.mrb[0].mxu0 %v5596
        %v5675 = vpop.f32.mrb[0].mxu0
        %v5676 = vadd.f32 %v5590, %v5675
        %v5677 = vpop.f32.mrb[0].mxu0
        %5678 = vmatprep.mubr.f32.mxu0 0.0
        %5679 = vmatmul.mubr.f32.gmra.mrb[0].mxu0 %v5599
        %v5680 = vpop.f32.mrb[0].mxu0
        %v5681 = vadd.f32 %v5590, %v5680
        %v5682 = vpop.f32.mrb[0].mxu0
        %5683 = vdwg.mxu0
        %5684 = vst.msk [vmem:[%s1301] sm:$0xff] %vm1395, %v5671
        %5685 = vst.msk [vmem:[%s1301 + $0x8] sm:$0xff] %vm1395, %v5676
        %5686 = vst.msk [vmem:[%s1301 + $0x10] sm:$0xff] %vm1395, %v5681
        %p5687 = scmp.lt.s32.totalorder %s89, 1
        %s5688 = scalar_select %p5687, %s89, 1
        %s5689 = smul.addr %s5688, 3
        %s5690 = smul.addr %s5689, 8
        %s5691 = scalar_lea.vmem %s67, %s5690
        // Predicated region
        $region237: #{forward.1} parent=151 // pred_check
          %p5692 = pneg %p805
        $region238: #{forward.1} parent=151 // pred_check_branch
          %5694 = sbr.rel (%p5692) target = $region240
        $region239: #{forward.1} parent=151 // pred_region
          _
        $region240: #{forward.1} parent=151 // pred_fallthru
          _
      $region152: #{forward.1} parent=5 // pred_fallthru
        _
      %p5695 = scmp.le.s32.totalorder 2, %s84
      // Predicated region
      $region241: #{forward.1} parent=5 // pred_check
        %p5696 = pneg %p5695
      $region242: #{forward.1} parent=5 // pred_check_branch
        %5698 = sbr.rel (%p5696) target = $region244
      $region243: #{forward.1} parent=5 // pred_region
        %s5699 = ssub.s32 %s84, 2
        // Predicated region
        $region245: #{forward.1} parent=243 // pred_check
          %p5700 = pneg %p811
        $region246: #{forward.1} parent=243 // pred_check_branch
          %5702 = sbr.rel (%p5700) target = $region248
        $region247: #{forward.1} parent=243 // pred_region
          %p5703 = scmp.lt.s32.totalorder %s90, 1
          %s5704 = scalar_select %p5703, %s90, 1
          %s5705 = smul.addr %s5704, 3
          %s5706 = smul.addr %s5705, 8
          %s5707 = scalar_lea.vmem %s67, %s5706
        $region248: #{forward.1} parent=243 // pred_fallthru
          _
      $region244: #{forward.1} parent=5 // pred_fallthru
        _
    $region6: #{forward.1} parent=1 // loop_footer
      %s88 = sadd.s32 1, %s84
    $region7: #{forward.1} parent=1 // loop_footer_branch
      %83 = sbr.rel target = $region3
    $region8: #{forward.1} parent=1 // loop_exit
      _
    %5708 = vsyncpa [#allocation3], 1
    %s5709 = scalar_lea.sflag [#allocation3], 1
    %5710 = vsyncpa %s5709, 1
    %5711 = vsyncpa [#allocation5], 1
    %5712 = vsyncpa [#allocation8], 1
    %5713 = vsyncpa [#allocation11], 1
    %5714 = vsyncpa [#allocation14], 1
    %5715 = vsyncpa [#allocation17], 1
    %5716 = vsyncpa [#allocation20], 1
    %5717 = vsyncpa [#allocation23], 1
    %5718 = vsyncpa [#allocation26], 1
    %5719 = vsyncpa [#allocation29], 1
    %5720 = vsyncpa [#allocation32], 1

</llo_original>
